<compile_context>
chip_gen: v7x
topology: tpu7x:2x2x1
jax: 0.10.0
libtpu: 0.0.40
codegen_flags: <defaults>
</compile_context>

<pallas_src>
import jax
import jax.numpy as jnp
from jax.experimental import pallas as pl
from jax.experimental.pallas import tpu as pltpu


# ----------------------------- Pallas kernels ------------------------------

def _conv_stack_kernel(x_ref, w1_ref, b1_ref, w2_ref, b2_ref, o_ref):
    # x: (28, 28, 1) f32, w1: (9, 32) f32, b1: (1, 32) f32,
    # w2: (288, 64) bf16 (rows ordered (dy, dx, ci)), b2: (1, 64) f32
    # o: (12, 24, 64) f32  (conv2+ReLU output, already max-pooled over H pairs)
    x = x_ref[...]
    w1 = w1_ref[...]

    # conv1 + ReLU via 9 broadcasted tap-FMAs (Cin == 1); y1 stays on-chip.
    y1 = jnp.zeros((26, 26, 32), jnp.float32)
    for dy in range(3):
        for dx in range(3):
            t = dy * 3 + dx
            y1 = y1 + x[dy:dy + 26, dx:dx + 26, :] * w1[t:t + 1, :]
    y1 = jnp.maximum(y1 + b1_ref[...], 0.0)                       # (26, 26, 32)

    # conv2 + ReLU as 9 shifted matmuls accumulated in f32.
    # For each dx shift, flatten (h, w) so every tap is a contiguous,
    # 8-aligned row slice of a 2D operand (lane-/tile-friendly).
    ys = [y1[:, dx:dx + 24, :].reshape(624, 32) for dx in range(3)]
    w2 = w2_ref[...]                                              # (288, 64) bf16
    acc = jnp.zeros((576, 64), jnp.float32)
    for dy in range(3):
        for dx in range(3):
            t = dy * 3 + dx
            lhs = ys[dx][dy * 24:dy * 24 + 576, :].astype(jnp.bfloat16)
            acc = acc + jnp.dot(lhs, w2[t * 32:(t + 1) * 32, :],
                                preferred_element_type=jnp.float32)
    y2 = jnp.maximum(acc + b2_ref[...], 0.0)                      # (576, 64)

    # H-half of the 2x2 max-pool: rows r = ho*24 + wo, pool pairs ho=(2a, 2a+1).
    y2 = y2.reshape(12, 2, 24, 64)
    o_ref[...] = jnp.maximum(y2[:, 0], y2[:, 1])                  # (12, 24, 64)


def _mlp_head_kernel(x_ref, w1_ref, b1_ref, w2_ref, b2_ref, o_ref, h_acc):
    # Streams fc1's K axis over the grid; h_acc is a resident f32 accumulator.
    k = pl.program_id(0)

    @pl.when(k == 0)
    def _():
        h_acc[...] = jnp.zeros_like(h_acc)

    h_acc[...] += jnp.dot(x_ref[...], w1_ref[...],
                          preferred_element_type=jnp.float32)

    @pl.when(k == pl.num_programs(0) - 1)
    def _():
        h = jnp.maximum(h_acc[...] + b1_ref[...], 0.0)            # fc1 + ReLU
        logits = jnp.dot(h, w2_ref[...],
                         preferred_element_type=jnp.float32) + b2_ref[...]
        m = jnp.max(logits, axis=-1, keepdims=True)
        z = logits - m
        lse = jnp.log(jnp.sum(jnp.exp(z), axis=-1, keepdims=True))
        o_ref[...] = (z - lse).astype(o_ref.dtype)                # log_softmax


# ------------------------------ Pallas wrappers -----------------------------

def conv_stack(x_nhwc, w1r, b1, w2r, b2):
    # x_nhwc: (B, 28, 28, 1) f32 -> (B, 12, 24, 64) f32 (H-pooled conv2 output)
    B = x_nhwc.shape[0]
    return pl.pallas_call(
        _conv_stack_kernel,
        out_shape=jax.ShapeDtypeStruct((B, 12, 24, 64), jnp.float32),
        grid=(B,),
        in_specs=[
            pl.BlockSpec((None, 28, 28, 1), lambda i: (i, 0, 0, 0)),
            pl.BlockSpec((9, 32), lambda i: (0, 0)),
            pl.BlockSpec((1, 32), lambda i: (0, 0)),
            pl.BlockSpec((288, 64), lambda i: (0, 0)),
            pl.BlockSpec((1, 64), lambda i: (0, 0)),
        ],
        out_specs=pl.BlockSpec((None, 12, 24, 64), lambda i: (i, 0, 0, 0)),
        compiler_params=pltpu.CompilerParams(
            dimension_semantics=("parallel",)),
    )(x_nhwc, w1r, b1, w2r, b2)


def mlp_head(x_flat, w1, b1, w2, b2, *, k_tile=2304):
    # x_flat: (B, 9216) bf16, w1: (9216, 128) bf16, w2: (128, 10) f32 -> (B, 10)
    B, K = x_flat.shape
    H = w1.shape[1]
    N = w2.shape[1]
    nk = K // k_tile
    return pl.pallas_call(
        _mlp_head_kernel,
        out_shape=jax.ShapeDtypeStruct((B, N), jnp.float32),
        grid=(nk,),
        in_specs=[
            pl.BlockSpec((B, k_tile), lambda k: (0, k)),
            pl.BlockSpec((k_tile, H), lambda k: (k, 0)),
            pl.BlockSpec((1, H), lambda k: (0, 0)),
            pl.BlockSpec((H, N), lambda k: (0, 0)),
            pl.BlockSpec((1, N), lambda k: (0, 0)),
        ],
        out_specs=pl.BlockSpec((B, N), lambda k: (0, 0)),
        scratch_shapes=[pltpu.VMEM((B, H), jnp.float32)],
        compiler_params=pltpu.CompilerParams(
            dimension_semantics=("arbitrary",)),
    )(x_flat, w1, b1, w2, b2)


# --------------------------------- Forward ----------------------------------

def net_forward(x_nchw, kparams):
    # x_nchw: (B, 1, 28, 28) f32 -- same convention as the PyTorch module.
    w1r, b1, w2r, b2, fw1, fb1, fw2, fb2 = kparams
    B = x_nchw.shape[0]
    x = jnp.transpose(x_nchw, (0, 2, 3, 1))                 # NCHW -> NHWC (free: C=1)

    hp = conv_stack(x, w1r, b1, w2r, b2)                    # (B, 12, 24, 64)

    # W-half of the 2x2 max-pool + flatten (tiny XLA glue, ~150KB).
    pooled = jnp.maximum(hp[:, :, 0::2, :], hp[:, :, 1::2, :])   # (B, 12, 12, 64)
    # dropout1: identity (eval mode)
    flat = pooled.reshape(B, 12 * 12 * 64).astype(jnp.bfloat16)  # NHWC flatten
    # (fw1's rows were permuted at prep time to match this NHWC order, so this
    #  is bit-equivalent to torch.flatten(x, 1) followed by the torch fc1.)

    # fc1 + ReLU, dropout2 (identity), fc2, log_softmax
    # TODO(synk): training-mode dropout (RNG masks) not implemented; eval semantics used.
    return mlp_head(flat, fw1, fb1, fw2, fb2)               # (B, 10)


# ------------------------------ Parameters -----------------------------------

def init_params(key):
    """Random parameters in the PyTorch layout (Cout,Cin,kh,kw / out,in)."""
    ks = jax.random.split(key, 8)
    conv1_w = jax.random.normal(ks[0], (32, 1, 3, 3), jnp.float32) * (1.0 / 3.0)
    conv1_b = jax.random.normal(ks[1], (32,), jnp.float32) * 0.01
    conv2_w = jax.random.normal(ks[2], (64, 32, 3, 3), jnp.float32) * (1.0 / 17.0)
    conv2_b = jax.random.normal(ks[3], (64,), jnp.float32) * 0.01
    fc1_w = jax.random.normal(ks[4], (128, 9216), jnp.float32) * (1.0 / 96.0)
    fc1_b = jax.random.normal(ks[5], (128,), jnp.float32) * 0.01
    fc2_w = jax.random.normal(ks[6], (10, 128), jnp.float32) * (1.0 / jnp.sqrt(128.0))
    fc2_b = jax.random.normal(ks[7], (10,), jnp.float32) * 0.01
    return (conv1_w, conv1_b, conv2_w, conv2_b, fc1_w, fc1_b, fc2_w, fc2_b)


def prepare_params(torch_params):
    """One-time conversion to kernel-friendly layouts (outside the hot path)."""
    c1w, c1b, c2w, c2b, f1w, f1b, f2w, f2b = torch_params
    # conv weights -> (kh, kw, cin, cout), flattened to rows ordered (dy, dx, ci).
    w1r = jnp.transpose(c1w, (2, 3, 1, 0)).reshape(9, 32)
    b1 = c1b.reshape(1, 32)
    w2r = jnp.transpose(c2w, (2, 3, 1, 0)).reshape(288, 64).astype(jnp.bfloat16)
    b2 = c2b.reshape(1, 64)
    # fc1: (out,in) -> (in,out); permute rows from torch's (c,h,w) flatten order
    # to the kernel's NHWC (h,w,c) order so no runtime transpose is needed;
    # store bf16 to halve the dominant weight DMA.
    fw1 = jnp.transpose(f1w)                                  # (9216, 128), (c,h,w) rows
    fw1 = fw1.reshape(64, 12, 12, 128).transpose(1, 2, 0, 3).reshape(9216, 128)
    fw1 = fw1.astype(jnp.bfloat16)
    fb1 = f1b.reshape(1, 128)
    fw2 = jnp.transpose(f2w)                                  # (128, 10) f32 (tiny)
    fb2 = f2b.reshape(1, 10)
    return (w1r, b1, w2r, b2, fw1, fb1, fw2, fb2)


if __name__ == "__main__":
    key = jax.random.PRNGKey(0)
    pkey, xkey = jax.random.split(key)
    kparams = prepare_params(init_params(pkey))
    # fc1 expects 9216 = 64 * 12 * 12 features, which pins the input to 1x28x28.
    x = jax.random.normal(xkey, (2, 1, 28, 28), jnp.float32)

    out = jax.jit(net_forward)(x, kparams)
    out = jax.block_until_ready(out)

    assert out.shape == (2, 10), out.shape
    assert bool(jnp.all(jnp.isfinite(out)))
    # rows of log_softmax must exponentiate-sum to 1
    assert bool(jnp.allclose(jnp.sum(jnp.exp(out), axis=1), 1.0, atol=1e-3))
    print("KERNEL_OK")
</pallas_src>

<mosaic_0001>
module attributes {stable_mosaic.version = 11 : i64} {
  func.func @_conv_stack_kernel(%arg0: i32, %arg1: memref<1x28x28x1xf32, #tpu.memory_space<vmem>>, %arg2: memref<9x32xf32, #tpu.memory_space<vmem>>, %arg3: memref<1x32xf32, #tpu.memory_space<vmem>>, %arg4: memref<288x64xbf16, #tpu.memory_space<vmem>>, %arg5: memref<1x64xf32, #tpu.memory_space<vmem>>, %arg6: memref<1x12x24x64xf32, #tpu.memory_space<vmem>>) attributes {dimension_semantics = [#tpu.dimension_semantics<parallel>], iteration_bounds = array<i64: 2>, scalar_prefetch = 0 : i64, scratch_operands = 0 : i64, tpu.core_type = #tpu.core_type<tc>, window_params = [{transform_indices = @transform_0, window_bounds = array<i64: 1, 28, 28, 1>}, {pipeline_mode = #tpu.pipeline_mode<synchronous>, transform_indices = @transform_1, window_bounds = array<i64: 9, 32>}, {pipeline_mode = #tpu.pipeline_mode<synchronous>, transform_indices = @transform_2, window_bounds = array<i64: 1, 32>}, {pipeline_mode = #tpu.pipeline_mode<synchronous>, transform_indices = @transform_3, window_bounds = array<i64: 288, 64>}, {pipeline_mode = #tpu.pipeline_mode<synchronous>, transform_indices = @transform_4, window_bounds = array<i64: 1, 64>}, {transform_indices = @transform_5, window_bounds = array<i64: 1, 12, 24, 64>}]} {
    %c0 = arith.constant 0 : index
    %c0_0 = arith.constant 0 : index
    %c0_1 = arith.constant 0 : index
    %c0_2 = arith.constant 0 : index
    %0 = vector.load %arg1[%c0, %c0_0, %c0_1, %c0_2] : memref<1x28x28x1xf32, #tpu.memory_space<vmem>>, vector<1x28x28x1xf32>
    %1 = vector.shape_cast %0 : vector<1x28x28x1xf32> to vector<28x28x1xf32>
    %c0_3 = arith.constant 0 : index
    %c0_4 = arith.constant 0 : index
    %2 = vector.load %arg2[%c0_3, %c0_4] : memref<9x32xf32, #tpu.memory_space<vmem>>, vector<9x32xf32>
    %cst = arith.constant 0.000000e+00 : f32
    %3 = vector.broadcast %cst : f32 to vector<26x26x32xf32>
    %4 = vector.extract_strided_slice %1 {offsets = [0, 0, 0], sizes = [26, 26, 1], strides = [1, 1, 1]} : vector<28x28x1xf32> to vector<26x26x1xf32>
    %5 = vector.extract_strided_slice %2 {offsets = [0, 0], sizes = [1, 32], strides = [1, 1]} : vector<9x32xf32> to vector<1x32xf32>
    %6 = vector.shape_cast %5 : vector<1x32xf32> to vector<1x1x32xf32>
    %7 = vector.broadcast %4 : vector<26x26x1xf32> to vector<26x26x32xf32>
    %8 = vector.broadcast %6 : vector<1x1x32xf32> to vector<26x26x32xf32>
    %9 = arith.mulf %7, %8 : vector<26x26x32xf32>
    %10 = arith.addf %3, %9 : vector<26x26x32xf32>
    %11 = vector.extract_strided_slice %1 {offsets = [0, 1, 0], sizes = [26, 26, 1], strides = [1, 1, 1]} : vector<28x28x1xf32> to vector<26x26x1xf32>
    %12 = vector.extract_strided_slice %2 {offsets = [1, 0], sizes = [1, 32], strides = [1, 1]} : vector<9x32xf32> to vector<1x32xf32>
    %13 = vector.shape_cast %12 : vector<1x32xf32> to vector<1x1x32xf32>
    %14 = vector.broadcast %11 : vector<26x26x1xf32> to vector<26x26x32xf32>
    %15 = vector.broadcast %13 : vector<1x1x32xf32> to vector<26x26x32xf32>
    %16 = arith.mulf %14, %15 : vector<26x26x32xf32>
    %17 = arith.addf %10, %16 : vector<26x26x32xf32>
    %18 = vector.extract_strided_slice %1 {offsets = [0, 2, 0], sizes = [26, 26, 1], strides = [1, 1, 1]} : vector<28x28x1xf32> to vector<26x26x1xf32>
    %19 = vector.extract_strided_slice %2 {offsets = [2, 0], sizes = [1, 32], strides = [1, 1]} : vector<9x32xf32> to vector<1x32xf32>
    %20 = vector.shape_cast %19 : vector<1x32xf32> to vector<1x1x32xf32>
    %21 = vector.broadcast %18 : vector<26x26x1xf32> to vector<26x26x32xf32>
    %22 = vector.broadcast %20 : vector<1x1x32xf32> to vector<26x26x32xf32>
    %23 = arith.mulf %21, %22 : vector<26x26x32xf32>
    %24 = arith.addf %17, %23 : vector<26x26x32xf32>
    %25 = vector.extract_strided_slice %1 {offsets = [1, 0, 0], sizes = [26, 26, 1], strides = [1, 1, 1]} : vector<28x28x1xf32> to vector<26x26x1xf32>
    %26 = vector.extract_strided_slice %2 {offsets = [3, 0], sizes = [1, 32], strides = [1, 1]} : vector<9x32xf32> to vector<1x32xf32>
    %27 = vector.shape_cast %26 : vector<1x32xf32> to vector<1x1x32xf32>
    %28 = vector.broadcast %25 : vector<26x26x1xf32> to vector<26x26x32xf32>
    %29 = vector.broadcast %27 : vector<1x1x32xf32> to vector<26x26x32xf32>
    %30 = arith.mulf %28, %29 : vector<26x26x32xf32>
    %31 = arith.addf %24, %30 : vector<26x26x32xf32>
    %32 = vector.extract_strided_slice %1 {offsets = [1, 1, 0], sizes = [26, 26, 1], strides = [1, 1, 1]} : vector<28x28x1xf32> to vector<26x26x1xf32>
    %33 = vector.extract_strided_slice %2 {offsets = [4, 0], sizes = [1, 32], strides = [1, 1]} : vector<9x32xf32> to vector<1x32xf32>
    %34 = vector.shape_cast %33 : vector<1x32xf32> to vector<1x1x32xf32>
    %35 = vector.broadcast %32 : vector<26x26x1xf32> to vector<26x26x32xf32>
    %36 = vector.broadcast %34 : vector<1x1x32xf32> to vector<26x26x32xf32>
    %37 = arith.mulf %35, %36 : vector<26x26x32xf32>
    %38 = arith.addf %31, %37 : vector<26x26x32xf32>
    %39 = vector.extract_strided_slice %1 {offsets = [1, 2, 0], sizes = [26, 26, 1], strides = [1, 1, 1]} : vector<28x28x1xf32> to vector<26x26x1xf32>
    %40 = vector.extract_strided_slice %2 {offsets = [5, 0], sizes = [1, 32], strides = [1, 1]} : vector<9x32xf32> to vector<1x32xf32>
    %41 = vector.shape_cast %40 : vector<1x32xf32> to vector<1x1x32xf32>
    %42 = vector.broadcast %39 : vector<26x26x1xf32> to vector<26x26x32xf32>
    %43 = vector.broadcast %41 : vector<1x1x32xf32> to vector<26x26x32xf32>
    %44 = arith.mulf %42, %43 : vector<26x26x32xf32>
    %45 = arith.addf %38, %44 : vector<26x26x32xf32>
    %46 = vector.extract_strided_slice %1 {offsets = [2, 0, 0], sizes = [26, 26, 1], strides = [1, 1, 1]} : vector<28x28x1xf32> to vector<26x26x1xf32>
    %47 = vector.extract_strided_slice %2 {offsets = [6, 0], sizes = [1, 32], strides = [1, 1]} : vector<9x32xf32> to vector<1x32xf32>
    %48 = vector.shape_cast %47 : vector<1x32xf32> to vector<1x1x32xf32>
    %49 = vector.broadcast %46 : vector<26x26x1xf32> to vector<26x26x32xf32>
    %50 = vector.broadcast %48 : vector<1x1x32xf32> to vector<26x26x32xf32>
    %51 = arith.mulf %49, %50 : vector<26x26x32xf32>
    %52 = arith.addf %45, %51 : vector<26x26x32xf32>
    %53 = vector.extract_strided_slice %1 {offsets = [2, 1, 0], sizes = [26, 26, 1], strides = [1, 1, 1]} : vector<28x28x1xf32> to vector<26x26x1xf32>
    %54 = vector.extract_strided_slice %2 {offsets = [7, 0], sizes = [1, 32], strides = [1, 1]} : vector<9x32xf32> to vector<1x32xf32>
    %55 = vector.shape_cast %54 : vector<1x32xf32> to vector<1x1x32xf32>
    %56 = vector.broadcast %53 : vector<26x26x1xf32> to vector<26x26x32xf32>
    %57 = vector.broadcast %55 : vector<1x1x32xf32> to vector<26x26x32xf32>
    %58 = arith.mulf %56, %57 : vector<26x26x32xf32>
    %59 = arith.addf %52, %58 : vector<26x26x32xf32>
    %60 = vector.extract_strided_slice %1 {offsets = [2, 2, 0], sizes = [26, 26, 1], strides = [1, 1, 1]} : vector<28x28x1xf32> to vector<26x26x1xf32>
    %61 = vector.extract_strided_slice %2 {offsets = [8, 0], sizes = [1, 32], strides = [1, 1]} : vector<9x32xf32> to vector<1x32xf32>
    %62 = vector.shape_cast %61 : vector<1x32xf32> to vector<1x1x32xf32>
    %63 = vector.broadcast %60 : vector<26x26x1xf32> to vector<26x26x32xf32>
    %64 = vector.broadcast %62 : vector<1x1x32xf32> to vector<26x26x32xf32>
    %65 = arith.mulf %63, %64 : vector<26x26x32xf32>
    %66 = arith.addf %59, %65 : vector<26x26x32xf32>
    %c0_5 = arith.constant 0 : index
    %c0_6 = arith.constant 0 : index
    %67 = vector.load %arg3[%c0_5, %c0_6] : memref<1x32xf32, #tpu.memory_space<vmem>>, vector<1x32xf32>
    %68 = vector.shape_cast %67 : vector<1x32xf32> to vector<1x1x32xf32>
    %69 = vector.broadcast %68 : vector<1x1x32xf32> to vector<26x26x32xf32>
    %70 = arith.addf %66, %69 : vector<26x26x32xf32>
    %cst_7 = arith.constant 0.000000e+00 : f32
    %71 = vector.broadcast %cst_7 : f32 to vector<26x26x32xf32>
    %72 = arith.maximumf %70, %71 : vector<26x26x32xf32>
    %73 = vector.extract_strided_slice %72 {offsets = [0, 0, 0], sizes = [26, 24, 32], strides = [1, 1, 1]} : vector<26x26x32xf32> to vector<26x24x32xf32>
    %74 = vector.shape_cast %73 : vector<26x24x32xf32> to vector<624x32xf32>
    %75 = vector.extract_strided_slice %72 {offsets = [0, 1, 0], sizes = [26, 24, 32], strides = [1, 1, 1]} : vector<26x26x32xf32> to vector<26x24x32xf32>
    %76 = vector.shape_cast %75 : vector<26x24x32xf32> to vector<624x32xf32>
    %77 = vector.extract_strided_slice %72 {offsets = [0, 2, 0], sizes = [26, 24, 32], strides = [1, 1, 1]} : vector<26x26x32xf32> to vector<26x24x32xf32>
    %78 = vector.shape_cast %77 : vector<26x24x32xf32> to vector<624x32xf32>
    %c0_8 = arith.constant 0 : index
    %c0_9 = arith.constant 0 : index
    %79 = vector.load %arg4[%c0_8, %c0_9] : memref<288x64xbf16, #tpu.memory_space<vmem>>, vector<288x64xbf16>
    %cst_10 = arith.constant 0.000000e+00 : f32
    %80 = vector.broadcast %cst_10 : f32 to vector<576x64xf32>
    %81 = vector.extract_strided_slice %74 {offsets = [0, 0], sizes = [576, 32], strides = [1, 1]} : vector<624x32xf32> to vector<576x32xf32>
    %82 = arith.truncf %81 : vector<576x32xf32> to vector<576x32xbf16>
    %83 = vector.extract_strided_slice %79 {offsets = [0, 0], sizes = [32, 64], strides = [1, 1]} : vector<288x64xbf16> to vector<32x64xbf16>
    %cst_11 = arith.constant dense<0.000000e+00> : vector<576x64xf32>
    %84 = tpu.matmul %82, %83, %cst_11 {dimension_numbers = #tpu.dot_dimension_numbers<[1], [0], [0], [1], [0, 0, 1, 1], [], []>} : vector<576x32xbf16>, vector<32x64xbf16>, vector<576x64xf32> -> vector<576x64xf32>
    %85 = arith.addf %80, %84 : vector<576x64xf32>
    %86 = vector.extract_strided_slice %76 {offsets = [0, 0], sizes = [576, 32], strides = [1, 1]} : vector<624x32xf32> to vector<576x32xf32>
    %87 = arith.truncf %86 : vector<576x32xf32> to vector<576x32xbf16>
    %88 = vector.extract_strided_slice %79 {offsets = [32, 0], sizes = [32, 64], strides = [1, 1]} : vector<288x64xbf16> to vector<32x64xbf16>
    %cst_12 = arith.constant dense<0.000000e+00> : vector<576x64xf32>
    %89 = tpu.matmul %87, %88, %cst_12 {dimension_numbers = #tpu.dot_dimension_numbers<[1], [0], [0], [1], [0, 0, 1, 1], [], []>} : vector<576x32xbf16>, vector<32x64xbf16>, vector<576x64xf32> -> vector<576x64xf32>
    %90 = arith.addf %85, %89 : vector<576x64xf32>
    %91 = vector.extract_strided_slice %78 {offsets = [0, 0], sizes = [576, 32], strides = [1, 1]} : vector<624x32xf32> to vector<576x32xf32>
    %92 = arith.truncf %91 : vector<576x32xf32> to vector<576x32xbf16>
    %93 = vector.extract_strided_slice %79 {offsets = [64, 0], sizes = [32, 64], strides = [1, 1]} : vector<288x64xbf16> to vector<32x64xbf16>
    %cst_13 = arith.constant dense<0.000000e+00> : vector<576x64xf32>
    %94 = tpu.matmul %92, %93, %cst_13 {dimension_numbers = #tpu.dot_dimension_numbers<[1], [0], [0], [1], [0, 0, 1, 1], [], []>} : vector<576x32xbf16>, vector<32x64xbf16>, vector<576x64xf32> -> vector<576x64xf32>
    %95 = arith.addf %90, %94 : vector<576x64xf32>
    %96 = vector.extract_strided_slice %74 {offsets = [24, 0], sizes = [576, 32], strides = [1, 1]} : vector<624x32xf32> to vector<576x32xf32>
    %97 = arith.truncf %96 : vector<576x32xf32> to vector<576x32xbf16>
    %98 = vector.extract_strided_slice %79 {offsets = [96, 0], sizes = [32, 64], strides = [1, 1]} : vector<288x64xbf16> to vector<32x64xbf16>
    %cst_14 = arith.constant dense<0.000000e+00> : vector<576x64xf32>
    %99 = tpu.matmul %97, %98, %cst_14 {dimension_numbers = #tpu.dot_dimension_numbers<[1], [0], [0], [1], [0, 0, 1, 1], [], []>} : vector<576x32xbf16>, vector<32x64xbf16>, vector<576x64xf32> -> vector<576x64xf32>
    %100 = arith.addf %95, %99 : vector<576x64xf32>
    %101 = vector.extract_strided_slice %76 {offsets = [24, 0], sizes = [576, 32], strides = [1, 1]} : vector<624x32xf32> to vector<576x32xf32>
    %102 = arith.truncf %101 : vector<576x32xf32> to vector<576x32xbf16>
    %103 = vector.extract_strided_slice %79 {offsets = [128, 0], sizes = [32, 64], strides = [1, 1]} : vector<288x64xbf16> to vector<32x64xbf16>
    %cst_15 = arith.constant dense<0.000000e+00> : vector<576x64xf32>
    %104 = tpu.matmul %102, %103, %cst_15 {dimension_numbers = #tpu.dot_dimension_numbers<[1], [0], [0], [1], [0, 0, 1, 1], [], []>} : vector<576x32xbf16>, vector<32x64xbf16>, vector<576x64xf32> -> vector<576x64xf32>
    %105 = arith.addf %100, %104 : vector<576x64xf32>
    %106 = vector.extract_strided_slice %78 {offsets = [24, 0], sizes = [576, 32], strides = [1, 1]} : vector<624x32xf32> to vector<576x32xf32>
    %107 = arith.truncf %106 : vector<576x32xf32> to vector<576x32xbf16>
    %108 = vector.extract_strided_slice %79 {offsets = [160, 0], sizes = [32, 64], strides = [1, 1]} : vector<288x64xbf16> to vector<32x64xbf16>
    %cst_16 = arith.constant dense<0.000000e+00> : vector<576x64xf32>
    %109 = tpu.matmul %107, %108, %cst_16 {dimension_numbers = #tpu.dot_dimension_numbers<[1], [0], [0], [1], [0, 0, 1, 1], [], []>} : vector<576x32xbf16>, vector<32x64xbf16>, vector<576x64xf32> -> vector<576x64xf32>
    %110 = arith.addf %105, %109 : vector<576x64xf32>
    %111 = vector.extract_strided_slice %74 {offsets = [48, 0], sizes = [576, 32], strides = [1, 1]} : vector<624x32xf32> to vector<576x32xf32>
    %112 = arith.truncf %111 : vector<576x32xf32> to vector<576x32xbf16>
    %113 = vector.extract_strided_slice %79 {offsets = [192, 0], sizes = [32, 64], strides = [1, 1]} : vector<288x64xbf16> to vector<32x64xbf16>
    %cst_17 = arith.constant dense<0.000000e+00> : vector<576x64xf32>
    %114 = tpu.matmul %112, %113, %cst_17 {dimension_numbers = #tpu.dot_dimension_numbers<[1], [0], [0], [1], [0, 0, 1, 1], [], []>} : vector<576x32xbf16>, vector<32x64xbf16>, vector<576x64xf32> -> vector<576x64xf32>
    %115 = arith.addf %110, %114 : vector<576x64xf32>
    %116 = vector.extract_strided_slice %76 {offsets = [48, 0], sizes = [576, 32], strides = [1, 1]} : vector<624x32xf32> to vector<576x32xf32>
    %117 = arith.truncf %116 : vector<576x32xf32> to vector<576x32xbf16>
    %118 = vector.extract_strided_slice %79 {offsets = [224, 0], sizes = [32, 64], strides = [1, 1]} : vector<288x64xbf16> to vector<32x64xbf16>
    %cst_18 = arith.constant dense<0.000000e+00> : vector<576x64xf32>
    %119 = tpu.matmul %117, %118, %cst_18 {dimension_numbers = #tpu.dot_dimension_numbers<[1], [0], [0], [1], [0, 0, 1, 1], [], []>} : vector<576x32xbf16>, vector<32x64xbf16>, vector<576x64xf32> -> vector<576x64xf32>
    %120 = arith.addf %115, %119 : vector<576x64xf32>
    %121 = vector.extract_strided_slice %78 {offsets = [48, 0], sizes = [576, 32], strides = [1, 1]} : vector<624x32xf32> to vector<576x32xf32>
    %122 = arith.truncf %121 : vector<576x32xf32> to vector<576x32xbf16>
    %123 = vector.extract_strided_slice %79 {offsets = [256, 0], sizes = [32, 64], strides = [1, 1]} : vector<288x64xbf16> to vector<32x64xbf16>
    %cst_19 = arith.constant dense<0.000000e+00> : vector<576x64xf32>
    %124 = tpu.matmul %122, %123, %cst_19 {dimension_numbers = #tpu.dot_dimension_numbers<[1], [0], [0], [1], [0, 0, 1, 1], [], []>} : vector<576x32xbf16>, vector<32x64xbf16>, vector<576x64xf32> -> vector<576x64xf32>
    %125 = arith.addf %120, %124 : vector<576x64xf32>
    %c0_20 = arith.constant 0 : index
    %c0_21 = arith.constant 0 : index
    %126 = vector.load %arg5[%c0_20, %c0_21] : memref<1x64xf32, #tpu.memory_space<vmem>>, vector<1x64xf32>
    %127 = vector.broadcast %126 : vector<1x64xf32> to vector<576x64xf32>
    %128 = arith.addf %125, %127 : vector<576x64xf32>
    %cst_22 = arith.constant 0.000000e+00 : f32
    %129 = vector.broadcast %cst_22 : f32 to vector<576x64xf32>
    %130 = arith.maximumf %128, %129 : vector<576x64xf32>
    %131 = vector.shape_cast %130 : vector<576x64xf32> to vector<12x2x24x64xf32>
    %132 = vector.extract_strided_slice %131 {offsets = [0, 0, 0, 0], sizes = [12, 1, 24, 64], strides = [1, 1, 1, 1]} : vector<12x2x24x64xf32> to vector<12x1x24x64xf32>
    %133 = vector.shape_cast %132 : vector<12x1x24x64xf32> to vector<12x24x64xf32>
    %134 = vector.extract_strided_slice %131 {offsets = [0, 1, 0, 0], sizes = [12, 1, 24, 64], strides = [1, 1, 1, 1]} : vector<12x2x24x64xf32> to vector<12x1x24x64xf32>
    %135 = vector.shape_cast %134 : vector<12x1x24x64xf32> to vector<12x24x64xf32>
    %136 = arith.maximumf %133, %135 : vector<12x24x64xf32>
    %c0_23 = arith.constant 0 : index
    %c0_24 = arith.constant 0 : index
    %c0_25 = arith.constant 0 : index
    %c0_26 = arith.constant 0 : index
    %137 = vector.load %arg6[%c0_23, %c0_24, %c0_25, %c0_26] : memref<1x12x24x64xf32, #tpu.memory_space<vmem>>, vector<1x12x24x64xf32>
    %138 = vector.shape_cast %137 : vector<1x12x24x64xf32> to vector<12x24x64xf32>
    %139 = vector.shape_cast %136 : vector<12x24x64xf32> to vector<1x12x24x64xf32>
    tpu.vector_store %arg6[%c0_23, %c0_24, %c0_25, %c0_26], %139 {strides = array<i32>} : memref<1x12x24x64xf32, #tpu.memory_space<vmem>>, vector<1x12x24x64xf32>,
    return
  }
  func.func @transform_0(%arg0: i32) -> (i32, i32, i32, i32) {
    %c0_i32 = arith.constant 0 : i32
    %c0_i32_0 = arith.constant 0 : i32
    %c0_i32_1 = arith.constant 0 : i32
    %c0_i32_2 = arith.constant 0 : i32
    return %arg0, %c0_i32, %c0_i32_0, %c0_i32_1 : i32, i32, i32, i32
  }
  func.func @transform_1(%arg0: i32) -> (i32, i32) {
    %c0_i32 = arith.constant 0 : i32
    %c0_i32_0 = arith.constant 0 : i32
    %c0_i32_1 = arith.constant 0 : i32
    return %c0_i32, %c0_i32_0 : i32, i32
  }
  func.func @transform_2(%arg0: i32) -> (i32, i32) {
    %c0_i32 = arith.constant 0 : i32
    %c0_i32_0 = arith.constant 0 : i32
    %c0_i32_1 = arith.constant 0 : i32
    return %c0_i32, %c0_i32_0 : i32, i32
  }
  func.func @transform_3(%arg0: i32) -> (i32, i32) {
    %c0_i32 = arith.constant 0 : i32
    %c0_i32_0 = arith.constant 0 : i32
    %c0_i32_1 = arith.constant 0 : i32
    return %c0_i32, %c0_i32_0 : i32, i32
  }
  func.func @transform_4(%arg0: i32) -> (i32, i32) {
    %c0_i32 = arith.constant 0 : i32
    %c0_i32_0 = arith.constant 0 : i32
    %c0_i32_1 = arith.constant 0 : i32
    return %c0_i32, %c0_i32_0 : i32, i32
  }
  func.func @transform_5(%arg0: i32) -> (i32, i32, i32, i32) {
    %c0_i32 = arith.constant 0 : i32
    %c0_i32_0 = arith.constant 0 : i32
    %c0_i32_1 = arith.constant 0 : i32
    %c0_i32_2 = arith.constant 0 : i32
    return %arg0, %c0_i32, %c0_i32_0, %c0_i32_1 : i32, i32, i32, i32
  }
}

module attributes {stable_mosaic.version = 11 : i64} {
  func.func @_mlp_head_kernel(%arg0: i32, %arg1: memref<2x2304xbf16, #tpu.memory_space<vmem>>, %arg2: memref<2304x128xbf16, #tpu.memory_space<vmem>>, %arg3: memref<1x128xf32, #tpu.memory_space<vmem>>, %arg4: memref<128x10xf32, #tpu.memory_space<vmem>>, %arg5: memref<1x10xf32, #tpu.memory_space<vmem>>, %arg6: memref<2x10xf32, #tpu.memory_space<vmem>>, %arg7: memref<2x128xf32, #tpu.memory_space<vmem>>) attributes {dimension_semantics = [#tpu.dimension_semantics<arbitrary>], iteration_bounds = array<i64: 4>, scalar_prefetch = 0 : i64, scratch_operands = 1 : i64, tpu.core_type = #tpu.core_type<tc>, window_params = [{transform_indices = @transform_0, window_bounds = array<i64: 2, 2304>}, {transform_indices = @transform_1, window_bounds = array<i64: 2304, 128>}, {pipeline_mode = #tpu.pipeline_mode<synchronous>, transform_indices = @transform_2, window_bounds = array<i64: 1, 128>}, {pipeline_mode = #tpu.pipeline_mode<synchronous>, transform_indices = @transform_3, window_bounds = array<i64: 128, 10>}, {pipeline_mode = #tpu.pipeline_mode<synchronous>, transform_indices = @transform_4, window_bounds = array<i64: 1, 10>}, {pipeline_mode = #tpu.pipeline_mode<synchronous>, transform_indices = @transform_5, window_bounds = array<i64: 2, 10>}]} {
    %c0_i32 = arith.constant 0 : i32
    %0 = arith.cmpi eq, %arg0, %c0_i32 : i32
    %1 = arith.extui %0 : i1 to i32
    %c0_i32_0 = arith.constant 0 : i32
    %2 = arith.cmpi ne, %1, %c0_i32_0 : i32
    scf.if %2 {
      %cst_9 = arith.constant 0.000000e+00 : f32
      %12 = vector.broadcast %cst_9 : f32 to vector<2x128xf32>
      %c0_10 = arith.constant 0 : index
      %c0_11 = arith.constant 0 : index
      %13 = vector.load %arg7[%c0_10, %c0_11] : memref<2x128xf32, #tpu.memory_space<vmem>>, vector<2x128xf32>
      tpu.vector_store %arg7[%c0_10, %c0_11], %12 {strides = array<i32>} : memref<2x128xf32, #tpu.memory_space<vmem>>, vector<2x128xf32>,
    } else {
    }
    %c0 = arith.constant 0 : index
    %c0_1 = arith.constant 0 : index
    %3 = vector.load %arg7[%c0, %c0_1] : memref<2x128xf32, #tpu.memory_space<vmem>>, vector<2x128xf32>
    %c0_2 = arith.constant 0 : index
    %c0_3 = arith.constant 0 : index
    %4 = vector.load %arg1[%c0_2, %c0_3] : memref<2x2304xbf16, #tpu.memory_space<vmem>>, vector<2x2304xbf16>
    %c0_4 = arith.constant 0 : index
    %c0_5 = arith.constant 0 : index
    %5 = vector.load %arg2[%c0_4, %c0_5] : memref<2304x128xbf16, #tpu.memory_space<vmem>>, vector<2304x128xbf16>
    %cst = arith.constant dense<0.000000e+00> : vector<2x128xf32>
    %6 = tpu.matmul %4, %5, %cst {dimension_numbers = #tpu.dot_dimension_numbers<[1], [0], [0], [1], [0, 0, 1, 1], [], []>} : vector<2x2304xbf16>, vector<2304x128xbf16>, vector<2x128xf32> -> vector<2x128xf32>
    %7 = arith.addf %3, %6 : vector<2x128xf32>
    %c0_6 = arith.constant 0 : index
    %c0_7 = arith.constant 0 : index
    %8 = vector.load %arg7[%c0_6, %c0_7] : memref<2x128xf32, #tpu.memory_space<vmem>>, vector<2x128xf32>
    tpu.vector_store %arg7[%c0_6, %c0_7], %7 {strides = array<i32>} : memref<2x128xf32, #tpu.memory_space<vmem>>, vector<2x128xf32>,
    %c3_i32 = arith.constant 3 : i32
    %9 = arith.cmpi eq, %arg0, %c3_i32 : i32
    %10 = arith.extui %9 : i1 to i32
    %c0_i32_8 = arith.constant 0 : i32
    %11 = arith.cmpi ne, %10, %c0_i32_8 : i32
    scf.if %11 {
      %c0_9 = arith.constant 0 : index
      %c0_10 = arith.constant 0 : index
      %12 = vector.load %arg7[%c0_9, %c0_10] : memref<2x128xf32, #tpu.memory_space<vmem>>, vector<2x128xf32>
      %c0_11 = arith.constant 0 : index
      %c0_12 = arith.constant 0 : index
      %13 = vector.load %arg3[%c0_11, %c0_12] : memref<1x128xf32, #tpu.memory_space<vmem>>, vector<1x128xf32>
      %14 = vector.broadcast %13 : vector<1x128xf32> to vector<2x128xf32>
      %15 = arith.addf %12, %14 : vector<2x128xf32>
      %cst_13 = arith.constant 0.000000e+00 : f32
      %16 = vector.broadcast %cst_13 : f32 to vector<2x128xf32>
      %17 = arith.maximumf %15, %16 : vector<2x128xf32>
      %c0_14 = arith.constant 0 : index
      %c0_15 = arith.constant 0 : index
      %18 = vector.load %arg4[%c0_14, %c0_15] : memref<128x10xf32, #tpu.memory_space<vmem>>, vector<128x10xf32>
      %cst_16 = arith.constant dense<0.000000e+00> : vector<2x10xf32>
      %19 = tpu.matmul %17, %18, %cst_16 {dimension_numbers = #tpu.dot_dimension_numbers<[1], [0], [0], [1], [0, 0, 1, 1], [], []>} : vector<2x128xf32>, vector<128x10xf32>, vector<2x10xf32> -> vector<2x10xf32>
      %c0_17 = arith.constant 0 : index
      %c0_18 = arith.constant 0 : index
      %20 = vector.load %arg5[%c0_17, %c0_18] : memref<1x10xf32, #tpu.memory_space<vmem>>, vector<1x10xf32>
      %21 = vector.broadcast %20 : vector<1x10xf32> to vector<2x10xf32>
      %22 = arith.addf %19, %21 : vector<2x10xf32>
      %cst_19 = arith.constant dense<0xFF800000> : vector<2xf32>
      %23 = vector.multi_reduction <maximumf>, %22, %cst_19 [1] : vector<2x10xf32> to vector<2xf32>
      %24 = vector.shape_cast %23 : vector<2xf32> to vector<2x1xf32>
      %25 = vector.broadcast %24 : vector<2x1xf32> to vector<2x10xf32>
      %26 = arith.subf %22, %25 : vector<2x10xf32>
      %27 = math.exp %26 : vector<2x10xf32>
      %cst_20 = arith.constant dense<0.000000e+00> : vector<2xf32>
      %28 = vector.multi_reduction <add>, %27, %cst_20 [1] : vector<2x10xf32> to vector<2xf32>
      %29 = vector.shape_cast %28 : vector<2xf32> to vector<2x1xf32>
      %30 = math.log %29 : vector<2x1xf32>
      %31 = vector.broadcast %30 : vector<2x1xf32> to vector<2x10xf32>
      %32 = arith.subf %26, %31 : vector<2x10xf32>
      %c0_21 = arith.constant 0 : index
      %c0_22 = arith.constant 0 : index
      %33 = vector.load %arg6[%c0_21, %c0_22] : memref<2x10xf32, #tpu.memory_space<vmem>>, vector<2x10xf32>
      tpu.vector_store %arg6[%c0_21, %c0_22], %32 {strides = array<i32>} : memref<2x10xf32, #tpu.memory_space<vmem>>, vector<2x10xf32>,
    } else {
    }
    return
  }
  func.func @transform_0(%arg0: i32) -> (i32, i32) {
    %c0_i32 = arith.constant 0 : i32
    %c0_i32_0 = arith.constant 0 : i32
    return %c0_i32, %arg0 : i32, i32
  }
  func.func @transform_1(%arg0: i32) -> (i32, i32) {
    %c0_i32 = arith.constant 0 : i32
    %c0_i32_0 = arith.constant 0 : i32
    return %arg0, %c0_i32 : i32, i32
  }
  func.func @transform_2(%arg0: i32) -> (i32, i32) {
    %c0_i32 = arith.constant 0 : i32
    %c0_i32_0 = arith.constant 0 : i32
    %c0_i32_1 = arith.constant 0 : i32
    return %c0_i32, %c0_i32_0 : i32, i32
  }
  func.func @transform_3(%arg0: i32) -> (i32, i32) {
    %c0_i32 = arith.constant 0 : i32
    %c0_i32_0 = arith.constant 0 : i32
    %c0_i32_1 = arith.constant 0 : i32
    return %c0_i32, %c0_i32_0 : i32, i32
  }
  func.func @transform_4(%arg0: i32) -> (i32, i32) {
    %c0_i32 = arith.constant 0 : i32
    %c0_i32_0 = arith.constant 0 : i32
    %c0_i32_1 = arith.constant 0 : i32
    return %c0_i32, %c0_i32_0 : i32, i32
  }
  func.func @transform_5(%arg0: i32) -> (i32, i32) {
    %c0_i32 = arith.constant 0 : i32
    %c0_i32_0 = arith.constant 0 : i32
    %c0_i32_1 = arith.constant 0 : i32
    return %c0_i32, %c0_i32_0 : i32, i32
  }
}

</mosaic_0001>

<llo_original>
// kernel: net_forward.3
$region0: #{net_forward.3}
  #allocation0 [shape = 'u32[]', space=smem, size = 0x4, offset = 0x4, fixed_abs, tag = 'smem constant byte address 0x4 - core index']
  #allocation1 [shape = 'u32[144,128]{1,0:T(1,128)}', space=vmem, size = 0x12000, scoped, tag = 'internal scratch']
  #allocation2 [shape = 'f32[2,128]{1,0:T(2,128)}', space=vmem, size = 0x400, scoped, tag = 'scratch operand']
  %s0 = inlined_call_operand.vmem [shape: bf16[2,9216], index: 0, kind: input, shape index: {}]
  %s1 = inlined_call_operand.vmem [shape: bf16[9216,128], index: 1, kind: input, shape index: {}]
  %s2 = inlined_call_operand.vmem [shape: f32[1,128], index: 2, kind: input, shape index: {}]
  %s3 = inlined_call_operand.vmem [shape: f32[128,10], index: 3, kind: input, shape index: {}]
  %s4 = inlined_call_operand.vmem [shape: f32[1,10], index: 4, kind: input, shape index: {}]
  %s5 = inlined_call_operand.hbm [shape: f32[2,10], index: 5, kind: output, shape index: {}]
  %s6 = sld [smem:[#allocation0]]
  $region61: #{net_forward.3} parent=0
    _
  %s8 = ssub.s32 1, %s6
  %s9 = scalar_select 0, %s8, %s6
  $region1: #{net_forward.3} parent=0
    #allocation3 [shape = 'u8[1024]{0}', space=vmem, size = 0x400, scoped, tag = 'output window, operand 0, single buffered']
    #allocation4 [shape = 's32[2]{0}', space=sflag, size = 0x8, scoped, tag = 'scoped memory for net_forward.3']
    %10 = vsyncpa [#allocation4], 0
    loop: start=0, step=1, limit=6
    $region2: #{net_forward.3} parent=1 // loop_pre_header
      _
    $region3: #{net_forward.3} parent=1 // loop_header
      %s12 = sphi 0, %s16
      %p13 = scmp.ge.s32.totalorder %s12, 6
      %s22 = sphi 0, %s24
      %s25 = sphi 0, %s22
      %s26 = sphi 0, %s25
      %s42 = sphi 0, %s26
      %s48 = sphi 0, %s50
      %s51 = sphi 0, %s48
      %s52 = sphi 0, %s51
      %s68 = sphi 0, %s52
      %s72 = sphi 0, %s72
      %s74 = sphi 0, %s72
      %s75 = sphi 0, %s74
      %s89 = sphi 0, %s75
      %s93 = sphi 0, %s93
      %s95 = sphi 0, %s93
      %s96 = sphi 0, %s95
      %s110 = sphi 0, %s96
      %s114 = sphi 0, %s114
      %s116 = sphi 0, %s114
      %s117 = sphi 0, %s116
      %s131 = sphi 0, %s117
      %s135 = sphi 0, %s135
      %s137 = sphi 0, %s135
      %s138 = sphi 0, %s137
      %s152 = sphi 0, %s138
    $region4: #{net_forward.3} parent=1 // loop_header_branch
      %15 = sbr.rel (%p13) target = $region8
    $region5: #{net_forward.3} parent=1 // loop_body
      %s17 = ssub.s32 %s12, 1
      %s18 = ssub.s32 %s12, 2
      %s19 = sadd.s32 %s12, 1
      %s20 = ssub.s32 %s12, %s19
      %p21 = scmp.eq.s32.totalorder %s20, 0
      %s23 = sadd.s32 %s22, 1
      %s24 = scalar_select %p21, %s22, %s23
      %p27 = pneg %p21
      %p28 = scmp.eq.s32.totalorder %s12, 3
      %p29 = por %p27, %p28
      %p30 = scmp.ne.s32.totalorder %s22, %s25
      %p31 = scmp.eq.s32.totalorder %s12, 0
      %p32 = por %p30, %p31
      %p33 = scmp.ne.s32.totalorder %s22, %s25
      %p34 = scmp.eq.s32.totalorder %s17, 3
      %p35 = por %p33, %p34
      %p36 = scmp.ne.s32.totalorder %s25, %s26
      %p37 = scmp.eq.s32.totalorder %s17, 0
      %p38 = por %p36, %p37
      %p39 = scmp.ne.s32.totalorder %s25, %s26
      %p40 = scmp.eq.s32.totalorder %s18, 3
      %p41 = por %p39, %p40
      %p43 = scmp.ne.s32.totalorder %s26, %s42
      %p44 = scmp.eq.s32.totalorder %s18, 0
      %p45 = por %p43, %p44
      %s46 = ssub.s32 %s12, %s19
      %p47 = scmp.eq.s32.totalorder %s46, 0
      %s49 = sadd.s32 %s48, 1
      %s50 = scalar_select %p47, %s48, %s49
      %p53 = pneg %p47
      %p54 = scmp.eq.s32.totalorder %s12, 3
      %p55 = por %p53, %p54
      %p56 = scmp.ne.s32.totalorder %s48, %s51
      %p57 = scmp.eq.s32.totalorder %s12, 0
      %p58 = por %p56, %p57
      %p59 = scmp.ne.s32.totalorder %s48, %s51
      %p60 = scmp.eq.s32.totalorder %s17, 3
      %p61 = por %p59, %p60
      %p62 = scmp.ne.s32.totalorder %s51, %s52
      %p63 = scmp.eq.s32.totalorder %s17, 0
      %p64 = por %p62, %p63
      %p65 = scmp.ne.s32.totalorder %s51, %s52
      %p66 = scmp.eq.s32.totalorder %s18, 3
      %p67 = por %p65, %p66
      %p69 = scmp.ne.s32.totalorder %s52, %s68
      %p70 = scmp.eq.s32.totalorder %s18, 0
      %p71 = por %p69, %p70
      %s73 = sadd.s32 %s72, 1
      %p76 = scmp.eq.s32.totalorder %s12, 3
      %p77 = scmp.ne.s32.totalorder %s72, %s74
      %p78 = scmp.eq.s32.totalorder %s12, 0
      %p79 = por %p77, %p78
      %p80 = scmp.ne.s32.totalorder %s72, %s74
      %p81 = scmp.eq.s32.totalorder %s17, 3
      %p82 = por %p80, %p81
      %p83 = scmp.ne.s32.totalorder %s74, %s75
      %p84 = scmp.eq.s32.totalorder %s17, 0
      %p85 = por %p83, %p84
      %p86 = scmp.ne.s32.totalorder %s74, %s75
      %p87 = scmp.eq.s32.totalorder %s18, 3
      %p88 = por %p86, %p87
      %p90 = scmp.ne.s32.totalorder %s75, %s89
      %p91 = scmp.eq.s32.totalorder %s18, 0
      %p92 = por %p90, %p91
      %s94 = sadd.s32 %s93, 1
      %p97 = scmp.eq.s32.totalorder %s12, 3
      %p98 = scmp.ne.s32.totalorder %s93, %s95
      %p99 = scmp.eq.s32.totalorder %s12, 0
      %p100 = por %p98, %p99
      %p101 = scmp.ne.s32.totalorder %s93, %s95
      %p102 = scmp.eq.s32.totalorder %s17, 3
      %p103 = por %p101, %p102
      %p104 = scmp.ne.s32.totalorder %s95, %s96
      %p105 = scmp.eq.s32.totalorder %s17, 0
      %p106 = por %p104, %p105
      %p107 = scmp.ne.s32.totalorder %s95, %s96
      %p108 = scmp.eq.s32.totalorder %s18, 3
      %p109 = por %p107, %p108
      %p111 = scmp.ne.s32.totalorder %s96, %s110
      %p112 = scmp.eq.s32.totalorder %s18, 0
      %p113 = por %p111, %p112
      %s115 = sadd.s32 %s114, 1
      %p118 = scmp.eq.s32.totalorder %s12, 3
      %p119 = scmp.ne.s32.totalorder %s114, %s116
      %p120 = scmp.eq.s32.totalorder %s12, 0
      %p121 = por %p119, %p120
      %p122 = scmp.ne.s32.totalorder %s114, %s116
      %p123 = scmp.eq.s32.totalorder %s17, 3
      %p124 = por %p122, %p123
      %p125 = scmp.ne.s32.totalorder %s116, %s117
      %p126 = scmp.eq.s32.totalorder %s17, 0
      %p127 = por %p125, %p126
      %p128 = scmp.ne.s32.totalorder %s116, %s117
      %p129 = scmp.eq.s32.totalorder %s18, 3
      %p130 = por %p128, %p129
      %p132 = scmp.ne.s32.totalorder %s117, %s131
      %p133 = scmp.eq.s32.totalorder %s18, 0
      %p134 = por %p132, %p133
      %s136 = sadd.s32 %s135, 1
      %p139 = scmp.eq.s32.totalorder %s12, 3
      %p140 = scmp.ne.s32.totalorder %s135, %s137
      %p141 = scmp.eq.s32.totalorder %s12, 0
      %p142 = por %p140, %p141
      %p143 = scmp.ne.s32.totalorder %s135, %s137
      %p144 = scmp.eq.s32.totalorder %s17, 3
      %p145 = por %p143, %p144
      %p146 = scmp.ne.s32.totalorder %s137, %s138
      %p147 = scmp.eq.s32.totalorder %s17, 0
      %p148 = por %p146, %p147
      %p149 = scmp.ne.s32.totalorder %s137, %s138
      %p150 = scmp.eq.s32.totalorder %s18, 3
      %p151 = por %p149, %p150
      %p153 = scmp.ne.s32.totalorder %s138, %s152
      %p154 = scmp.eq.s32.totalorder %s18, 0
      %p155 = por %p153, %p154
      %p156 = scmp.le.s32.totalorder 1, %s12
      %p157 = scmp.lt.s32.totalorder %s12, 5
      %p158 = pnand %p156, %p157
      %p159 = pneg %p158
      // Predicated region
      $region9: #{net_forward.3} parent=5 // pred_check
        _
      $region10: #{net_forward.3} parent=5 // pred_check_branch
        %161 = sbr.rel (%p158) target = $region12
      $region11: #{net_forward.3} parent=5 // pred_region
        %s162 = ssub.s32 %s12, 1
        // Predicated region
        $region13: #{net_forward.3} parent=11 // pred_check
          %p163 = pneg %p85
        $region14: #{net_forward.3} parent=11 // pred_check_branch
          %165 = sbr.rel (%p163) target = $region16
        $region15: #{net_forward.3} parent=11 // pred_region
          _
        $region16: #{net_forward.3} parent=11 // pred_fallthru
          _
        // Predicated region
        $region17: #{net_forward.3} parent=11 // pred_check
          %p166 = pneg %p106
        $region18: #{net_forward.3} parent=11 // pred_check_branch
          %168 = sbr.rel (%p166) target = $region20
        $region19: #{net_forward.3} parent=11 // pred_region
          _
        $region20: #{net_forward.3} parent=11 // pred_fallthru
          _
        // Predicated region
        $region21: #{net_forward.3} parent=11 // pred_check
          %p169 = pneg %p127
        $region22: #{net_forward.3} parent=11 // pred_check_branch
          %171 = sbr.rel (%p169) target = $region24
        $region23: #{net_forward.3} parent=11 // pred_region
          _
        $region24: #{net_forward.3} parent=11 // pred_fallthru
          _
      $region12: #{net_forward.3} parent=5 // pred_fallthru
        _
      %p172 = scmp.lt.s32.totalorder %s12, 4
      // Predicated region
      $region25: #{net_forward.3} parent=5 // pred_check
        %p173 = pneg %p172
      $region26: #{net_forward.3} parent=5 // pred_check_branch
        %175 = sbr.rel (%p173) target = $region28
      $region27: #{net_forward.3} parent=5 // pred_region
        // Predicated region
        $region29: #{net_forward.3} parent=27 // pred_check
          %p176 = pneg %p32
        $region30: #{net_forward.3} parent=27 // pred_check_branch
          %178 = sbr.rel (%p176) target = $region32
        $region31: #{net_forward.3} parent=27 // pred_region
          %s179 = smul.u32 18, %s12
          %p180 = scmp.lt.s32.totalorder %s179, 71
          %s181 = scalar_select %p180, %s179, 71
          %s182 = scalar_lea.vmem %s0, %s181
          %s183 = smul.u32 18, %s12
        $region32: #{net_forward.3} parent=27 // pred_fallthru
          _
        // Predicated region
        $region33: #{net_forward.3} parent=27 // pred_check
          %p184 = pneg %p58
        $region34: #{net_forward.3} parent=27 // pred_check_branch
          %186 = sbr.rel (%p184) target = $region36
        $region35: #{net_forward.3} parent=27 // pred_region
          %s187 = smul.u32 288, %s12
          %p188 = scmp.lt.s32.totalorder %s187, 1151
          %s189 = scalar_select %p188, %s187, 1151
          %s190 = smul.addr %s189, 4
          %s191 = scalar_lea.vmem %s1, %s190
          %s192 = smul.u32 288, %s12
        $region36: #{net_forward.3} parent=27 // pred_fallthru
          _
      $region28: #{net_forward.3} parent=5 // pred_fallthru
        _
      %p193 = scmp.le.s32.totalorder 1, %s12
      %p194 = scmp.lt.s32.totalorder %s12, 5
      %p195 = pnand %p193, %p194
      %p196 = pneg %p195
      // Predicated region
      $region37: #{net_forward.3} parent=5 // pred_check
        _
      $region38: #{net_forward.3} parent=5 // pred_check_branch
        %198 = sbr.rel (%p195) target = $region40
      $region39: #{net_forward.3} parent=5 // pred_region
        %s199 = ssub.s32 %s12, 1
        %s200 = smul.u32 18, %s17
        %p201 = scmp.lt.s32.totalorder %s200, 71
        %s202 = scalar_select %p201, %s200, 71
        %s203 = scalar_lea.vmem %s0, %s202
        %p204 = pneg %p38
        %p205 = pneg %p35
        %s206 = smul.u32 288, %s17
        %p207 = scmp.lt.s32.totalorder %s206, 1151
        %s208 = scalar_select %p207, %s206, 1151
        %s209 = smul.addr %s208, 4
        %s210 = scalar_lea.vmem %s1, %s209
        %p211 = pneg %p64
        %p212 = pneg %p61
        %p213 = pneg %p85
        %p214 = pneg %p82
        %p215 = pneg %p106
        %p216 = pneg %p103
        %p217 = pneg %p127
        %p218 = pneg %p124
        %p219 = pneg %p148
        %p220 = pneg %p145
        %s221 = smul.u32 18, %s17
        %p222 = scmp.lt.s32.totalorder %s221, 71
        %s223 = scalar_select %p222, %s221, 71
        %s224 = scalar_lea.vmem %s0, %s223
        %s225 = smul.u32 18, %s17
        %s226 = smul.u32 288, %s17
        %p227 = scmp.lt.s32.totalorder %s226, 1151
        %s228 = scalar_select %p227, %s226, 1151
        %s229 = smul.addr %s228, 4
        %s230 = scalar_lea.vmem %s1, %s229
        %s231 = smul.u32 288, %s17
        %p233 = scmp.eq.s32.totalorder %s17, 0
        // Predicated region
        $region41: #{net_forward.3} parent=39 // pred_check
          %p234 = pneg %p233
        $region42: #{net_forward.3} parent=39 // pred_check_branch
          %236 = sbr.rel (%p234) target = $region44
        $region43: #{net_forward.3} parent=39 // pred_region
          %237 = vst [vmem:[#allocation2] sm:$0x3] 0.0
        $region44: #{net_forward.3} parent=39 // pred_fallthru
          _
        %v238 = vld [vmem:[#allocation2] sm:$0x3]
        %v239 = vld [vmem:[%s224] sm:$0xff]
        %v240 = vld [vmem:[%s224 + $0x8] sm:$0xff]
        %v241 = vld [vmem:[%s224 + $0x10] sm:$0x3]
        %v242 = vld [vmem:[%s230] sm:$0xf]
        %v243 = vld [vmem:[%s230 + $0x4] sm:$0xf]
        %v244 = vld [vmem:[%s230 + $0x8] sm:$0xf]
        %v245 = vld [vmem:[%s230 + $0xc] sm:$0xf]
        %v246 = vld [vmem:[%s230 + $0x10] sm:$0xf]
        %v247 = vld [vmem:[%s230 + $0x14] sm:$0xf]
        %v248 = vld [vmem:[%s230 + $0x18] sm:$0xf]
        %v249 = vld [vmem:[%s230 + $0x1c] sm:$0xf]
        %v250 = vld [vmem:[%s230 + $0x20] sm:$0xf]
        %v251 = vld [vmem:[%s230 + $0x24] sm:$0xf]
        %v252 = vld [vmem:[%s230 + $0x28] sm:$0xf]
        %v253 = vld [vmem:[%s230 + $0x2c] sm:$0xf]
        %v254 = vld [vmem:[%s230 + $0x30] sm:$0xf]
        %v255 = vld [vmem:[%s230 + $0x34] sm:$0xf]
        %v256 = vld [vmem:[%s230 + $0x38] sm:$0xf]
        %v257 = vld [vmem:[%s230 + $0x3c] sm:$0xf]
        %v258 = vld [vmem:[%s230 + $0x40] sm:$0xf]
        %v259 = vld [vmem:[%s230 + $0x44] sm:$0xf]
        %v260 = vld [vmem:[%s230 + $0x48] sm:$0xf]
        %v261 = vld [vmem:[%s230 + $0x4c] sm:$0xf]
        %v262 = vld [vmem:[%s230 + $0x50] sm:$0xf]
        %v263 = vld [vmem:[%s230 + $0x54] sm:$0xf]
        %v264 = vld [vmem:[%s230 + $0x58] sm:$0xf]
        %v265 = vld [vmem:[%s230 + $0x5c] sm:$0xf]
        %v266 = vld [vmem:[%s230 + $0x60] sm:$0xf]
        %v267 = vld [vmem:[%s230 + $0x64] sm:$0xf]
        %v268 = vld [vmem:[%s230 + $0x68] sm:$0xf]
        %v269 = vld [vmem:[%s230 + $0x6c] sm:$0xf]
        %v270 = vld [vmem:[%s230 + $0x70] sm:$0xf]
        %v271 = vld [vmem:[%s230 + $0x74] sm:$0xf]
        %v272 = vld [vmem:[%s230 + $0x78] sm:$0xf]
        %v273 = vld [vmem:[%s230 + $0x7c] sm:$0xf]
        %v274 = vld [vmem:[%s230 + $0x80] sm:$0xf]
        %v275 = vld [vmem:[%s230 + $0x84] sm:$0xf]
        %v276 = vld [vmem:[%s230 + $0x88] sm:$0xf]
        %v277 = vld [vmem:[%s230 + $0x8c] sm:$0xf]
        %v278 = vld [vmem:[%s230 + $0x90] sm:$0xf]
        %v279 = vld [vmem:[%s230 + $0x94] sm:$0xf]
        %v280 = vld [vmem:[%s230 + $0x98] sm:$0xf]
        %v281 = vld [vmem:[%s230 + $0x9c] sm:$0xf]
        %v282 = vld [vmem:[%s230 + $0xa0] sm:$0xf]
        %v283 = vld [vmem:[%s230 + $0xa4] sm:$0xf]
        %v284 = vld [vmem:[%s230 + $0xa8] sm:$0xf]
        %v285 = vld [vmem:[%s230 + $0xac] sm:$0xf]
        %v286 = vld [vmem:[%s230 + $0xb0] sm:$0xf]
        %v287 = vld [vmem:[%s230 + $0xb4] sm:$0xf]
        %v288 = vld [vmem:[%s230 + $0xb8] sm:$0xf]
        %v289 = vld [vmem:[%s230 + $0xbc] sm:$0xf]
        %v290 = vld [vmem:[%s230 + $0xc0] sm:$0xf]
        %v291 = vld [vmem:[%s230 + $0xc4] sm:$0xf]
        %v292 = vld [vmem:[%s230 + $0xc8] sm:$0xf]
        %v293 = vld [vmem:[%s230 + $0xcc] sm:$0xf]
        %v294 = vld [vmem:[%s230 + $0xd0] sm:$0xf]
        %v295 = vld [vmem:[%s230 + $0xd4] sm:$0xf]
        %v296 = vld [vmem:[%s230 + $0xd8] sm:$0xf]
        %v297 = vld [vmem:[%s230 + $0xdc] sm:$0xf]
        %v298 = vld [vmem:[%s230 + $0xe0] sm:$0xf]
        %v299 = vld [vmem:[%s230 + $0xe4] sm:$0xf]
        %v300 = vld [vmem:[%s230 + $0xe8] sm:$0xf]
        %v301 = vld [vmem:[%s230 + $0xec] sm:$0xf]
        %v302 = vld [vmem:[%s230 + $0xf0] sm:$0xf]
        %v303 = vld [vmem:[%s230 + $0xf4] sm:$0xf]
        %v304 = vld [vmem:[%s230 + $0xf8] sm:$0xf]
        %v305 = vld [vmem:[%s230 + $0xfc] sm:$0xf]
        %v306 = vld [vmem:[%s230 + $0x100] sm:$0xf]
        %v307 = vld [vmem:[%s230 + $0x104] sm:$0xf]
        %v308 = vld [vmem:[%s230 + $0x108] sm:$0xf]
        %v309 = vld [vmem:[%s230 + $0x10c] sm:$0xf]
        %v310 = vld [vmem:[%s230 + $0x110] sm:$0xf]
        %v311 = vld [vmem:[%s230 + $0x114] sm:$0xf]
        %v312 = vld [vmem:[%s230 + $0x118] sm:$0xf]
        %v313 = vld [vmem:[%s230 + $0x11c] sm:$0xf]
        %v314 = vld [vmem:[%s230 + $0x120] sm:$0xf]
        %v315 = vld [vmem:[%s230 + $0x124] sm:$0xf]
        %v316 = vld [vmem:[%s230 + $0x128] sm:$0xf]
        %v317 = vld [vmem:[%s230 + $0x12c] sm:$0xf]
        %v318 = vld [vmem:[%s230 + $0x130] sm:$0xf]
        %v319 = vld [vmem:[%s230 + $0x134] sm:$0xf]
        %v320 = vld [vmem:[%s230 + $0x138] sm:$0xf]
        %v321 = vld [vmem:[%s230 + $0x13c] sm:$0xf]
        %v322 = vld [vmem:[%s230 + $0x140] sm:$0xf]
        %v323 = vld [vmem:[%s230 + $0x144] sm:$0xf]
        %v324 = vld [vmem:[%s230 + $0x148] sm:$0xf]
        %v325 = vld [vmem:[%s230 + $0x14c] sm:$0xf]
        %v326 = vld [vmem:[%s230 + $0x150] sm:$0xf]
        %v327 = vld [vmem:[%s230 + $0x154] sm:$0xf]
        %v328 = vld [vmem:[%s230 + $0x158] sm:$0xf]
        %v329 = vld [vmem:[%s230 + $0x15c] sm:$0xf]
        %v330 = vld [vmem:[%s230 + $0x160] sm:$0xf]
        %v331 = vld [vmem:[%s230 + $0x164] sm:$0xf]
        %v332 = vld [vmem:[%s230 + $0x168] sm:$0xf]
        %v333 = vld [vmem:[%s230 + $0x16c] sm:$0xf]
        %v334 = vld [vmem:[%s230 + $0x170] sm:$0xf]
        %v335 = vld [vmem:[%s230 + $0x174] sm:$0xf]
        %v336 = vld [vmem:[%s230 + $0x178] sm:$0xf]
        %v337 = vld [vmem:[%s230 + $0x17c] sm:$0xf]
        %v338 = vld [vmem:[%s230 + $0x180] sm:$0xf]
        %v339 = vld [vmem:[%s230 + $0x184] sm:$0xf]
        %v340 = vld [vmem:[%s230 + $0x188] sm:$0xf]
        %v341 = vld [vmem:[%s230 + $0x18c] sm:$0xf]
        %v342 = vld [vmem:[%s230 + $0x190] sm:$0xf]
        %v343 = vld [vmem:[%s230 + $0x194] sm:$0xf]
        %v344 = vld [vmem:[%s230 + $0x198] sm:$0xf]
        %v345 = vld [vmem:[%s230 + $0x19c] sm:$0xf]
        %v346 = vld [vmem:[%s230 + $0x1a0] sm:$0xf]
        %v347 = vld [vmem:[%s230 + $0x1a4] sm:$0xf]
        %v348 = vld [vmem:[%s230 + $0x1a8] sm:$0xf]
        %v349 = vld [vmem:[%s230 + $0x1ac] sm:$0xf]
        %v350 = vld [vmem:[%s230 + $0x1b0] sm:$0xf]
        %v351 = vld [vmem:[%s230 + $0x1b4] sm:$0xf]
        %v352 = vld [vmem:[%s230 + $0x1b8] sm:$0xf]
        %v353 = vld [vmem:[%s230 + $0x1bc] sm:$0xf]
        %v354 = vld [vmem:[%s230 + $0x1c0] sm:$0xf]
        %v355 = vld [vmem:[%s230 + $0x1c4] sm:$0xf]
        %v356 = vld [vmem:[%s230 + $0x1c8] sm:$0xf]
        %v357 = vld [vmem:[%s230 + $0x1cc] sm:$0xf]
        %v358 = vld [vmem:[%s230 + $0x1d0] sm:$0xf]
        %v359 = vld [vmem:[%s230 + $0x1d4] sm:$0xf]
        %v360 = vld [vmem:[%s230 + $0x1d8] sm:$0xf]
        %v361 = vld [vmem:[%s230 + $0x1dc] sm:$0xf]
        %v362 = vld [vmem:[%s230 + $0x1e0] sm:$0xf]
        %v363 = vld [vmem:[%s230 + $0x1e4] sm:$0xf]
        %v364 = vld [vmem:[%s230 + $0x1e8] sm:$0xf]
        %v365 = vld [vmem:[%s230 + $0x1ec] sm:$0xf]
        %v366 = vld [vmem:[%s230 + $0x1f0] sm:$0xf]
        %v367 = vld [vmem:[%s230 + $0x1f4] sm:$0xf]
        %v368 = vld [vmem:[%s230 + $0x1f8] sm:$0xf]
        %v369 = vld [vmem:[%s230 + $0x1fc] sm:$0xf]
        %v370 = vld [vmem:[%s230 + $0x200] sm:$0xf]
        %v371 = vld [vmem:[%s230 + $0x204] sm:$0xf]
        %v372 = vld [vmem:[%s230 + $0x208] sm:$0xf]
        %v373 = vld [vmem:[%s230 + $0x20c] sm:$0xf]
        %v374 = vld [vmem:[%s230 + $0x210] sm:$0xf]
        %v375 = vld [vmem:[%s230 + $0x214] sm:$0xf]
        %v376 = vld [vmem:[%s230 + $0x218] sm:$0xf]
        %v377 = vld [vmem:[%s230 + $0x21c] sm:$0xf]
        %v378 = vld [vmem:[%s230 + $0x220] sm:$0xf]
        %v379 = vld [vmem:[%s230 + $0x224] sm:$0xf]
        %v380 = vld [vmem:[%s230 + $0x228] sm:$0xf]
        %v381 = vld [vmem:[%s230 + $0x22c] sm:$0xf]
        %v382 = vld [vmem:[%s230 + $0x230] sm:$0xf]
        %v383 = vld [vmem:[%s230 + $0x234] sm:$0xf]
        %v384 = vld [vmem:[%s230 + $0x238] sm:$0xf]
        %v385 = vld [vmem:[%s230 + $0x23c] sm:$0xf]
        %v386 = vld [vmem:[%s230 + $0x240] sm:$0xf]
        %v387 = vld [vmem:[%s230 + $0x244] sm:$0xf]
        %v388 = vld [vmem:[%s230 + $0x248] sm:$0xf]
        %v389 = vld [vmem:[%s230 + $0x24c] sm:$0xf]
        %v390 = vld [vmem:[%s230 + $0x250] sm:$0xf]
        %v391 = vld [vmem:[%s230 + $0x254] sm:$0xf]
        %v392 = vld [vmem:[%s230 + $0x258] sm:$0xf]
        %v393 = vld [vmem:[%s230 + $0x25c] sm:$0xf]
        %v394 = vld [vmem:[%s230 + $0x260] sm:$0xf]
        %v395 = vld [vmem:[%s230 + $0x264] sm:$0xf]
        %v396 = vld [vmem:[%s230 + $0x268] sm:$0xf]
        %v397 = vld [vmem:[%s230 + $0x26c] sm:$0xf]
        %v398 = vld [vmem:[%s230 + $0x270] sm:$0xf]
        %v399 = vld [vmem:[%s230 + $0x274] sm:$0xf]
        %v400 = vld [vmem:[%s230 + $0x278] sm:$0xf]
        %v401 = vld [vmem:[%s230 + $0x27c] sm:$0xf]
        %v402 = vld [vmem:[%s230 + $0x280] sm:$0xf]
        %v403 = vld [vmem:[%s230 + $0x284] sm:$0xf]
        %v404 = vld [vmem:[%s230 + $0x288] sm:$0xf]
        %v405 = vld [vmem:[%s230 + $0x28c] sm:$0xf]
        %v406 = vld [vmem:[%s230 + $0x290] sm:$0xf]
        %v407 = vld [vmem:[%s230 + $0x294] sm:$0xf]
        %v408 = vld [vmem:[%s230 + $0x298] sm:$0xf]
        %v409 = vld [vmem:[%s230 + $0x29c] sm:$0xf]
        %v410 = vld [vmem:[%s230 + $0x2a0] sm:$0xf]
        %v411 = vld [vmem:[%s230 + $0x2a4] sm:$0xf]
        %v412 = vld [vmem:[%s230 + $0x2a8] sm:$0xf]
        %v413 = vld [vmem:[%s230 + $0x2ac] sm:$0xf]
        %v414 = vld [vmem:[%s230 + $0x2b0] sm:$0xf]
        %v415 = vld [vmem:[%s230 + $0x2b4] sm:$0xf]
        %v416 = vld [vmem:[%s230 + $0x2b8] sm:$0xf]
        %v417 = vld [vmem:[%s230 + $0x2bc] sm:$0xf]
        %v418 = vld [vmem:[%s230 + $0x2c0] sm:$0xf]
        %v419 = vld [vmem:[%s230 + $0x2c4] sm:$0xf]
        %v420 = vld [vmem:[%s230 + $0x2c8] sm:$0xf]
        %v421 = vld [vmem:[%s230 + $0x2cc] sm:$0xf]
        %v422 = vld [vmem:[%s230 + $0x2d0] sm:$0xf]
        %v423 = vld [vmem:[%s230 + $0x2d4] sm:$0xf]
        %v424 = vld [vmem:[%s230 + $0x2d8] sm:$0xf]
        %v425 = vld [vmem:[%s230 + $0x2dc] sm:$0xf]
        %v426 = vld [vmem:[%s230 + $0x2e0] sm:$0xf]
        %v427 = vld [vmem:[%s230 + $0x2e4] sm:$0xf]
        %v428 = vld [vmem:[%s230 + $0x2e8] sm:$0xf]
        %v429 = vld [vmem:[%s230 + $0x2ec] sm:$0xf]
        %v430 = vld [vmem:[%s230 + $0x2f0] sm:$0xf]
        %v431 = vld [vmem:[%s230 + $0x2f4] sm:$0xf]
        %v432 = vld [vmem:[%s230 + $0x2f8] sm:$0xf]
        %v433 = vld [vmem:[%s230 + $0x2fc] sm:$0xf]
        %v434 = vld [vmem:[%s230 + $0x300] sm:$0xf]
        %v435 = vld [vmem:[%s230 + $0x304] sm:$0xf]
        %v436 = vld [vmem:[%s230 + $0x308] sm:$0xf]
        %v437 = vld [vmem:[%s230 + $0x30c] sm:$0xf]
        %v438 = vld [vmem:[%s230 + $0x310] sm:$0xf]
        %v439 = vld [vmem:[%s230 + $0x314] sm:$0xf]
        %v440 = vld [vmem:[%s230 + $0x318] sm:$0xf]
        %v441 = vld [vmem:[%s230 + $0x31c] sm:$0xf]
        %v442 = vld [vmem:[%s230 + $0x320] sm:$0xf]
        %v443 = vld [vmem:[%s230 + $0x324] sm:$0xf]
        %v444 = vld [vmem:[%s230 + $0x328] sm:$0xf]
        %v445 = vld [vmem:[%s230 + $0x32c] sm:$0xf]
        %v446 = vld [vmem:[%s230 + $0x330] sm:$0xf]
        %v447 = vld [vmem:[%s230 + $0x334] sm:$0xf]
        %v448 = vld [vmem:[%s230 + $0x338] sm:$0xf]
        %v449 = vld [vmem:[%s230 + $0x33c] sm:$0xf]
        %v450 = vld [vmem:[%s230 + $0x340] sm:$0xf]
        %v451 = vld [vmem:[%s230 + $0x344] sm:$0xf]
        %v452 = vld [vmem:[%s230 + $0x348] sm:$0xf]
        %v453 = vld [vmem:[%s230 + $0x34c] sm:$0xf]
        %v454 = vld [vmem:[%s230 + $0x350] sm:$0xf]
        %v455 = vld [vmem:[%s230 + $0x354] sm:$0xf]
        %v456 = vld [vmem:[%s230 + $0x358] sm:$0xf]
        %v457 = vld [vmem:[%s230 + $0x35c] sm:$0xf]
        %v458 = vld [vmem:[%s230 + $0x360] sm:$0xf]
        %v459 = vld [vmem:[%s230 + $0x364] sm:$0xf]
        %v460 = vld [vmem:[%s230 + $0x368] sm:$0xf]
        %v461 = vld [vmem:[%s230 + $0x36c] sm:$0xf]
        %v462 = vld [vmem:[%s230 + $0x370] sm:$0xf]
        %v463 = vld [vmem:[%s230 + $0x374] sm:$0xf]
        %v464 = vld [vmem:[%s230 + $0x378] sm:$0xf]
        %v465 = vld [vmem:[%s230 + $0x37c] sm:$0xf]
        %v466 = vld [vmem:[%s230 + $0x380] sm:$0xf]
        %v467 = vld [vmem:[%s230 + $0x384] sm:$0xf]
        %v468 = vld [vmem:[%s230 + $0x388] sm:$0xf]
        %v469 = vld [vmem:[%s230 + $0x38c] sm:$0xf]
        %v470 = vld [vmem:[%s230 + $0x390] sm:$0xf]
        %v471 = vld [vmem:[%s230 + $0x394] sm:$0xf]
        %v472 = vld [vmem:[%s230 + $0x398] sm:$0xf]
        %v473 = vld [vmem:[%s230 + $0x39c] sm:$0xf]
        %v474 = vld [vmem:[%s230 + $0x3a0] sm:$0xf]
        %v475 = vld [vmem:[%s230 + $0x3a4] sm:$0xf]
        %v476 = vld [vmem:[%s230 + $0x3a8] sm:$0xf]
        %v477 = vld [vmem:[%s230 + $0x3ac] sm:$0xf]
        %v478 = vld [vmem:[%s230 + $0x3b0] sm:$0xf]
        %v479 = vld [vmem:[%s230 + $0x3b4] sm:$0xf]
        %v480 = vld [vmem:[%s230 + $0x3b8] sm:$0xf]
        %v481 = vld [vmem:[%s230 + $0x3bc] sm:$0xf]
        %v482 = vld [vmem:[%s230 + $0x3c0] sm:$0xf]
        %v483 = vld [vmem:[%s230 + $0x3c4] sm:$0xf]
        %v484 = vld [vmem:[%s230 + $0x3c8] sm:$0xf]
        %v485 = vld [vmem:[%s230 + $0x3cc] sm:$0xf]
        %v486 = vld [vmem:[%s230 + $0x3d0] sm:$0xf]
        %v487 = vld [vmem:[%s230 + $0x3d4] sm:$0xf]
        %v488 = vld [vmem:[%s230 + $0x3d8] sm:$0xf]
        %v489 = vld [vmem:[%s230 + $0x3dc] sm:$0xf]
        %v490 = vld [vmem:[%s230 + $0x3e0] sm:$0xf]
        %v491 = vld [vmem:[%s230 + $0x3e4] sm:$0xf]
        %v492 = vld [vmem:[%s230 + $0x3e8] sm:$0xf]
        %v493 = vld [vmem:[%s230 + $0x3ec] sm:$0xf]
        %v494 = vld [vmem:[%s230 + $0x3f0] sm:$0xf]
        %v495 = vld [vmem:[%s230 + $0x3f4] sm:$0xf]
        %v496 = vld [vmem:[%s230 + $0x3f8] sm:$0xf]
        %v497 = vld [vmem:[%s230 + $0x3fc] sm:$0xf]
        %v498 = vld [vmem:[%s230 + $0x400] sm:$0xf]
        %v499 = vld [vmem:[%s230 + $0x404] sm:$0xf]
        %v500 = vld [vmem:[%s230 + $0x408] sm:$0xf]
        %v501 = vld [vmem:[%s230 + $0x40c] sm:$0xf]
        %v502 = vld [vmem:[%s230 + $0x410] sm:$0xf]
        %v503 = vld [vmem:[%s230 + $0x414] sm:$0xf]
        %v504 = vld [vmem:[%s230 + $0x418] sm:$0xf]
        %v505 = vld [vmem:[%s230 + $0x41c] sm:$0xf]
        %v506 = vld [vmem:[%s230 + $0x420] sm:$0xf]
        %v507 = vld [vmem:[%s230 + $0x424] sm:$0xf]
        %v508 = vld [vmem:[%s230 + $0x428] sm:$0xf]
        %v509 = vld [vmem:[%s230 + $0x42c] sm:$0xf]
        %v510 = vld [vmem:[%s230 + $0x430] sm:$0xf]
        %v511 = vld [vmem:[%s230 + $0x434] sm:$0xf]
        %v512 = vld [vmem:[%s230 + $0x438] sm:$0xf]
        %v513 = vld [vmem:[%s230 + $0x43c] sm:$0xf]
        %v514 = vld [vmem:[%s230 + $0x440] sm:$0xf]
        %v515 = vld [vmem:[%s230 + $0x444] sm:$0xf]
        %v516 = vld [vmem:[%s230 + $0x448] sm:$0xf]
        %v517 = vld [vmem:[%s230 + $0x44c] sm:$0xf]
        %v518 = vld [vmem:[%s230 + $0x450] sm:$0xf]
        %v519 = vld [vmem:[%s230 + $0x454] sm:$0xf]
        %v520 = vld [vmem:[%s230 + $0x458] sm:$0xf]
        %v521 = vld [vmem:[%s230 + $0x45c] sm:$0xf]
        %v522 = vld [vmem:[%s230 + $0x460] sm:$0xf]
        %v523 = vld [vmem:[%s230 + $0x464] sm:$0xf]
        %v524 = vld [vmem:[%s230 + $0x468] sm:$0xf]
        %v525 = vld [vmem:[%s230 + $0x46c] sm:$0xf]
        %v526 = vld [vmem:[%s230 + $0x470] sm:$0xf]
        %v527 = vld [vmem:[%s230 + $0x474] sm:$0xf]
        %v528 = vld [vmem:[%s230 + $0x478] sm:$0xf]
        %v529 = vld [vmem:[%s230 + $0x47c] sm:$0xf]
        %v533 = vcombine.high %v239, %v239
        %v535 = vunpack.c.l.s4 1966171168
        %v536 = vunpack.c.0.s8 %v535
        %v537 = vlaneseq
        %v538 = vshrl.u32 %v537, 7
        %v539 = vsub.s32 %v536, %v538
        %v540 = vrot.slane %v239, %v539
        %v542 = vunpack.c.l.s4 1966171168
        %v543 = vunpack.c.0.s8 %v542
        %v544 = vlaneseq
        %v545 = vshrl.u32 %v544, 7
        %v546 = vsub.s32 %v543, %v545
        %v547 = vrot.slane %v533, %v546
        %v548 = vcombine.high %v540, %v540
        %v549 = vcombine.high %v547, %v547
        %v551 = vunpack.c.l.s4 1966171168
        %v552 = vunpack.c.0.s8 %v551
        %v553 = vlaneseq
        %v554 = vshrl.u32 %v553, 7
        %v555 = vsub.s32 %v552, %v554
        %v556 = vrot.slane %v540, %v555
        %v558 = vunpack.c.l.s4 1966171168
        %v559 = vunpack.c.0.s8 %v558
        %v560 = vlaneseq
        %v561 = vshrl.u32 %v560, 7
        %v562 = vsub.s32 %v559, %v561
        %v563 = vrot.slane %v547, %v562
        %v565 = vunpack.c.l.s4 1966171168
        %v566 = vunpack.c.0.s8 %v565
        %v567 = vlaneseq
        %v568 = vshrl.u32 %v567, 7
        %v569 = vsub.s32 %v566, %v568
        %v570 = vrot.slane %v548, %v569
        %v572 = vunpack.c.l.s4 1966171168
        %v573 = vunpack.c.0.s8 %v572
        %v574 = vlaneseq
        %v575 = vshrl.u32 %v574, 7
        %v576 = vsub.s32 %v573, %v575
        %v577 = vrot.slane %v549, %v576
        %v578 = vcombine.high %v556, %v556
        %v579 = vcombine.high %v563, %v563
        %v580 = vcombine.high %v570, %v570
        %v581 = vcombine.high %v577, %v577
        %v582 = vcombine.high %v240, %v240
        %v584 = vunpack.c.l.s4 1966171168
        %v585 = vunpack.c.0.s8 %v584
        %v586 = vlaneseq
        %v587 = vshrl.u32 %v586, 7
        %v588 = vsub.s32 %v585, %v587
        %v589 = vrot.slane %v240, %v588
        %v591 = vunpack.c.l.s4 1966171168
        %v592 = vunpack.c.0.s8 %v591
        %v593 = vlaneseq
        %v594 = vshrl.u32 %v593, 7
        %v595 = vsub.s32 %v592, %v594
        %v596 = vrot.slane %v582, %v595
        %v597 = vcombine.high %v589, %v589
        %v598 = vcombine.high %v596, %v596
        %v600 = vunpack.c.l.s4 1966171168
        %v601 = vunpack.c.0.s8 %v600
        %v602 = vlaneseq
        %v603 = vshrl.u32 %v602, 7
        %v604 = vsub.s32 %v601, %v603
        %v605 = vrot.slane %v589, %v604
        %v607 = vunpack.c.l.s4 1966171168
        %v608 = vunpack.c.0.s8 %v607
        %v609 = vlaneseq
        %v610 = vshrl.u32 %v609, 7
        %v611 = vsub.s32 %v608, %v610
        %v612 = vrot.slane %v596, %v611
        %v614 = vunpack.c.l.s4 1966171168
        %v615 = vunpack.c.0.s8 %v614
        %v616 = vlaneseq
        %v617 = vshrl.u32 %v616, 7
        %v618 = vsub.s32 %v615, %v617
        %v619 = vrot.slane %v597, %v618
        %v621 = vunpack.c.l.s4 1966171168
        %v622 = vunpack.c.0.s8 %v621
        %v623 = vlaneseq
        %v624 = vshrl.u32 %v623, 7
        %v625 = vsub.s32 %v622, %v624
        %v626 = vrot.slane %v598, %v625
        %v627 = vcombine.high %v605, %v605
        %v628 = vcombine.high %v612, %v612
        %v629 = vcombine.high %v619, %v619
        %v630 = vcombine.high %v626, %v626
        %v632 = vunpack.c.l.s4 1966171168
        %v633 = vunpack.c.0.s8 %v632
        %v634 = vlaneseq
        %v635 = vshrl.u32 %v634, 7
        %v636 = vsub.s32 %v633, %v635
        %v637 = vrot.slane %v241, %v636
        %v638 = vcombine.high %v637, %v637
        %v640 = vunpack.c.l.s4 1966171168
        %v641 = vunpack.c.0.s8 %v640
        %v642 = vlaneseq
        %v643 = vshrl.u32 %v642, 7
        %v644 = vsub.s32 %v641, %v643
        %v645 = vrot.slane %v637, %v644
        %v647 = vunpack.c.l.s4 1966171168
        %v648 = vunpack.c.0.s8 %v647
        %v649 = vlaneseq
        %v650 = vshrl.u32 %v649, 7
        %v651 = vsub.s32 %v648, %v650
        %v652 = vrot.slane %v638, %v651
        %v959 = vunpack.c.l.b16 %v242
        %v960 = vunpack.c.l.b16 %v243
        %v961 = vunpack.c.l.b16 %v244
        %v962 = vunpack.c.l.b16 %v245
        %v963 = vunpack.c.l.b16 %v246
        %v964 = vunpack.c.l.b16 %v247
        %v965 = vunpack.c.l.b16 %v248
        %v966 = vunpack.c.l.b16 %v249
        %v967 = vunpack.c.l.b16 %v250
        %v968 = vunpack.c.l.b16 %v251
        %v969 = vunpack.c.l.b16 %v252
        %v970 = vunpack.c.l.b16 %v253
        %v971 = vunpack.c.l.b16 %v254
        %v972 = vunpack.c.l.b16 %v255
        %v973 = vunpack.c.l.b16 %v256
        %v974 = vunpack.c.l.b16 %v257
        %v975 = vunpack.c.l.b16 %v258
        %v976 = vunpack.c.l.b16 %v259
        %v977 = vunpack.c.l.b16 %v260
        %v978 = vunpack.c.l.b16 %v261
        %v979 = vunpack.c.l.b16 %v262
        %v980 = vunpack.c.l.b16 %v263
        %v981 = vunpack.c.l.b16 %v264
        %v982 = vunpack.c.l.b16 %v265
        %v983 = vunpack.c.l.b16 %v266
        %v984 = vunpack.c.l.b16 %v267
        %v985 = vunpack.c.l.b16 %v268
        %v986 = vunpack.c.l.b16 %v269
        %v987 = vunpack.c.l.b16 %v270
        %v988 = vunpack.c.l.b16 %v271
        %v989 = vunpack.c.l.b16 %v272
        %v990 = vunpack.c.l.b16 %v273
        %v991 = vunpack.c.l.b16 %v274
        %v992 = vunpack.c.l.b16 %v275
        %v993 = vunpack.c.l.b16 %v276
        %v994 = vunpack.c.l.b16 %v277
        %v995 = vunpack.c.l.b16 %v278
        %v996 = vunpack.c.l.b16 %v279
        %v997 = vunpack.c.l.b16 %v280
        %v998 = vunpack.c.l.b16 %v281
        %v999 = vunpack.c.l.b16 %v282
        %v1000 = vunpack.c.l.b16 %v283
        %v1001 = vunpack.c.l.b16 %v284
        %v1002 = vunpack.c.l.b16 %v285
        %v1003 = vunpack.c.l.b16 %v286
        %v1004 = vunpack.c.l.b16 %v287
        %v1005 = vunpack.c.l.b16 %v288
        %v1006 = vunpack.c.l.b16 %v289
        %v1007 = vunpack.c.l.b16 %v290
        %v1008 = vunpack.c.l.b16 %v291
        %v1009 = vunpack.c.l.b16 %v292
        %v1010 = vunpack.c.l.b16 %v293
        %v1011 = vunpack.c.l.b16 %v294
        %v1012 = vunpack.c.l.b16 %v295
        %v1013 = vunpack.c.l.b16 %v296
        %v1014 = vunpack.c.l.b16 %v297
        %v1015 = vunpack.c.l.b16 %v298
        %v1016 = vunpack.c.l.b16 %v299
        %v1017 = vunpack.c.l.b16 %v300
        %v1018 = vunpack.c.l.b16 %v301
        %v1019 = vunpack.c.l.b16 %v302
        %v1020 = vunpack.c.l.b16 %v303
        %v1021 = vunpack.c.l.b16 %v304
        %v1022 = vunpack.c.l.b16 %v305
        %v1023 = vunpack.c.l.b16 %v306
        %v1024 = vunpack.c.l.b16 %v307
        %v1025 = vunpack.c.l.b16 %v308
        %v1026 = vunpack.c.l.b16 %v309
        %v1027 = vunpack.c.l.b16 %v310
        %v1028 = vunpack.c.l.b16 %v311
        %v1029 = vunpack.c.l.b16 %v312
        %v1030 = vunpack.c.l.b16 %v313
        %v1031 = vunpack.c.l.b16 %v314
        %v1032 = vunpack.c.l.b16 %v315
        %v1033 = vunpack.c.l.b16 %v316
        %v1034 = vunpack.c.l.b16 %v317
        %v1035 = vunpack.c.l.b16 %v318
        %v1036 = vunpack.c.l.b16 %v319
        %v1037 = vunpack.c.l.b16 %v320
        %v1038 = vunpack.c.l.b16 %v321
        %v1039 = vunpack.c.l.b16 %v322
        %v1040 = vunpack.c.l.b16 %v323
        %v1041 = vunpack.c.l.b16 %v324
        %v1042 = vunpack.c.l.b16 %v325
        %v1043 = vunpack.c.l.b16 %v326
        %v1044 = vunpack.c.l.b16 %v327
        %v1045 = vunpack.c.l.b16 %v328
        %v1046 = vunpack.c.l.b16 %v329
        %v1047 = vunpack.c.l.b16 %v330
        %v1048 = vunpack.c.l.b16 %v331
        %v1049 = vunpack.c.l.b16 %v332
        %v1050 = vunpack.c.l.b16 %v333
        %v1051 = vunpack.c.l.b16 %v334
        %v1052 = vunpack.c.l.b16 %v335
        %v1053 = vunpack.c.l.b16 %v336
        %v1054 = vunpack.c.l.b16 %v337
        %v1055 = vunpack.c.l.b16 %v338
        %v1056 = vunpack.c.l.b16 %v339
        %v1057 = vunpack.c.l.b16 %v340
        %v1058 = vunpack.c.l.b16 %v341
        %v1059 = vunpack.c.l.b16 %v342
        %v1060 = vunpack.c.l.b16 %v343
        %v1061 = vunpack.c.l.b16 %v344
        %v1062 = vunpack.c.l.b16 %v345
        %v1063 = vunpack.c.l.b16 %v346
        %v1064 = vunpack.c.l.b16 %v347
        %v1065 = vunpack.c.l.b16 %v348
        %v1066 = vunpack.c.l.b16 %v349
        %v1067 = vunpack.c.l.b16 %v350
        %v1068 = vunpack.c.l.b16 %v351
        %v1069 = vunpack.c.l.b16 %v352
        %v1070 = vunpack.c.l.b16 %v353
        %v1071 = vunpack.c.l.b16 %v354
        %v1072 = vunpack.c.l.b16 %v355
        %v1073 = vunpack.c.l.b16 %v356
        %v1074 = vunpack.c.l.b16 %v357
        %v1075 = vunpack.c.l.b16 %v358
        %v1076 = vunpack.c.l.b16 %v359
        %v1077 = vunpack.c.l.b16 %v360
        %v1078 = vunpack.c.l.b16 %v361
        %v1079 = vunpack.c.l.b16 %v362
        %v1080 = vunpack.c.l.b16 %v363
        %v1081 = vunpack.c.l.b16 %v364
        %v1082 = vunpack.c.l.b16 %v365
        %v1083 = vunpack.c.l.b16 %v366
        %v1084 = vunpack.c.l.b16 %v367
        %v1085 = vunpack.c.l.b16 %v368
        %v1086 = vunpack.c.l.b16 %v369
        %v1087 = vunpack.c.l.b16 %v370
        %v1088 = vunpack.c.l.b16 %v371
        %v1089 = vunpack.c.l.b16 %v372
        %v1090 = vunpack.c.l.b16 %v373
        %v1091 = vunpack.c.l.b16 %v374
        %v1092 = vunpack.c.l.b16 %v375
        %v1093 = vunpack.c.l.b16 %v376
        %v1094 = vunpack.c.l.b16 %v377
        %v1095 = vunpack.c.l.b16 %v378
        %v1096 = vunpack.c.l.b16 %v379
        %v1097 = vunpack.c.l.b16 %v380
        %v1098 = vunpack.c.l.b16 %v381
        %v1099 = vunpack.c.l.b16 %v382
        %v1100 = vunpack.c.l.b16 %v383
        %v1101 = vunpack.c.l.b16 %v384
        %v1102 = vunpack.c.l.b16 %v385
        %v1103 = vunpack.c.l.b16 %v386
        %v1104 = vunpack.c.l.b16 %v387
        %v1105 = vunpack.c.l.b16 %v388
        %v1106 = vunpack.c.l.b16 %v389
        %v1107 = vunpack.c.l.b16 %v390
        %v1108 = vunpack.c.l.b16 %v391
        %v1109 = vunpack.c.l.b16 %v392
        %v1110 = vunpack.c.l.b16 %v393
        %v1111 = vunpack.c.l.b16 %v394
        %v1112 = vunpack.c.l.b16 %v395
        %v1113 = vunpack.c.l.b16 %v396
        %v1114 = vunpack.c.l.b16 %v397
        %v1115 = vunpack.c.l.b16 %v398
        %v1116 = vunpack.c.l.b16 %v399
        %v1117 = vunpack.c.l.b16 %v400
        %v1118 = vunpack.c.l.b16 %v401
        %v1119 = vunpack.c.l.b16 %v402
        %v1120 = vunpack.c.l.b16 %v403
        %v1121 = vunpack.c.l.b16 %v404
        %v1122 = vunpack.c.l.b16 %v405
        %v1123 = vunpack.c.l.b16 %v406
        %v1124 = vunpack.c.l.b16 %v407
        %v1125 = vunpack.c.l.b16 %v408
        %v1126 = vunpack.c.l.b16 %v409
        %v1127 = vunpack.c.l.b16 %v410
        %v1128 = vunpack.c.l.b16 %v411
        %v1129 = vunpack.c.l.b16 %v412
        %v1130 = vunpack.c.l.b16 %v413
        %v1131 = vunpack.c.l.b16 %v414
        %v1132 = vunpack.c.l.b16 %v415
        %v1133 = vunpack.c.l.b16 %v416
        %v1134 = vunpack.c.l.b16 %v417
        %v1135 = vunpack.c.l.b16 %v418
        %v1136 = vunpack.c.l.b16 %v419
        %v1137 = vunpack.c.l.b16 %v420
        %v1138 = vunpack.c.l.b16 %v421
        %v1139 = vunpack.c.l.b16 %v422
        %v1140 = vunpack.c.l.b16 %v423
        %v1141 = vunpack.c.l.b16 %v424
        %v1142 = vunpack.c.l.b16 %v425
        %v1143 = vunpack.c.l.b16 %v426
        %v1144 = vunpack.c.l.b16 %v427
        %v1145 = vunpack.c.l.b16 %v428
        %v1146 = vunpack.c.l.b16 %v429
        %v1147 = vunpack.c.l.b16 %v430
        %v1148 = vunpack.c.l.b16 %v431
        %v1149 = vunpack.c.l.b16 %v432
        %v1150 = vunpack.c.l.b16 %v433
        %v1151 = vunpack.c.l.b16 %v434
        %v1152 = vunpack.c.l.b16 %v435
        %v1153 = vunpack.c.l.b16 %v436
        %v1154 = vunpack.c.l.b16 %v437
        %v1155 = vunpack.c.l.b16 %v438
        %v1156 = vunpack.c.l.b16 %v439
        %v1157 = vunpack.c.l.b16 %v440
        %v1158 = vunpack.c.l.b16 %v441
        %v1159 = vunpack.c.l.b16 %v442
        %v1160 = vunpack.c.l.b16 %v443
        %v1161 = vunpack.c.l.b16 %v444
        %v1162 = vunpack.c.l.b16 %v445
        %v1163 = vunpack.c.l.b16 %v446
        %v1164 = vunpack.c.l.b16 %v447
        %v1165 = vunpack.c.l.b16 %v448
        %v1166 = vunpack.c.l.b16 %v449
        %v1167 = vunpack.c.l.b16 %v450
        %v1168 = vunpack.c.l.b16 %v451
        %v1169 = vunpack.c.l.b16 %v452
        %v1170 = vunpack.c.l.b16 %v453
        %v1171 = vunpack.c.l.b16 %v454
        %v1172 = vunpack.c.l.b16 %v455
        %v1173 = vunpack.c.l.b16 %v456
        %v1174 = vunpack.c.l.b16 %v457
        %v1175 = vunpack.c.l.b16 %v458
        %v1176 = vunpack.c.l.b16 %v459
        %v1177 = vunpack.c.l.b16 %v460
        %v1178 = vunpack.c.l.b16 %v461
        %v1179 = vunpack.c.l.b16 %v462
        %v1180 = vunpack.c.l.b16 %v463
        %v1181 = vunpack.c.l.b16 %v464
        %v1182 = vunpack.c.l.b16 %v465
        %v1183 = vunpack.c.l.b16 %v466
        %v1184 = vunpack.c.l.b16 %v467
        %v1185 = vunpack.c.l.b16 %v468
        %v1186 = vunpack.c.l.b16 %v469
        %v1187 = vunpack.c.l.b16 %v470
        %v1188 = vunpack.c.l.b16 %v471
        %v1189 = vunpack.c.l.b16 %v472
        %v1190 = vunpack.c.l.b16 %v473
        %v1191 = vunpack.c.l.b16 %v474
        %v1192 = vunpack.c.l.b16 %v475
        %v1193 = vunpack.c.l.b16 %v476
        %v1194 = vunpack.c.l.b16 %v477
        %v1195 = vunpack.c.l.b16 %v478
        %v1196 = vunpack.c.l.b16 %v479
        %v1197 = vunpack.c.l.b16 %v480
        %v1198 = vunpack.c.l.b16 %v481
        %v1199 = vunpack.c.l.b16 %v482
        %v1200 = vunpack.c.l.b16 %v483
        %v1201 = vunpack.c.l.b16 %v484
        %v1202 = vunpack.c.l.b16 %v485
        %v1203 = vunpack.c.l.b16 %v486
        %v1204 = vunpack.c.l.b16 %v487
        %v1205 = vunpack.c.l.b16 %v488
        %v1206 = vunpack.c.l.b16 %v489
        %v1207 = vunpack.c.l.b16 %v490
        %v1208 = vunpack.c.l.b16 %v491
        %v1209 = vunpack.c.l.b16 %v492
        %v1210 = vunpack.c.l.b16 %v493
        %v1211 = vunpack.c.l.b16 %v494
        %v1212 = vunpack.c.l.b16 %v495
        %v1213 = vunpack.c.l.b16 %v496
        %v1214 = vunpack.c.l.b16 %v497
        %v1215 = vunpack.c.l.b16 %v498
        %v1216 = vunpack.c.l.b16 %v499
        %v1217 = vunpack.c.l.b16 %v500
        %v1218 = vunpack.c.l.b16 %v501
        %v1219 = vunpack.c.l.b16 %v502
        %v1220 = vunpack.c.l.b16 %v503
        %v1221 = vunpack.c.l.b16 %v504
        %v1222 = vunpack.c.l.b16 %v505
        %v1223 = vunpack.c.l.b16 %v506
        %v1224 = vunpack.c.l.b16 %v507
        %v1225 = vunpack.c.l.b16 %v508
        %v1226 = vunpack.c.l.b16 %v509
        %v1227 = vunpack.c.l.b16 %v510
        %v1228 = vunpack.c.l.b16 %v511
        %v1229 = vunpack.c.l.b16 %v512
        %v1230 = vunpack.c.l.b16 %v513
        %v1231 = vunpack.c.l.b16 %v514
        %v1232 = vunpack.c.l.b16 %v515
        %v1233 = vunpack.c.l.b16 %v516
        %v1234 = vunpack.c.l.b16 %v517
        %v1235 = vunpack.c.l.b16 %v518
        %v1236 = vunpack.c.l.b16 %v519
        %v1237 = vunpack.c.l.b16 %v520
        %v1238 = vunpack.c.l.b16 %v521
        %v1239 = vunpack.c.l.b16 %v522
        %v1240 = vunpack.c.l.b16 %v523
        %v1241 = vunpack.c.l.b16 %v524
        %v1242 = vunpack.c.l.b16 %v525
        %v1243 = vunpack.c.l.b16 %v526
        %v1244 = vunpack.c.l.b16 %v527
        %v1245 = vunpack.c.l.b16 %v528
        %v1246 = vunpack.c.l.b16 %v529
        %v1247 = vpack.c.b16 %v960, %v959
        %v1248 = vpack.c.b16 %v962, %v961
        %v1249 = vpack.c.b16 %v964, %v963
        %v1250 = vpack.c.b16 %v966, %v965
        %v1251 = vpack.c.b16 %v968, %v967
        %v1252 = vpack.c.b16 %v970, %v969
        %v1253 = vpack.c.b16 %v972, %v971
        %v1254 = vpack.c.b16 %v974, %v973
        %v1255 = vpack.c.b16 %v976, %v975
        %v1256 = vpack.c.b16 %v978, %v977
        %v1257 = vpack.c.b16 %v980, %v979
        %v1258 = vpack.c.b16 %v982, %v981
        %v1259 = vpack.c.b16 %v984, %v983
        %v1260 = vpack.c.b16 %v986, %v985
        %v1261 = vpack.c.b16 %v988, %v987
        %v1262 = vpack.c.b16 %v990, %v989
        %v1263 = vpack.c.b16 %v992, %v991
        %v1264 = vpack.c.b16 %v994, %v993
        %v1265 = vpack.c.b16 %v996, %v995
        %v1266 = vpack.c.b16 %v998, %v997
        %v1267 = vpack.c.b16 %v1000, %v999
        %v1268 = vpack.c.b16 %v1002, %v1001
        %v1269 = vpack.c.b16 %v1004, %v1003
        %v1270 = vpack.c.b16 %v1006, %v1005
        %v1271 = vpack.c.b16 %v1008, %v1007
        %v1272 = vpack.c.b16 %v1010, %v1009
        %v1273 = vpack.c.b16 %v1012, %v1011
        %v1274 = vpack.c.b16 %v1014, %v1013
        %v1275 = vpack.c.b16 %v1016, %v1015
        %v1276 = vpack.c.b16 %v1018, %v1017
        %v1277 = vpack.c.b16 %v1020, %v1019
        %v1278 = vpack.c.b16 %v1022, %v1021
        %v1279 = vpack.c.b16 %v1024, %v1023
        %v1280 = vpack.c.b16 %v1026, %v1025
        %v1281 = vpack.c.b16 %v1028, %v1027
        %v1282 = vpack.c.b16 %v1030, %v1029
        %v1283 = vpack.c.b16 %v1032, %v1031
        %v1284 = vpack.c.b16 %v1034, %v1033
        %v1285 = vpack.c.b16 %v1036, %v1035
        %v1286 = vpack.c.b16 %v1038, %v1037
        %v1287 = vpack.c.b16 %v1040, %v1039
        %v1288 = vpack.c.b16 %v1042, %v1041
        %v1289 = vpack.c.b16 %v1044, %v1043
        %v1290 = vpack.c.b16 %v1046, %v1045
        %v1291 = vpack.c.b16 %v1048, %v1047
        %v1292 = vpack.c.b16 %v1050, %v1049
        %v1293 = vpack.c.b16 %v1052, %v1051
        %v1294 = vpack.c.b16 %v1054, %v1053
        %v1295 = vpack.c.b16 %v1056, %v1055
        %v1296 = vpack.c.b16 %v1058, %v1057
        %v1297 = vpack.c.b16 %v1060, %v1059
        %v1298 = vpack.c.b16 %v1062, %v1061
        %v1299 = vpack.c.b16 %v1064, %v1063
        %v1300 = vpack.c.b16 %v1066, %v1065
        %v1301 = vpack.c.b16 %v1068, %v1067
        %v1302 = vpack.c.b16 %v1070, %v1069
        %v1303 = vpack.c.b16 %v1072, %v1071
        %v1304 = vpack.c.b16 %v1074, %v1073
        %v1305 = vpack.c.b16 %v1076, %v1075
        %v1306 = vpack.c.b16 %v1078, %v1077
        %v1307 = vpack.c.b16 %v1080, %v1079
        %v1308 = vpack.c.b16 %v1082, %v1081
        %v1309 = vpack.c.b16 %v1084, %v1083
        %v1310 = vpack.c.b16 %v1086, %v1085
        %v1311 = vpack.c.b16 %v1088, %v1087
        %v1312 = vpack.c.b16 %v1090, %v1089
        %v1313 = vpack.c.b16 %v1092, %v1091
        %v1314 = vpack.c.b16 %v1094, %v1093
        %v1315 = vpack.c.b16 %v1096, %v1095
        %v1316 = vpack.c.b16 %v1098, %v1097
        %v1317 = vpack.c.b16 %v1100, %v1099
        %v1318 = vpack.c.b16 %v1102, %v1101
        %v1319 = vpack.c.b16 %v1104, %v1103
        %v1320 = vpack.c.b16 %v1106, %v1105
        %v1321 = vpack.c.b16 %v1108, %v1107
        %v1322 = vpack.c.b16 %v1110, %v1109
        %v1323 = vpack.c.b16 %v1112, %v1111
        %v1324 = vpack.c.b16 %v1114, %v1113
        %v1325 = vpack.c.b16 %v1116, %v1115
        %v1326 = vpack.c.b16 %v1118, %v1117
        %v1327 = vpack.c.b16 %v1120, %v1119
        %v1328 = vpack.c.b16 %v1122, %v1121
        %v1329 = vpack.c.b16 %v1124, %v1123
        %v1330 = vpack.c.b16 %v1126, %v1125
        %v1331 = vpack.c.b16 %v1128, %v1127
        %v1332 = vpack.c.b16 %v1130, %v1129
        %v1333 = vpack.c.b16 %v1132, %v1131
        %v1334 = vpack.c.b16 %v1134, %v1133
        %v1335 = vpack.c.b16 %v1136, %v1135
        %v1336 = vpack.c.b16 %v1138, %v1137
        %v1337 = vpack.c.b16 %v1140, %v1139
        %v1338 = vpack.c.b16 %v1142, %v1141
        %v1339 = vpack.c.b16 %v1144, %v1143
        %v1340 = vpack.c.b16 %v1146, %v1145
        %v1341 = vpack.c.b16 %v1148, %v1147
        %v1342 = vpack.c.b16 %v1150, %v1149
        %v1343 = vpack.c.b16 %v1152, %v1151
        %v1344 = vpack.c.b16 %v1154, %v1153
        %v1345 = vpack.c.b16 %v1156, %v1155
        %v1346 = vpack.c.b16 %v1158, %v1157
        %v1347 = vpack.c.b16 %v1160, %v1159
        %v1348 = vpack.c.b16 %v1162, %v1161
        %v1349 = vpack.c.b16 %v1164, %v1163
        %v1350 = vpack.c.b16 %v1166, %v1165
        %v1351 = vpack.c.b16 %v1168, %v1167
        %v1352 = vpack.c.b16 %v1170, %v1169
        %v1353 = vpack.c.b16 %v1172, %v1171
        %v1354 = vpack.c.b16 %v1174, %v1173
        %v1355 = vpack.c.b16 %v1176, %v1175
        %v1356 = vpack.c.b16 %v1178, %v1177
        %v1357 = vpack.c.b16 %v1180, %v1179
        %v1358 = vpack.c.b16 %v1182, %v1181
        %v1359 = vpack.c.b16 %v1184, %v1183
        %v1360 = vpack.c.b16 %v1186, %v1185
        %v1361 = vpack.c.b16 %v1188, %v1187
        %v1362 = vpack.c.b16 %v1190, %v1189
        %v1363 = vpack.c.b16 %v1192, %v1191
        %v1364 = vpack.c.b16 %v1194, %v1193
        %v1365 = vpack.c.b16 %v1196, %v1195
        %v1366 = vpack.c.b16 %v1198, %v1197
        %v1367 = vpack.c.b16 %v1200, %v1199
        %v1368 = vpack.c.b16 %v1202, %v1201
        %v1369 = vpack.c.b16 %v1204, %v1203
        %v1370 = vpack.c.b16 %v1206, %v1205
        %v1371 = vpack.c.b16 %v1208, %v1207
        %v1372 = vpack.c.b16 %v1210, %v1209
        %v1373 = vpack.c.b16 %v1212, %v1211
        %v1374 = vpack.c.b16 %v1214, %v1213
        %v1375 = vpack.c.b16 %v1216, %v1215
        %v1376 = vpack.c.b16 %v1218, %v1217
        %v1377 = vpack.c.b16 %v1220, %v1219
        %v1378 = vpack.c.b16 %v1222, %v1221
        %v1379 = vpack.c.b16 %v1224, %v1223
        %v1380 = vpack.c.b16 %v1226, %v1225
        %v1381 = vpack.c.b16 %v1228, %v1227
        %v1382 = vpack.c.b16 %v1230, %v1229
        %v1383 = vpack.c.b16 %v1232, %v1231
        %v1384 = vpack.c.b16 %v1234, %v1233
        %v1385 = vpack.c.b16 %v1236, %v1235
        %v1386 = vpack.c.b16 %v1238, %v1237
        %v1387 = vpack.c.b16 %v1240, %v1239
        %v1388 = vpack.c.b16 %v1242, %v1241
        %v1389 = vpack.c.b16 %v1244, %v1243
        %v1390 = vpack.c.b16 %v1246, %v1245
        %1535 = vmatprep.subr.bf16.mxu0 0
        %1536 = vmatpush1.bf16.msra.mxu0 %v1247
        %1537 = vmatprep.subr.bf16.mxu0 0
        %1538 = vmatpush1.bf16.msra.mxu0 %v1248
        %1539 = vmatprep.subr.bf16.mxu0 0
        %1540 = vmatpush1.bf16.msra.mxu0 %v1249
        %1541 = vmatprep.subr.bf16.mxu0 0
        %1542 = vmatpush1.bf16.msra.mxu0 %v1250
        %1543 = vmatprep.subr.bf16.mxu0 0
        %1544 = vmatpush1.bf16.msra.mxu0 %v1251
        %1545 = vmatprep.subr.bf16.mxu0 0
        %1546 = vmatpush1.bf16.msra.mxu0 %v1252
        %1547 = vmatprep.subr.bf16.mxu0 0
        %1548 = vmatpush1.bf16.msra.mxu0 %v1253
        %1549 = vmatprep.subr.bf16.mxu0 0
        %1550 = vmatpush1.bf16.msra.mxu0 %v1254
        %1551 = vmatprep.subr.bf16.mxu0 0
        %1552 = vmatpush1.bf16.msra.mxu0 %v1255
        %1553 = vmatprep.subr.bf16.mxu0 0
        %1554 = vmatpush1.bf16.msra.mxu0 %v1256
        %1555 = vmatprep.subr.bf16.mxu0 0
        %1556 = vmatpush1.bf16.msra.mxu0 %v1257
        %1557 = vmatprep.subr.bf16.mxu0 0
        %1558 = vmatpush1.bf16.msra.mxu0 %v1258
        %1559 = vmatprep.subr.bf16.mxu0 0
        %1560 = vmatpush1.bf16.msra.mxu0 %v1259
        %1561 = vmatprep.subr.bf16.mxu0 0
        %1562 = vmatpush1.bf16.msra.mxu0 %v1260
        %1563 = vmatprep.subr.bf16.mxu0 0
        %1564 = vmatpush1.bf16.msra.mxu0 %v1261
        %1565 = vmatprep.subr.bf16.mxu0 0
        %1566 = vmatpush1.bf16.msra.mxu0 %v1262
        %1567 = vmatprep.mubr.bf16.mxu0 %v570
        %1568 = vmatmul.mubr.bf16.gmra.mrb[0].mxu0 %v556
        %v1569 = vpop.f32.mrb[0].mxu0
        %v1570 = vadd.f32 0.0, %v1569
        %v1571 = vpop.f32.mrb[0].mxu0
        %v1572 = vpop.f32.mrb[0].mxu0
        %v1573 = vpop.f32.mrb[0].mxu0
        %1574 = vdwg.mxu0
        %1575 = vmatprep.subr.bf16.mxu0 0
        %1576 = vmatpush1.bf16.msra.mxu0 %v1263
        %1577 = vmatprep.subr.bf16.mxu0 0
        %1578 = vmatpush1.bf16.msra.mxu0 %v1264
        %1579 = vmatprep.subr.bf16.mxu0 0
        %1580 = vmatpush1.bf16.msra.mxu0 %v1265
        %1581 = vmatprep.subr.bf16.mxu0 0
        %1582 = vmatpush1.bf16.msra.mxu0 %v1266
        %1583 = vmatprep.subr.bf16.mxu0 0
        %1584 = vmatpush1.bf16.msra.mxu0 %v1267
        %1585 = vmatprep.subr.bf16.mxu0 0
        %1586 = vmatpush1.bf16.msra.mxu0 %v1268
        %1587 = vmatprep.subr.bf16.mxu0 0
        %1588 = vmatpush1.bf16.msra.mxu0 %v1269
        %1589 = vmatprep.subr.bf16.mxu0 0
        %1590 = vmatpush1.bf16.msra.mxu0 %v1270
        %1591 = vmatprep.subr.bf16.mxu0 0
        %1592 = vmatpush1.bf16.msra.mxu0 %v1271
        %1593 = vmatprep.subr.bf16.mxu0 0
        %1594 = vmatpush1.bf16.msra.mxu0 %v1272
        %1595 = vmatprep.subr.bf16.mxu0 0
        %1596 = vmatpush1.bf16.msra.mxu0 %v1273
        %1597 = vmatprep.subr.bf16.mxu0 0
        %1598 = vmatpush1.bf16.msra.mxu0 %v1274
        %1599 = vmatprep.subr.bf16.mxu0 0
        %1600 = vmatpush1.bf16.msra.mxu0 %v1275
        %1601 = vmatprep.subr.bf16.mxu0 0
        %1602 = vmatpush1.bf16.msra.mxu0 %v1276
        %1603 = vmatprep.subr.bf16.mxu0 0
        %1604 = vmatpush1.bf16.msra.mxu0 %v1277
        %1605 = vmatprep.subr.bf16.mxu0 0
        %1606 = vmatpush1.bf16.msra.mxu0 %v1278
        %1607 = vmatprep.mubr.bf16.mxu0 %v580
        %1608 = vmatmul.mubr.bf16.gmra.mrb[0].mxu0 %v578
        %v1609 = vpop.f32.mrb[0].mxu0
        %v1610 = vadd.f32 %v1570, %v1609
        %v1611 = vpop.f32.mrb[0].mxu0
        %v1612 = vpop.f32.mrb[0].mxu0
        %v1613 = vpop.f32.mrb[0].mxu0
        %1614 = vdwg.mxu0
        %1615 = vmatprep.subr.bf16.mxu0 0
        %1616 = vmatpush1.bf16.msra.mxu0 %v1279
        %1617 = vmatprep.subr.bf16.mxu0 0
        %1618 = vmatpush1.bf16.msra.mxu0 %v1280
        %1619 = vmatprep.subr.bf16.mxu0 0
        %1620 = vmatpush1.bf16.msra.mxu0 %v1281
        %1621 = vmatprep.subr.bf16.mxu0 0
        %1622 = vmatpush1.bf16.msra.mxu0 %v1282
        %1623 = vmatprep.subr.bf16.mxu0 0
        %1624 = vmatpush1.bf16.msra.mxu0 %v1283
        %1625 = vmatprep.subr.bf16.mxu0 0
        %1626 = vmatpush1.bf16.msra.mxu0 %v1284
        %1627 = vmatprep.subr.bf16.mxu0 0
        %1628 = vmatpush1.bf16.msra.mxu0 %v1285
        %1629 = vmatprep.subr.bf16.mxu0 0
        %1630 = vmatpush1.bf16.msra.mxu0 %v1286
        %1631 = vmatprep.subr.bf16.mxu0 0
        %1632 = vmatpush1.bf16.msra.mxu0 %v1287
        %1633 = vmatprep.subr.bf16.mxu0 0
        %1634 = vmatpush1.bf16.msra.mxu0 %v1288
        %1635 = vmatprep.subr.bf16.mxu0 0
        %1636 = vmatpush1.bf16.msra.mxu0 %v1289
        %1637 = vmatprep.subr.bf16.mxu0 0
        %1638 = vmatpush1.bf16.msra.mxu0 %v1290
        %1639 = vmatprep.subr.bf16.mxu0 0
        %1640 = vmatpush1.bf16.msra.mxu0 %v1291
        %1641 = vmatprep.subr.bf16.mxu0 0
        %1642 = vmatpush1.bf16.msra.mxu0 %v1292
        %1643 = vmatprep.subr.bf16.mxu0 0
        %1644 = vmatpush1.bf16.msra.mxu0 %v1293
        %1645 = vmatprep.subr.bf16.mxu0 0
        %1646 = vmatpush1.bf16.msra.mxu0 %v1294
        %1647 = vmatprep.mubr.bf16.mxu0 %v577
        %1648 = vmatmul.mubr.bf16.gmra.mrb[0].mxu0 %v563
        %v1649 = vpop.f32.mrb[0].mxu0
        %v1650 = vadd.f32 %v1610, %v1649
        %v1651 = vpop.f32.mrb[0].mxu0
        %v1652 = vpop.f32.mrb[0].mxu0
        %v1653 = vpop.f32.mrb[0].mxu0
        %1654 = vdwg.mxu0
        %1655 = vmatprep.subr.bf16.mxu0 0
        %1656 = vmatpush1.bf16.msra.mxu0 %v1295
        %1657 = vmatprep.subr.bf16.mxu0 0
        %1658 = vmatpush1.bf16.msra.mxu0 %v1296
        %1659 = vmatprep.subr.bf16.mxu0 0
        %1660 = vmatpush1.bf16.msra.mxu0 %v1297
        %1661 = vmatprep.subr.bf16.mxu0 0
        %1662 = vmatpush1.bf16.msra.mxu0 %v1298
        %1663 = vmatprep.subr.bf16.mxu0 0
        %1664 = vmatpush1.bf16.msra.mxu0 %v1299
        %1665 = vmatprep.subr.bf16.mxu0 0
        %1666 = vmatpush1.bf16.msra.mxu0 %v1300
        %1667 = vmatprep.subr.bf16.mxu0 0
        %1668 = vmatpush1.bf16.msra.mxu0 %v1301
        %1669 = vmatprep.subr.bf16.mxu0 0
        %1670 = vmatpush1.bf16.msra.mxu0 %v1302
        %1671 = vmatprep.subr.bf16.mxu0 0
        %1672 = vmatpush1.bf16.msra.mxu0 %v1303
        %1673 = vmatprep.subr.bf16.mxu0 0
        %1674 = vmatpush1.bf16.msra.mxu0 %v1304
        %1675 = vmatprep.subr.bf16.mxu0 0
        %1676 = vmatpush1.bf16.msra.mxu0 %v1305
        %1677 = vmatprep.subr.bf16.mxu0 0
        %1678 = vmatpush1.bf16.msra.mxu0 %v1306
        %1679 = vmatprep.subr.bf16.mxu0 0
        %1680 = vmatpush1.bf16.msra.mxu0 %v1307
        %1681 = vmatprep.subr.bf16.mxu0 0
        %1682 = vmatpush1.bf16.msra.mxu0 %v1308
        %1683 = vmatprep.subr.bf16.mxu0 0
        %1684 = vmatpush1.bf16.msra.mxu0 %v1309
        %1685 = vmatprep.subr.bf16.mxu0 0
        %1686 = vmatpush1.bf16.msra.mxu0 %v1310
        %1687 = vmatprep.mubr.bf16.mxu0 %v581
        %1688 = vmatmul.mubr.bf16.gmra.mrb[0].mxu0 %v579
        %v1689 = vpop.f32.mrb[0].mxu0
        %v1690 = vadd.f32 %v1650, %v1689
        %v1691 = vpop.f32.mrb[0].mxu0
        %v1692 = vpop.f32.mrb[0].mxu0
        %v1693 = vpop.f32.mrb[0].mxu0
        %1694 = vdwg.mxu0
        %1695 = vmatprep.subr.bf16.mxu0 0
        %1696 = vmatpush1.bf16.msra.mxu0 %v1311
        %1697 = vmatprep.subr.bf16.mxu0 0
        %1698 = vmatpush1.bf16.msra.mxu0 %v1312
        %1699 = vmatprep.subr.bf16.mxu0 0
        %1700 = vmatpush1.bf16.msra.mxu0 %v1313
        %1701 = vmatprep.subr.bf16.mxu0 0
        %1702 = vmatpush1.bf16.msra.mxu0 %v1314
        %1703 = vmatprep.subr.bf16.mxu0 0
        %1704 = vmatpush1.bf16.msra.mxu0 %v1315
        %1705 = vmatprep.subr.bf16.mxu0 0
        %1706 = vmatpush1.bf16.msra.mxu0 %v1316
        %1707 = vmatprep.subr.bf16.mxu0 0
        %1708 = vmatpush1.bf16.msra.mxu0 %v1317
        %1709 = vmatprep.subr.bf16.mxu0 0
        %1710 = vmatpush1.bf16.msra.mxu0 %v1318
        %1711 = vmatprep.subr.bf16.mxu0 0
        %1712 = vmatpush1.bf16.msra.mxu0 %v1319
        %1713 = vmatprep.subr.bf16.mxu0 0
        %1714 = vmatpush1.bf16.msra.mxu0 %v1320
        %1715 = vmatprep.subr.bf16.mxu0 0
        %1716 = vmatpush1.bf16.msra.mxu0 %v1321
        %1717 = vmatprep.subr.bf16.mxu0 0
        %1718 = vmatpush1.bf16.msra.mxu0 %v1322
        %1719 = vmatprep.subr.bf16.mxu0 0
        %1720 = vmatpush1.bf16.msra.mxu0 %v1323
        %1721 = vmatprep.subr.bf16.mxu0 0
        %1722 = vmatpush1.bf16.msra.mxu0 %v1324
        %1723 = vmatprep.subr.bf16.mxu0 0
        %1724 = vmatpush1.bf16.msra.mxu0 %v1325
        %1725 = vmatprep.subr.bf16.mxu0 0
        %1726 = vmatpush1.bf16.msra.mxu0 %v1326
        %1727 = vmatprep.mubr.bf16.mxu0 %v619
        %1728 = vmatmul.mubr.bf16.gmra.mrb[0].mxu0 %v605
        %v1729 = vpop.f32.mrb[0].mxu0
        %v1730 = vadd.f32 %v1690, %v1729
        %v1731 = vpop.f32.mrb[0].mxu0
        %v1732 = vpop.f32.mrb[0].mxu0
        %v1733 = vpop.f32.mrb[0].mxu0
        %1734 = vdwg.mxu0
        %1735 = vmatprep.subr.bf16.mxu0 0
        %1736 = vmatpush1.bf16.msra.mxu0 %v1327
        %1737 = vmatprep.subr.bf16.mxu0 0
        %1738 = vmatpush1.bf16.msra.mxu0 %v1328
        %1739 = vmatprep.subr.bf16.mxu0 0
        %1740 = vmatpush1.bf16.msra.mxu0 %v1329
        %1741 = vmatprep.subr.bf16.mxu0 0
        %1742 = vmatpush1.bf16.msra.mxu0 %v1330
        %1743 = vmatprep.subr.bf16.mxu0 0
        %1744 = vmatpush1.bf16.msra.mxu0 %v1331
        %1745 = vmatprep.subr.bf16.mxu0 0
        %1746 = vmatpush1.bf16.msra.mxu0 %v1332
        %1747 = vmatprep.subr.bf16.mxu0 0
        %1748 = vmatpush1.bf16.msra.mxu0 %v1333
        %1749 = vmatprep.subr.bf16.mxu0 0
        %1750 = vmatpush1.bf16.msra.mxu0 %v1334
        %1751 = vmatprep.subr.bf16.mxu0 0
        %1752 = vmatpush1.bf16.msra.mxu0 %v1335
        %1753 = vmatprep.subr.bf16.mxu0 0
        %1754 = vmatpush1.bf16.msra.mxu0 %v1336
        %1755 = vmatprep.subr.bf16.mxu0 0
        %1756 = vmatpush1.bf16.msra.mxu0 %v1337
        %1757 = vmatprep.subr.bf16.mxu0 0
        %1758 = vmatpush1.bf16.msra.mxu0 %v1338
        %1759 = vmatprep.subr.bf16.mxu0 0
        %1760 = vmatpush1.bf16.msra.mxu0 %v1339
        %1761 = vmatprep.subr.bf16.mxu0 0
        %1762 = vmatpush1.bf16.msra.mxu0 %v1340
        %1763 = vmatprep.subr.bf16.mxu0 0
        %1764 = vmatpush1.bf16.msra.mxu0 %v1341
        %1765 = vmatprep.subr.bf16.mxu0 0
        %1766 = vmatpush1.bf16.msra.mxu0 %v1342
        %1767 = vmatprep.mubr.bf16.mxu0 %v629
        %1768 = vmatmul.mubr.bf16.gmra.mrb[0].mxu0 %v627
        %v1769 = vpop.f32.mrb[0].mxu0
        %v1770 = vadd.f32 %v1730, %v1769
        %v1771 = vpop.f32.mrb[0].mxu0
        %v1772 = vpop.f32.mrb[0].mxu0
        %v1773 = vpop.f32.mrb[0].mxu0
        %1774 = vdwg.mxu0
        %1775 = vmatprep.subr.bf16.mxu0 0
        %1776 = vmatpush1.bf16.msra.mxu0 %v1343
        %1777 = vmatprep.subr.bf16.mxu0 0
        %1778 = vmatpush1.bf16.msra.mxu0 %v1344
        %1779 = vmatprep.subr.bf16.mxu0 0
        %1780 = vmatpush1.bf16.msra.mxu0 %v1345
        %1781 = vmatprep.subr.bf16.mxu0 0
        %1782 = vmatpush1.bf16.msra.mxu0 %v1346
        %1783 = vmatprep.subr.bf16.mxu0 0
        %1784 = vmatpush1.bf16.msra.mxu0 %v1347
        %1785 = vmatprep.subr.bf16.mxu0 0
        %1786 = vmatpush1.bf16.msra.mxu0 %v1348
        %1787 = vmatprep.subr.bf16.mxu0 0
        %1788 = vmatpush1.bf16.msra.mxu0 %v1349
        %1789 = vmatprep.subr.bf16.mxu0 0
        %1790 = vmatpush1.bf16.msra.mxu0 %v1350
        %1791 = vmatprep.subr.bf16.mxu0 0
        %1792 = vmatpush1.bf16.msra.mxu0 %v1351
        %1793 = vmatprep.subr.bf16.mxu0 0
        %1794 = vmatpush1.bf16.msra.mxu0 %v1352
        %1795 = vmatprep.subr.bf16.mxu0 0
        %1796 = vmatpush1.bf16.msra.mxu0 %v1353
        %1797 = vmatprep.subr.bf16.mxu0 0
        %1798 = vmatpush1.bf16.msra.mxu0 %v1354
        %1799 = vmatprep.subr.bf16.mxu0 0
        %1800 = vmatpush1.bf16.msra.mxu0 %v1355
        %1801 = vmatprep.subr.bf16.mxu0 0
        %1802 = vmatpush1.bf16.msra.mxu0 %v1356
        %1803 = vmatprep.subr.bf16.mxu0 0
        %1804 = vmatpush1.bf16.msra.mxu0 %v1357
        %1805 = vmatprep.subr.bf16.mxu0 0
        %1806 = vmatpush1.bf16.msra.mxu0 %v1358
        %1807 = vmatprep.mubr.bf16.mxu0 %v626
        %1808 = vmatmul.mubr.bf16.gmra.mrb[0].mxu0 %v612
        %v1809 = vpop.f32.mrb[0].mxu0
        %v1810 = vadd.f32 %v1770, %v1809
        %v1811 = vpop.f32.mrb[0].mxu0
        %v1812 = vpop.f32.mrb[0].mxu0
        %v1813 = vpop.f32.mrb[0].mxu0
        %1814 = vdwg.mxu0
        %1815 = vmatprep.subr.bf16.mxu0 0
        %1816 = vmatpush1.bf16.msra.mxu0 %v1359
        %1817 = vmatprep.subr.bf16.mxu0 0
        %1818 = vmatpush1.bf16.msra.mxu0 %v1360
        %1819 = vmatprep.subr.bf16.mxu0 0
        %1820 = vmatpush1.bf16.msra.mxu0 %v1361
        %1821 = vmatprep.subr.bf16.mxu0 0
        %1822 = vmatpush1.bf16.msra.mxu0 %v1362
        %1823 = vmatprep.subr.bf16.mxu0 0
        %1824 = vmatpush1.bf16.msra.mxu0 %v1363
        %1825 = vmatprep.subr.bf16.mxu0 0
        %1826 = vmatpush1.bf16.msra.mxu0 %v1364
        %1827 = vmatprep.subr.bf16.mxu0 0
        %1828 = vmatpush1.bf16.msra.mxu0 %v1365
        %1829 = vmatprep.subr.bf16.mxu0 0
        %1830 = vmatpush1.bf16.msra.mxu0 %v1366
        %1831 = vmatprep.subr.bf16.mxu0 0
        %1832 = vmatpush1.bf16.msra.mxu0 %v1367
        %1833 = vmatprep.subr.bf16.mxu0 0
        %1834 = vmatpush1.bf16.msra.mxu0 %v1368
        %1835 = vmatprep.subr.bf16.mxu0 0
        %1836 = vmatpush1.bf16.msra.mxu0 %v1369
        %1837 = vmatprep.subr.bf16.mxu0 0
        %1838 = vmatpush1.bf16.msra.mxu0 %v1370
        %1839 = vmatprep.subr.bf16.mxu0 0
        %1840 = vmatpush1.bf16.msra.mxu0 %v1371
        %1841 = vmatprep.subr.bf16.mxu0 0
        %1842 = vmatpush1.bf16.msra.mxu0 %v1372
        %1843 = vmatprep.subr.bf16.mxu0 0
        %1844 = vmatpush1.bf16.msra.mxu0 %v1373
        %1845 = vmatprep.subr.bf16.mxu0 0
        %1846 = vmatpush1.bf16.msra.mxu0 %v1374
        %1847 = vmatprep.mubr.bf16.mxu0 %v630
        %1848 = vmatmul.mubr.bf16.gmra.mrb[0].mxu0 %v628
        %v1849 = vpop.f32.mrb[0].mxu0
        %v1850 = vadd.f32 %v1810, %v1849
        %v1851 = vpop.f32.mrb[0].mxu0
        %v1852 = vpop.f32.mrb[0].mxu0
        %v1853 = vpop.f32.mrb[0].mxu0
        %1854 = vdwg.mxu0
        %1855 = vmatprep.subr.bf16.mxu0 0
        %1856 = vmatpush1.bf16.msra.mxu0 %v1375
        %1857 = vmatprep.subr.bf16.mxu0 0
        %1858 = vmatpush1.bf16.msra.mxu0 %v1376
        %1859 = vmatprep.subr.bf16.mxu0 0
        %1860 = vmatpush1.bf16.msra.mxu0 %v1377
        %1861 = vmatprep.subr.bf16.mxu0 0
        %1862 = vmatpush1.bf16.msra.mxu0 %v1378
        %1863 = vmatprep.subr.bf16.mxu0 0
        %1864 = vmatpush1.bf16.msra.mxu0 %v1379
        %1865 = vmatprep.subr.bf16.mxu0 0
        %1866 = vmatpush1.bf16.msra.mxu0 %v1380
        %1867 = vmatprep.subr.bf16.mxu0 0
        %1868 = vmatpush1.bf16.msra.mxu0 %v1381
        %1869 = vmatprep.subr.bf16.mxu0 0
        %1870 = vmatpush1.bf16.msra.mxu0 %v1382
        %1871 = vmatprep.subr.bf16.mxu0 0
        %1872 = vmatpush1.bf16.msra.mxu0 %v1383
        %1873 = vmatprep.subr.bf16.mxu0 0
        %1874 = vmatpush1.bf16.msra.mxu0 %v1384
        %1875 = vmatprep.subr.bf16.mxu0 0
        %1876 = vmatpush1.bf16.msra.mxu0 %v1385
        %1877 = vmatprep.subr.bf16.mxu0 0
        %1878 = vmatpush1.bf16.msra.mxu0 %v1386
        %1879 = vmatprep.subr.bf16.mxu0 0
        %1880 = vmatpush1.bf16.msra.mxu0 %v1387
        %1881 = vmatprep.subr.bf16.mxu0 0
        %1882 = vmatpush1.bf16.msra.mxu0 %v1388
        %1883 = vmatprep.subr.bf16.mxu0 0
        %1884 = vmatpush1.bf16.msra.mxu0 %v1389
        %1885 = vmatprep.subr.bf16.mxu0 0
        %1886 = vmatpush1.bf16.msra.mxu0 %v1390
        %1887 = vmatprep.mubr.bf16.mxu0 %v652
        %1888 = vmatmul.mubr.bf16.gmra.mrb[0].mxu0 %v645
        %v1889 = vpop.f32.mrb[0].mxu0
        %v1890 = vadd.f32 %v1850, %v1889
        %v1891 = vpop.f32.mrb[0].mxu0
        %v1892 = vpop.f32.mrb[0].mxu0
        %v1893 = vpop.f32.mrb[0].mxu0
        %1894 = vdwg.mxu0
        %v1895 = vadd.f32 %v238, %v1890
        %1896 = vst [vmem:[#allocation2] sm:$0x3] %v1895
        %p1897 = scmp.eq.s32.totalorder %s17, 3
        // Predicated region
        $region45: #{net_forward.3} parent=39 // pred_check
          %p1898 = pneg %p1897
        $region46: #{net_forward.3} parent=39 // pred_check_branch
          %1900 = sbr.rel (%p1898) target = $region48
        $region47: #{net_forward.3} parent=39 // pred_region
          %v1901 = vld [vmem:[#allocation2] sm:$0x3]
          %v1902 = vld [vmem:[%s2] sm:$0x1]
          %v1904 = vlaneseq
          %v1905 = vshrl.u32 %v1904, 7
          %v1906 = vsub.s32 0, %v1905
          %v1907 = vrot.slane %v1902, %v1906
          %v1909 = vadd.f32 %v1901, %v1907
          %v1910 = vmax.f32 %v1909, 0.0
          %v1911 = vld [vmem:[%s3] sm:$0xff]
          %v1912 = vld [vmem:[%s3 + $0x8] sm:$0xff]
          %v1913 = vld [vmem:[%s3 + $0x10] sm:$0xff]
          %v1914 = vld [vmem:[%s3 + $0x18] sm:$0xff]
          %v1915 = vld [vmem:[%s3 + $0x20] sm:$0xff]
          %v1916 = vld [vmem:[%s3 + $0x28] sm:$0xff]
          %v1917 = vld [vmem:[%s3 + $0x30] sm:$0xff]
          %v1918 = vld [vmem:[%s3 + $0x38] sm:$0xff]
          %v1919 = vld [vmem:[%s3 + $0x40] sm:$0xff]
          %v1920 = vld [vmem:[%s3 + $0x48] sm:$0xff]
          %v1921 = vld [vmem:[%s3 + $0x50] sm:$0xff]
          %v1922 = vld [vmem:[%s3 + $0x58] sm:$0xff]
          %v1923 = vld [vmem:[%s3 + $0x60] sm:$0xff]
          %v1924 = vld [vmem:[%s3 + $0x68] sm:$0xff]
          %v1925 = vld [vmem:[%s3 + $0x70] sm:$0xff]
          %v1926 = vld [vmem:[%s3 + $0x78] sm:$0xff]
          %v1927 = vld [vmem:[%s4] sm:$0x1]
          %v1929 = vlaneseq
          %v1930 = vshrl.u32 %v1929, 7
          %v1931 = vsub.s32 0, %v1930
          %v1932 = vrot.slane %v1927, %v1931
          %1934 = vmatprep.subr.mxu0 0.0
          %1935 = vmatpush1.msra.mxu0 %v1911
          %1936 = vmatprep.subr.mxu0 0.0
          %1937 = vmatpush1.msra.mxu0 %v1912
          %1938 = vmatprep.subr.mxu0 0.0
          %1939 = vmatpush1.msra.mxu0 %v1913
          %1940 = vmatprep.subr.mxu0 0.0
          %1941 = vmatpush1.msra.mxu0 %v1914
          %1942 = vmatprep.subr.mxu0 0.0
          %1943 = vmatpush1.msra.mxu0 %v1915
          %1944 = vmatprep.subr.mxu0 0.0
          %1945 = vmatpush1.msra.mxu0 %v1916
          %1946 = vmatprep.subr.mxu0 0.0
          %1947 = vmatpush1.msra.mxu0 %v1917
          %1948 = vmatprep.subr.mxu0 0.0
          %1949 = vmatpush1.msra.mxu0 %v1918
          %1950 = vmatprep.subr.mxu0 0.0
          %1951 = vmatpush1.msra.mxu0 %v1919
          %1952 = vmatprep.subr.mxu0 0.0
          %1953 = vmatpush1.msra.mxu0 %v1920
          %1954 = vmatprep.subr.mxu0 0.0
          %1955 = vmatpush1.msra.mxu0 %v1921
          %1956 = vmatprep.subr.mxu0 0.0
          %1957 = vmatpush1.msra.mxu0 %v1922
          %1958 = vmatprep.subr.mxu0 0.0
          %1959 = vmatpush1.msra.mxu0 %v1923
          %1960 = vmatprep.subr.mxu0 0.0
          %1961 = vmatpush1.msra.mxu0 %v1924
          %1962 = vmatprep.subr.mxu0 0.0
          %1963 = vmatpush1.msra.mxu0 %v1925
          %1964 = vmatprep.subr.mxu0 0.0
          %1965 = vmatpush1.msra.mxu0 %v1926
          %1966 = vmatprep.subr.mxu0 0.0
          %1967 = vmatpush1.msra.mxu0 0.0
          %1968 = vmatprep.subr.mxu0 0.0
          %1969 = vmatpush1.msra.mxu0 0.0
          %1970 = vmatprep.subr.mxu0 0.0
          %1971 = vmatpush1.msra.mxu0 0.0
          %1972 = vmatprep.subr.mxu0 0.0
          %1973 = vmatpush1.msra.mxu0 0.0
          %1974 = vmatprep.subr.mxu0 0.0
          %1975 = vmatpush1.msra.mxu0 0.0
          %1976 = vmatprep.subr.mxu0 0.0
          %1977 = vmatpush1.msra.mxu0 0.0
          %1978 = vmatprep.subr.mxu0 0.0
          %1979 = vmatpush1.msra.mxu0 0.0
          %1980 = vmatprep.subr.mxu0 0.0
          %1981 = vmatpush1.msra.mxu0 0.0
          %1982 = vmatprep.subr.mxu0 0.0
          %1983 = vmatpush1.msra.mxu0 0.0
          %1984 = vmatprep.subr.mxu0 0.0
          %1985 = vmatpush1.msra.mxu0 0.0
          %1986 = vmatprep.subr.mxu0 0.0
          %1987 = vmatpush1.msra.mxu0 0.0
          %1988 = vmatprep.subr.mxu0 0.0
          %1989 = vmatpush1.msra.mxu0 0.0
          %1990 = vmatprep.subr.mxu0 0.0
          %1991 = vmatpush1.msra.mxu0 0.0
          %1992 = vmatprep.subr.mxu0 0.0
          %1993 = vmatpush1.msra.mxu0 0.0
          %1994 = vmatprep.subr.mxu0 0.0
          %1995 = vmatpush1.msra.mxu0 0.0
          %1996 = vmatprep.subr.mxu0 0.0
          %1997 = vmatpush1.msra.mxu0 0.0
          %1998 = vmatprep.mubr.f32.mxu0 0.0
          %1999 = vmatmul.mubr.f32.gmra.mrb[0].mxu0 %v1910
          %v2000 = vpop.f32.mrb[0].mxu0
          %v2001 = vadd.f32 %v1932, %v2000
          %v2002 = vpop.f32.mrb[0].mxu0
          %2003 = vdwg.mxu0
          %vm2004 = vcmask 74752
          %v2005 = vsel %vm2004, %v2001, -inf
          %2006 = vmax.xlane.f32.xlu0 %v2005
          %v2007 = vpop.xlane.xlu0 %2006
          %v2008 = vsub.f32 %v2001, %v2007
          %v2009 = vmul.f32 %v2008, 1.442695
          %v2010 = vpow.pop %v2009
          %v2011 = vsel %vm2004, %v2010, 0.0
          %2012 = vadd.xlane.f32.xlu0 %v2011
          %v2013 = vpop.xlane.xlu0 %2012
          %v2014 = vlog2.pop %v2013
          %v2015 = vmul.f32 %v2014, 0.6931472
          %v2016 = vsub.f32 %v2008, %v2015
          %2017 = vst.msk [vmem:[#allocation3] sm:$0x3] %vm2004, %v2016
        $region48: #{net_forward.3} parent=39 // pred_fallthru
          _
        // Predicated region
        $region49: #{net_forward.3} parent=39 // pred_check
          %p2018 = pneg %p145
        $region50: #{net_forward.3} parent=39 // pred_check_branch
          %2020 = sbr.rel (%p2018) target = $region52
        $region51: #{net_forward.3} parent=39 // pred_region
          %s2022 = ssub.s32 32, 32
          %2023 = vsyncadd [#allocation4], %s2022
          %s2025 = sshll.u32 [#allocation3], 4
          %s2026 = int_to_ptr.vmem [resolvable:$true] %s2025
          %2028 = dma.vmem_to_hbm [thread:$0]  %s2026, 32, %s5, [#allocation4]
        $region52: #{net_forward.3} parent=39 // pred_fallthru
          _
        // Predicated region
        $region53: #{net_forward.3} parent=39 // pred_check
          %p2029 = pneg %p145
        $region54: #{net_forward.3} parent=39 // pred_check_branch
          %2031 = sbr.rel (%p2029) target = $region56
        $region55: #{net_forward.3} parent=39 // pred_region
          %2032 = dma.done [#allocation4], 32
        $region56: #{net_forward.3} parent=39 // pred_fallthru
          _
      $region40: #{net_forward.3} parent=5 // pred_fallthru
        _
      %p2033 = scmp.le.s32.totalorder 2, %s12
      // Predicated region
      $region57: #{net_forward.3} parent=5 // pred_check
        %p2034 = pneg %p2033
      $region58: #{net_forward.3} parent=5 // pred_check_branch
        %2036 = sbr.rel (%p2034) target = $region60
      $region59: #{net_forward.3} parent=5 // pred_region
        %s2037 = ssub.s32 %s12, 2
      $region60: #{net_forward.3} parent=5 // pred_fallthru
        _
    $region6: #{net_forward.3} parent=1 // loop_footer
      %s16 = sadd.s32 1, %s12
    $region7: #{net_forward.3} parent=1 // loop_footer_branch
      %11 = sbr.rel target = $region3
    $region8: #{net_forward.3} parent=1 // loop_exit
      _
    %2038 = vsyncpa [#allocation4], 1
    %s2039 = scalar_lea.sflag [#allocation4], 1
    %2040 = vsyncpa %s2039, 1

// kernel: net_forward.2
$region0: #{net_forward.2}
  #allocation0 [shape = 'u32[]', space=smem, size = 0x4, offset = 0x4, fixed_abs, tag = 'smem constant byte address 0x4 - core index']
  #allocation1 [shape = 'u32[144,128]{1,0:T(1,128)}', space=vmem, size = 0x12000, scoped, tag = 'internal scratch']
  %s0 = inlined_call_operand.vmem [shape: f32[2,28,28,1], index: 0, kind: input, shape index: {}]
  %s1 = inlined_call_operand.hbm [shape: f32[9,32], index: 1, kind: input, shape index: {}]
  %s2 = inlined_call_operand.hbm [shape: f32[1,32], index: 2, kind: input, shape index: {}]
  %s3 = inlined_call_operand.vmem [shape: bf16[288,64], index: 3, kind: input, shape index: {}]
  %s4 = inlined_call_operand.hbm [shape: f32[1,64], index: 4, kind: input, shape index: {}]
  %s5 = inlined_call_operand.vmem [shape: f32[2,12,24,64], index: 5, kind: output, shape index: {}]
  %s6 = sld [smem:[#allocation0]]
  $region65: #{net_forward.2} parent=0
    _
  %s8 = ssub.s32 1, %s6
  %s9 = scalar_select 0, %s8, %s6
  $region1: #{net_forward.2} parent=0
    #allocation2 [shape = 'u8[8192]{0}', space=vmem, size = 0x2000, scoped, tag = 'input window, operand 1, single buffered']
    #allocation3 [shape = 's32[2]{0}', space=sflag, size = 0x8, scoped, tag = 'scoped memory for net_forward.2']
    #allocation4 [shape = 'u8[512]{0}', space=vmem, size = 0x400, scoped, tag = 'input window, operand 2, single buffered']
    #allocation5 [shape = 's32[1]{0}', space=sflag, size = 0x4, scoped, tag = 'scoped memory for net_forward.2']
    #allocation6 [shape = 'u8[512]{0}', space=vmem, size = 0x400, scoped, tag = 'input window, operand 4, single buffered']
    %10 = vsyncpa [#allocation3], 0
    %11 = vsyncpa [#allocation5], 0
    loop: start=0, step=1, limit=4
    $region2: #{net_forward.2} parent=1 // loop_pre_header
      _
    $region3: #{net_forward.2} parent=1 // loop_header
      %s13 = sphi 0, %s17
      %p14 = scmp.ge.s32.totalorder %s13, 4
      %s23 = sphi 0, %s25
      %s26 = sphi 0, %s23
      %s27 = sphi 0, %s26
      %s43 = sphi 0, %s27
      %s47 = sphi 0, %s47
      %s49 = sphi 0, %s47
      %s50 = sphi 0, %s49
      %s64 = sphi 0, %s50
      %s68 = sphi 0, %s68
      %s70 = sphi 0, %s68
      %s71 = sphi 0, %s70
      %s85 = sphi 0, %s71
      %s89 = sphi 0, %s89
      %s91 = sphi 0, %s89
      %s92 = sphi 0, %s91
      %s106 = sphi 0, %s92
      %s110 = sphi 0, %s110
      %s112 = sphi 0, %s110
      %s113 = sphi 0, %s112
      %s127 = sphi 0, %s113
      %s133 = sphi 0, %s135
      %s136 = sphi 0, %s133
      %s137 = sphi 0, %s136
      %s153 = sphi 0, %s137
    $region4: #{net_forward.2} parent=1 // loop_header_branch
      %16 = sbr.rel (%p14) target = $region8
    $region5: #{net_forward.2} parent=1 // loop_body
      %s18 = ssub.s32 %s13, 1
      %s19 = ssub.s32 %s13, 2
      %s20 = sadd.s32 %s13, 1
      %s21 = ssub.s32 %s13, %s20
      %p22 = scmp.eq.s32.totalorder %s21, 0
      %s24 = sadd.s32 %s23, 1
      %s25 = scalar_select %p22, %s23, %s24
      %p28 = pneg %p22
      %p29 = scmp.eq.s32.totalorder %s13, 1
      %p30 = por %p28, %p29
      %p31 = scmp.ne.s32.totalorder %s23, %s26
      %p32 = scmp.eq.s32.totalorder %s13, 0
      %p33 = por %p31, %p32
      %p34 = scmp.ne.s32.totalorder %s23, %s26
      %p35 = scmp.eq.s32.totalorder %s18, 1
      %p36 = por %p34, %p35
      %p37 = scmp.ne.s32.totalorder %s26, %s27
      %p38 = scmp.eq.s32.totalorder %s18, 0
      %p39 = por %p37, %p38
      %p40 = scmp.ne.s32.totalorder %s26, %s27
      %p41 = scmp.eq.s32.totalorder %s19, 1
      %p42 = por %p40, %p41
      %p44 = scmp.ne.s32.totalorder %s27, %s43
      %p45 = scmp.eq.s32.totalorder %s19, 0
      %p46 = por %p44, %p45
      %s48 = sadd.s32 %s47, 1
      %p51 = scmp.eq.s32.totalorder %s13, 1
      %p52 = scmp.ne.s32.totalorder %s47, %s49
      %p53 = scmp.eq.s32.totalorder %s13, 0
      %p54 = por %p52, %p53
      %p55 = scmp.ne.s32.totalorder %s47, %s49
      %p56 = scmp.eq.s32.totalorder %s18, 1
      %p57 = por %p55, %p56
      %p58 = scmp.ne.s32.totalorder %s49, %s50
      %p59 = scmp.eq.s32.totalorder %s18, 0
      %p60 = por %p58, %p59
      %p61 = scmp.ne.s32.totalorder %s49, %s50
      %p62 = scmp.eq.s32.totalorder %s19, 1
      %p63 = por %p61, %p62
      %p65 = scmp.ne.s32.totalorder %s50, %s64
      %p66 = scmp.eq.s32.totalorder %s19, 0
      %p67 = por %p65, %p66
      %s69 = sadd.s32 %s68, 1
      %p72 = scmp.eq.s32.totalorder %s13, 1
      %p73 = scmp.ne.s32.totalorder %s68, %s70
      %p74 = scmp.eq.s32.totalorder %s13, 0
      %p75 = por %p73, %p74
      %p76 = scmp.ne.s32.totalorder %s68, %s70
      %p77 = scmp.eq.s32.totalorder %s18, 1
      %p78 = por %p76, %p77
      %p79 = scmp.ne.s32.totalorder %s70, %s71
      %p80 = scmp.eq.s32.totalorder %s18, 0
      %p81 = por %p79, %p80
      %p82 = scmp.ne.s32.totalorder %s70, %s71
      %p83 = scmp.eq.s32.totalorder %s19, 1
      %p84 = por %p82, %p83
      %p86 = scmp.ne.s32.totalorder %s71, %s85
      %p87 = scmp.eq.s32.totalorder %s19, 0
      %p88 = por %p86, %p87
      %s90 = sadd.s32 %s89, 1
      %p93 = scmp.eq.s32.totalorder %s13, 1
      %p94 = scmp.ne.s32.totalorder %s89, %s91
      %p95 = scmp.eq.s32.totalorder %s13, 0
      %p96 = por %p94, %p95
      %p97 = scmp.ne.s32.totalorder %s89, %s91
      %p98 = scmp.eq.s32.totalorder %s18, 1
      %p99 = por %p97, %p98
      %p100 = scmp.ne.s32.totalorder %s91, %s92
      %p101 = scmp.eq.s32.totalorder %s18, 0
      %p102 = por %p100, %p101
      %p103 = scmp.ne.s32.totalorder %s91, %s92
      %p104 = scmp.eq.s32.totalorder %s19, 1
      %p105 = por %p103, %p104
      %p107 = scmp.ne.s32.totalorder %s92, %s106
      %p108 = scmp.eq.s32.totalorder %s19, 0
      %p109 = por %p107, %p108
      %s111 = sadd.s32 %s110, 1
      %p114 = scmp.eq.s32.totalorder %s13, 1
      %p115 = scmp.ne.s32.totalorder %s110, %s112
      %p116 = scmp.eq.s32.totalorder %s13, 0
      %p117 = por %p115, %p116
      %p118 = scmp.ne.s32.totalorder %s110, %s112
      %p119 = scmp.eq.s32.totalorder %s18, 1
      %p120 = por %p118, %p119
      %p121 = scmp.ne.s32.totalorder %s112, %s113
      %p122 = scmp.eq.s32.totalorder %s18, 0
      %p123 = por %p121, %p122
      %p124 = scmp.ne.s32.totalorder %s112, %s113
      %p125 = scmp.eq.s32.totalorder %s19, 1
      %p126 = por %p124, %p125
      %p128 = scmp.ne.s32.totalorder %s113, %s127
      %p129 = scmp.eq.s32.totalorder %s19, 0
      %p130 = por %p128, %p129
      %s131 = ssub.s32 %s13, %s20
      %p132 = scmp.eq.s32.totalorder %s131, 0
      %s134 = sadd.s32 %s133, 1
      %s135 = scalar_select %p132, %s133, %s134
      %p138 = pneg %p132
      %p139 = scmp.eq.s32.totalorder %s13, 1
      %p140 = por %p138, %p139
      %p141 = scmp.ne.s32.totalorder %s133, %s136
      %p142 = scmp.eq.s32.totalorder %s13, 0
      %p143 = por %p141, %p142
      %p144 = scmp.ne.s32.totalorder %s133, %s136
      %p145 = scmp.eq.s32.totalorder %s18, 1
      %p146 = por %p144, %p145
      %p147 = scmp.ne.s32.totalorder %s136, %s137
      %p148 = scmp.eq.s32.totalorder %s18, 0
      %p149 = por %p147, %p148
      %p150 = scmp.ne.s32.totalorder %s136, %s137
      %p151 = scmp.eq.s32.totalorder %s19, 1
      %p152 = por %p150, %p151
      %p154 = scmp.ne.s32.totalorder %s137, %s153
      %p155 = scmp.eq.s32.totalorder %s19, 0
      %p156 = por %p154, %p155
      %p157 = scmp.le.s32.totalorder 1, %s13
      %p158 = scmp.lt.s32.totalorder %s13, 3
      %p159 = pnand %p157, %p158
      %p160 = pneg %p159
      // Predicated region
      $region9: #{net_forward.2} parent=5 // pred_check
        _
      $region10: #{net_forward.2} parent=5 // pred_check_branch
        %162 = sbr.rel (%p159) target = $region12
      $region11: #{net_forward.2} parent=5 // pred_region
        %s163 = ssub.s32 %s13, 1
        // Predicated region
        $region13: #{net_forward.2} parent=11 // pred_check
          %p164 = pneg %p60
        $region14: #{net_forward.2} parent=11 // pred_check_branch
          %166 = sbr.rel (%p164) target = $region16
        $region15: #{net_forward.2} parent=11 // pred_region
          %s168 = ssub.s32 256, 256
          %169 = vsyncadd [#allocation3], %s168
          %s170 = sshll.u32 [#allocation2], 4
          %s171 = int_to_ptr.vmem [resolvable:$true] %s170
          %176 = dma.hbm_to_vmem [thread:$0]  %s1, 256, %s171, [#allocation3], 128, 128, 8
        $region16: #{net_forward.2} parent=11 // pred_fallthru
          _
        // Predicated region
        $region17: #{net_forward.2} parent=11 // pred_check
          %p177 = pneg %p81
        $region18: #{net_forward.2} parent=11 // pred_check_branch
          %179 = sbr.rel (%p177) target = $region20
        $region19: #{net_forward.2} parent=11 // pred_region
          %s181 = ssub.s32 16, 16
          %182 = vsyncadd [#allocation5], %s181
          %s184 = sshll.u32 [#allocation4], 4
          %s185 = int_to_ptr.vmem [resolvable:$true] %s184
          %187 = dma.hbm_to_vmem [thread:$0]  %s2, 16, %s185, [#allocation5]
        $region20: #{net_forward.2} parent=11 // pred_fallthru
          _
        // Predicated region
        $region21: #{net_forward.2} parent=11 // pred_check
          %p188 = pneg %p102
        $region22: #{net_forward.2} parent=11 // pred_check_branch
          %190 = sbr.rel (%p188) target = $region24
        $region23: #{net_forward.2} parent=11 // pred_region
          _
        $region24: #{net_forward.2} parent=11 // pred_fallthru
          _
        // Predicated region
        $region25: #{net_forward.2} parent=11 // pred_check
          %p191 = pneg %p123
        $region26: #{net_forward.2} parent=11 // pred_check_branch
          %193 = sbr.rel (%p191) target = $region28
        $region27: #{net_forward.2} parent=11 // pred_region
          %s195 = ssub.s32 16, 16
          %196 = vsyncadd [#allocation5], %s195
          %s198 = sshll.u32 [#allocation6], 4
          %s199 = int_to_ptr.vmem [resolvable:$true] %s198
          %201 = dma.hbm_to_vmem [thread:$0]  %s4, 16, %s199, [#allocation5]
        $region28: #{net_forward.2} parent=11 // pred_fallthru
          _
      $region12: #{net_forward.2} parent=5 // pred_fallthru
        _
      %p202 = scmp.lt.s32.totalorder %s13, 2
      // Predicated region
      $region29: #{net_forward.2} parent=5 // pred_check
        %p203 = pneg %p202
      $region30: #{net_forward.2} parent=5 // pred_check_branch
        %205 = sbr.rel (%p203) target = $region32
      $region31: #{net_forward.2} parent=5 // pred_region
        // Predicated region
        $region33: #{net_forward.2} parent=31 // pred_check
          %p206 = pneg %p33
        $region34: #{net_forward.2} parent=31 // pred_check_branch
          %208 = sbr.rel (%p206) target = $region36
        $region35: #{net_forward.2} parent=31 // pred_region
          %p209 = scmp.lt.s32.totalorder %s13, 1
          %s210 = scalar_select %p209, %s13, 1
          %s211 = smul.addr %s210, 112
          %s212 = smul.addr %s211, 8
          %s213 = scalar_lea.vmem %s0, %s212
        $region36: #{net_forward.2} parent=31 // pred_fallthru
          _
      $region32: #{net_forward.2} parent=5 // pred_fallthru
        _
      %p214 = scmp.le.s32.totalorder 1, %s13
      %p215 = scmp.lt.s32.totalorder %s13, 3
      %p216 = pnand %p214, %p215
      %p217 = pneg %p216
      // Predicated region
      $region37: #{net_forward.2} parent=5 // pred_check
        _
      $region38: #{net_forward.2} parent=5 // pred_check_branch
        %219 = sbr.rel (%p216) target = $region40
      $region39: #{net_forward.2} parent=5 // pred_region
        %s220 = ssub.s32 %s13, 1
        // Predicated region
        $region41: #{net_forward.2} parent=39 // pred_check
          %p221 = pneg %p60
        $region42: #{net_forward.2} parent=39 // pred_check_branch
          %223 = sbr.rel (%p221) target = $region44
        $region43: #{net_forward.2} parent=39 // pred_region
          %224 = dma.done [#allocation3], 256
        $region44: #{net_forward.2} parent=39 // pred_fallthru
          _
        // Predicated region
        $region45: #{net_forward.2} parent=39 // pred_check
          %p225 = pneg %p81
        $region46: #{net_forward.2} parent=39 // pred_check_branch
          %227 = sbr.rel (%p225) target = $region48
        $region47: #{net_forward.2} parent=39 // pred_region
          %228 = dma.done [#allocation5], 16
        $region48: #{net_forward.2} parent=39 // pred_fallthru
          _
        // Predicated region
        $region49: #{net_forward.2} parent=39 // pred_check
          %p229 = pneg %p123
        $region50: #{net_forward.2} parent=39 // pred_check_branch
          %231 = sbr.rel (%p229) target = $region52
        $region51: #{net_forward.2} parent=39 // pred_region
          %232 = dma.done [#allocation5], 16
        $region52: #{net_forward.2} parent=39 // pred_fallthru
          _
        %p233 = scmp.lt.s32.totalorder %s18, 1
        %s234 = scalar_select %p233, %s18, 1
        %s235 = smul.addr %s234, 112
        %s236 = smul.addr %s235, 8
        %s237 = scalar_lea.vmem %s0, %s236
        %p238 = pneg %p39
        %p239 = pneg %p36
        %p240 = pneg %p60
        %p241 = pneg %p57
        %p242 = pneg %p81
        %p243 = pneg %p78
        %p244 = pneg %p102
        %p245 = pneg %p99
        %p246 = pneg %p123
        %p247 = pneg %p120
        %p248 = pneg %p149
        %p249 = pneg %p146
        %p250 = scmp.lt.s32.totalorder %s18, 1
        %s251 = scalar_select %p250, %s18, 1
        %s252 = smul.addr %s251, 36
        %s253 = smul.addr %s252, 8
        %s254 = scalar_lea.vmem %s5, %s253
        %p255 = scmp.lt.s32.totalorder %s18, 1
        %s256 = scalar_select %p255, %s18, 1
        %s257 = smul.addr %s256, 112
        %s258 = smul.addr %s257, 8
        %s259 = scalar_lea.vmem %s0, %s258
        %p260 = scmp.lt.s32.totalorder %s18, 1
        %s261 = scalar_select %p260, %s18, 1
        %s262 = smul.addr %s261, 36
        %s263 = smul.addr %s262, 8
        %s264 = scalar_lea.vmem %s5, %s263
        %v266 = vld [vmem:[%s259] sm:$0xff]
        %v267 = vld [vmem:[%s259 + $0x8] sm:$0xff]
        %v268 = vld [vmem:[%s259 + $0x10] sm:$0xff]
        %v269 = vld [vmem:[%s259 + $0x18] sm:$0xf]
        %v270 = vld [vmem:[%s259 + $0x20] sm:$0xff]
        %v271 = vld [vmem:[%s259 + $0x28] sm:$0xff]
        %v272 = vld [vmem:[%s259 + $0x30] sm:$0xff]
        %v273 = vld [vmem:[%s259 + $0x38] sm:$0xf]
        %v274 = vld [vmem:[%s259 + $0x40] sm:$0xff]
        %v275 = vld [vmem:[%s259 + $0x48] sm:$0xff]
        %v276 = vld [vmem:[%s259 + $0x50] sm:$0xff]
        %v277 = vld [vmem:[%s259 + $0x58] sm:$0xf]
        %v278 = vld [vmem:[%s259 + $0x60] sm:$0xff]
        %v279 = vld [vmem:[%s259 + $0x68] sm:$0xff]
        %v280 = vld [vmem:[%s259 + $0x70] sm:$0xff]
        %v281 = vld [vmem:[%s259 + $0x78] sm:$0xf]
        %v282 = vld [vmem:[%s259 + $0x80] sm:$0xff]
        %v283 = vld [vmem:[%s259 + $0x88] sm:$0xff]
        %v284 = vld [vmem:[%s259 + $0x90] sm:$0xff]
        %v285 = vld [vmem:[%s259 + $0x98] sm:$0xf]
        %v286 = vld [vmem:[%s259 + $0xa0] sm:$0xff]
        %v287 = vld [vmem:[%s259 + $0xa8] sm:$0xff]
        %v288 = vld [vmem:[%s259 + $0xb0] sm:$0xff]
        %v289 = vld [vmem:[%s259 + $0xb8] sm:$0xf]
        %v290 = vld [vmem:[%s259 + $0xc0] sm:$0xff]
        %v291 = vld [vmem:[%s259 + $0xc8] sm:$0xff]
        %v292 = vld [vmem:[%s259 + $0xd0] sm:$0xff]
        %v293 = vld [vmem:[%s259 + $0xd8] sm:$0xf]
        %v294 = vld [vmem:[%s259 + $0xe0] sm:$0xff]
        %v295 = vld [vmem:[%s259 + $0xe8] sm:$0xff]
        %v296 = vld [vmem:[%s259 + $0xf0] sm:$0xff]
        %v297 = vld [vmem:[%s259 + $0xf8] sm:$0xf]
        %v298 = vld [vmem:[%s259 + $0x100] sm:$0xff]
        %v299 = vld [vmem:[%s259 + $0x108] sm:$0xff]
        %v300 = vld [vmem:[%s259 + $0x110] sm:$0xff]
        %v301 = vld [vmem:[%s259 + $0x118] sm:$0xf]
        %v302 = vld [vmem:[%s259 + $0x120] sm:$0xff]
        %v303 = vld [vmem:[%s259 + $0x128] sm:$0xff]
        %v304 = vld [vmem:[%s259 + $0x130] sm:$0xff]
        %v305 = vld [vmem:[%s259 + $0x138] sm:$0xf]
        %v306 = vld [vmem:[%s259 + $0x140] sm:$0xff]
        %v307 = vld [vmem:[%s259 + $0x148] sm:$0xff]
        %v308 = vld [vmem:[%s259 + $0x150] sm:$0xff]
        %v309 = vld [vmem:[%s259 + $0x158] sm:$0xf]
        %v310 = vld [vmem:[%s259 + $0x160] sm:$0xff]
        %v311 = vld [vmem:[%s259 + $0x168] sm:$0xff]
        %v312 = vld [vmem:[%s259 + $0x170] sm:$0xff]
        %v313 = vld [vmem:[%s259 + $0x178] sm:$0xf]
        %v314 = vld [vmem:[%s259 + $0x180] sm:$0xff]
        %v315 = vld [vmem:[%s259 + $0x188] sm:$0xff]
        %v316 = vld [vmem:[%s259 + $0x190] sm:$0xff]
        %v317 = vld [vmem:[%s259 + $0x198] sm:$0xf]
        %v318 = vld [vmem:[%s259 + $0x1a0] sm:$0xff]
        %v319 = vld [vmem:[%s259 + $0x1a8] sm:$0xff]
        %v320 = vld [vmem:[%s259 + $0x1b0] sm:$0xff]
        %v321 = vld [vmem:[%s259 + $0x1b8] sm:$0xf]
        %v322 = vld [vmem:[%s259 + $0x1c0] sm:$0xff]
        %v323 = vld [vmem:[%s259 + $0x1c8] sm:$0xff]
        %v324 = vld [vmem:[%s259 + $0x1d0] sm:$0xff]
        %v325 = vld [vmem:[%s259 + $0x1d8] sm:$0xf]
        %v326 = vld [vmem:[%s259 + $0x1e0] sm:$0xff]
        %v327 = vld [vmem:[%s259 + $0x1e8] sm:$0xff]
        %v328 = vld [vmem:[%s259 + $0x1f0] sm:$0xff]
        %v329 = vld [vmem:[%s259 + $0x1f8] sm:$0xf]
        %v330 = vld [vmem:[%s259 + $0x200] sm:$0xff]
        %v331 = vld [vmem:[%s259 + $0x208] sm:$0xff]
        %v332 = vld [vmem:[%s259 + $0x210] sm:$0xff]
        %v333 = vld [vmem:[%s259 + $0x218] sm:$0xf]
        %v334 = vld [vmem:[%s259 + $0x220] sm:$0xff]
        %v335 = vld [vmem:[%s259 + $0x228] sm:$0xff]
        %v336 = vld [vmem:[%s259 + $0x230] sm:$0xff]
        %v337 = vld [vmem:[%s259 + $0x238] sm:$0xf]
        %v338 = vld [vmem:[%s259 + $0x240] sm:$0xff]
        %v339 = vld [vmem:[%s259 + $0x248] sm:$0xff]
        %v340 = vld [vmem:[%s259 + $0x250] sm:$0xff]
        %v341 = vld [vmem:[%s259 + $0x258] sm:$0xf]
        %v342 = vld [vmem:[%s259 + $0x260] sm:$0xff]
        %v343 = vld [vmem:[%s259 + $0x268] sm:$0xff]
        %v344 = vld [vmem:[%s259 + $0x270] sm:$0xff]
        %v345 = vld [vmem:[%s259 + $0x278] sm:$0xf]
        %v346 = vld [vmem:[%s259 + $0x280] sm:$0xff]
        %v347 = vld [vmem:[%s259 + $0x288] sm:$0xff]
        %v348 = vld [vmem:[%s259 + $0x290] sm:$0xff]
        %v349 = vld [vmem:[%s259 + $0x298] sm:$0xf]
        %v350 = vld [vmem:[%s259 + $0x2a0] sm:$0xff]
        %v351 = vld [vmem:[%s259 + $0x2a8] sm:$0xff]
        %v352 = vld [vmem:[%s259 + $0x2b0] sm:$0xff]
        %v353 = vld [vmem:[%s259 + $0x2b8] sm:$0xf]
        %v354 = vld [vmem:[%s259 + $0x2c0] sm:$0xff]
        %v355 = vld [vmem:[%s259 + $0x2c8] sm:$0xff]
        %v356 = vld [vmem:[%s259 + $0x2d0] sm:$0xff]
        %v357 = vld [vmem:[%s259 + $0x2d8] sm:$0xf]
        %v358 = vld [vmem:[%s259 + $0x2e0] sm:$0xff]
        %v359 = vld [vmem:[%s259 + $0x2e8] sm:$0xff]
        %v360 = vld [vmem:[%s259 + $0x2f0] sm:$0xff]
        %v361 = vld [vmem:[%s259 + $0x2f8] sm:$0xf]
        %v362 = vld [vmem:[%s259 + $0x300] sm:$0xff]
        %v363 = vld [vmem:[%s259 + $0x308] sm:$0xff]
        %v364 = vld [vmem:[%s259 + $0x310] sm:$0xff]
        %v365 = vld [vmem:[%s259 + $0x318] sm:$0xf]
        %v366 = vld [vmem:[%s259 + $0x320] sm:$0xff]
        %v367 = vld [vmem:[%s259 + $0x328] sm:$0xff]
        %v368 = vld [vmem:[%s259 + $0x330] sm:$0xff]
        %v369 = vld [vmem:[%s259 + $0x338] sm:$0xf]
        %v370 = vld [vmem:[%s259 + $0x340] sm:$0xff]
        %v371 = vld [vmem:[%s259 + $0x348] sm:$0xff]
        %v372 = vld [vmem:[%s259 + $0x350] sm:$0xff]
        %v373 = vld [vmem:[%s259 + $0x358] sm:$0xf]
        %v374 = vld [vmem:[%s259 + $0x360] sm:$0xff]
        %v375 = vld [vmem:[%s259 + $0x368] sm:$0xff]
        %v376 = vld [vmem:[%s259 + $0x370] sm:$0xff]
        %v377 = vld [vmem:[%s259 + $0x378] sm:$0xf]
        %v378 = vld [vmem:[#allocation2] sm:$0xff]
        %v379 = vld [vmem:[#allocation2 + $0x8] sm:$0x1]
        %381 = vset.pattern.permute.xlu0 0
        %382 = vperm.xlu0 %381, %v266
        %v383 = vpop.permute.xlu0 %382
        %386 = vset.pattern.permute.xlu0 0
        %387 = vperm.xlu0 %386, %v267
        %v388 = vpop.permute.xlu0 %387
        %391 = vset.pattern.permute.xlu0 0
        %392 = vperm.xlu0 %391, %v268
        %v393 = vpop.permute.xlu0 %392
        %396 = vset.pattern.permute.xlu0 0
        %397 = vperm.xlu0 %396, %v269
        %v398 = vpop.permute.xlu0 %397
        %401 = vset.pattern.permute.xlu0 0
        %402 = vperm.xlu0 %401, %v270
        %v403 = vpop.permute.xlu0 %402
        %406 = vset.pattern.permute.xlu0 0
        %407 = vperm.xlu0 %406, %v271
        %v408 = vpop.permute.xlu0 %407
        %411 = vset.pattern.permute.xlu0 0
        %412 = vperm.xlu0 %411, %v272
        %v413 = vpop.permute.xlu0 %412
        %416 = vset.pattern.permute.xlu0 0
        %417 = vperm.xlu0 %416, %v273
        %v418 = vpop.permute.xlu0 %417
        %421 = vset.pattern.permute.xlu0 0
        %422 = vperm.xlu0 %421, %v274
        %v423 = vpop.permute.xlu0 %422
        %426 = vset.pattern.permute.xlu0 0
        %427 = vperm.xlu0 %426, %v275
        %v428 = vpop.permute.xlu0 %427
        %431 = vset.pattern.permute.xlu0 0
        %432 = vperm.xlu0 %431, %v276
        %v433 = vpop.permute.xlu0 %432
        %436 = vset.pattern.permute.xlu0 0
        %437 = vperm.xlu0 %436, %v277
        %v438 = vpop.permute.xlu0 %437
        %441 = vset.pattern.permute.xlu0 0
        %442 = vperm.xlu0 %441, %v278
        %v443 = vpop.permute.xlu0 %442
        %446 = vset.pattern.permute.xlu0 0
        %447 = vperm.xlu0 %446, %v279
        %v448 = vpop.permute.xlu0 %447
        %451 = vset.pattern.permute.xlu0 0
        %452 = vperm.xlu0 %451, %v280
        %v453 = vpop.permute.xlu0 %452
        %456 = vset.pattern.permute.xlu0 0
        %457 = vperm.xlu0 %456, %v281
        %v458 = vpop.permute.xlu0 %457
        %461 = vset.pattern.permute.xlu0 0
        %462 = vperm.xlu0 %461, %v282
        %v463 = vpop.permute.xlu0 %462
        %466 = vset.pattern.permute.xlu0 0
        %467 = vperm.xlu0 %466, %v283
        %v468 = vpop.permute.xlu0 %467
        %471 = vset.pattern.permute.xlu0 0
        %472 = vperm.xlu0 %471, %v284
        %v473 = vpop.permute.xlu0 %472
        %476 = vset.pattern.permute.xlu0 0
        %477 = vperm.xlu0 %476, %v285
        %v478 = vpop.permute.xlu0 %477
        %481 = vset.pattern.permute.xlu0 0
        %482 = vperm.xlu0 %481, %v286
        %v483 = vpop.permute.xlu0 %482
        %486 = vset.pattern.permute.xlu0 0
        %487 = vperm.xlu0 %486, %v287
        %v488 = vpop.permute.xlu0 %487
        %491 = vset.pattern.permute.xlu0 0
        %492 = vperm.xlu0 %491, %v288
        %v493 = vpop.permute.xlu0 %492
        %496 = vset.pattern.permute.xlu0 0
        %497 = vperm.xlu0 %496, %v289
        %v498 = vpop.permute.xlu0 %497
        %501 = vset.pattern.permute.xlu0 0
        %502 = vperm.xlu0 %501, %v290
        %v503 = vpop.permute.xlu0 %502
        %506 = vset.pattern.permute.xlu0 0
        %507 = vperm.xlu0 %506, %v291
        %v508 = vpop.permute.xlu0 %507
        %511 = vset.pattern.permute.xlu0 0
        %512 = vperm.xlu0 %511, %v292
        %v513 = vpop.permute.xlu0 %512
        %516 = vset.pattern.permute.xlu0 0
        %517 = vperm.xlu0 %516, %v293
        %v518 = vpop.permute.xlu0 %517
        %521 = vset.pattern.permute.xlu0 0
        %522 = vperm.xlu0 %521, %v294
        %v523 = vpop.permute.xlu0 %522
        %526 = vset.pattern.permute.xlu0 0
        %527 = vperm.xlu0 %526, %v295
        %v528 = vpop.permute.xlu0 %527
        %531 = vset.pattern.permute.xlu0 0
        %532 = vperm.xlu0 %531, %v296
        %v533 = vpop.permute.xlu0 %532
        %536 = vset.pattern.permute.xlu0 0
        %537 = vperm.xlu0 %536, %v297
        %v538 = vpop.permute.xlu0 %537
        %541 = vset.pattern.permute.xlu0 0
        %542 = vperm.xlu0 %541, %v298
        %v543 = vpop.permute.xlu0 %542
        %546 = vset.pattern.permute.xlu0 0
        %547 = vperm.xlu0 %546, %v299
        %v548 = vpop.permute.xlu0 %547
        %551 = vset.pattern.permute.xlu0 0
        %552 = vperm.xlu0 %551, %v300
        %v553 = vpop.permute.xlu0 %552
        %556 = vset.pattern.permute.xlu0 0
        %557 = vperm.xlu0 %556, %v301
        %v558 = vpop.permute.xlu0 %557
        %561 = vset.pattern.permute.xlu0 0
        %562 = vperm.xlu0 %561, %v302
        %v563 = vpop.permute.xlu0 %562
        %566 = vset.pattern.permute.xlu0 0
        %567 = vperm.xlu0 %566, %v303
        %v568 = vpop.permute.xlu0 %567
        %571 = vset.pattern.permute.xlu0 0
        %572 = vperm.xlu0 %571, %v304
        %v573 = vpop.permute.xlu0 %572
        %576 = vset.pattern.permute.xlu0 0
        %577 = vperm.xlu0 %576, %v305
        %v578 = vpop.permute.xlu0 %577
        %581 = vset.pattern.permute.xlu0 0
        %582 = vperm.xlu0 %581, %v306
        %v583 = vpop.permute.xlu0 %582
        %586 = vset.pattern.permute.xlu0 0
        %587 = vperm.xlu0 %586, %v307
        %v588 = vpop.permute.xlu0 %587
        %591 = vset.pattern.permute.xlu0 0
        %592 = vperm.xlu0 %591, %v308
        %v593 = vpop.permute.xlu0 %592
        %596 = vset.pattern.permute.xlu0 0
        %597 = vperm.xlu0 %596, %v309
        %v598 = vpop.permute.xlu0 %597
        %601 = vset.pattern.permute.xlu0 0
        %602 = vperm.xlu0 %601, %v310
        %v603 = vpop.permute.xlu0 %602
        %606 = vset.pattern.permute.xlu0 0
        %607 = vperm.xlu0 %606, %v311
        %v608 = vpop.permute.xlu0 %607
        %611 = vset.pattern.permute.xlu0 0
        %612 = vperm.xlu0 %611, %v312
        %v613 = vpop.permute.xlu0 %612
        %616 = vset.pattern.permute.xlu0 0
        %617 = vperm.xlu0 %616, %v313
        %v618 = vpop.permute.xlu0 %617
        %621 = vset.pattern.permute.xlu0 0
        %622 = vperm.xlu0 %621, %v314
        %v623 = vpop.permute.xlu0 %622
        %626 = vset.pattern.permute.xlu0 0
        %627 = vperm.xlu0 %626, %v315
        %v628 = vpop.permute.xlu0 %627
        %631 = vset.pattern.permute.xlu0 0
        %632 = vperm.xlu0 %631, %v316
        %v633 = vpop.permute.xlu0 %632
        %636 = vset.pattern.permute.xlu0 0
        %637 = vperm.xlu0 %636, %v317
        %v638 = vpop.permute.xlu0 %637
        %641 = vset.pattern.permute.xlu0 0
        %642 = vperm.xlu0 %641, %v318
        %v643 = vpop.permute.xlu0 %642
        %646 = vset.pattern.permute.xlu0 0
        %647 = vperm.xlu0 %646, %v319
        %v648 = vpop.permute.xlu0 %647
        %651 = vset.pattern.permute.xlu0 0
        %652 = vperm.xlu0 %651, %v320
        %v653 = vpop.permute.xlu0 %652
        %656 = vset.pattern.permute.xlu0 0
        %657 = vperm.xlu0 %656, %v321
        %v658 = vpop.permute.xlu0 %657
        %661 = vset.pattern.permute.xlu0 0
        %662 = vperm.xlu0 %661, %v322
        %v663 = vpop.permute.xlu0 %662
        %666 = vset.pattern.permute.xlu0 0
        %667 = vperm.xlu0 %666, %v323
        %v668 = vpop.permute.xlu0 %667
        %671 = vset.pattern.permute.xlu0 0
        %672 = vperm.xlu0 %671, %v324
        %v673 = vpop.permute.xlu0 %672
        %676 = vset.pattern.permute.xlu0 0
        %677 = vperm.xlu0 %676, %v325
        %v678 = vpop.permute.xlu0 %677
        %681 = vset.pattern.permute.xlu0 0
        %682 = vperm.xlu0 %681, %v326
        %v683 = vpop.permute.xlu0 %682
        %686 = vset.pattern.permute.xlu0 0
        %687 = vperm.xlu0 %686, %v327
        %v688 = vpop.permute.xlu0 %687
        %691 = vset.pattern.permute.xlu0 0
        %692 = vperm.xlu0 %691, %v328
        %v693 = vpop.permute.xlu0 %692
        %696 = vset.pattern.permute.xlu0 0
        %697 = vperm.xlu0 %696, %v329
        %v698 = vpop.permute.xlu0 %697
        %701 = vset.pattern.permute.xlu0 0
        %702 = vperm.xlu0 %701, %v330
        %v703 = vpop.permute.xlu0 %702
        %706 = vset.pattern.permute.xlu0 0
        %707 = vperm.xlu0 %706, %v331
        %v708 = vpop.permute.xlu0 %707
        %711 = vset.pattern.permute.xlu0 0
        %712 = vperm.xlu0 %711, %v332
        %v713 = vpop.permute.xlu0 %712
        %716 = vset.pattern.permute.xlu0 0
        %717 = vperm.xlu0 %716, %v333
        %v718 = vpop.permute.xlu0 %717
        %721 = vset.pattern.permute.xlu0 0
        %722 = vperm.xlu0 %721, %v334
        %v723 = vpop.permute.xlu0 %722
        %726 = vset.pattern.permute.xlu0 0
        %727 = vperm.xlu0 %726, %v335
        %v728 = vpop.permute.xlu0 %727
        %731 = vset.pattern.permute.xlu0 0
        %732 = vperm.xlu0 %731, %v336
        %v733 = vpop.permute.xlu0 %732
        %736 = vset.pattern.permute.xlu0 0
        %737 = vperm.xlu0 %736, %v337
        %v738 = vpop.permute.xlu0 %737
        %741 = vset.pattern.permute.xlu0 0
        %742 = vperm.xlu0 %741, %v338
        %v743 = vpop.permute.xlu0 %742
        %746 = vset.pattern.permute.xlu0 0
        %747 = vperm.xlu0 %746, %v339
        %v748 = vpop.permute.xlu0 %747
        %751 = vset.pattern.permute.xlu0 0
        %752 = vperm.xlu0 %751, %v340
        %v753 = vpop.permute.xlu0 %752
        %756 = vset.pattern.permute.xlu0 0
        %757 = vperm.xlu0 %756, %v341
        %v758 = vpop.permute.xlu0 %757
        %761 = vset.pattern.permute.xlu0 0
        %762 = vperm.xlu0 %761, %v342
        %v763 = vpop.permute.xlu0 %762
        %766 = vset.pattern.permute.xlu0 0
        %767 = vperm.xlu0 %766, %v343
        %v768 = vpop.permute.xlu0 %767
        %771 = vset.pattern.permute.xlu0 0
        %772 = vperm.xlu0 %771, %v344
        %v773 = vpop.permute.xlu0 %772
        %776 = vset.pattern.permute.xlu0 0
        %777 = vperm.xlu0 %776, %v345
        %v778 = vpop.permute.xlu0 %777
        %781 = vset.pattern.permute.xlu0 0
        %782 = vperm.xlu0 %781, %v346
        %v783 = vpop.permute.xlu0 %782
        %786 = vset.pattern.permute.xlu0 0
        %787 = vperm.xlu0 %786, %v347
        %v788 = vpop.permute.xlu0 %787
        %791 = vset.pattern.permute.xlu0 0
        %792 = vperm.xlu0 %791, %v348
        %v793 = vpop.permute.xlu0 %792
        %796 = vset.pattern.permute.xlu0 0
        %797 = vperm.xlu0 %796, %v349
        %v798 = vpop.permute.xlu0 %797
        %801 = vset.pattern.permute.xlu0 0
        %802 = vperm.xlu0 %801, %v350
        %v803 = vpop.permute.xlu0 %802
        %806 = vset.pattern.permute.xlu0 0
        %807 = vperm.xlu0 %806, %v351
        %v808 = vpop.permute.xlu0 %807
        %811 = vset.pattern.permute.xlu0 0
        %812 = vperm.xlu0 %811, %v352
        %v813 = vpop.permute.xlu0 %812
        %816 = vset.pattern.permute.xlu0 0
        %817 = vperm.xlu0 %816, %v353
        %v818 = vpop.permute.xlu0 %817
        %821 = vset.pattern.permute.xlu0 0
        %822 = vperm.xlu0 %821, %v354
        %v823 = vpop.permute.xlu0 %822
        %826 = vset.pattern.permute.xlu0 0
        %827 = vperm.xlu0 %826, %v355
        %v828 = vpop.permute.xlu0 %827
        %831 = vset.pattern.permute.xlu0 0
        %832 = vperm.xlu0 %831, %v356
        %v833 = vpop.permute.xlu0 %832
        %836 = vset.pattern.permute.xlu0 0
        %837 = vperm.xlu0 %836, %v357
        %v838 = vpop.permute.xlu0 %837
        %841 = vset.pattern.permute.xlu0 0
        %842 = vperm.xlu0 %841, %v358
        %v843 = vpop.permute.xlu0 %842
        %846 = vset.pattern.permute.xlu0 0
        %847 = vperm.xlu0 %846, %v359
        %v848 = vpop.permute.xlu0 %847
        %851 = vset.pattern.permute.xlu0 0
        %852 = vperm.xlu0 %851, %v360
        %v853 = vpop.permute.xlu0 %852
        %856 = vset.pattern.permute.xlu0 0
        %857 = vperm.xlu0 %856, %v361
        %v858 = vpop.permute.xlu0 %857
        %861 = vset.pattern.permute.xlu0 0
        %862 = vperm.xlu0 %861, %v362
        %v863 = vpop.permute.xlu0 %862
        %866 = vset.pattern.permute.xlu0 0
        %867 = vperm.xlu0 %866, %v363
        %v868 = vpop.permute.xlu0 %867
        %871 = vset.pattern.permute.xlu0 0
        %872 = vperm.xlu0 %871, %v364
        %v873 = vpop.permute.xlu0 %872
        %876 = vset.pattern.permute.xlu0 0
        %877 = vperm.xlu0 %876, %v365
        %v878 = vpop.permute.xlu0 %877
        %881 = vset.pattern.permute.xlu0 0
        %882 = vperm.xlu0 %881, %v366
        %v883 = vpop.permute.xlu0 %882
        %886 = vset.pattern.permute.xlu0 0
        %887 = vperm.xlu0 %886, %v367
        %v888 = vpop.permute.xlu0 %887
        %891 = vset.pattern.permute.xlu0 0
        %892 = vperm.xlu0 %891, %v368
        %v893 = vpop.permute.xlu0 %892
        %896 = vset.pattern.permute.xlu0 0
        %897 = vperm.xlu0 %896, %v369
        %v898 = vpop.permute.xlu0 %897
        %v900 = vlaneseq
        %v901 = vshrl.u32 %v900, 7
        %v902 = vsub.s32 0, %v901
        %v903 = vrot.slane %v378, %v902
        %v904 = vmul.f32 %v383, %v903
        %v905 = vmul.f32 %v388, %v903
        %v906 = vmul.f32 %v393, %v903
        %v907 = vmul.f32 %v398, %v903
        %v908 = vmul.f32 %v403, %v903
        %v909 = vmul.f32 %v408, %v903
        %v910 = vmul.f32 %v413, %v903
        %v911 = vmul.f32 %v418, %v903
        %v912 = vmul.f32 %v423, %v903
        %v913 = vmul.f32 %v428, %v903
        %v914 = vmul.f32 %v433, %v903
        %v915 = vmul.f32 %v438, %v903
        %v916 = vmul.f32 %v443, %v903
        %v917 = vmul.f32 %v448, %v903
        %v918 = vmul.f32 %v453, %v903
        %v919 = vmul.f32 %v458, %v903
        %v920 = vmul.f32 %v463, %v903
        %v921 = vmul.f32 %v468, %v903
        %v922 = vmul.f32 %v473, %v903
        %v923 = vmul.f32 %v478, %v903
        %v924 = vmul.f32 %v483, %v903
        %v925 = vmul.f32 %v488, %v903
        %v926 = vmul.f32 %v493, %v903
        %v927 = vmul.f32 %v498, %v903
        %v928 = vmul.f32 %v503, %v903
        %v929 = vmul.f32 %v508, %v903
        %v930 = vmul.f32 %v513, %v903
        %v931 = vmul.f32 %v518, %v903
        %v932 = vmul.f32 %v523, %v903
        %v933 = vmul.f32 %v528, %v903
        %v934 = vmul.f32 %v533, %v903
        %v935 = vmul.f32 %v538, %v903
        %v936 = vmul.f32 %v543, %v903
        %v937 = vmul.f32 %v548, %v903
        %v938 = vmul.f32 %v553, %v903
        %v939 = vmul.f32 %v558, %v903
        %v940 = vmul.f32 %v563, %v903
        %v941 = vmul.f32 %v568, %v903
        %v942 = vmul.f32 %v573, %v903
        %v943 = vmul.f32 %v578, %v903
        %v944 = vmul.f32 %v583, %v903
        %v945 = vmul.f32 %v588, %v903
        %v946 = vmul.f32 %v593, %v903
        %v947 = vmul.f32 %v598, %v903
        %v948 = vmul.f32 %v603, %v903
        %v949 = vmul.f32 %v608, %v903
        %v950 = vmul.f32 %v613, %v903
        %v951 = vmul.f32 %v618, %v903
        %v952 = vmul.f32 %v623, %v903
        %v953 = vmul.f32 %v628, %v903
        %v954 = vmul.f32 %v633, %v903
        %v955 = vmul.f32 %v638, %v903
        %v956 = vmul.f32 %v643, %v903
        %v957 = vmul.f32 %v648, %v903
        %v958 = vmul.f32 %v653, %v903
        %v959 = vmul.f32 %v658, %v903
        %v960 = vmul.f32 %v663, %v903
        %v961 = vmul.f32 %v668, %v903
        %v962 = vmul.f32 %v673, %v903
        %v963 = vmul.f32 %v678, %v903
        %v964 = vmul.f32 %v683, %v903
        %v965 = vmul.f32 %v688, %v903
        %v966 = vmul.f32 %v693, %v903
        %v967 = vmul.f32 %v698, %v903
        %v968 = vmul.f32 %v703, %v903
        %v969 = vmul.f32 %v708, %v903
        %v970 = vmul.f32 %v713, %v903
        %v971 = vmul.f32 %v718, %v903
        %v972 = vmul.f32 %v723, %v903
        %v973 = vmul.f32 %v728, %v903
        %v974 = vmul.f32 %v733, %v903
        %v975 = vmul.f32 %v738, %v903
        %v976 = vmul.f32 %v743, %v903
        %v977 = vmul.f32 %v748, %v903
        %v978 = vmul.f32 %v753, %v903
        %v979 = vmul.f32 %v758, %v903
        %v980 = vmul.f32 %v763, %v903
        %v981 = vmul.f32 %v768, %v903
        %v982 = vmul.f32 %v773, %v903
        %v983 = vmul.f32 %v778, %v903
        %v984 = vmul.f32 %v783, %v903
        %v985 = vmul.f32 %v788, %v903
        %v986 = vmul.f32 %v793, %v903
        %v987 = vmul.f32 %v798, %v903
        %v988 = vmul.f32 %v803, %v903
        %v989 = vmul.f32 %v808, %v903
        %v990 = vmul.f32 %v813, %v903
        %v991 = vmul.f32 %v818, %v903
        %v992 = vmul.f32 %v823, %v903
        %v993 = vmul.f32 %v828, %v903
        %v994 = vmul.f32 %v833, %v903
        %v995 = vmul.f32 %v838, %v903
        %v996 = vmul.f32 %v843, %v903
        %v997 = vmul.f32 %v848, %v903
        %v998 = vmul.f32 %v853, %v903
        %v999 = vmul.f32 %v858, %v903
        %v1000 = vmul.f32 %v863, %v903
        %v1001 = vmul.f32 %v868, %v903
        %v1002 = vmul.f32 %v873, %v903
        %v1003 = vmul.f32 %v878, %v903
        %v1004 = vmul.f32 %v883, %v903
        %v1005 = vmul.f32 %v888, %v903
        %v1006 = vmul.f32 %v893, %v903
        %v1007 = vmul.f32 %v898, %v903
        %v1008 = vadd.f32 %v904, 0.0
        %v1009 = vadd.f32 %v905, 0.0
        %v1010 = vadd.f32 %v906, 0.0
        %v1011 = vadd.f32 %v907, 0.0
        %v1012 = vadd.f32 %v908, 0.0
        %v1013 = vadd.f32 %v909, 0.0
        %v1014 = vadd.f32 %v910, 0.0
        %v1015 = vadd.f32 %v911, 0.0
        %v1016 = vadd.f32 %v912, 0.0
        %v1017 = vadd.f32 %v913, 0.0
        %v1018 = vadd.f32 %v914, 0.0
        %v1019 = vadd.f32 %v915, 0.0
        %v1020 = vadd.f32 %v916, 0.0
        %v1021 = vadd.f32 %v917, 0.0
        %v1022 = vadd.f32 %v918, 0.0
        %v1023 = vadd.f32 %v919, 0.0
        %v1024 = vadd.f32 %v920, 0.0
        %v1025 = vadd.f32 %v921, 0.0
        %v1026 = vadd.f32 %v922, 0.0
        %v1027 = vadd.f32 %v923, 0.0
        %v1028 = vadd.f32 %v924, 0.0
        %v1029 = vadd.f32 %v925, 0.0
        %v1030 = vadd.f32 %v926, 0.0
        %v1031 = vadd.f32 %v927, 0.0
        %v1032 = vadd.f32 %v928, 0.0
        %v1033 = vadd.f32 %v929, 0.0
        %v1034 = vadd.f32 %v930, 0.0
        %v1035 = vadd.f32 %v931, 0.0
        %v1036 = vadd.f32 %v932, 0.0
        %v1037 = vadd.f32 %v933, 0.0
        %v1038 = vadd.f32 %v934, 0.0
        %v1039 = vadd.f32 %v935, 0.0
        %v1040 = vadd.f32 %v936, 0.0
        %v1041 = vadd.f32 %v937, 0.0
        %v1042 = vadd.f32 %v938, 0.0
        %v1043 = vadd.f32 %v939, 0.0
        %v1044 = vadd.f32 %v940, 0.0
        %v1045 = vadd.f32 %v941, 0.0
        %v1046 = vadd.f32 %v942, 0.0
        %v1047 = vadd.f32 %v943, 0.0
        %v1048 = vadd.f32 %v944, 0.0
        %v1049 = vadd.f32 %v945, 0.0
        %v1050 = vadd.f32 %v946, 0.0
        %v1051 = vadd.f32 %v947, 0.0
        %v1052 = vadd.f32 %v948, 0.0
        %v1053 = vadd.f32 %v949, 0.0
        %v1054 = vadd.f32 %v950, 0.0
        %v1055 = vadd.f32 %v951, 0.0
        %v1056 = vadd.f32 %v952, 0.0
        %v1057 = vadd.f32 %v953, 0.0
        %v1058 = vadd.f32 %v954, 0.0
        %v1059 = vadd.f32 %v955, 0.0
        %v1060 = vadd.f32 %v956, 0.0
        %v1061 = vadd.f32 %v957, 0.0
        %v1062 = vadd.f32 %v958, 0.0
        %v1063 = vadd.f32 %v959, 0.0
        %v1064 = vadd.f32 %v960, 0.0
        %v1065 = vadd.f32 %v961, 0.0
        %v1066 = vadd.f32 %v962, 0.0
        %v1067 = vadd.f32 %v963, 0.0
        %v1068 = vadd.f32 %v964, 0.0
        %v1069 = vadd.f32 %v965, 0.0
        %v1070 = vadd.f32 %v966, 0.0
        %v1071 = vadd.f32 %v967, 0.0
        %v1072 = vadd.f32 %v968, 0.0
        %v1073 = vadd.f32 %v969, 0.0
        %v1074 = vadd.f32 %v970, 0.0
        %v1075 = vadd.f32 %v971, 0.0
        %v1076 = vadd.f32 %v972, 0.0
        %v1077 = vadd.f32 %v973, 0.0
        %v1078 = vadd.f32 %v974, 0.0
        %v1079 = vadd.f32 %v975, 0.0
        %v1080 = vadd.f32 %v976, 0.0
        %v1081 = vadd.f32 %v977, 0.0
        %v1082 = vadd.f32 %v978, 0.0
        %v1083 = vadd.f32 %v979, 0.0
        %v1084 = vadd.f32 %v980, 0.0
        %v1085 = vadd.f32 %v981, 0.0
        %v1086 = vadd.f32 %v982, 0.0
        %v1087 = vadd.f32 %v983, 0.0
        %v1088 = vadd.f32 %v984, 0.0
        %v1089 = vadd.f32 %v985, 0.0
        %v1090 = vadd.f32 %v986, 0.0
        %v1091 = vadd.f32 %v987, 0.0
        %v1092 = vadd.f32 %v988, 0.0
        %v1093 = vadd.f32 %v989, 0.0
        %v1094 = vadd.f32 %v990, 0.0
        %v1095 = vadd.f32 %v991, 0.0
        %v1096 = vadd.f32 %v992, 0.0
        %v1097 = vadd.f32 %v993, 0.0
        %v1098 = vadd.f32 %v994, 0.0
        %v1099 = vadd.f32 %v995, 0.0
        %v1100 = vadd.f32 %v996, 0.0
        %v1101 = vadd.f32 %v997, 0.0
        %v1102 = vadd.f32 %v998, 0.0
        %v1103 = vadd.f32 %v999, 0.0
        %v1104 = vadd.f32 %v1000, 0.0
        %v1105 = vadd.f32 %v1001, 0.0
        %v1106 = vadd.f32 %v1002, 0.0
        %v1107 = vadd.f32 %v1003, 0.0
        %v1108 = vadd.f32 %v1004, 0.0
        %v1109 = vadd.f32 %v1005, 0.0
        %v1110 = vadd.f32 %v1006, 0.0
        %v1111 = vadd.f32 %v1007, 0.0
        %v1112 = vlaneseq
        %v1113 = vshrl.u32 %v1112, 7
        %v1114 = vsub.s32 1, %v1113
        %v1115 = vrot.slane %v378, %v1114
        %v1116 = vmul.f32 %v383, %v1115
        %v1117 = vmul.f32 %v388, %v1115
        %v1118 = vmul.f32 %v393, %v1115
        %v1119 = vmul.f32 %v398, %v1115
        %v1120 = vmul.f32 %v403, %v1115
        %v1121 = vmul.f32 %v408, %v1115
        %v1122 = vmul.f32 %v413, %v1115
        %v1123 = vmul.f32 %v418, %v1115
        %v1124 = vmul.f32 %v423, %v1115
        %v1125 = vmul.f32 %v428, %v1115
        %v1126 = vmul.f32 %v433, %v1115
        %v1127 = vmul.f32 %v438, %v1115
        %v1128 = vmul.f32 %v443, %v1115
        %v1129 = vmul.f32 %v448, %v1115
        %v1130 = vmul.f32 %v453, %v1115
        %v1131 = vmul.f32 %v458, %v1115
        %v1132 = vmul.f32 %v463, %v1115
        %v1133 = vmul.f32 %v468, %v1115
        %v1134 = vmul.f32 %v473, %v1115
        %v1135 = vmul.f32 %v478, %v1115
        %v1136 = vmul.f32 %v483, %v1115
        %v1137 = vmul.f32 %v488, %v1115
        %v1138 = vmul.f32 %v493, %v1115
        %v1139 = vmul.f32 %v498, %v1115
        %v1140 = vmul.f32 %v503, %v1115
        %v1141 = vmul.f32 %v508, %v1115
        %v1142 = vmul.f32 %v513, %v1115
        %v1143 = vmul.f32 %v518, %v1115
        %v1144 = vmul.f32 %v523, %v1115
        %v1145 = vmul.f32 %v528, %v1115
        %v1146 = vmul.f32 %v533, %v1115
        %v1147 = vmul.f32 %v538, %v1115
        %v1148 = vmul.f32 %v543, %v1115
        %v1149 = vmul.f32 %v548, %v1115
        %v1150 = vmul.f32 %v553, %v1115
        %v1151 = vmul.f32 %v558, %v1115
        %v1152 = vmul.f32 %v563, %v1115
        %v1153 = vmul.f32 %v568, %v1115
        %v1154 = vmul.f32 %v573, %v1115
        %v1155 = vmul.f32 %v578, %v1115
        %v1156 = vmul.f32 %v583, %v1115
        %v1157 = vmul.f32 %v588, %v1115
        %v1158 = vmul.f32 %v593, %v1115
        %v1159 = vmul.f32 %v598, %v1115
        %v1160 = vmul.f32 %v603, %v1115
        %v1161 = vmul.f32 %v608, %v1115
        %v1162 = vmul.f32 %v613, %v1115
        %v1163 = vmul.f32 %v618, %v1115
        %v1164 = vmul.f32 %v623, %v1115
        %v1165 = vmul.f32 %v628, %v1115
        %v1166 = vmul.f32 %v633, %v1115
        %v1167 = vmul.f32 %v638, %v1115
        %v1168 = vmul.f32 %v643, %v1115
        %v1169 = vmul.f32 %v648, %v1115
        %v1170 = vmul.f32 %v653, %v1115
        %v1171 = vmul.f32 %v658, %v1115
        %v1172 = vmul.f32 %v663, %v1115
        %v1173 = vmul.f32 %v668, %v1115
        %v1174 = vmul.f32 %v673, %v1115
        %v1175 = vmul.f32 %v678, %v1115
        %v1176 = vmul.f32 %v683, %v1115
        %v1177 = vmul.f32 %v688, %v1115
        %v1178 = vmul.f32 %v693, %v1115
        %v1179 = vmul.f32 %v698, %v1115
        %v1180 = vmul.f32 %v703, %v1115
        %v1181 = vmul.f32 %v708, %v1115
        %v1182 = vmul.f32 %v713, %v1115
        %v1183 = vmul.f32 %v718, %v1115
        %v1184 = vmul.f32 %v723, %v1115
        %v1185 = vmul.f32 %v728, %v1115
        %v1186 = vmul.f32 %v733, %v1115
        %v1187 = vmul.f32 %v738, %v1115
        %v1188 = vmul.f32 %v743, %v1115
        %v1189 = vmul.f32 %v748, %v1115
        %v1190 = vmul.f32 %v753, %v1115
        %v1191 = vmul.f32 %v758, %v1115
        %v1192 = vmul.f32 %v763, %v1115
        %v1193 = vmul.f32 %v768, %v1115
        %v1194 = vmul.f32 %v773, %v1115
        %v1195 = vmul.f32 %v778, %v1115
        %v1196 = vmul.f32 %v783, %v1115
        %v1197 = vmul.f32 %v788, %v1115
        %v1198 = vmul.f32 %v793, %v1115
        %v1199 = vmul.f32 %v798, %v1115
        %v1200 = vmul.f32 %v803, %v1115
        %v1201 = vmul.f32 %v808, %v1115
        %v1202 = vmul.f32 %v813, %v1115
        %v1203 = vmul.f32 %v818, %v1115
        %v1204 = vmul.f32 %v823, %v1115
        %v1205 = vmul.f32 %v828, %v1115
        %v1206 = vmul.f32 %v833, %v1115
        %v1207 = vmul.f32 %v838, %v1115
        %v1208 = vmul.f32 %v843, %v1115
        %v1209 = vmul.f32 %v848, %v1115
        %v1210 = vmul.f32 %v853, %v1115
        %v1211 = vmul.f32 %v858, %v1115
        %v1212 = vmul.f32 %v863, %v1115
        %v1213 = vmul.f32 %v868, %v1115
        %v1214 = vmul.f32 %v873, %v1115
        %v1215 = vmul.f32 %v878, %v1115
        %v1216 = vmul.f32 %v883, %v1115
        %v1217 = vmul.f32 %v888, %v1115
        %v1218 = vmul.f32 %v893, %v1115
        %v1219 = vmul.f32 %v898, %v1115
        %vm1324 = vcmask 1046528
        %v1325 = vrot.slane %v1116, 1
        %v1326 = vrot.slane %v1117, 1
        %v1327 = vsel %vm1324, %v1325, %v1326
        %v1328 = vrot.slane %v1118, 1
        %v1329 = vsel %vm1324, %v1326, %v1328
        %v1330 = vrot.slane %v1119, 1
        %v1331 = vsel %vm1324, %v1328, %v1330
        %v1332 = vrot.slane %v1120, 1
        %v1333 = vrot.slane %v1121, 1
        %v1334 = vsel %vm1324, %v1332, %v1333
        %v1335 = vrot.slane %v1122, 1
        %v1336 = vsel %vm1324, %v1333, %v1335
        %v1337 = vrot.slane %v1123, 1
        %v1338 = vsel %vm1324, %v1335, %v1337
        %v1339 = vrot.slane %v1124, 1
        %v1340 = vrot.slane %v1125, 1
        %v1341 = vsel %vm1324, %v1339, %v1340
        %v1342 = vrot.slane %v1126, 1
        %v1343 = vsel %vm1324, %v1340, %v1342
        %v1344 = vrot.slane %v1127, 1
        %v1345 = vsel %vm1324, %v1342, %v1344
        %v1346 = vrot.slane %v1128, 1
        %v1347 = vrot.slane %v1129, 1
        %v1348 = vsel %vm1324, %v1346, %v1347
        %v1349 = vrot.slane %v1130, 1
        %v1350 = vsel %vm1324, %v1347, %v1349
        %v1351 = vrot.slane %v1131, 1
        %v1352 = vsel %vm1324, %v1349, %v1351
        %v1353 = vrot.slane %v1132, 1
        %v1354 = vrot.slane %v1133, 1
        %v1355 = vsel %vm1324, %v1353, %v1354
        %v1356 = vrot.slane %v1134, 1
        %v1357 = vsel %vm1324, %v1354, %v1356
        %v1358 = vrot.slane %v1135, 1
        %v1359 = vsel %vm1324, %v1356, %v1358
        %v1360 = vrot.slane %v1136, 1
        %v1361 = vrot.slane %v1137, 1
        %v1362 = vsel %vm1324, %v1360, %v1361
        %v1363 = vrot.slane %v1138, 1
        %v1364 = vsel %vm1324, %v1361, %v1363
        %v1365 = vrot.slane %v1139, 1
        %v1366 = vsel %vm1324, %v1363, %v1365
        %v1367 = vrot.slane %v1140, 1
        %v1368 = vrot.slane %v1141, 1
        %v1369 = vsel %vm1324, %v1367, %v1368
        %v1370 = vrot.slane %v1142, 1
        %v1371 = vsel %vm1324, %v1368, %v1370
        %v1372 = vrot.slane %v1143, 1
        %v1373 = vsel %vm1324, %v1370, %v1372
        %v1374 = vrot.slane %v1144, 1
        %v1375 = vrot.slane %v1145, 1
        %v1376 = vsel %vm1324, %v1374, %v1375
        %v1377 = vrot.slane %v1146, 1
        %v1378 = vsel %vm1324, %v1375, %v1377
        %v1379 = vrot.slane %v1147, 1
        %v1380 = vsel %vm1324, %v1377, %v1379
        %v1381 = vrot.slane %v1148, 1
        %v1382 = vrot.slane %v1149, 1
        %v1383 = vsel %vm1324, %v1381, %v1382
        %v1384 = vrot.slane %v1150, 1
        %v1385 = vsel %vm1324, %v1382, %v1384
        %v1386 = vrot.slane %v1151, 1
        %v1387 = vsel %vm1324, %v1384, %v1386
        %v1388 = vrot.slane %v1152, 1
        %v1389 = vrot.slane %v1153, 1
        %v1390 = vsel %vm1324, %v1388, %v1389
        %v1391 = vrot.slane %v1154, 1
        %v1392 = vsel %vm1324, %v1389, %v1391
        %v1393 = vrot.slane %v1155, 1
        %v1394 = vsel %vm1324, %v1391, %v1393
        %v1395 = vrot.slane %v1156, 1
        %v1396 = vrot.slane %v1157, 1
        %v1397 = vsel %vm1324, %v1395, %v1396
        %v1398 = vrot.slane %v1158, 1
        %v1399 = vsel %vm1324, %v1396, %v1398
        %v1400 = vrot.slane %v1159, 1
        %v1401 = vsel %vm1324, %v1398, %v1400
        %v1402 = vrot.slane %v1160, 1
        %v1403 = vrot.slane %v1161, 1
        %v1404 = vsel %vm1324, %v1402, %v1403
        %v1405 = vrot.slane %v1162, 1
        %v1406 = vsel %vm1324, %v1403, %v1405
        %v1407 = vrot.slane %v1163, 1
        %v1408 = vsel %vm1324, %v1405, %v1407
        %v1409 = vrot.slane %v1164, 1
        %v1410 = vrot.slane %v1165, 1
        %v1411 = vsel %vm1324, %v1409, %v1410
        %v1412 = vrot.slane %v1166, 1
        %v1413 = vsel %vm1324, %v1410, %v1412
        %v1414 = vrot.slane %v1167, 1
        %v1415 = vsel %vm1324, %v1412, %v1414
        %v1416 = vrot.slane %v1168, 1
        %v1417 = vrot.slane %v1169, 1
        %v1418 = vsel %vm1324, %v1416, %v1417
        %v1419 = vrot.slane %v1170, 1
        %v1420 = vsel %vm1324, %v1417, %v1419
        %v1421 = vrot.slane %v1171, 1
        %v1422 = vsel %vm1324, %v1419, %v1421
        %v1423 = vrot.slane %v1172, 1
        %v1424 = vrot.slane %v1173, 1
        %v1425 = vsel %vm1324, %v1423, %v1424
        %v1426 = vrot.slane %v1174, 1
        %v1427 = vsel %vm1324, %v1424, %v1426
        %v1428 = vrot.slane %v1175, 1
        %v1429 = vsel %vm1324, %v1426, %v1428
        %v1430 = vrot.slane %v1176, 1
        %v1431 = vrot.slane %v1177, 1
        %v1432 = vsel %vm1324, %v1430, %v1431
        %v1433 = vrot.slane %v1178, 1
        %v1434 = vsel %vm1324, %v1431, %v1433
        %v1435 = vrot.slane %v1179, 1
        %v1436 = vsel %vm1324, %v1433, %v1435
        %v1437 = vrot.slane %v1180, 1
        %v1438 = vrot.slane %v1181, 1
        %v1439 = vsel %vm1324, %v1437, %v1438
        %v1440 = vrot.slane %v1182, 1
        %v1441 = vsel %vm1324, %v1438, %v1440
        %v1442 = vrot.slane %v1183, 1
        %v1443 = vsel %vm1324, %v1440, %v1442
        %v1444 = vrot.slane %v1184, 1
        %v1445 = vrot.slane %v1185, 1
        %v1446 = vsel %vm1324, %v1444, %v1445
        %v1447 = vrot.slane %v1186, 1
        %v1448 = vsel %vm1324, %v1445, %v1447
        %v1449 = vrot.slane %v1187, 1
        %v1450 = vsel %vm1324, %v1447, %v1449
        %v1451 = vrot.slane %v1188, 1
        %v1452 = vrot.slane %v1189, 1
        %v1453 = vsel %vm1324, %v1451, %v1452
        %v1454 = vrot.slane %v1190, 1
        %v1455 = vsel %vm1324, %v1452, %v1454
        %v1456 = vrot.slane %v1191, 1
        %v1457 = vsel %vm1324, %v1454, %v1456
        %v1458 = vrot.slane %v1192, 1
        %v1459 = vrot.slane %v1193, 1
        %v1460 = vsel %vm1324, %v1458, %v1459
        %v1461 = vrot.slane %v1194, 1
        %v1462 = vsel %vm1324, %v1459, %v1461
        %v1463 = vrot.slane %v1195, 1
        %v1464 = vsel %vm1324, %v1461, %v1463
        %v1465 = vrot.slane %v1196, 1
        %v1466 = vrot.slane %v1197, 1
        %v1467 = vsel %vm1324, %v1465, %v1466
        %v1468 = vrot.slane %v1198, 1
        %v1469 = vsel %vm1324, %v1466, %v1468
        %v1470 = vrot.slane %v1199, 1
        %v1471 = vsel %vm1324, %v1468, %v1470
        %v1472 = vrot.slane %v1200, 1
        %v1473 = vrot.slane %v1201, 1
        %v1474 = vsel %vm1324, %v1472, %v1473
        %v1475 = vrot.slane %v1202, 1
        %v1476 = vsel %vm1324, %v1473, %v1475
        %v1477 = vrot.slane %v1203, 1
        %v1478 = vsel %vm1324, %v1475, %v1477
        %v1479 = vrot.slane %v1204, 1
        %v1480 = vrot.slane %v1205, 1
        %v1481 = vsel %vm1324, %v1479, %v1480
        %v1482 = vrot.slane %v1206, 1
        %v1483 = vsel %vm1324, %v1480, %v1482
        %v1484 = vrot.slane %v1207, 1
        %v1485 = vsel %vm1324, %v1482, %v1484
        %v1486 = vrot.slane %v1208, 1
        %v1487 = vrot.slane %v1209, 1
        %v1488 = vsel %vm1324, %v1486, %v1487
        %v1489 = vrot.slane %v1210, 1
        %v1490 = vsel %vm1324, %v1487, %v1489
        %v1491 = vrot.slane %v1211, 1
        %v1492 = vsel %vm1324, %v1489, %v1491
        %v1493 = vrot.slane %v1212, 1
        %v1494 = vrot.slane %v1213, 1
        %v1495 = vsel %vm1324, %v1493, %v1494
        %v1496 = vrot.slane %v1214, 1
        %v1497 = vsel %vm1324, %v1494, %v1496
        %v1498 = vrot.slane %v1215, 1
        %v1499 = vsel %vm1324, %v1496, %v1498
        %v1500 = vrot.slane %v1216, 1
        %v1501 = vrot.slane %v1217, 1
        %v1502 = vsel %vm1324, %v1500, %v1501
        %v1503 = vrot.slane %v1218, 1
        %v1504 = vsel %vm1324, %v1501, %v1503
        %v1505 = vrot.slane %v1219, 1
        %v1506 = vsel %vm1324, %v1503, %v1505
        %v1611 = vadd.f32 %v1008, %v1327
        %v1612 = vadd.f32 %v1009, %v1329
        %v1613 = vadd.f32 %v1010, %v1331
        %v1614 = vadd.f32 %v1011, %v1330
        %v1615 = vadd.f32 %v1012, %v1334
        %v1616 = vadd.f32 %v1013, %v1336
        %v1617 = vadd.f32 %v1014, %v1338
        %v1618 = vadd.f32 %v1015, %v1337
        %v1619 = vadd.f32 %v1016, %v1341
        %v1620 = vadd.f32 %v1017, %v1343
        %v1621 = vadd.f32 %v1018, %v1345
        %v1622 = vadd.f32 %v1019, %v1344
        %v1623 = vadd.f32 %v1020, %v1348
        %v1624 = vadd.f32 %v1021, %v1350
        %v1625 = vadd.f32 %v1022, %v1352
        %v1626 = vadd.f32 %v1023, %v1351
        %v1627 = vadd.f32 %v1024, %v1355
        %v1628 = vadd.f32 %v1025, %v1357
        %v1629 = vadd.f32 %v1026, %v1359
        %v1630 = vadd.f32 %v1027, %v1358
        %v1631 = vadd.f32 %v1028, %v1362
        %v1632 = vadd.f32 %v1029, %v1364
        %v1633 = vadd.f32 %v1030, %v1366
        %v1634 = vadd.f32 %v1031, %v1365
        %v1635 = vadd.f32 %v1032, %v1369
        %v1636 = vadd.f32 %v1033, %v1371
        %v1637 = vadd.f32 %v1034, %v1373
        %v1638 = vadd.f32 %v1035, %v1372
        %v1639 = vadd.f32 %v1036, %v1376
        %v1640 = vadd.f32 %v1037, %v1378
        %v1641 = vadd.f32 %v1038, %v1380
        %v1642 = vadd.f32 %v1039, %v1379
        %v1643 = vadd.f32 %v1040, %v1383
        %v1644 = vadd.f32 %v1041, %v1385
        %v1645 = vadd.f32 %v1042, %v1387
        %v1646 = vadd.f32 %v1043, %v1386
        %v1647 = vadd.f32 %v1044, %v1390
        %v1648 = vadd.f32 %v1045, %v1392
        %v1649 = vadd.f32 %v1046, %v1394
        %v1650 = vadd.f32 %v1047, %v1393
        %v1651 = vadd.f32 %v1048, %v1397
        %v1652 = vadd.f32 %v1049, %v1399
        %v1653 = vadd.f32 %v1050, %v1401
        %v1654 = vadd.f32 %v1051, %v1400
        %v1655 = vadd.f32 %v1052, %v1404
        %v1656 = vadd.f32 %v1053, %v1406
        %v1657 = vadd.f32 %v1054, %v1408
        %v1658 = vadd.f32 %v1055, %v1407
        %v1659 = vadd.f32 %v1056, %v1411
        %v1660 = vadd.f32 %v1057, %v1413
        %v1661 = vadd.f32 %v1058, %v1415
        %v1662 = vadd.f32 %v1059, %v1414
        %v1663 = vadd.f32 %v1060, %v1418
        %v1664 = vadd.f32 %v1061, %v1420
        %v1665 = vadd.f32 %v1062, %v1422
        %v1666 = vadd.f32 %v1063, %v1421
        %v1667 = vadd.f32 %v1064, %v1425
        %v1668 = vadd.f32 %v1065, %v1427
        %v1669 = vadd.f32 %v1066, %v1429
        %v1670 = vadd.f32 %v1067, %v1428
        %v1671 = vadd.f32 %v1068, %v1432
        %v1672 = vadd.f32 %v1069, %v1434
        %v1673 = vadd.f32 %v1070, %v1436
        %v1674 = vadd.f32 %v1071, %v1435
        %v1675 = vadd.f32 %v1072, %v1439
        %v1676 = vadd.f32 %v1073, %v1441
        %v1677 = vadd.f32 %v1074, %v1443
        %v1678 = vadd.f32 %v1075, %v1442
        %v1679 = vadd.f32 %v1076, %v1446
        %v1680 = vadd.f32 %v1077, %v1448
        %v1681 = vadd.f32 %v1078, %v1450
        %v1682 = vadd.f32 %v1079, %v1449
        %v1683 = vadd.f32 %v1080, %v1453
        %v1684 = vadd.f32 %v1081, %v1455
        %v1685 = vadd.f32 %v1082, %v1457
        %v1686 = vadd.f32 %v1083, %v1456
        %v1687 = vadd.f32 %v1084, %v1460
        %v1688 = vadd.f32 %v1085, %v1462
        %v1689 = vadd.f32 %v1086, %v1464
        %v1690 = vadd.f32 %v1087, %v1463
        %v1691 = vadd.f32 %v1088, %v1467
        %v1692 = vadd.f32 %v1089, %v1469
        %v1693 = vadd.f32 %v1090, %v1471
        %v1694 = vadd.f32 %v1091, %v1470
        %v1695 = vadd.f32 %v1092, %v1474
        %v1696 = vadd.f32 %v1093, %v1476
        %v1697 = vadd.f32 %v1094, %v1478
        %v1698 = vadd.f32 %v1095, %v1477
        %v1699 = vadd.f32 %v1096, %v1481
        %v1700 = vadd.f32 %v1097, %v1483
        %v1701 = vadd.f32 %v1098, %v1485
        %v1702 = vadd.f32 %v1099, %v1484
        %v1703 = vadd.f32 %v1100, %v1488
        %v1704 = vadd.f32 %v1101, %v1490
        %v1705 = vadd.f32 %v1102, %v1492
        %v1706 = vadd.f32 %v1103, %v1491
        %v1707 = vadd.f32 %v1104, %v1495
        %v1708 = vadd.f32 %v1105, %v1497
        %v1709 = vadd.f32 %v1106, %v1499
        %v1710 = vadd.f32 %v1107, %v1498
        %v1711 = vadd.f32 %v1108, %v1502
        %v1712 = vadd.f32 %v1109, %v1504
        %v1713 = vadd.f32 %v1110, %v1506
        %v1714 = vadd.f32 %v1111, %v1505
        %v1715 = vlaneseq
        %v1716 = vshrl.u32 %v1715, 7
        %v1717 = vsub.s32 2, %v1716
        %v1718 = vrot.slane %v378, %v1717
        %v1719 = vmul.f32 %v383, %v1718
        %v1720 = vmul.f32 %v388, %v1718
        %v1721 = vmul.f32 %v393, %v1718
        %v1722 = vmul.f32 %v398, %v1718
        %v1723 = vmul.f32 %v403, %v1718
        %v1724 = vmul.f32 %v408, %v1718
        %v1725 = vmul.f32 %v413, %v1718
        %v1726 = vmul.f32 %v418, %v1718
        %v1727 = vmul.f32 %v423, %v1718
        %v1728 = vmul.f32 %v428, %v1718
        %v1729 = vmul.f32 %v433, %v1718
        %v1730 = vmul.f32 %v438, %v1718
        %v1731 = vmul.f32 %v443, %v1718
        %v1732 = vmul.f32 %v448, %v1718
        %v1733 = vmul.f32 %v453, %v1718
        %v1734 = vmul.f32 %v458, %v1718
        %v1735 = vmul.f32 %v463, %v1718
        %v1736 = vmul.f32 %v468, %v1718
        %v1737 = vmul.f32 %v473, %v1718
        %v1738 = vmul.f32 %v478, %v1718
        %v1739 = vmul.f32 %v483, %v1718
        %v1740 = vmul.f32 %v488, %v1718
        %v1741 = vmul.f32 %v493, %v1718
        %v1742 = vmul.f32 %v498, %v1718
        %v1743 = vmul.f32 %v503, %v1718
        %v1744 = vmul.f32 %v508, %v1718
        %v1745 = vmul.f32 %v513, %v1718
        %v1746 = vmul.f32 %v518, %v1718
        %v1747 = vmul.f32 %v523, %v1718
        %v1748 = vmul.f32 %v528, %v1718
        %v1749 = vmul.f32 %v533, %v1718
        %v1750 = vmul.f32 %v538, %v1718
        %v1751 = vmul.f32 %v543, %v1718
        %v1752 = vmul.f32 %v548, %v1718
        %v1753 = vmul.f32 %v553, %v1718
        %v1754 = vmul.f32 %v558, %v1718
        %v1755 = vmul.f32 %v563, %v1718
        %v1756 = vmul.f32 %v568, %v1718
        %v1757 = vmul.f32 %v573, %v1718
        %v1758 = vmul.f32 %v578, %v1718
        %v1759 = vmul.f32 %v583, %v1718
        %v1760 = vmul.f32 %v588, %v1718
        %v1761 = vmul.f32 %v593, %v1718
        %v1762 = vmul.f32 %v598, %v1718
        %v1763 = vmul.f32 %v603, %v1718
        %v1764 = vmul.f32 %v608, %v1718
        %v1765 = vmul.f32 %v613, %v1718
        %v1766 = vmul.f32 %v618, %v1718
        %v1767 = vmul.f32 %v623, %v1718
        %v1768 = vmul.f32 %v628, %v1718
        %v1769 = vmul.f32 %v633, %v1718
        %v1770 = vmul.f32 %v638, %v1718
        %v1771 = vmul.f32 %v643, %v1718
        %v1772 = vmul.f32 %v648, %v1718
        %v1773 = vmul.f32 %v653, %v1718
        %v1774 = vmul.f32 %v658, %v1718
        %v1775 = vmul.f32 %v663, %v1718
        %v1776 = vmul.f32 %v668, %v1718
        %v1777 = vmul.f32 %v673, %v1718
        %v1778 = vmul.f32 %v678, %v1718
        %v1779 = vmul.f32 %v683, %v1718
        %v1780 = vmul.f32 %v688, %v1718
        %v1781 = vmul.f32 %v693, %v1718
        %v1782 = vmul.f32 %v698, %v1718
        %v1783 = vmul.f32 %v703, %v1718
        %v1784 = vmul.f32 %v708, %v1718
        %v1785 = vmul.f32 %v713, %v1718
        %v1786 = vmul.f32 %v718, %v1718
        %v1787 = vmul.f32 %v723, %v1718
        %v1788 = vmul.f32 %v728, %v1718
        %v1789 = vmul.f32 %v733, %v1718
        %v1790 = vmul.f32 %v738, %v1718
        %v1791 = vmul.f32 %v743, %v1718
        %v1792 = vmul.f32 %v748, %v1718
        %v1793 = vmul.f32 %v753, %v1718
        %v1794 = vmul.f32 %v758, %v1718
        %v1795 = vmul.f32 %v763, %v1718
        %v1796 = vmul.f32 %v768, %v1718
        %v1797 = vmul.f32 %v773, %v1718
        %v1798 = vmul.f32 %v778, %v1718
        %v1799 = vmul.f32 %v783, %v1718
        %v1800 = vmul.f32 %v788, %v1718
        %v1801 = vmul.f32 %v793, %v1718
        %v1802 = vmul.f32 %v798, %v1718
        %v1803 = vmul.f32 %v803, %v1718
        %v1804 = vmul.f32 %v808, %v1718
        %v1805 = vmul.f32 %v813, %v1718
        %v1806 = vmul.f32 %v818, %v1718
        %v1807 = vmul.f32 %v823, %v1718
        %v1808 = vmul.f32 %v828, %v1718
        %v1809 = vmul.f32 %v833, %v1718
        %v1810 = vmul.f32 %v838, %v1718
        %v1811 = vmul.f32 %v843, %v1718
        %v1812 = vmul.f32 %v848, %v1718
        %v1813 = vmul.f32 %v853, %v1718
        %v1814 = vmul.f32 %v858, %v1718
        %v1815 = vmul.f32 %v863, %v1718
        %v1816 = vmul.f32 %v868, %v1718
        %v1817 = vmul.f32 %v873, %v1718
        %v1818 = vmul.f32 %v878, %v1718
        %v1819 = vmul.f32 %v883, %v1718
        %v1820 = vmul.f32 %v888, %v1718
        %v1821 = vmul.f32 %v893, %v1718
        %v1822 = vmul.f32 %v898, %v1718
        %vm1927 = vcmask 1045504
        %v1928 = vrot.slane %v1719, 2
        %v1929 = vrot.slane %v1720, 2
        %v1930 = vsel %vm1927, %v1928, %v1929
        %v1931 = vrot.slane %v1721, 2
        %v1932 = vsel %vm1927, %v1929, %v1931
        %v1933 = vrot.slane %v1722, 2
        %v1934 = vsel %vm1927, %v1931, %v1933
        %v1935 = vrot.slane %v1723, 2
        %v1936 = vrot.slane %v1724, 2
        %v1937 = vsel %vm1927, %v1935, %v1936
        %v1938 = vrot.slane %v1725, 2
        %v1939 = vsel %vm1927, %v1936, %v1938
        %v1940 = vrot.slane %v1726, 2
        %v1941 = vsel %vm1927, %v1938, %v1940
        %v1942 = vrot.slane %v1727, 2
        %v1943 = vrot.slane %v1728, 2
        %v1944 = vsel %vm1927, %v1942, %v1943
        %v1945 = vrot.slane %v1729, 2
        %v1946 = vsel %vm1927, %v1943, %v1945
        %v1947 = vrot.slane %v1730, 2
        %v1948 = vsel %vm1927, %v1945, %v1947
        %v1949 = vrot.slane %v1731, 2
        %v1950 = vrot.slane %v1732, 2
        %v1951 = vsel %vm1927, %v1949, %v1950
        %v1952 = vrot.slane %v1733, 2
        %v1953 = vsel %vm1927, %v1950, %v1952
        %v1954 = vrot.slane %v1734, 2
        %v1955 = vsel %vm1927, %v1952, %v1954
        %v1956 = vrot.slane %v1735, 2
        %v1957 = vrot.slane %v1736, 2
        %v1958 = vsel %vm1927, %v1956, %v1957
        %v1959 = vrot.slane %v1737, 2
        %v1960 = vsel %vm1927, %v1957, %v1959
        %v1961 = vrot.slane %v1738, 2
        %v1962 = vsel %vm1927, %v1959, %v1961
        %v1963 = vrot.slane %v1739, 2
        %v1964 = vrot.slane %v1740, 2
        %v1965 = vsel %vm1927, %v1963, %v1964
        %v1966 = vrot.slane %v1741, 2
        %v1967 = vsel %vm1927, %v1964, %v1966
        %v1968 = vrot.slane %v1742, 2
        %v1969 = vsel %vm1927, %v1966, %v1968
        %v1970 = vrot.slane %v1743, 2
        %v1971 = vrot.slane %v1744, 2
        %v1972 = vsel %vm1927, %v1970, %v1971
        %v1973 = vrot.slane %v1745, 2
        %v1974 = vsel %vm1927, %v1971, %v1973
        %v1975 = vrot.slane %v1746, 2
        %v1976 = vsel %vm1927, %v1973, %v1975
        %v1977 = vrot.slane %v1747, 2
        %v1978 = vrot.slane %v1748, 2
        %v1979 = vsel %vm1927, %v1977, %v1978
        %v1980 = vrot.slane %v1749, 2
        %v1981 = vsel %vm1927, %v1978, %v1980
        %v1982 = vrot.slane %v1750, 2
        %v1983 = vsel %vm1927, %v1980, %v1982
        %v1984 = vrot.slane %v1751, 2
        %v1985 = vrot.slane %v1752, 2
        %v1986 = vsel %vm1927, %v1984, %v1985
        %v1987 = vrot.slane %v1753, 2
        %v1988 = vsel %vm1927, %v1985, %v1987
        %v1989 = vrot.slane %v1754, 2
        %v1990 = vsel %vm1927, %v1987, %v1989
        %v1991 = vrot.slane %v1755, 2
        %v1992 = vrot.slane %v1756, 2
        %v1993 = vsel %vm1927, %v1991, %v1992
        %v1994 = vrot.slane %v1757, 2
        %v1995 = vsel %vm1927, %v1992, %v1994
        %v1996 = vrot.slane %v1758, 2
        %v1997 = vsel %vm1927, %v1994, %v1996
        %v1998 = vrot.slane %v1759, 2
        %v1999 = vrot.slane %v1760, 2
        %v2000 = vsel %vm1927, %v1998, %v1999
        %v2001 = vrot.slane %v1761, 2
        %v2002 = vsel %vm1927, %v1999, %v2001
        %v2003 = vrot.slane %v1762, 2
        %v2004 = vsel %vm1927, %v2001, %v2003
        %v2005 = vrot.slane %v1763, 2
        %v2006 = vrot.slane %v1764, 2
        %v2007 = vsel %vm1927, %v2005, %v2006
        %v2008 = vrot.slane %v1765, 2
        %v2009 = vsel %vm1927, %v2006, %v2008
        %v2010 = vrot.slane %v1766, 2
        %v2011 = vsel %vm1927, %v2008, %v2010
        %v2012 = vrot.slane %v1767, 2
        %v2013 = vrot.slane %v1768, 2
        %v2014 = vsel %vm1927, %v2012, %v2013
        %v2015 = vrot.slane %v1769, 2
        %v2016 = vsel %vm1927, %v2013, %v2015
        %v2017 = vrot.slane %v1770, 2
        %v2018 = vsel %vm1927, %v2015, %v2017
        %v2019 = vrot.slane %v1771, 2
        %v2020 = vrot.slane %v1772, 2
        %v2021 = vsel %vm1927, %v2019, %v2020
        %v2022 = vrot.slane %v1773, 2
        %v2023 = vsel %vm1927, %v2020, %v2022
        %v2024 = vrot.slane %v1774, 2
        %v2025 = vsel %vm1927, %v2022, %v2024
        %v2026 = vrot.slane %v1775, 2
        %v2027 = vrot.slane %v1776, 2
        %v2028 = vsel %vm1927, %v2026, %v2027
        %v2029 = vrot.slane %v1777, 2
        %v2030 = vsel %vm1927, %v2027, %v2029
        %v2031 = vrot.slane %v1778, 2
        %v2032 = vsel %vm1927, %v2029, %v2031
        %v2033 = vrot.slane %v1779, 2
        %v2034 = vrot.slane %v1780, 2
        %v2035 = vsel %vm1927, %v2033, %v2034
        %v2036 = vrot.slane %v1781, 2
        %v2037 = vsel %vm1927, %v2034, %v2036
        %v2038 = vrot.slane %v1782, 2
        %v2039 = vsel %vm1927, %v2036, %v2038
        %v2040 = vrot.slane %v1783, 2
        %v2041 = vrot.slane %v1784, 2
        %v2042 = vsel %vm1927, %v2040, %v2041
        %v2043 = vrot.slane %v1785, 2
        %v2044 = vsel %vm1927, %v2041, %v2043
        %v2045 = vrot.slane %v1786, 2
        %v2046 = vsel %vm1927, %v2043, %v2045
        %v2047 = vrot.slane %v1787, 2
        %v2048 = vrot.slane %v1788, 2
        %v2049 = vsel %vm1927, %v2047, %v2048
        %v2050 = vrot.slane %v1789, 2
        %v2051 = vsel %vm1927, %v2048, %v2050
        %v2052 = vrot.slane %v1790, 2
        %v2053 = vsel %vm1927, %v2050, %v2052
        %v2054 = vrot.slane %v1791, 2
        %v2055 = vrot.slane %v1792, 2
        %v2056 = vsel %vm1927, %v2054, %v2055
        %v2057 = vrot.slane %v1793, 2
        %v2058 = vsel %vm1927, %v2055, %v2057
        %v2059 = vrot.slane %v1794, 2
        %v2060 = vsel %vm1927, %v2057, %v2059
        %v2061 = vrot.slane %v1795, 2
        %v2062 = vrot.slane %v1796, 2
        %v2063 = vsel %vm1927, %v2061, %v2062
        %v2064 = vrot.slane %v1797, 2
        %v2065 = vsel %vm1927, %v2062, %v2064
        %v2066 = vrot.slane %v1798, 2
        %v2067 = vsel %vm1927, %v2064, %v2066
        %v2068 = vrot.slane %v1799, 2
        %v2069 = vrot.slane %v1800, 2
        %v2070 = vsel %vm1927, %v2068, %v2069
        %v2071 = vrot.slane %v1801, 2
        %v2072 = vsel %vm1927, %v2069, %v2071
        %v2073 = vrot.slane %v1802, 2
        %v2074 = vsel %vm1927, %v2071, %v2073
        %v2075 = vrot.slane %v1803, 2
        %v2076 = vrot.slane %v1804, 2
        %v2077 = vsel %vm1927, %v2075, %v2076
        %v2078 = vrot.slane %v1805, 2
        %v2079 = vsel %vm1927, %v2076, %v2078
        %v2080 = vrot.slane %v1806, 2
        %v2081 = vsel %vm1927, %v2078, %v2080
        %v2082 = vrot.slane %v1807, 2
        %v2083 = vrot.slane %v1808, 2
        %v2084 = vsel %vm1927, %v2082, %v2083
        %v2085 = vrot.slane %v1809, 2
        %v2086 = vsel %vm1927, %v2083, %v2085
        %v2087 = vrot.slane %v1810, 2
        %v2088 = vsel %vm1927, %v2085, %v2087
        %v2089 = vrot.slane %v1811, 2
        %v2090 = vrot.slane %v1812, 2
        %v2091 = vsel %vm1927, %v2089, %v2090
        %v2092 = vrot.slane %v1813, 2
        %v2093 = vsel %vm1927, %v2090, %v2092
        %v2094 = vrot.slane %v1814, 2
        %v2095 = vsel %vm1927, %v2092, %v2094
        %v2096 = vrot.slane %v1815, 2
        %v2097 = vrot.slane %v1816, 2
        %v2098 = vsel %vm1927, %v2096, %v2097
        %v2099 = vrot.slane %v1817, 2
        %v2100 = vsel %vm1927, %v2097, %v2099
        %v2101 = vrot.slane %v1818, 2
        %v2102 = vsel %vm1927, %v2099, %v2101
        %v2103 = vrot.slane %v1819, 2
        %v2104 = vrot.slane %v1820, 2
        %v2105 = vsel %vm1927, %v2103, %v2104
        %v2106 = vrot.slane %v1821, 2
        %v2107 = vsel %vm1927, %v2104, %v2106
        %v2108 = vrot.slane %v1822, 2
        %v2109 = vsel %vm1927, %v2106, %v2108
        %v2214 = vadd.f32 %v1611, %v1930
        %v2215 = vadd.f32 %v1612, %v1932
        %v2216 = vadd.f32 %v1613, %v1934
        %v2217 = vadd.f32 %v1614, %v1933
        %v2218 = vadd.f32 %v1615, %v1937
        %v2219 = vadd.f32 %v1616, %v1939
        %v2220 = vadd.f32 %v1617, %v1941
        %v2221 = vadd.f32 %v1618, %v1940
        %v2222 = vadd.f32 %v1619, %v1944
        %v2223 = vadd.f32 %v1620, %v1946
        %v2224 = vadd.f32 %v1621, %v1948
        %v2225 = vadd.f32 %v1622, %v1947
        %v2226 = vadd.f32 %v1623, %v1951
        %v2227 = vadd.f32 %v1624, %v1953
        %v2228 = vadd.f32 %v1625, %v1955
        %v2229 = vadd.f32 %v1626, %v1954
        %v2230 = vadd.f32 %v1627, %v1958
        %v2231 = vadd.f32 %v1628, %v1960
        %v2232 = vadd.f32 %v1629, %v1962
        %v2233 = vadd.f32 %v1630, %v1961
        %v2234 = vadd.f32 %v1631, %v1965
        %v2235 = vadd.f32 %v1632, %v1967
        %v2236 = vadd.f32 %v1633, %v1969
        %v2237 = vadd.f32 %v1634, %v1968
        %v2238 = vadd.f32 %v1635, %v1972
        %v2239 = vadd.f32 %v1636, %v1974
        %v2240 = vadd.f32 %v1637, %v1976
        %v2241 = vadd.f32 %v1638, %v1975
        %v2242 = vadd.f32 %v1639, %v1979
        %v2243 = vadd.f32 %v1640, %v1981
        %v2244 = vadd.f32 %v1641, %v1983
        %v2245 = vadd.f32 %v1642, %v1982
        %v2246 = vadd.f32 %v1643, %v1986
        %v2247 = vadd.f32 %v1644, %v1988
        %v2248 = vadd.f32 %v1645, %v1990
        %v2249 = vadd.f32 %v1646, %v1989
        %v2250 = vadd.f32 %v1647, %v1993
        %v2251 = vadd.f32 %v1648, %v1995
        %v2252 = vadd.f32 %v1649, %v1997
        %v2253 = vadd.f32 %v1650, %v1996
        %v2254 = vadd.f32 %v1651, %v2000
        %v2255 = vadd.f32 %v1652, %v2002
        %v2256 = vadd.f32 %v1653, %v2004
        %v2257 = vadd.f32 %v1654, %v2003
        %v2258 = vadd.f32 %v1655, %v2007
        %v2259 = vadd.f32 %v1656, %v2009
        %v2260 = vadd.f32 %v1657, %v2011
        %v2261 = vadd.f32 %v1658, %v2010
        %v2262 = vadd.f32 %v1659, %v2014
        %v2263 = vadd.f32 %v1660, %v2016
        %v2264 = vadd.f32 %v1661, %v2018
        %v2265 = vadd.f32 %v1662, %v2017
        %v2266 = vadd.f32 %v1663, %v2021
        %v2267 = vadd.f32 %v1664, %v2023
        %v2268 = vadd.f32 %v1665, %v2025
        %v2269 = vadd.f32 %v1666, %v2024
        %v2270 = vadd.f32 %v1667, %v2028
        %v2271 = vadd.f32 %v1668, %v2030
        %v2272 = vadd.f32 %v1669, %v2032
        %v2273 = vadd.f32 %v1670, %v2031
        %v2274 = vadd.f32 %v1671, %v2035
        %v2275 = vadd.f32 %v1672, %v2037
        %v2276 = vadd.f32 %v1673, %v2039
        %v2277 = vadd.f32 %v1674, %v2038
        %v2278 = vadd.f32 %v1675, %v2042
        %v2279 = vadd.f32 %v1676, %v2044
        %v2280 = vadd.f32 %v1677, %v2046
        %v2281 = vadd.f32 %v1678, %v2045
        %v2282 = vadd.f32 %v1679, %v2049
        %v2283 = vadd.f32 %v1680, %v2051
        %v2284 = vadd.f32 %v1681, %v2053
        %v2285 = vadd.f32 %v1682, %v2052
        %v2286 = vadd.f32 %v1683, %v2056
        %v2287 = vadd.f32 %v1684, %v2058
        %v2288 = vadd.f32 %v1685, %v2060
        %v2289 = vadd.f32 %v1686, %v2059
        %v2290 = vadd.f32 %v1687, %v2063
        %v2291 = vadd.f32 %v1688, %v2065
        %v2292 = vadd.f32 %v1689, %v2067
        %v2293 = vadd.f32 %v1690, %v2066
        %v2294 = vadd.f32 %v1691, %v2070
        %v2295 = vadd.f32 %v1692, %v2072
        %v2296 = vadd.f32 %v1693, %v2074
        %v2297 = vadd.f32 %v1694, %v2073
        %v2298 = vadd.f32 %v1695, %v2077
        %v2299 = vadd.f32 %v1696, %v2079
        %v2300 = vadd.f32 %v1697, %v2081
        %v2301 = vadd.f32 %v1698, %v2080
        %v2302 = vadd.f32 %v1699, %v2084
        %v2303 = vadd.f32 %v1700, %v2086
        %v2304 = vadd.f32 %v1701, %v2088
        %v2305 = vadd.f32 %v1702, %v2087
        %v2306 = vadd.f32 %v1703, %v2091
        %v2307 = vadd.f32 %v1704, %v2093
        %v2308 = vadd.f32 %v1705, %v2095
        %v2309 = vadd.f32 %v1706, %v2094
        %v2310 = vadd.f32 %v1707, %v2098
        %v2311 = vadd.f32 %v1708, %v2100
        %v2312 = vadd.f32 %v1709, %v2102
        %v2313 = vadd.f32 %v1710, %v2101
        %v2314 = vadd.f32 %v1711, %v2105
        %v2315 = vadd.f32 %v1712, %v2107
        %v2316 = vadd.f32 %v1713, %v2109
        %v2317 = vadd.f32 %v1714, %v2108
        %2319 = vset.pattern.permute.xlu0 0
        %2320 = vperm.xlu0 %2319, %v370
        %v2321 = vpop.permute.xlu0 %2320
        %2324 = vset.pattern.permute.xlu0 0
        %2325 = vperm.xlu0 %2324, %v371
        %v2326 = vpop.permute.xlu0 %2325
        %2329 = vset.pattern.permute.xlu0 0
        %2330 = vperm.xlu0 %2329, %v372
        %v2331 = vpop.permute.xlu0 %2330
        %2334 = vset.pattern.permute.xlu0 0
        %2335 = vperm.xlu0 %2334, %v373
        %v2336 = vpop.permute.xlu0 %2335
        %v2338 = vlaneseq
        %v2339 = vshrl.u32 %v2338, 7
        %v2340 = vsub.s32 3, %v2339
        %v2341 = vrot.slane %v378, %v2340
        %v2342 = vmul.f32 %v403, %v2341
        %v2343 = vmul.f32 %v408, %v2341
        %v2344 = vmul.f32 %v413, %v2341
        %v2345 = vmul.f32 %v418, %v2341
        %v2346 = vmul.f32 %v423, %v2341
        %v2347 = vmul.f32 %v428, %v2341
        %v2348 = vmul.f32 %v433, %v2341
        %v2349 = vmul.f32 %v438, %v2341
        %v2350 = vmul.f32 %v443, %v2341
        %v2351 = vmul.f32 %v448, %v2341
        %v2352 = vmul.f32 %v453, %v2341
        %v2353 = vmul.f32 %v458, %v2341
        %v2354 = vmul.f32 %v463, %v2341
        %v2355 = vmul.f32 %v468, %v2341
        %v2356 = vmul.f32 %v473, %v2341
        %v2357 = vmul.f32 %v478, %v2341
        %v2358 = vmul.f32 %v483, %v2341
        %v2359 = vmul.f32 %v488, %v2341
        %v2360 = vmul.f32 %v493, %v2341
        %v2361 = vmul.f32 %v498, %v2341
        %v2362 = vmul.f32 %v503, %v2341
        %v2363 = vmul.f32 %v508, %v2341
        %v2364 = vmul.f32 %v513, %v2341
        %v2365 = vmul.f32 %v518, %v2341
        %v2366 = vmul.f32 %v523, %v2341
        %v2367 = vmul.f32 %v528, %v2341
        %v2368 = vmul.f32 %v533, %v2341
        %v2369 = vmul.f32 %v538, %v2341
        %v2370 = vmul.f32 %v543, %v2341
        %v2371 = vmul.f32 %v548, %v2341
        %v2372 = vmul.f32 %v553, %v2341
        %v2373 = vmul.f32 %v558, %v2341
        %v2374 = vmul.f32 %v563, %v2341
        %v2375 = vmul.f32 %v568, %v2341
        %v2376 = vmul.f32 %v573, %v2341
        %v2377 = vmul.f32 %v578, %v2341
        %v2378 = vmul.f32 %v583, %v2341
        %v2379 = vmul.f32 %v588, %v2341
        %v2380 = vmul.f32 %v593, %v2341
        %v2381 = vmul.f32 %v598, %v2341
        %v2382 = vmul.f32 %v603, %v2341
        %v2383 = vmul.f32 %v608, %v2341
        %v2384 = vmul.f32 %v613, %v2341
        %v2385 = vmul.f32 %v618, %v2341
        %v2386 = vmul.f32 %v623, %v2341
        %v2387 = vmul.f32 %v628, %v2341
        %v2388 = vmul.f32 %v633, %v2341
        %v2389 = vmul.f32 %v638, %v2341
        %v2390 = vmul.f32 %v643, %v2341
        %v2391 = vmul.f32 %v648, %v2341
        %v2392 = vmul.f32 %v653, %v2341
        %v2393 = vmul.f32 %v658, %v2341
        %v2394 = vmul.f32 %v663, %v2341
        %v2395 = vmul.f32 %v668, %v2341
        %v2396 = vmul.f32 %v673, %v2341
        %v2397 = vmul.f32 %v678, %v2341
        %v2398 = vmul.f32 %v683, %v2341
        %v2399 = vmul.f32 %v688, %v2341
        %v2400 = vmul.f32 %v693, %v2341
        %v2401 = vmul.f32 %v698, %v2341
        %v2402 = vmul.f32 %v703, %v2341
        %v2403 = vmul.f32 %v708, %v2341
        %v2404 = vmul.f32 %v713, %v2341
        %v2405 = vmul.f32 %v718, %v2341
        %v2406 = vmul.f32 %v723, %v2341
        %v2407 = vmul.f32 %v728, %v2341
        %v2408 = vmul.f32 %v733, %v2341
        %v2409 = vmul.f32 %v738, %v2341
        %v2410 = vmul.f32 %v743, %v2341
        %v2411 = vmul.f32 %v748, %v2341
        %v2412 = vmul.f32 %v753, %v2341
        %v2413 = vmul.f32 %v758, %v2341
        %v2414 = vmul.f32 %v763, %v2341
        %v2415 = vmul.f32 %v768, %v2341
        %v2416 = vmul.f32 %v773, %v2341
        %v2417 = vmul.f32 %v778, %v2341
        %v2418 = vmul.f32 %v783, %v2341
        %v2419 = vmul.f32 %v788, %v2341
        %v2420 = vmul.f32 %v793, %v2341
        %v2421 = vmul.f32 %v798, %v2341
        %v2422 = vmul.f32 %v803, %v2341
        %v2423 = vmul.f32 %v808, %v2341
        %v2424 = vmul.f32 %v813, %v2341
        %v2425 = vmul.f32 %v818, %v2341
        %v2426 = vmul.f32 %v823, %v2341
        %v2427 = vmul.f32 %v828, %v2341
        %v2428 = vmul.f32 %v833, %v2341
        %v2429 = vmul.f32 %v838, %v2341
        %v2430 = vmul.f32 %v843, %v2341
        %v2431 = vmul.f32 %v848, %v2341
        %v2432 = vmul.f32 %v853, %v2341
        %v2433 = vmul.f32 %v858, %v2341
        %v2434 = vmul.f32 %v863, %v2341
        %v2435 = vmul.f32 %v868, %v2341
        %v2436 = vmul.f32 %v873, %v2341
        %v2437 = vmul.f32 %v878, %v2341
        %v2438 = vmul.f32 %v883, %v2341
        %v2439 = vmul.f32 %v888, %v2341
        %v2440 = vmul.f32 %v893, %v2341
        %v2441 = vmul.f32 %v898, %v2341
        %v2442 = vmul.f32 %v2321, %v2341
        %v2443 = vmul.f32 %v2326, %v2341
        %v2444 = vmul.f32 %v2331, %v2341
        %v2445 = vmul.f32 %v2336, %v2341
        %v2446 = vadd.f32 %v2214, %v2342
        %v2447 = vadd.f32 %v2215, %v2343
        %v2448 = vadd.f32 %v2216, %v2344
        %v2449 = vadd.f32 %v2217, %v2345
        %v2450 = vadd.f32 %v2218, %v2346
        %v2451 = vadd.f32 %v2219, %v2347
        %v2452 = vadd.f32 %v2220, %v2348
        %v2453 = vadd.f32 %v2221, %v2349
        %v2454 = vadd.f32 %v2222, %v2350
        %v2455 = vadd.f32 %v2223, %v2351
        %v2456 = vadd.f32 %v2224, %v2352
        %v2457 = vadd.f32 %v2225, %v2353
        %v2458 = vadd.f32 %v2226, %v2354
        %v2459 = vadd.f32 %v2227, %v2355
        %v2460 = vadd.f32 %v2228, %v2356
        %v2461 = vadd.f32 %v2229, %v2357
        %v2462 = vadd.f32 %v2230, %v2358
        %v2463 = vadd.f32 %v2231, %v2359
        %v2464 = vadd.f32 %v2232, %v2360
        %v2465 = vadd.f32 %v2233, %v2361
        %v2466 = vadd.f32 %v2234, %v2362
        %v2467 = vadd.f32 %v2235, %v2363
        %v2468 = vadd.f32 %v2236, %v2364
        %v2469 = vadd.f32 %v2237, %v2365
        %v2470 = vadd.f32 %v2238, %v2366
        %v2471 = vadd.f32 %v2239, %v2367
        %v2472 = vadd.f32 %v2240, %v2368
        %v2473 = vadd.f32 %v2241, %v2369
        %v2474 = vadd.f32 %v2242, %v2370
        %v2475 = vadd.f32 %v2243, %v2371
        %v2476 = vadd.f32 %v2244, %v2372
        %v2477 = vadd.f32 %v2245, %v2373
        %v2478 = vadd.f32 %v2246, %v2374
        %v2479 = vadd.f32 %v2247, %v2375
        %v2480 = vadd.f32 %v2248, %v2376
        %v2481 = vadd.f32 %v2249, %v2377
        %v2482 = vadd.f32 %v2250, %v2378
        %v2483 = vadd.f32 %v2251, %v2379
        %v2484 = vadd.f32 %v2252, %v2380
        %v2485 = vadd.f32 %v2253, %v2381
        %v2486 = vadd.f32 %v2254, %v2382
        %v2487 = vadd.f32 %v2255, %v2383
        %v2488 = vadd.f32 %v2256, %v2384
        %v2489 = vadd.f32 %v2257, %v2385
        %v2490 = vadd.f32 %v2258, %v2386
        %v2491 = vadd.f32 %v2259, %v2387
        %v2492 = vadd.f32 %v2260, %v2388
        %v2493 = vadd.f32 %v2261, %v2389
        %v2494 = vadd.f32 %v2262, %v2390
        %v2495 = vadd.f32 %v2263, %v2391
        %v2496 = vadd.f32 %v2264, %v2392
        %v2497 = vadd.f32 %v2265, %v2393
        %v2498 = vadd.f32 %v2266, %v2394
        %v2499 = vadd.f32 %v2267, %v2395
        %v2500 = vadd.f32 %v2268, %v2396
        %v2501 = vadd.f32 %v2269, %v2397
        %v2502 = vadd.f32 %v2270, %v2398
        %v2503 = vadd.f32 %v2271, %v2399
        %v2504 = vadd.f32 %v2272, %v2400
        %v2505 = vadd.f32 %v2273, %v2401
        %v2506 = vadd.f32 %v2274, %v2402
        %v2507 = vadd.f32 %v2275, %v2403
        %v2508 = vadd.f32 %v2276, %v2404
        %v2509 = vadd.f32 %v2277, %v2405
        %v2510 = vadd.f32 %v2278, %v2406
        %v2511 = vadd.f32 %v2279, %v2407
        %v2512 = vadd.f32 %v2280, %v2408
        %v2513 = vadd.f32 %v2281, %v2409
        %v2514 = vadd.f32 %v2282, %v2410
        %v2515 = vadd.f32 %v2283, %v2411
        %v2516 = vadd.f32 %v2284, %v2412
        %v2517 = vadd.f32 %v2285, %v2413
        %v2518 = vadd.f32 %v2286, %v2414
        %v2519 = vadd.f32 %v2287, %v2415
        %v2520 = vadd.f32 %v2288, %v2416
        %v2521 = vadd.f32 %v2289, %v2417
        %v2522 = vadd.f32 %v2290, %v2418
        %v2523 = vadd.f32 %v2291, %v2419
        %v2524 = vadd.f32 %v2292, %v2420
        %v2525 = vadd.f32 %v2293, %v2421
        %v2526 = vadd.f32 %v2294, %v2422
        %v2527 = vadd.f32 %v2295, %v2423
        %v2528 = vadd.f32 %v2296, %v2424
        %v2529 = vadd.f32 %v2297, %v2425
        %v2530 = vadd.f32 %v2298, %v2426
        %v2531 = vadd.f32 %v2299, %v2427
        %v2532 = vadd.f32 %v2300, %v2428
        %v2533 = vadd.f32 %v2301, %v2429
        %v2534 = vadd.f32 %v2302, %v2430
        %v2535 = vadd.f32 %v2303, %v2431
        %v2536 = vadd.f32 %v2304, %v2432
        %v2537 = vadd.f32 %v2305, %v2433
        %v2538 = vadd.f32 %v2306, %v2434
        %v2539 = vadd.f32 %v2307, %v2435
        %v2540 = vadd.f32 %v2308, %v2436
        %v2541 = vadd.f32 %v2309, %v2437
        %v2542 = vadd.f32 %v2310, %v2438
        %v2543 = vadd.f32 %v2311, %v2439
        %v2544 = vadd.f32 %v2312, %v2440
        %v2545 = vadd.f32 %v2313, %v2441
        %v2546 = vadd.f32 %v2314, %v2442
        %v2547 = vadd.f32 %v2315, %v2443
        %v2548 = vadd.f32 %v2316, %v2444
        %v2549 = vadd.f32 %v2317, %v2445
        %v2550 = vlaneseq
        %v2551 = vshrl.u32 %v2550, 7
        %v2552 = vsub.s32 4, %v2551
        %v2553 = vrot.slane %v378, %v2552
        %v2554 = vmul.f32 %v403, %v2553
        %v2555 = vmul.f32 %v408, %v2553
        %v2556 = vmul.f32 %v413, %v2553
        %v2557 = vmul.f32 %v418, %v2553
        %v2558 = vmul.f32 %v423, %v2553
        %v2559 = vmul.f32 %v428, %v2553
        %v2560 = vmul.f32 %v433, %v2553
        %v2561 = vmul.f32 %v438, %v2553
        %v2562 = vmul.f32 %v443, %v2553
        %v2563 = vmul.f32 %v448, %v2553
        %v2564 = vmul.f32 %v453, %v2553
        %v2565 = vmul.f32 %v458, %v2553
        %v2566 = vmul.f32 %v463, %v2553
        %v2567 = vmul.f32 %v468, %v2553
        %v2568 = vmul.f32 %v473, %v2553
        %v2569 = vmul.f32 %v478, %v2553
        %v2570 = vmul.f32 %v483, %v2553
        %v2571 = vmul.f32 %v488, %v2553
        %v2572 = vmul.f32 %v493, %v2553
        %v2573 = vmul.f32 %v498, %v2553
        %v2574 = vmul.f32 %v503, %v2553
        %v2575 = vmul.f32 %v508, %v2553
        %v2576 = vmul.f32 %v513, %v2553
        %v2577 = vmul.f32 %v518, %v2553
        %v2578 = vmul.f32 %v523, %v2553
        %v2579 = vmul.f32 %v528, %v2553
        %v2580 = vmul.f32 %v533, %v2553
        %v2581 = vmul.f32 %v538, %v2553
        %v2582 = vmul.f32 %v543, %v2553
        %v2583 = vmul.f32 %v548, %v2553
        %v2584 = vmul.f32 %v553, %v2553
        %v2585 = vmul.f32 %v558, %v2553
        %v2586 = vmul.f32 %v563, %v2553
        %v2587 = vmul.f32 %v568, %v2553
        %v2588 = vmul.f32 %v573, %v2553
        %v2589 = vmul.f32 %v578, %v2553
        %v2590 = vmul.f32 %v583, %v2553
        %v2591 = vmul.f32 %v588, %v2553
        %v2592 = vmul.f32 %v593, %v2553
        %v2593 = vmul.f32 %v598, %v2553
        %v2594 = vmul.f32 %v603, %v2553
        %v2595 = vmul.f32 %v608, %v2553
        %v2596 = vmul.f32 %v613, %v2553
        %v2597 = vmul.f32 %v618, %v2553
        %v2598 = vmul.f32 %v623, %v2553
        %v2599 = vmul.f32 %v628, %v2553
        %v2600 = vmul.f32 %v633, %v2553
        %v2601 = vmul.f32 %v638, %v2553
        %v2602 = vmul.f32 %v643, %v2553
        %v2603 = vmul.f32 %v648, %v2553
        %v2604 = vmul.f32 %v653, %v2553
        %v2605 = vmul.f32 %v658, %v2553
        %v2606 = vmul.f32 %v663, %v2553
        %v2607 = vmul.f32 %v668, %v2553
        %v2608 = vmul.f32 %v673, %v2553
        %v2609 = vmul.f32 %v678, %v2553
        %v2610 = vmul.f32 %v683, %v2553
        %v2611 = vmul.f32 %v688, %v2553
        %v2612 = vmul.f32 %v693, %v2553
        %v2613 = vmul.f32 %v698, %v2553
        %v2614 = vmul.f32 %v703, %v2553
        %v2615 = vmul.f32 %v708, %v2553
        %v2616 = vmul.f32 %v713, %v2553
        %v2617 = vmul.f32 %v718, %v2553
        %v2618 = vmul.f32 %v723, %v2553
        %v2619 = vmul.f32 %v728, %v2553
        %v2620 = vmul.f32 %v733, %v2553
        %v2621 = vmul.f32 %v738, %v2553
        %v2622 = vmul.f32 %v743, %v2553
        %v2623 = vmul.f32 %v748, %v2553
        %v2624 = vmul.f32 %v753, %v2553
        %v2625 = vmul.f32 %v758, %v2553
        %v2626 = vmul.f32 %v763, %v2553
        %v2627 = vmul.f32 %v768, %v2553
        %v2628 = vmul.f32 %v773, %v2553
        %v2629 = vmul.f32 %v778, %v2553
        %v2630 = vmul.f32 %v783, %v2553
        %v2631 = vmul.f32 %v788, %v2553
        %v2632 = vmul.f32 %v793, %v2553
        %v2633 = vmul.f32 %v798, %v2553
        %v2634 = vmul.f32 %v803, %v2553
        %v2635 = vmul.f32 %v808, %v2553
        %v2636 = vmul.f32 %v813, %v2553
        %v2637 = vmul.f32 %v818, %v2553
        %v2638 = vmul.f32 %v823, %v2553
        %v2639 = vmul.f32 %v828, %v2553
        %v2640 = vmul.f32 %v833, %v2553
        %v2641 = vmul.f32 %v838, %v2553
        %v2642 = vmul.f32 %v843, %v2553
        %v2643 = vmul.f32 %v848, %v2553
        %v2644 = vmul.f32 %v853, %v2553
        %v2645 = vmul.f32 %v858, %v2553
        %v2646 = vmul.f32 %v863, %v2553
        %v2647 = vmul.f32 %v868, %v2553
        %v2648 = vmul.f32 %v873, %v2553
        %v2649 = vmul.f32 %v878, %v2553
        %v2650 = vmul.f32 %v883, %v2553
        %v2651 = vmul.f32 %v888, %v2553
        %v2652 = vmul.f32 %v893, %v2553
        %v2653 = vmul.f32 %v898, %v2553
        %v2654 = vmul.f32 %v2321, %v2553
        %v2655 = vmul.f32 %v2326, %v2553
        %v2656 = vmul.f32 %v2331, %v2553
        %v2657 = vmul.f32 %v2336, %v2553
        %v2762 = vrot.slane %v2554, 1
        %v2763 = vrot.slane %v2555, 1
        %v2764 = vsel %vm1324, %v2762, %v2763
        %v2765 = vrot.slane %v2556, 1
        %v2766 = vsel %vm1324, %v2763, %v2765
        %v2767 = vrot.slane %v2557, 1
        %v2768 = vsel %vm1324, %v2765, %v2767
        %v2769 = vrot.slane %v2558, 1
        %v2770 = vrot.slane %v2559, 1
        %v2771 = vsel %vm1324, %v2769, %v2770
        %v2772 = vrot.slane %v2560, 1
        %v2773 = vsel %vm1324, %v2770, %v2772
        %v2774 = vrot.slane %v2561, 1
        %v2775 = vsel %vm1324, %v2772, %v2774
        %v2776 = vrot.slane %v2562, 1
        %v2777 = vrot.slane %v2563, 1
        %v2778 = vsel %vm1324, %v2776, %v2777
        %v2779 = vrot.slane %v2564, 1
        %v2780 = vsel %vm1324, %v2777, %v2779
        %v2781 = vrot.slane %v2565, 1
        %v2782 = vsel %vm1324, %v2779, %v2781
        %v2783 = vrot.slane %v2566, 1
        %v2784 = vrot.slane %v2567, 1
        %v2785 = vsel %vm1324, %v2783, %v2784
        %v2786 = vrot.slane %v2568, 1
        %v2787 = vsel %vm1324, %v2784, %v2786
        %v2788 = vrot.slane %v2569, 1
        %v2789 = vsel %vm1324, %v2786, %v2788
        %v2790 = vrot.slane %v2570, 1
        %v2791 = vrot.slane %v2571, 1
        %v2792 = vsel %vm1324, %v2790, %v2791
        %v2793 = vrot.slane %v2572, 1
        %v2794 = vsel %vm1324, %v2791, %v2793
        %v2795 = vrot.slane %v2573, 1
        %v2796 = vsel %vm1324, %v2793, %v2795
        %v2797 = vrot.slane %v2574, 1
        %v2798 = vrot.slane %v2575, 1
        %v2799 = vsel %vm1324, %v2797, %v2798
        %v2800 = vrot.slane %v2576, 1
        %v2801 = vsel %vm1324, %v2798, %v2800
        %v2802 = vrot.slane %v2577, 1
        %v2803 = vsel %vm1324, %v2800, %v2802
        %v2804 = vrot.slane %v2578, 1
        %v2805 = vrot.slane %v2579, 1
        %v2806 = vsel %vm1324, %v2804, %v2805
        %v2807 = vrot.slane %v2580, 1
        %v2808 = vsel %vm1324, %v2805, %v2807
        %v2809 = vrot.slane %v2581, 1
        %v2810 = vsel %vm1324, %v2807, %v2809
        %v2811 = vrot.slane %v2582, 1
        %v2812 = vrot.slane %v2583, 1
        %v2813 = vsel %vm1324, %v2811, %v2812
        %v2814 = vrot.slane %v2584, 1
        %v2815 = vsel %vm1324, %v2812, %v2814
        %v2816 = vrot.slane %v2585, 1
        %v2817 = vsel %vm1324, %v2814, %v2816
        %v2818 = vrot.slane %v2586, 1
        %v2819 = vrot.slane %v2587, 1
        %v2820 = vsel %vm1324, %v2818, %v2819
        %v2821 = vrot.slane %v2588, 1
        %v2822 = vsel %vm1324, %v2819, %v2821
        %v2823 = vrot.slane %v2589, 1
        %v2824 = vsel %vm1324, %v2821, %v2823
        %v2825 = vrot.slane %v2590, 1
        %v2826 = vrot.slane %v2591, 1
        %v2827 = vsel %vm1324, %v2825, %v2826
        %v2828 = vrot.slane %v2592, 1
        %v2829 = vsel %vm1324, %v2826, %v2828
        %v2830 = vrot.slane %v2593, 1
        %v2831 = vsel %vm1324, %v2828, %v2830
        %v2832 = vrot.slane %v2594, 1
        %v2833 = vrot.slane %v2595, 1
        %v2834 = vsel %vm1324, %v2832, %v2833
        %v2835 = vrot.slane %v2596, 1
        %v2836 = vsel %vm1324, %v2833, %v2835
        %v2837 = vrot.slane %v2597, 1
        %v2838 = vsel %vm1324, %v2835, %v2837
        %v2839 = vrot.slane %v2598, 1
        %v2840 = vrot.slane %v2599, 1
        %v2841 = vsel %vm1324, %v2839, %v2840
        %v2842 = vrot.slane %v2600, 1
        %v2843 = vsel %vm1324, %v2840, %v2842
        %v2844 = vrot.slane %v2601, 1
        %v2845 = vsel %vm1324, %v2842, %v2844
        %v2846 = vrot.slane %v2602, 1
        %v2847 = vrot.slane %v2603, 1
        %v2848 = vsel %vm1324, %v2846, %v2847
        %v2849 = vrot.slane %v2604, 1
        %v2850 = vsel %vm1324, %v2847, %v2849
        %v2851 = vrot.slane %v2605, 1
        %v2852 = vsel %vm1324, %v2849, %v2851
        %v2853 = vrot.slane %v2606, 1
        %v2854 = vrot.slane %v2607, 1
        %v2855 = vsel %vm1324, %v2853, %v2854
        %v2856 = vrot.slane %v2608, 1
        %v2857 = vsel %vm1324, %v2854, %v2856
        %v2858 = vrot.slane %v2609, 1
        %v2859 = vsel %vm1324, %v2856, %v2858
        %v2860 = vrot.slane %v2610, 1
        %v2861 = vrot.slane %v2611, 1
        %v2862 = vsel %vm1324, %v2860, %v2861
        %v2863 = vrot.slane %v2612, 1
        %v2864 = vsel %vm1324, %v2861, %v2863
        %v2865 = vrot.slane %v2613, 1
        %v2866 = vsel %vm1324, %v2863, %v2865
        %v2867 = vrot.slane %v2614, 1
        %v2868 = vrot.slane %v2615, 1
        %v2869 = vsel %vm1324, %v2867, %v2868
        %v2870 = vrot.slane %v2616, 1
        %v2871 = vsel %vm1324, %v2868, %v2870
        %v2872 = vrot.slane %v2617, 1
        %v2873 = vsel %vm1324, %v2870, %v2872
        %v2874 = vrot.slane %v2618, 1
        %v2875 = vrot.slane %v2619, 1
        %v2876 = vsel %vm1324, %v2874, %v2875
        %v2877 = vrot.slane %v2620, 1
        %v2878 = vsel %vm1324, %v2875, %v2877
        %v2879 = vrot.slane %v2621, 1
        %v2880 = vsel %vm1324, %v2877, %v2879
        %v2881 = vrot.slane %v2622, 1
        %v2882 = vrot.slane %v2623, 1
        %v2883 = vsel %vm1324, %v2881, %v2882
        %v2884 = vrot.slane %v2624, 1
        %v2885 = vsel %vm1324, %v2882, %v2884
        %v2886 = vrot.slane %v2625, 1
        %v2887 = vsel %vm1324, %v2884, %v2886
        %v2888 = vrot.slane %v2626, 1
        %v2889 = vrot.slane %v2627, 1
        %v2890 = vsel %vm1324, %v2888, %v2889
        %v2891 = vrot.slane %v2628, 1
        %v2892 = vsel %vm1324, %v2889, %v2891
        %v2893 = vrot.slane %v2629, 1
        %v2894 = vsel %vm1324, %v2891, %v2893
        %v2895 = vrot.slane %v2630, 1
        %v2896 = vrot.slane %v2631, 1
        %v2897 = vsel %vm1324, %v2895, %v2896
        %v2898 = vrot.slane %v2632, 1
        %v2899 = vsel %vm1324, %v2896, %v2898
        %v2900 = vrot.slane %v2633, 1
        %v2901 = vsel %vm1324, %v2898, %v2900
        %v2902 = vrot.slane %v2634, 1
        %v2903 = vrot.slane %v2635, 1
        %v2904 = vsel %vm1324, %v2902, %v2903
        %v2905 = vrot.slane %v2636, 1
        %v2906 = vsel %vm1324, %v2903, %v2905
        %v2907 = vrot.slane %v2637, 1
        %v2908 = vsel %vm1324, %v2905, %v2907
        %v2909 = vrot.slane %v2638, 1
        %v2910 = vrot.slane %v2639, 1
        %v2911 = vsel %vm1324, %v2909, %v2910
        %v2912 = vrot.slane %v2640, 1
        %v2913 = vsel %vm1324, %v2910, %v2912
        %v2914 = vrot.slane %v2641, 1
        %v2915 = vsel %vm1324, %v2912, %v2914
        %v2916 = vrot.slane %v2642, 1
        %v2917 = vrot.slane %v2643, 1
        %v2918 = vsel %vm1324, %v2916, %v2917
        %v2919 = vrot.slane %v2644, 1
        %v2920 = vsel %vm1324, %v2917, %v2919
        %v2921 = vrot.slane %v2645, 1
        %v2922 = vsel %vm1324, %v2919, %v2921
        %v2923 = vrot.slane %v2646, 1
        %v2924 = vrot.slane %v2647, 1
        %v2925 = vsel %vm1324, %v2923, %v2924
        %v2926 = vrot.slane %v2648, 1
        %v2927 = vsel %vm1324, %v2924, %v2926
        %v2928 = vrot.slane %v2649, 1
        %v2929 = vsel %vm1324, %v2926, %v2928
        %v2930 = vrot.slane %v2650, 1
        %v2931 = vrot.slane %v2651, 1
        %v2932 = vsel %vm1324, %v2930, %v2931
        %v2933 = vrot.slane %v2652, 1
        %v2934 = vsel %vm1324, %v2931, %v2933
        %v2935 = vrot.slane %v2653, 1
        %v2936 = vsel %vm1324, %v2933, %v2935
        %v2937 = vrot.slane %v2654, 1
        %v2938 = vrot.slane %v2655, 1
        %v2939 = vsel %vm1324, %v2937, %v2938
        %v2940 = vrot.slane %v2656, 1
        %v2941 = vsel %vm1324, %v2938, %v2940
        %v2942 = vrot.slane %v2657, 1
        %v2943 = vsel %vm1324, %v2940, %v2942
        %v3048 = vadd.f32 %v2446, %v2764
        %v3049 = vadd.f32 %v2447, %v2766
        %v3050 = vadd.f32 %v2448, %v2768
        %v3051 = vadd.f32 %v2449, %v2767
        %v3052 = vadd.f32 %v2450, %v2771
        %v3053 = vadd.f32 %v2451, %v2773
        %v3054 = vadd.f32 %v2452, %v2775
        %v3055 = vadd.f32 %v2453, %v2774
        %v3056 = vadd.f32 %v2454, %v2778
        %v3057 = vadd.f32 %v2455, %v2780
        %v3058 = vadd.f32 %v2456, %v2782
        %v3059 = vadd.f32 %v2457, %v2781
        %v3060 = vadd.f32 %v2458, %v2785
        %v3061 = vadd.f32 %v2459, %v2787
        %v3062 = vadd.f32 %v2460, %v2789
        %v3063 = vadd.f32 %v2461, %v2788
        %v3064 = vadd.f32 %v2462, %v2792
        %v3065 = vadd.f32 %v2463, %v2794
        %v3066 = vadd.f32 %v2464, %v2796
        %v3067 = vadd.f32 %v2465, %v2795
        %v3068 = vadd.f32 %v2466, %v2799
        %v3069 = vadd.f32 %v2467, %v2801
        %v3070 = vadd.f32 %v2468, %v2803
        %v3071 = vadd.f32 %v2469, %v2802
        %v3072 = vadd.f32 %v2470, %v2806
        %v3073 = vadd.f32 %v2471, %v2808
        %v3074 = vadd.f32 %v2472, %v2810
        %v3075 = vadd.f32 %v2473, %v2809
        %v3076 = vadd.f32 %v2474, %v2813
        %v3077 = vadd.f32 %v2475, %v2815
        %v3078 = vadd.f32 %v2476, %v2817
        %v3079 = vadd.f32 %v2477, %v2816
        %v3080 = vadd.f32 %v2478, %v2820
        %v3081 = vadd.f32 %v2479, %v2822
        %v3082 = vadd.f32 %v2480, %v2824
        %v3083 = vadd.f32 %v2481, %v2823
        %v3084 = vadd.f32 %v2482, %v2827
        %v3085 = vadd.f32 %v2483, %v2829
        %v3086 = vadd.f32 %v2484, %v2831
        %v3087 = vadd.f32 %v2485, %v2830
        %v3088 = vadd.f32 %v2486, %v2834
        %v3089 = vadd.f32 %v2487, %v2836
        %v3090 = vadd.f32 %v2488, %v2838
        %v3091 = vadd.f32 %v2489, %v2837
        %v3092 = vadd.f32 %v2490, %v2841
        %v3093 = vadd.f32 %v2491, %v2843
        %v3094 = vadd.f32 %v2492, %v2845
        %v3095 = vadd.f32 %v2493, %v2844
        %v3096 = vadd.f32 %v2494, %v2848
        %v3097 = vadd.f32 %v2495, %v2850
        %v3098 = vadd.f32 %v2496, %v2852
        %v3099 = vadd.f32 %v2497, %v2851
        %v3100 = vadd.f32 %v2498, %v2855
        %v3101 = vadd.f32 %v2499, %v2857
        %v3102 = vadd.f32 %v2500, %v2859
        %v3103 = vadd.f32 %v2501, %v2858
        %v3104 = vadd.f32 %v2502, %v2862
        %v3105 = vadd.f32 %v2503, %v2864
        %v3106 = vadd.f32 %v2504, %v2866
        %v3107 = vadd.f32 %v2505, %v2865
        %v3108 = vadd.f32 %v2506, %v2869
        %v3109 = vadd.f32 %v2507, %v2871
        %v3110 = vadd.f32 %v2508, %v2873
        %v3111 = vadd.f32 %v2509, %v2872
        %v3112 = vadd.f32 %v2510, %v2876
        %v3113 = vadd.f32 %v2511, %v2878
        %v3114 = vadd.f32 %v2512, %v2880
        %v3115 = vadd.f32 %v2513, %v2879
        %v3116 = vadd.f32 %v2514, %v2883
        %v3117 = vadd.f32 %v2515, %v2885
        %v3118 = vadd.f32 %v2516, %v2887
        %v3119 = vadd.f32 %v2517, %v2886
        %v3120 = vadd.f32 %v2518, %v2890
        %v3121 = vadd.f32 %v2519, %v2892
        %v3122 = vadd.f32 %v2520, %v2894
        %v3123 = vadd.f32 %v2521, %v2893
        %v3124 = vadd.f32 %v2522, %v2897
        %v3125 = vadd.f32 %v2523, %v2899
        %v3126 = vadd.f32 %v2524, %v2901
        %v3127 = vadd.f32 %v2525, %v2900
        %v3128 = vadd.f32 %v2526, %v2904
        %v3129 = vadd.f32 %v2527, %v2906
        %v3130 = vadd.f32 %v2528, %v2908
        %v3131 = vadd.f32 %v2529, %v2907
        %v3132 = vadd.f32 %v2530, %v2911
        %v3133 = vadd.f32 %v2531, %v2913
        %v3134 = vadd.f32 %v2532, %v2915
        %v3135 = vadd.f32 %v2533, %v2914
        %v3136 = vadd.f32 %v2534, %v2918
        %v3137 = vadd.f32 %v2535, %v2920
        %v3138 = vadd.f32 %v2536, %v2922
        %v3139 = vadd.f32 %v2537, %v2921
        %v3140 = vadd.f32 %v2538, %v2925
        %v3141 = vadd.f32 %v2539, %v2927
        %v3142 = vadd.f32 %v2540, %v2929
        %v3143 = vadd.f32 %v2541, %v2928
        %v3144 = vadd.f32 %v2542, %v2932
        %v3145 = vadd.f32 %v2543, %v2934
        %v3146 = vadd.f32 %v2544, %v2936
        %v3147 = vadd.f32 %v2545, %v2935
        %v3148 = vadd.f32 %v2546, %v2939
        %v3149 = vadd.f32 %v2547, %v2941
        %v3150 = vadd.f32 %v2548, %v2943
        %v3151 = vadd.f32 %v2549, %v2942
        %v3152 = vlaneseq
        %v3153 = vshrl.u32 %v3152, 7
        %v3154 = vsub.s32 5, %v3153
        %v3155 = vrot.slane %v378, %v3154
        %v3156 = vmul.f32 %v403, %v3155
        %v3157 = vmul.f32 %v408, %v3155
        %v3158 = vmul.f32 %v413, %v3155
        %v3159 = vmul.f32 %v418, %v3155
        %v3160 = vmul.f32 %v423, %v3155
        %v3161 = vmul.f32 %v428, %v3155
        %v3162 = vmul.f32 %v433, %v3155
        %v3163 = vmul.f32 %v438, %v3155
        %v3164 = vmul.f32 %v443, %v3155
        %v3165 = vmul.f32 %v448, %v3155
        %v3166 = vmul.f32 %v453, %v3155
        %v3167 = vmul.f32 %v458, %v3155
        %v3168 = vmul.f32 %v463, %v3155
        %v3169 = vmul.f32 %v468, %v3155
        %v3170 = vmul.f32 %v473, %v3155
        %v3171 = vmul.f32 %v478, %v3155
        %v3172 = vmul.f32 %v483, %v3155
        %v3173 = vmul.f32 %v488, %v3155
        %v3174 = vmul.f32 %v493, %v3155
        %v3175 = vmul.f32 %v498, %v3155
        %v3176 = vmul.f32 %v503, %v3155
        %v3177 = vmul.f32 %v508, %v3155
        %v3178 = vmul.f32 %v513, %v3155
        %v3179 = vmul.f32 %v518, %v3155
        %v3180 = vmul.f32 %v523, %v3155
        %v3181 = vmul.f32 %v528, %v3155
        %v3182 = vmul.f32 %v533, %v3155
        %v3183 = vmul.f32 %v538, %v3155
        %v3184 = vmul.f32 %v543, %v3155
        %v3185 = vmul.f32 %v548, %v3155
        %v3186 = vmul.f32 %v553, %v3155
        %v3187 = vmul.f32 %v558, %v3155
        %v3188 = vmul.f32 %v563, %v3155
        %v3189 = vmul.f32 %v568, %v3155
        %v3190 = vmul.f32 %v573, %v3155
        %v3191 = vmul.f32 %v578, %v3155
        %v3192 = vmul.f32 %v583, %v3155
        %v3193 = vmul.f32 %v588, %v3155
        %v3194 = vmul.f32 %v593, %v3155
        %v3195 = vmul.f32 %v598, %v3155
        %v3196 = vmul.f32 %v603, %v3155
        %v3197 = vmul.f32 %v608, %v3155
        %v3198 = vmul.f32 %v613, %v3155
        %v3199 = vmul.f32 %v618, %v3155
        %v3200 = vmul.f32 %v623, %v3155
        %v3201 = vmul.f32 %v628, %v3155
        %v3202 = vmul.f32 %v633, %v3155
        %v3203 = vmul.f32 %v638, %v3155
        %v3204 = vmul.f32 %v643, %v3155
        %v3205 = vmul.f32 %v648, %v3155
        %v3206 = vmul.f32 %v653, %v3155
        %v3207 = vmul.f32 %v658, %v3155
        %v3208 = vmul.f32 %v663, %v3155
        %v3209 = vmul.f32 %v668, %v3155
        %v3210 = vmul.f32 %v673, %v3155
        %v3211 = vmul.f32 %v678, %v3155
        %v3212 = vmul.f32 %v683, %v3155
        %v3213 = vmul.f32 %v688, %v3155
        %v3214 = vmul.f32 %v693, %v3155
        %v3215 = vmul.f32 %v698, %v3155
        %v3216 = vmul.f32 %v703, %v3155
        %v3217 = vmul.f32 %v708, %v3155
        %v3218 = vmul.f32 %v713, %v3155
        %v3219 = vmul.f32 %v718, %v3155
        %v3220 = vmul.f32 %v723, %v3155
        %v3221 = vmul.f32 %v728, %v3155
        %v3222 = vmul.f32 %v733, %v3155
        %v3223 = vmul.f32 %v738, %v3155
        %v3224 = vmul.f32 %v743, %v3155
        %v3225 = vmul.f32 %v748, %v3155
        %v3226 = vmul.f32 %v753, %v3155
        %v3227 = vmul.f32 %v758, %v3155
        %v3228 = vmul.f32 %v763, %v3155
        %v3229 = vmul.f32 %v768, %v3155
        %v3230 = vmul.f32 %v773, %v3155
        %v3231 = vmul.f32 %v778, %v3155
        %v3232 = vmul.f32 %v783, %v3155
        %v3233 = vmul.f32 %v788, %v3155
        %v3234 = vmul.f32 %v793, %v3155
        %v3235 = vmul.f32 %v798, %v3155
        %v3236 = vmul.f32 %v803, %v3155
        %v3237 = vmul.f32 %v808, %v3155
        %v3238 = vmul.f32 %v813, %v3155
        %v3239 = vmul.f32 %v818, %v3155
        %v3240 = vmul.f32 %v823, %v3155
        %v3241 = vmul.f32 %v828, %v3155
        %v3242 = vmul.f32 %v833, %v3155
        %v3243 = vmul.f32 %v838, %v3155
        %v3244 = vmul.f32 %v843, %v3155
        %v3245 = vmul.f32 %v848, %v3155
        %v3246 = vmul.f32 %v853, %v3155
        %v3247 = vmul.f32 %v858, %v3155
        %v3248 = vmul.f32 %v863, %v3155
        %v3249 = vmul.f32 %v868, %v3155
        %v3250 = vmul.f32 %v873, %v3155
        %v3251 = vmul.f32 %v878, %v3155
        %v3252 = vmul.f32 %v883, %v3155
        %v3253 = vmul.f32 %v888, %v3155
        %v3254 = vmul.f32 %v893, %v3155
        %v3255 = vmul.f32 %v898, %v3155
        %v3256 = vmul.f32 %v2321, %v3155
        %v3257 = vmul.f32 %v2326, %v3155
        %v3258 = vmul.f32 %v2331, %v3155
        %v3259 = vmul.f32 %v2336, %v3155
        %v3364 = vrot.slane %v3156, 2
        %v3365 = vrot.slane %v3157, 2
        %v3366 = vsel %vm1927, %v3364, %v3365
        %v3367 = vrot.slane %v3158, 2
        %v3368 = vsel %vm1927, %v3365, %v3367
        %v3369 = vrot.slane %v3159, 2
        %v3370 = vsel %vm1927, %v3367, %v3369
        %v3371 = vrot.slane %v3160, 2
        %v3372 = vrot.slane %v3161, 2
        %v3373 = vsel %vm1927, %v3371, %v3372
        %v3374 = vrot.slane %v3162, 2
        %v3375 = vsel %vm1927, %v3372, %v3374
        %v3376 = vrot.slane %v3163, 2
        %v3377 = vsel %vm1927, %v3374, %v3376
        %v3378 = vrot.slane %v3164, 2
        %v3379 = vrot.slane %v3165, 2
        %v3380 = vsel %vm1927, %v3378, %v3379
        %v3381 = vrot.slane %v3166, 2
        %v3382 = vsel %vm1927, %v3379, %v3381
        %v3383 = vrot.slane %v3167, 2
        %v3384 = vsel %vm1927, %v3381, %v3383
        %v3385 = vrot.slane %v3168, 2
        %v3386 = vrot.slane %v3169, 2
        %v3387 = vsel %vm1927, %v3385, %v3386
        %v3388 = vrot.slane %v3170, 2
        %v3389 = vsel %vm1927, %v3386, %v3388
        %v3390 = vrot.slane %v3171, 2
        %v3391 = vsel %vm1927, %v3388, %v3390
        %v3392 = vrot.slane %v3172, 2
        %v3393 = vrot.slane %v3173, 2
        %v3394 = vsel %vm1927, %v3392, %v3393
        %v3395 = vrot.slane %v3174, 2
        %v3396 = vsel %vm1927, %v3393, %v3395
        %v3397 = vrot.slane %v3175, 2
        %v3398 = vsel %vm1927, %v3395, %v3397
        %v3399 = vrot.slane %v3176, 2
        %v3400 = vrot.slane %v3177, 2
        %v3401 = vsel %vm1927, %v3399, %v3400
        %v3402 = vrot.slane %v3178, 2
        %v3403 = vsel %vm1927, %v3400, %v3402
        %v3404 = vrot.slane %v3179, 2
        %v3405 = vsel %vm1927, %v3402, %v3404
        %v3406 = vrot.slane %v3180, 2
        %v3407 = vrot.slane %v3181, 2
        %v3408 = vsel %vm1927, %v3406, %v3407
        %v3409 = vrot.slane %v3182, 2
        %v3410 = vsel %vm1927, %v3407, %v3409
        %v3411 = vrot.slane %v3183, 2
        %v3412 = vsel %vm1927, %v3409, %v3411
        %v3413 = vrot.slane %v3184, 2
        %v3414 = vrot.slane %v3185, 2
        %v3415 = vsel %vm1927, %v3413, %v3414
        %v3416 = vrot.slane %v3186, 2
        %v3417 = vsel %vm1927, %v3414, %v3416
        %v3418 = vrot.slane %v3187, 2
        %v3419 = vsel %vm1927, %v3416, %v3418
        %v3420 = vrot.slane %v3188, 2
        %v3421 = vrot.slane %v3189, 2
        %v3422 = vsel %vm1927, %v3420, %v3421
        %v3423 = vrot.slane %v3190, 2
        %v3424 = vsel %vm1927, %v3421, %v3423
        %v3425 = vrot.slane %v3191, 2
        %v3426 = vsel %vm1927, %v3423, %v3425
        %v3427 = vrot.slane %v3192, 2
        %v3428 = vrot.slane %v3193, 2
        %v3429 = vsel %vm1927, %v3427, %v3428
        %v3430 = vrot.slane %v3194, 2
        %v3431 = vsel %vm1927, %v3428, %v3430
        %v3432 = vrot.slane %v3195, 2
        %v3433 = vsel %vm1927, %v3430, %v3432
        %v3434 = vrot.slane %v3196, 2
        %v3435 = vrot.slane %v3197, 2
        %v3436 = vsel %vm1927, %v3434, %v3435
        %v3437 = vrot.slane %v3198, 2
        %v3438 = vsel %vm1927, %v3435, %v3437
        %v3439 = vrot.slane %v3199, 2
        %v3440 = vsel %vm1927, %v3437, %v3439
        %v3441 = vrot.slane %v3200, 2
        %v3442 = vrot.slane %v3201, 2
        %v3443 = vsel %vm1927, %v3441, %v3442
        %v3444 = vrot.slane %v3202, 2
        %v3445 = vsel %vm1927, %v3442, %v3444
        %v3446 = vrot.slane %v3203, 2
        %v3447 = vsel %vm1927, %v3444, %v3446
        %v3448 = vrot.slane %v3204, 2
        %v3449 = vrot.slane %v3205, 2
        %v3450 = vsel %vm1927, %v3448, %v3449
        %v3451 = vrot.slane %v3206, 2
        %v3452 = vsel %vm1927, %v3449, %v3451
        %v3453 = vrot.slane %v3207, 2
        %v3454 = vsel %vm1927, %v3451, %v3453
        %v3455 = vrot.slane %v3208, 2
        %v3456 = vrot.slane %v3209, 2
        %v3457 = vsel %vm1927, %v3455, %v3456
        %v3458 = vrot.slane %v3210, 2
        %v3459 = vsel %vm1927, %v3456, %v3458
        %v3460 = vrot.slane %v3211, 2
        %v3461 = vsel %vm1927, %v3458, %v3460
        %v3462 = vrot.slane %v3212, 2
        %v3463 = vrot.slane %v3213, 2
        %v3464 = vsel %vm1927, %v3462, %v3463
        %v3465 = vrot.slane %v3214, 2
        %v3466 = vsel %vm1927, %v3463, %v3465
        %v3467 = vrot.slane %v3215, 2
        %v3468 = vsel %vm1927, %v3465, %v3467
        %v3469 = vrot.slane %v3216, 2
        %v3470 = vrot.slane %v3217, 2
        %v3471 = vsel %vm1927, %v3469, %v3470
        %v3472 = vrot.slane %v3218, 2
        %v3473 = vsel %vm1927, %v3470, %v3472
        %v3474 = vrot.slane %v3219, 2
        %v3475 = vsel %vm1927, %v3472, %v3474
        %v3476 = vrot.slane %v3220, 2
        %v3477 = vrot.slane %v3221, 2
        %v3478 = vsel %vm1927, %v3476, %v3477
        %v3479 = vrot.slane %v3222, 2
        %v3480 = vsel %vm1927, %v3477, %v3479
        %v3481 = vrot.slane %v3223, 2
        %v3482 = vsel %vm1927, %v3479, %v3481
        %v3483 = vrot.slane %v3224, 2
        %v3484 = vrot.slane %v3225, 2
        %v3485 = vsel %vm1927, %v3483, %v3484
        %v3486 = vrot.slane %v3226, 2
        %v3487 = vsel %vm1927, %v3484, %v3486
        %v3488 = vrot.slane %v3227, 2
        %v3489 = vsel %vm1927, %v3486, %v3488
        %v3490 = vrot.slane %v3228, 2
        %v3491 = vrot.slane %v3229, 2
        %v3492 = vsel %vm1927, %v3490, %v3491
        %v3493 = vrot.slane %v3230, 2
        %v3494 = vsel %vm1927, %v3491, %v3493
        %v3495 = vrot.slane %v3231, 2
        %v3496 = vsel %vm1927, %v3493, %v3495
        %v3497 = vrot.slane %v3232, 2
        %v3498 = vrot.slane %v3233, 2
        %v3499 = vsel %vm1927, %v3497, %v3498
        %v3500 = vrot.slane %v3234, 2
        %v3501 = vsel %vm1927, %v3498, %v3500
        %v3502 = vrot.slane %v3235, 2
        %v3503 = vsel %vm1927, %v3500, %v3502
        %v3504 = vrot.slane %v3236, 2
        %v3505 = vrot.slane %v3237, 2
        %v3506 = vsel %vm1927, %v3504, %v3505
        %v3507 = vrot.slane %v3238, 2
        %v3508 = vsel %vm1927, %v3505, %v3507
        %v3509 = vrot.slane %v3239, 2
        %v3510 = vsel %vm1927, %v3507, %v3509
        %v3511 = vrot.slane %v3240, 2
        %v3512 = vrot.slane %v3241, 2
        %v3513 = vsel %vm1927, %v3511, %v3512
        %v3514 = vrot.slane %v3242, 2
        %v3515 = vsel %vm1927, %v3512, %v3514
        %v3516 = vrot.slane %v3243, 2
        %v3517 = vsel %vm1927, %v3514, %v3516
        %v3518 = vrot.slane %v3244, 2
        %v3519 = vrot.slane %v3245, 2
        %v3520 = vsel %vm1927, %v3518, %v3519
        %v3521 = vrot.slane %v3246, 2
        %v3522 = vsel %vm1927, %v3519, %v3521
        %v3523 = vrot.slane %v3247, 2
        %v3524 = vsel %vm1927, %v3521, %v3523
        %v3525 = vrot.slane %v3248, 2
        %v3526 = vrot.slane %v3249, 2
        %v3527 = vsel %vm1927, %v3525, %v3526
        %v3528 = vrot.slane %v3250, 2
        %v3529 = vsel %vm1927, %v3526, %v3528
        %v3530 = vrot.slane %v3251, 2
        %v3531 = vsel %vm1927, %v3528, %v3530
        %v3532 = vrot.slane %v3252, 2
        %v3533 = vrot.slane %v3253, 2
        %v3534 = vsel %vm1927, %v3532, %v3533
        %v3535 = vrot.slane %v3254, 2
        %v3536 = vsel %vm1927, %v3533, %v3535
        %v3537 = vrot.slane %v3255, 2
        %v3538 = vsel %vm1927, %v3535, %v3537
        %v3539 = vrot.slane %v3256, 2
        %v3540 = vrot.slane %v3257, 2
        %v3541 = vsel %vm1927, %v3539, %v3540
        %v3542 = vrot.slane %v3258, 2
        %v3543 = vsel %vm1927, %v3540, %v3542
        %v3544 = vrot.slane %v3259, 2
        %v3545 = vsel %vm1927, %v3542, %v3544
        %v3650 = vadd.f32 %v3048, %v3366
        %v3651 = vadd.f32 %v3049, %v3368
        %v3652 = vadd.f32 %v3050, %v3370
        %v3653 = vadd.f32 %v3051, %v3369
        %v3654 = vadd.f32 %v3052, %v3373
        %v3655 = vadd.f32 %v3053, %v3375
        %v3656 = vadd.f32 %v3054, %v3377
        %v3657 = vadd.f32 %v3055, %v3376
        %v3658 = vadd.f32 %v3056, %v3380
        %v3659 = vadd.f32 %v3057, %v3382
        %v3660 = vadd.f32 %v3058, %v3384
        %v3661 = vadd.f32 %v3059, %v3383
        %v3662 = vadd.f32 %v3060, %v3387
        %v3663 = vadd.f32 %v3061, %v3389
        %v3664 = vadd.f32 %v3062, %v3391
        %v3665 = vadd.f32 %v3063, %v3390
        %v3666 = vadd.f32 %v3064, %v3394
        %v3667 = vadd.f32 %v3065, %v3396
        %v3668 = vadd.f32 %v3066, %v3398
        %v3669 = vadd.f32 %v3067, %v3397
        %v3670 = vadd.f32 %v3068, %v3401
        %v3671 = vadd.f32 %v3069, %v3403
        %v3672 = vadd.f32 %v3070, %v3405
        %v3673 = vadd.f32 %v3071, %v3404
        %v3674 = vadd.f32 %v3072, %v3408
        %v3675 = vadd.f32 %v3073, %v3410
        %v3676 = vadd.f32 %v3074, %v3412
        %v3677 = vadd.f32 %v3075, %v3411
        %v3678 = vadd.f32 %v3076, %v3415
        %v3679 = vadd.f32 %v3077, %v3417
        %v3680 = vadd.f32 %v3078, %v3419
        %v3681 = vadd.f32 %v3079, %v3418
        %v3682 = vadd.f32 %v3080, %v3422
        %v3683 = vadd.f32 %v3081, %v3424
        %v3684 = vadd.f32 %v3082, %v3426
        %v3685 = vadd.f32 %v3083, %v3425
        %v3686 = vadd.f32 %v3084, %v3429
        %v3687 = vadd.f32 %v3085, %v3431
        %v3688 = vadd.f32 %v3086, %v3433
        %v3689 = vadd.f32 %v3087, %v3432
        %v3690 = vadd.f32 %v3088, %v3436
        %v3691 = vadd.f32 %v3089, %v3438
        %v3692 = vadd.f32 %v3090, %v3440
        %v3693 = vadd.f32 %v3091, %v3439
        %v3694 = vadd.f32 %v3092, %v3443
        %v3695 = vadd.f32 %v3093, %v3445
        %v3696 = vadd.f32 %v3094, %v3447
        %v3697 = vadd.f32 %v3095, %v3446
        %v3698 = vadd.f32 %v3096, %v3450
        %v3699 = vadd.f32 %v3097, %v3452
        %v3700 = vadd.f32 %v3098, %v3454
        %v3701 = vadd.f32 %v3099, %v3453
        %v3702 = vadd.f32 %v3100, %v3457
        %v3703 = vadd.f32 %v3101, %v3459
        %v3704 = vadd.f32 %v3102, %v3461
        %v3705 = vadd.f32 %v3103, %v3460
        %v3706 = vadd.f32 %v3104, %v3464
        %v3707 = vadd.f32 %v3105, %v3466
        %v3708 = vadd.f32 %v3106, %v3468
        %v3709 = vadd.f32 %v3107, %v3467
        %v3710 = vadd.f32 %v3108, %v3471
        %v3711 = vadd.f32 %v3109, %v3473
        %v3712 = vadd.f32 %v3110, %v3475
        %v3713 = vadd.f32 %v3111, %v3474
        %v3714 = vadd.f32 %v3112, %v3478
        %v3715 = vadd.f32 %v3113, %v3480
        %v3716 = vadd.f32 %v3114, %v3482
        %v3717 = vadd.f32 %v3115, %v3481
        %v3718 = vadd.f32 %v3116, %v3485
        %v3719 = vadd.f32 %v3117, %v3487
        %v3720 = vadd.f32 %v3118, %v3489
        %v3721 = vadd.f32 %v3119, %v3488
        %v3722 = vadd.f32 %v3120, %v3492
        %v3723 = vadd.f32 %v3121, %v3494
        %v3724 = vadd.f32 %v3122, %v3496
        %v3725 = vadd.f32 %v3123, %v3495
        %v3726 = vadd.f32 %v3124, %v3499
        %v3727 = vadd.f32 %v3125, %v3501
        %v3728 = vadd.f32 %v3126, %v3503
        %v3729 = vadd.f32 %v3127, %v3502
        %v3730 = vadd.f32 %v3128, %v3506
        %v3731 = vadd.f32 %v3129, %v3508
        %v3732 = vadd.f32 %v3130, %v3510
        %v3733 = vadd.f32 %v3131, %v3509
        %v3734 = vadd.f32 %v3132, %v3513
        %v3735 = vadd.f32 %v3133, %v3515
        %v3736 = vadd.f32 %v3134, %v3517
        %v3737 = vadd.f32 %v3135, %v3516
        %v3738 = vadd.f32 %v3136, %v3520
        %v3739 = vadd.f32 %v3137, %v3522
        %v3740 = vadd.f32 %v3138, %v3524
        %v3741 = vadd.f32 %v3139, %v3523
        %v3742 = vadd.f32 %v3140, %v3527
        %v3743 = vadd.f32 %v3141, %v3529
        %v3744 = vadd.f32 %v3142, %v3531
        %v3745 = vadd.f32 %v3143, %v3530
        %v3746 = vadd.f32 %v3144, %v3534
        %v3747 = vadd.f32 %v3145, %v3536
        %v3748 = vadd.f32 %v3146, %v3538
        %v3749 = vadd.f32 %v3147, %v3537
        %v3750 = vadd.f32 %v3148, %v3541
        %v3751 = vadd.f32 %v3149, %v3543
        %v3752 = vadd.f32 %v3150, %v3545
        %v3753 = vadd.f32 %v3151, %v3544
        %3755 = vset.pattern.permute.xlu0 0
        %3756 = vperm.xlu0 %3755, %v374
        %v3757 = vpop.permute.xlu0 %3756
        %3760 = vset.pattern.permute.xlu0 0
        %3761 = vperm.xlu0 %3760, %v375
        %v3762 = vpop.permute.xlu0 %3761
        %3765 = vset.pattern.permute.xlu0 0
        %3766 = vperm.xlu0 %3765, %v376
        %v3767 = vpop.permute.xlu0 %3766
        %3770 = vset.pattern.permute.xlu0 0
        %3771 = vperm.xlu0 %3770, %v377
        %v3772 = vpop.permute.xlu0 %3771
        %v3774 = vlaneseq
        %v3775 = vshrl.u32 %v3774, 7
        %v3776 = vsub.s32 6, %v3775
        %v3777 = vrot.slane %v378, %v3776
        %v3778 = vmul.f32 %v423, %v3777
        %v3779 = vmul.f32 %v428, %v3777
        %v3780 = vmul.f32 %v433, %v3777
        %v3781 = vmul.f32 %v438, %v3777
        %v3782 = vmul.f32 %v443, %v3777
        %v3783 = vmul.f32 %v448, %v3777
        %v3784 = vmul.f32 %v453, %v3777
        %v3785 = vmul.f32 %v458, %v3777
        %v3786 = vmul.f32 %v463, %v3777
        %v3787 = vmul.f32 %v468, %v3777
        %v3788 = vmul.f32 %v473, %v3777
        %v3789 = vmul.f32 %v478, %v3777
        %v3790 = vmul.f32 %v483, %v3777
        %v3791 = vmul.f32 %v488, %v3777
        %v3792 = vmul.f32 %v493, %v3777
        %v3793 = vmul.f32 %v498, %v3777
        %v3794 = vmul.f32 %v503, %v3777
        %v3795 = vmul.f32 %v508, %v3777
        %v3796 = vmul.f32 %v513, %v3777
        %v3797 = vmul.f32 %v518, %v3777
        %v3798 = vmul.f32 %v523, %v3777
        %v3799 = vmul.f32 %v528, %v3777
        %v3800 = vmul.f32 %v533, %v3777
        %v3801 = vmul.f32 %v538, %v3777
        %v3802 = vmul.f32 %v543, %v3777
        %v3803 = vmul.f32 %v548, %v3777
        %v3804 = vmul.f32 %v553, %v3777
        %v3805 = vmul.f32 %v558, %v3777
        %v3806 = vmul.f32 %v563, %v3777
        %v3807 = vmul.f32 %v568, %v3777
        %v3808 = vmul.f32 %v573, %v3777
        %v3809 = vmul.f32 %v578, %v3777
        %v3810 = vmul.f32 %v583, %v3777
        %v3811 = vmul.f32 %v588, %v3777
        %v3812 = vmul.f32 %v593, %v3777
        %v3813 = vmul.f32 %v598, %v3777
        %v3814 = vmul.f32 %v603, %v3777
        %v3815 = vmul.f32 %v608, %v3777
        %v3816 = vmul.f32 %v613, %v3777
        %v3817 = vmul.f32 %v618, %v3777
        %v3818 = vmul.f32 %v623, %v3777
        %v3819 = vmul.f32 %v628, %v3777
        %v3820 = vmul.f32 %v633, %v3777
        %v3821 = vmul.f32 %v638, %v3777
        %v3822 = vmul.f32 %v643, %v3777
        %v3823 = vmul.f32 %v648, %v3777
        %v3824 = vmul.f32 %v653, %v3777
        %v3825 = vmul.f32 %v658, %v3777
        %v3826 = vmul.f32 %v663, %v3777
        %v3827 = vmul.f32 %v668, %v3777
        %v3828 = vmul.f32 %v673, %v3777
        %v3829 = vmul.f32 %v678, %v3777
        %v3830 = vmul.f32 %v683, %v3777
        %v3831 = vmul.f32 %v688, %v3777
        %v3832 = vmul.f32 %v693, %v3777
        %v3833 = vmul.f32 %v698, %v3777
        %v3834 = vmul.f32 %v703, %v3777
        %v3835 = vmul.f32 %v708, %v3777
        %v3836 = vmul.f32 %v713, %v3777
        %v3837 = vmul.f32 %v718, %v3777
        %v3838 = vmul.f32 %v723, %v3777
        %v3839 = vmul.f32 %v728, %v3777
        %v3840 = vmul.f32 %v733, %v3777
        %v3841 = vmul.f32 %v738, %v3777
        %v3842 = vmul.f32 %v743, %v3777
        %v3843 = vmul.f32 %v748, %v3777
        %v3844 = vmul.f32 %v753, %v3777
        %v3845 = vmul.f32 %v758, %v3777
        %v3846 = vmul.f32 %v763, %v3777
        %v3847 = vmul.f32 %v768, %v3777
        %v3848 = vmul.f32 %v773, %v3777
        %v3849 = vmul.f32 %v778, %v3777
        %v3850 = vmul.f32 %v783, %v3777
        %v3851 = vmul.f32 %v788, %v3777
        %v3852 = vmul.f32 %v793, %v3777
        %v3853 = vmul.f32 %v798, %v3777
        %v3854 = vmul.f32 %v803, %v3777
        %v3855 = vmul.f32 %v808, %v3777
        %v3856 = vmul.f32 %v813, %v3777
        %v3857 = vmul.f32 %v818, %v3777
        %v3858 = vmul.f32 %v823, %v3777
        %v3859 = vmul.f32 %v828, %v3777
        %v3860 = vmul.f32 %v833, %v3777
        %v3861 = vmul.f32 %v838, %v3777
        %v3862 = vmul.f32 %v843, %v3777
        %v3863 = vmul.f32 %v848, %v3777
        %v3864 = vmul.f32 %v853, %v3777
        %v3865 = vmul.f32 %v858, %v3777
        %v3866 = vmul.f32 %v863, %v3777
        %v3867 = vmul.f32 %v868, %v3777
        %v3868 = vmul.f32 %v873, %v3777
        %v3869 = vmul.f32 %v878, %v3777
        %v3870 = vmul.f32 %v883, %v3777
        %v3871 = vmul.f32 %v888, %v3777
        %v3872 = vmul.f32 %v893, %v3777
        %v3873 = vmul.f32 %v898, %v3777
        %v3874 = vmul.f32 %v2321, %v3777
        %v3875 = vmul.f32 %v2326, %v3777
        %v3876 = vmul.f32 %v2331, %v3777
        %v3877 = vmul.f32 %v2336, %v3777
        %v3878 = vmul.f32 %v3757, %v3777
        %v3879 = vmul.f32 %v3762, %v3777
        %v3880 = vmul.f32 %v3767, %v3777
        %v3881 = vmul.f32 %v3772, %v3777
        %v3882 = vadd.f32 %v3650, %v3778
        %v3883 = vadd.f32 %v3651, %v3779
        %v3884 = vadd.f32 %v3652, %v3780
        %v3885 = vadd.f32 %v3653, %v3781
        %v3886 = vadd.f32 %v3654, %v3782
        %v3887 = vadd.f32 %v3655, %v3783
        %v3888 = vadd.f32 %v3656, %v3784
        %v3889 = vadd.f32 %v3657, %v3785
        %v3890 = vadd.f32 %v3658, %v3786
        %v3891 = vadd.f32 %v3659, %v3787
        %v3892 = vadd.f32 %v3660, %v3788
        %v3893 = vadd.f32 %v3661, %v3789
        %v3894 = vadd.f32 %v3662, %v3790
        %v3895 = vadd.f32 %v3663, %v3791
        %v3896 = vadd.f32 %v3664, %v3792
        %v3897 = vadd.f32 %v3665, %v3793
        %v3898 = vadd.f32 %v3666, %v3794
        %v3899 = vadd.f32 %v3667, %v3795
        %v3900 = vadd.f32 %v3668, %v3796
        %v3901 = vadd.f32 %v3669, %v3797
        %v3902 = vadd.f32 %v3670, %v3798
        %v3903 = vadd.f32 %v3671, %v3799
        %v3904 = vadd.f32 %v3672, %v3800
        %v3905 = vadd.f32 %v3673, %v3801
        %v3906 = vadd.f32 %v3674, %v3802
        %v3907 = vadd.f32 %v3675, %v3803
        %v3908 = vadd.f32 %v3676, %v3804
        %v3909 = vadd.f32 %v3677, %v3805
        %v3910 = vadd.f32 %v3678, %v3806
        %v3911 = vadd.f32 %v3679, %v3807
        %v3912 = vadd.f32 %v3680, %v3808
        %v3913 = vadd.f32 %v3681, %v3809
        %v3914 = vadd.f32 %v3682, %v3810
        %v3915 = vadd.f32 %v3683, %v3811
        %v3916 = vadd.f32 %v3684, %v3812
        %v3917 = vadd.f32 %v3685, %v3813
        %v3918 = vadd.f32 %v3686, %v3814
        %v3919 = vadd.f32 %v3687, %v3815
        %v3920 = vadd.f32 %v3688, %v3816
        %v3921 = vadd.f32 %v3689, %v3817
        %v3922 = vadd.f32 %v3690, %v3818
        %v3923 = vadd.f32 %v3691, %v3819
        %v3924 = vadd.f32 %v3692, %v3820
        %v3925 = vadd.f32 %v3693, %v3821
        %v3926 = vadd.f32 %v3694, %v3822
        %v3927 = vadd.f32 %v3695, %v3823
        %v3928 = vadd.f32 %v3696, %v3824
        %v3929 = vadd.f32 %v3697, %v3825
        %v3930 = vadd.f32 %v3698, %v3826
        %v3931 = vadd.f32 %v3699, %v3827
        %v3932 = vadd.f32 %v3700, %v3828
        %v3933 = vadd.f32 %v3701, %v3829
        %v3934 = vadd.f32 %v3702, %v3830
        %v3935 = vadd.f32 %v3703, %v3831
        %v3936 = vadd.f32 %v3704, %v3832
        %v3937 = vadd.f32 %v3705, %v3833
        %v3938 = vadd.f32 %v3706, %v3834
        %v3939 = vadd.f32 %v3707, %v3835
        %v3940 = vadd.f32 %v3708, %v3836
        %v3941 = vadd.f32 %v3709, %v3837
        %v3942 = vadd.f32 %v3710, %v3838
        %v3943 = vadd.f32 %v3711, %v3839
        %v3944 = vadd.f32 %v3712, %v3840
        %v3945 = vadd.f32 %v3713, %v3841
        %v3946 = vadd.f32 %v3714, %v3842
        %v3947 = vadd.f32 %v3715, %v3843
        %v3948 = vadd.f32 %v3716, %v3844
        %v3949 = vadd.f32 %v3717, %v3845
        %v3950 = vadd.f32 %v3718, %v3846
        %v3951 = vadd.f32 %v3719, %v3847
        %v3952 = vadd.f32 %v3720, %v3848
        %v3953 = vadd.f32 %v3721, %v3849
        %v3954 = vadd.f32 %v3722, %v3850
        %v3955 = vadd.f32 %v3723, %v3851
        %v3956 = vadd.f32 %v3724, %v3852
        %v3957 = vadd.f32 %v3725, %v3853
        %v3958 = vadd.f32 %v3726, %v3854
        %v3959 = vadd.f32 %v3727, %v3855
        %v3960 = vadd.f32 %v3728, %v3856
        %v3961 = vadd.f32 %v3729, %v3857
        %v3962 = vadd.f32 %v3730, %v3858
        %v3963 = vadd.f32 %v3731, %v3859
        %v3964 = vadd.f32 %v3732, %v3860
        %v3965 = vadd.f32 %v3733, %v3861
        %v3966 = vadd.f32 %v3734, %v3862
        %v3967 = vadd.f32 %v3735, %v3863
        %v3968 = vadd.f32 %v3736, %v3864
        %v3969 = vadd.f32 %v3737, %v3865
        %v3970 = vadd.f32 %v3738, %v3866
        %v3971 = vadd.f32 %v3739, %v3867
        %v3972 = vadd.f32 %v3740, %v3868
        %v3973 = vadd.f32 %v3741, %v3869
        %v3974 = vadd.f32 %v3742, %v3870
        %v3975 = vadd.f32 %v3743, %v3871
        %v3976 = vadd.f32 %v3744, %v3872
        %v3977 = vadd.f32 %v3745, %v3873
        %v3978 = vadd.f32 %v3746, %v3874
        %v3979 = vadd.f32 %v3747, %v3875
        %v3980 = vadd.f32 %v3748, %v3876
        %v3981 = vadd.f32 %v3749, %v3877
        %v3982 = vadd.f32 %v3750, %v3878
        %v3983 = vadd.f32 %v3751, %v3879
        %v3984 = vadd.f32 %v3752, %v3880
        %v3985 = vadd.f32 %v3753, %v3881
        %v3986 = vlaneseq
        %v3987 = vshrl.u32 %v3986, 7
        %v3988 = vsub.s32 7, %v3987
        %v3989 = vrot.slane %v378, %v3988
        %v3990 = vmul.f32 %v423, %v3989
        %v3991 = vmul.f32 %v428, %v3989
        %v3992 = vmul.f32 %v433, %v3989
        %v3993 = vmul.f32 %v438, %v3989
        %v3994 = vmul.f32 %v443, %v3989
        %v3995 = vmul.f32 %v448, %v3989
        %v3996 = vmul.f32 %v453, %v3989
        %v3997 = vmul.f32 %v458, %v3989
        %v3998 = vmul.f32 %v463, %v3989
        %v3999 = vmul.f32 %v468, %v3989
        %v4000 = vmul.f32 %v473, %v3989
        %v4001 = vmul.f32 %v478, %v3989
        %v4002 = vmul.f32 %v483, %v3989
        %v4003 = vmul.f32 %v488, %v3989
        %v4004 = vmul.f32 %v493, %v3989
        %v4005 = vmul.f32 %v498, %v3989
        %v4006 = vmul.f32 %v503, %v3989
        %v4007 = vmul.f32 %v508, %v3989
        %v4008 = vmul.f32 %v513, %v3989
        %v4009 = vmul.f32 %v518, %v3989
        %v4010 = vmul.f32 %v523, %v3989
        %v4011 = vmul.f32 %v528, %v3989
        %v4012 = vmul.f32 %v533, %v3989
        %v4013 = vmul.f32 %v538, %v3989
        %v4014 = vmul.f32 %v543, %v3989
        %v4015 = vmul.f32 %v548, %v3989
        %v4016 = vmul.f32 %v553, %v3989
        %v4017 = vmul.f32 %v558, %v3989
        %v4018 = vmul.f32 %v563, %v3989
        %v4019 = vmul.f32 %v568, %v3989
        %v4020 = vmul.f32 %v573, %v3989
        %v4021 = vmul.f32 %v578, %v3989
        %v4022 = vmul.f32 %v583, %v3989
        %v4023 = vmul.f32 %v588, %v3989
        %v4024 = vmul.f32 %v593, %v3989
        %v4025 = vmul.f32 %v598, %v3989
        %v4026 = vmul.f32 %v603, %v3989
        %v4027 = vmul.f32 %v608, %v3989
        %v4028 = vmul.f32 %v613, %v3989
        %v4029 = vmul.f32 %v618, %v3989
        %v4030 = vmul.f32 %v623, %v3989
        %v4031 = vmul.f32 %v628, %v3989
        %v4032 = vmul.f32 %v633, %v3989
        %v4033 = vmul.f32 %v638, %v3989
        %v4034 = vmul.f32 %v643, %v3989
        %v4035 = vmul.f32 %v648, %v3989
        %v4036 = vmul.f32 %v653, %v3989
        %v4037 = vmul.f32 %v658, %v3989
        %v4038 = vmul.f32 %v663, %v3989
        %v4039 = vmul.f32 %v668, %v3989
        %v4040 = vmul.f32 %v673, %v3989
        %v4041 = vmul.f32 %v678, %v3989
        %v4042 = vmul.f32 %v683, %v3989
        %v4043 = vmul.f32 %v688, %v3989
        %v4044 = vmul.f32 %v693, %v3989
        %v4045 = vmul.f32 %v698, %v3989
        %v4046 = vmul.f32 %v703, %v3989
        %v4047 = vmul.f32 %v708, %v3989
        %v4048 = vmul.f32 %v713, %v3989
        %v4049 = vmul.f32 %v718, %v3989
        %v4050 = vmul.f32 %v723, %v3989
        %v4051 = vmul.f32 %v728, %v3989
        %v4052 = vmul.f32 %v733, %v3989
        %v4053 = vmul.f32 %v738, %v3989
        %v4054 = vmul.f32 %v743, %v3989
        %v4055 = vmul.f32 %v748, %v3989
        %v4056 = vmul.f32 %v753, %v3989
        %v4057 = vmul.f32 %v758, %v3989
        %v4058 = vmul.f32 %v763, %v3989
        %v4059 = vmul.f32 %v768, %v3989
        %v4060 = vmul.f32 %v773, %v3989
        %v4061 = vmul.f32 %v778, %v3989
        %v4062 = vmul.f32 %v783, %v3989
        %v4063 = vmul.f32 %v788, %v3989
        %v4064 = vmul.f32 %v793, %v3989
        %v4065 = vmul.f32 %v798, %v3989
        %v4066 = vmul.f32 %v803, %v3989
        %v4067 = vmul.f32 %v808, %v3989
        %v4068 = vmul.f32 %v813, %v3989
        %v4069 = vmul.f32 %v818, %v3989
        %v4070 = vmul.f32 %v823, %v3989
        %v4071 = vmul.f32 %v828, %v3989
        %v4072 = vmul.f32 %v833, %v3989
        %v4073 = vmul.f32 %v838, %v3989
        %v4074 = vmul.f32 %v843, %v3989
        %v4075 = vmul.f32 %v848, %v3989
        %v4076 = vmul.f32 %v853, %v3989
        %v4077 = vmul.f32 %v858, %v3989
        %v4078 = vmul.f32 %v863, %v3989
        %v4079 = vmul.f32 %v868, %v3989
        %v4080 = vmul.f32 %v873, %v3989
        %v4081 = vmul.f32 %v878, %v3989
        %v4082 = vmul.f32 %v883, %v3989
        %v4083 = vmul.f32 %v888, %v3989
        %v4084 = vmul.f32 %v893, %v3989
        %v4085 = vmul.f32 %v898, %v3989
        %v4086 = vmul.f32 %v2321, %v3989
        %v4087 = vmul.f32 %v2326, %v3989
        %v4088 = vmul.f32 %v2331, %v3989
        %v4089 = vmul.f32 %v2336, %v3989
        %v4090 = vmul.f32 %v3757, %v3989
        %v4091 = vmul.f32 %v3762, %v3989
        %v4092 = vmul.f32 %v3767, %v3989
        %v4093 = vmul.f32 %v3772, %v3989
        %v4198 = vrot.slane %v3990, 1
        %v4199 = vrot.slane %v3991, 1
        %v4200 = vsel %vm1324, %v4198, %v4199
        %v4201 = vrot.slane %v3992, 1
        %v4202 = vsel %vm1324, %v4199, %v4201
        %v4203 = vrot.slane %v3993, 1
        %v4204 = vsel %vm1324, %v4201, %v4203
        %v4205 = vrot.slane %v3994, 1
        %v4206 = vrot.slane %v3995, 1
        %v4207 = vsel %vm1324, %v4205, %v4206
        %v4208 = vrot.slane %v3996, 1
        %v4209 = vsel %vm1324, %v4206, %v4208
        %v4210 = vrot.slane %v3997, 1
        %v4211 = vsel %vm1324, %v4208, %v4210
        %v4212 = vrot.slane %v3998, 1
        %v4213 = vrot.slane %v3999, 1
        %v4214 = vsel %vm1324, %v4212, %v4213
        %v4215 = vrot.slane %v4000, 1
        %v4216 = vsel %vm1324, %v4213, %v4215
        %v4217 = vrot.slane %v4001, 1
        %v4218 = vsel %vm1324, %v4215, %v4217
        %v4219 = vrot.slane %v4002, 1
        %v4220 = vrot.slane %v4003, 1
        %v4221 = vsel %vm1324, %v4219, %v4220
        %v4222 = vrot.slane %v4004, 1
        %v4223 = vsel %vm1324, %v4220, %v4222
        %v4224 = vrot.slane %v4005, 1
        %v4225 = vsel %vm1324, %v4222, %v4224
        %v4226 = vrot.slane %v4006, 1
        %v4227 = vrot.slane %v4007, 1
        %v4228 = vsel %vm1324, %v4226, %v4227
        %v4229 = vrot.slane %v4008, 1
        %v4230 = vsel %vm1324, %v4227, %v4229
        %v4231 = vrot.slane %v4009, 1
        %v4232 = vsel %vm1324, %v4229, %v4231
        %v4233 = vrot.slane %v4010, 1
        %v4234 = vrot.slane %v4011, 1
        %v4235 = vsel %vm1324, %v4233, %v4234
        %v4236 = vrot.slane %v4012, 1
        %v4237 = vsel %vm1324, %v4234, %v4236
        %v4238 = vrot.slane %v4013, 1
        %v4239 = vsel %vm1324, %v4236, %v4238
        %v4240 = vrot.slane %v4014, 1
        %v4241 = vrot.slane %v4015, 1
        %v4242 = vsel %vm1324, %v4240, %v4241
        %v4243 = vrot.slane %v4016, 1
        %v4244 = vsel %vm1324, %v4241, %v4243
        %v4245 = vrot.slane %v4017, 1
        %v4246 = vsel %vm1324, %v4243, %v4245
        %v4247 = vrot.slane %v4018, 1
        %v4248 = vrot.slane %v4019, 1
        %v4249 = vsel %vm1324, %v4247, %v4248
        %v4250 = vrot.slane %v4020, 1
        %v4251 = vsel %vm1324, %v4248, %v4250
        %v4252 = vrot.slane %v4021, 1
        %v4253 = vsel %vm1324, %v4250, %v4252
        %v4254 = vrot.slane %v4022, 1
        %v4255 = vrot.slane %v4023, 1
        %v4256 = vsel %vm1324, %v4254, %v4255
        %v4257 = vrot.slane %v4024, 1
        %v4258 = vsel %vm1324, %v4255, %v4257
        %v4259 = vrot.slane %v4025, 1
        %v4260 = vsel %vm1324, %v4257, %v4259
        %v4261 = vrot.slane %v4026, 1
        %v4262 = vrot.slane %v4027, 1
        %v4263 = vsel %vm1324, %v4261, %v4262
        %v4264 = vrot.slane %v4028, 1
        %v4265 = vsel %vm1324, %v4262, %v4264
        %v4266 = vrot.slane %v4029, 1
        %v4267 = vsel %vm1324, %v4264, %v4266
        %v4268 = vrot.slane %v4030, 1
        %v4269 = vrot.slane %v4031, 1
        %v4270 = vsel %vm1324, %v4268, %v4269
        %v4271 = vrot.slane %v4032, 1
        %v4272 = vsel %vm1324, %v4269, %v4271
        %v4273 = vrot.slane %v4033, 1
        %v4274 = vsel %vm1324, %v4271, %v4273
        %v4275 = vrot.slane %v4034, 1
        %v4276 = vrot.slane %v4035, 1
        %v4277 = vsel %vm1324, %v4275, %v4276
        %v4278 = vrot.slane %v4036, 1
        %v4279 = vsel %vm1324, %v4276, %v4278
        %v4280 = vrot.slane %v4037, 1
        %v4281 = vsel %vm1324, %v4278, %v4280
        %v4282 = vrot.slane %v4038, 1
        %v4283 = vrot.slane %v4039, 1
        %v4284 = vsel %vm1324, %v4282, %v4283
        %v4285 = vrot.slane %v4040, 1
        %v4286 = vsel %vm1324, %v4283, %v4285
        %v4287 = vrot.slane %v4041, 1
        %v4288 = vsel %vm1324, %v4285, %v4287
        %v4289 = vrot.slane %v4042, 1
        %v4290 = vrot.slane %v4043, 1
        %v4291 = vsel %vm1324, %v4289, %v4290
        %v4292 = vrot.slane %v4044, 1
        %v4293 = vsel %vm1324, %v4290, %v4292
        %v4294 = vrot.slane %v4045, 1
        %v4295 = vsel %vm1324, %v4292, %v4294
        %v4296 = vrot.slane %v4046, 1
        %v4297 = vrot.slane %v4047, 1
        %v4298 = vsel %vm1324, %v4296, %v4297
        %v4299 = vrot.slane %v4048, 1
        %v4300 = vsel %vm1324, %v4297, %v4299
        %v4301 = vrot.slane %v4049, 1
        %v4302 = vsel %vm1324, %v4299, %v4301
        %v4303 = vrot.slane %v4050, 1
        %v4304 = vrot.slane %v4051, 1
        %v4305 = vsel %vm1324, %v4303, %v4304
        %v4306 = vrot.slane %v4052, 1
        %v4307 = vsel %vm1324, %v4304, %v4306
        %v4308 = vrot.slane %v4053, 1
        %v4309 = vsel %vm1324, %v4306, %v4308
        %v4310 = vrot.slane %v4054, 1
        %v4311 = vrot.slane %v4055, 1
        %v4312 = vsel %vm1324, %v4310, %v4311
        %v4313 = vrot.slane %v4056, 1
        %v4314 = vsel %vm1324, %v4311, %v4313
        %v4315 = vrot.slane %v4057, 1
        %v4316 = vsel %vm1324, %v4313, %v4315
        %v4317 = vrot.slane %v4058, 1
        %v4318 = vrot.slane %v4059, 1
        %v4319 = vsel %vm1324, %v4317, %v4318
        %v4320 = vrot.slane %v4060, 1
        %v4321 = vsel %vm1324, %v4318, %v4320
        %v4322 = vrot.slane %v4061, 1
        %v4323 = vsel %vm1324, %v4320, %v4322
        %v4324 = vrot.slane %v4062, 1
        %v4325 = vrot.slane %v4063, 1
        %v4326 = vsel %vm1324, %v4324, %v4325
        %v4327 = vrot.slane %v4064, 1
        %v4328 = vsel %vm1324, %v4325, %v4327
        %v4329 = vrot.slane %v4065, 1
        %v4330 = vsel %vm1324, %v4327, %v4329
        %v4331 = vrot.slane %v4066, 1
        %v4332 = vrot.slane %v4067, 1
        %v4333 = vsel %vm1324, %v4331, %v4332
        %v4334 = vrot.slane %v4068, 1
        %v4335 = vsel %vm1324, %v4332, %v4334
        %v4336 = vrot.slane %v4069, 1
        %v4337 = vsel %vm1324, %v4334, %v4336
        %v4338 = vrot.slane %v4070, 1
        %v4339 = vrot.slane %v4071, 1
        %v4340 = vsel %vm1324, %v4338, %v4339
        %v4341 = vrot.slane %v4072, 1
        %v4342 = vsel %vm1324, %v4339, %v4341
        %v4343 = vrot.slane %v4073, 1
        %v4344 = vsel %vm1324, %v4341, %v4343
        %v4345 = vrot.slane %v4074, 1
        %v4346 = vrot.slane %v4075, 1
        %v4347 = vsel %vm1324, %v4345, %v4346
        %v4348 = vrot.slane %v4076, 1
        %v4349 = vsel %vm1324, %v4346, %v4348
        %v4350 = vrot.slane %v4077, 1
        %v4351 = vsel %vm1324, %v4348, %v4350
        %v4352 = vrot.slane %v4078, 1
        %v4353 = vrot.slane %v4079, 1
        %v4354 = vsel %vm1324, %v4352, %v4353
        %v4355 = vrot.slane %v4080, 1
        %v4356 = vsel %vm1324, %v4353, %v4355
        %v4357 = vrot.slane %v4081, 1
        %v4358 = vsel %vm1324, %v4355, %v4357
        %v4359 = vrot.slane %v4082, 1
        %v4360 = vrot.slane %v4083, 1
        %v4361 = vsel %vm1324, %v4359, %v4360
        %v4362 = vrot.slane %v4084, 1
        %v4363 = vsel %vm1324, %v4360, %v4362
        %v4364 = vrot.slane %v4085, 1
        %v4365 = vsel %vm1324, %v4362, %v4364
        %v4366 = vrot.slane %v4086, 1
        %v4367 = vrot.slane %v4087, 1
        %v4368 = vsel %vm1324, %v4366, %v4367
        %v4369 = vrot.slane %v4088, 1
        %v4370 = vsel %vm1324, %v4367, %v4369
        %v4371 = vrot.slane %v4089, 1
        %v4372 = vsel %vm1324, %v4369, %v4371
        %v4373 = vrot.slane %v4090, 1
        %v4374 = vrot.slane %v4091, 1
        %v4375 = vsel %vm1324, %v4373, %v4374
        %v4376 = vrot.slane %v4092, 1
        %v4377 = vsel %vm1324, %v4374, %v4376
        %v4378 = vrot.slane %v4093, 1
        %v4379 = vsel %vm1324, %v4376, %v4378
        %v4484 = vadd.f32 %v3882, %v4200
        %v4485 = vadd.f32 %v3883, %v4202
        %v4486 = vadd.f32 %v3884, %v4204
        %v4487 = vadd.f32 %v3885, %v4203
        %v4488 = vadd.f32 %v3886, %v4207
        %v4489 = vadd.f32 %v3887, %v4209
        %v4490 = vadd.f32 %v3888, %v4211
        %v4491 = vadd.f32 %v3889, %v4210
        %v4492 = vadd.f32 %v3890, %v4214
        %v4493 = vadd.f32 %v3891, %v4216
        %v4494 = vadd.f32 %v3892, %v4218
        %v4495 = vadd.f32 %v3893, %v4217
        %v4496 = vadd.f32 %v3894, %v4221
        %v4497 = vadd.f32 %v3895, %v4223
        %v4498 = vadd.f32 %v3896, %v4225
        %v4499 = vadd.f32 %v3897, %v4224
        %v4500 = vadd.f32 %v3898, %v4228
        %v4501 = vadd.f32 %v3899, %v4230
        %v4502 = vadd.f32 %v3900, %v4232
        %v4503 = vadd.f32 %v3901, %v4231
        %v4504 = vadd.f32 %v3902, %v4235
        %v4505 = vadd.f32 %v3903, %v4237
        %v4506 = vadd.f32 %v3904, %v4239
        %v4507 = vadd.f32 %v3905, %v4238
        %v4508 = vadd.f32 %v3906, %v4242
        %v4509 = vadd.f32 %v3907, %v4244
        %v4510 = vadd.f32 %v3908, %v4246
        %v4511 = vadd.f32 %v3909, %v4245
        %v4512 = vadd.f32 %v3910, %v4249
        %v4513 = vadd.f32 %v3911, %v4251
        %v4514 = vadd.f32 %v3912, %v4253
        %v4515 = vadd.f32 %v3913, %v4252
        %v4516 = vadd.f32 %v3914, %v4256
        %v4517 = vadd.f32 %v3915, %v4258
        %v4518 = vadd.f32 %v3916, %v4260
        %v4519 = vadd.f32 %v3917, %v4259
        %v4520 = vadd.f32 %v3918, %v4263
        %v4521 = vadd.f32 %v3919, %v4265
        %v4522 = vadd.f32 %v3920, %v4267
        %v4523 = vadd.f32 %v3921, %v4266
        %v4524 = vadd.f32 %v3922, %v4270
        %v4525 = vadd.f32 %v3923, %v4272
        %v4526 = vadd.f32 %v3924, %v4274
        %v4527 = vadd.f32 %v3925, %v4273
        %v4528 = vadd.f32 %v3926, %v4277
        %v4529 = vadd.f32 %v3927, %v4279
        %v4530 = vadd.f32 %v3928, %v4281
        %v4531 = vadd.f32 %v3929, %v4280
        %v4532 = vadd.f32 %v3930, %v4284
        %v4533 = vadd.f32 %v3931, %v4286
        %v4534 = vadd.f32 %v3932, %v4288
        %v4535 = vadd.f32 %v3933, %v4287
        %v4536 = vadd.f32 %v3934, %v4291
        %v4537 = vadd.f32 %v3935, %v4293
        %v4538 = vadd.f32 %v3936, %v4295
        %v4539 = vadd.f32 %v3937, %v4294
        %v4540 = vadd.f32 %v3938, %v4298
        %v4541 = vadd.f32 %v3939, %v4300
        %v4542 = vadd.f32 %v3940, %v4302
        %v4543 = vadd.f32 %v3941, %v4301
        %v4544 = vadd.f32 %v3942, %v4305
        %v4545 = vadd.f32 %v3943, %v4307
        %v4546 = vadd.f32 %v3944, %v4309
        %v4547 = vadd.f32 %v3945, %v4308
        %v4548 = vadd.f32 %v3946, %v4312
        %v4549 = vadd.f32 %v3947, %v4314
        %v4550 = vadd.f32 %v3948, %v4316
        %v4551 = vadd.f32 %v3949, %v4315
        %v4552 = vadd.f32 %v3950, %v4319
        %v4553 = vadd.f32 %v3951, %v4321
        %v4554 = vadd.f32 %v3952, %v4323
        %v4555 = vadd.f32 %v3953, %v4322
        %v4556 = vadd.f32 %v3954, %v4326
        %v4557 = vadd.f32 %v3955, %v4328
        %v4558 = vadd.f32 %v3956, %v4330
        %v4559 = vadd.f32 %v3957, %v4329
        %v4560 = vadd.f32 %v3958, %v4333
        %v4561 = vadd.f32 %v3959, %v4335
        %v4562 = vadd.f32 %v3960, %v4337
        %v4563 = vadd.f32 %v3961, %v4336
        %v4564 = vadd.f32 %v3962, %v4340
        %v4565 = vadd.f32 %v3963, %v4342
        %v4566 = vadd.f32 %v3964, %v4344
        %v4567 = vadd.f32 %v3965, %v4343
        %v4568 = vadd.f32 %v3966, %v4347
        %v4569 = vadd.f32 %v3967, %v4349
        %v4570 = vadd.f32 %v3968, %v4351
        %v4571 = vadd.f32 %v3969, %v4350
        %v4572 = vadd.f32 %v3970, %v4354
        %v4573 = vadd.f32 %v3971, %v4356
        %v4574 = vadd.f32 %v3972, %v4358
        %v4575 = vadd.f32 %v3973, %v4357
        %v4576 = vadd.f32 %v3974, %v4361
        %v4577 = vadd.f32 %v3975, %v4363
        %v4578 = vadd.f32 %v3976, %v4365
        %v4579 = vadd.f32 %v3977, %v4364
        %v4580 = vadd.f32 %v3978, %v4368
        %v4581 = vadd.f32 %v3979, %v4370
        %v4582 = vadd.f32 %v3980, %v4372
        %v4583 = vadd.f32 %v3981, %v4371
        %v4584 = vadd.f32 %v3982, %v4375
        %v4585 = vadd.f32 %v3983, %v4377
        %v4586 = vadd.f32 %v3984, %v4379
        %v4587 = vadd.f32 %v3985, %v4378
        %v4588 = vlaneseq
        %v4589 = vshrl.u32 %v4588, 7
        %v4590 = vsub.s32 0, %v4589
        %v4591 = vrot.slane %v379, %v4590
        %v4592 = vmul.f32 %v423, %v4591
        %v4593 = vmul.f32 %v428, %v4591
        %v4594 = vmul.f32 %v433, %v4591
        %v4595 = vmul.f32 %v438, %v4591
        %v4596 = vmul.f32 %v443, %v4591
        %v4597 = vmul.f32 %v448, %v4591
        %v4598 = vmul.f32 %v453, %v4591
        %v4599 = vmul.f32 %v458, %v4591
        %v4600 = vmul.f32 %v463, %v4591
        %v4601 = vmul.f32 %v468, %v4591
        %v4602 = vmul.f32 %v473, %v4591
        %v4603 = vmul.f32 %v478, %v4591
        %v4604 = vmul.f32 %v483, %v4591
        %v4605 = vmul.f32 %v488, %v4591
        %v4606 = vmul.f32 %v493, %v4591
        %v4607 = vmul.f32 %v498, %v4591
        %v4608 = vmul.f32 %v503, %v4591
        %v4609 = vmul.f32 %v508, %v4591
        %v4610 = vmul.f32 %v513, %v4591
        %v4611 = vmul.f32 %v518, %v4591
        %v4612 = vmul.f32 %v523, %v4591
        %v4613 = vmul.f32 %v528, %v4591
        %v4614 = vmul.f32 %v533, %v4591
        %v4615 = vmul.f32 %v538, %v4591
        %v4616 = vmul.f32 %v543, %v4591
        %v4617 = vmul.f32 %v548, %v4591
        %v4618 = vmul.f32 %v553, %v4591
        %v4619 = vmul.f32 %v558, %v4591
        %v4620 = vmul.f32 %v563, %v4591
        %v4621 = vmul.f32 %v568, %v4591
        %v4622 = vmul.f32 %v573, %v4591
        %v4623 = vmul.f32 %v578, %v4591
        %v4624 = vmul.f32 %v583, %v4591
        %v4625 = vmul.f32 %v588, %v4591
        %v4626 = vmul.f32 %v593, %v4591
        %v4627 = vmul.f32 %v598, %v4591
        %v4628 = vmul.f32 %v603, %v4591
        %v4629 = vmul.f32 %v608, %v4591
        %v4630 = vmul.f32 %v613, %v4591
        %v4631 = vmul.f32 %v618, %v4591
        %v4632 = vmul.f32 %v623, %v4591
        %v4633 = vmul.f32 %v628, %v4591
        %v4634 = vmul.f32 %v633, %v4591
        %v4635 = vmul.f32 %v638, %v4591
        %v4636 = vmul.f32 %v643, %v4591
        %v4637 = vmul.f32 %v648, %v4591
        %v4638 = vmul.f32 %v653, %v4591
        %v4639 = vmul.f32 %v658, %v4591
        %v4640 = vmul.f32 %v663, %v4591
        %v4641 = vmul.f32 %v668, %v4591
        %v4642 = vmul.f32 %v673, %v4591
        %v4643 = vmul.f32 %v678, %v4591
        %v4644 = vmul.f32 %v683, %v4591
        %v4645 = vmul.f32 %v688, %v4591
        %v4646 = vmul.f32 %v693, %v4591
        %v4647 = vmul.f32 %v698, %v4591
        %v4648 = vmul.f32 %v703, %v4591
        %v4649 = vmul.f32 %v708, %v4591
        %v4650 = vmul.f32 %v713, %v4591
        %v4651 = vmul.f32 %v718, %v4591
        %v4652 = vmul.f32 %v723, %v4591
        %v4653 = vmul.f32 %v728, %v4591
        %v4654 = vmul.f32 %v733, %v4591
        %v4655 = vmul.f32 %v738, %v4591
        %v4656 = vmul.f32 %v743, %v4591
        %v4657 = vmul.f32 %v748, %v4591
        %v4658 = vmul.f32 %v753, %v4591
        %v4659 = vmul.f32 %v758, %v4591
        %v4660 = vmul.f32 %v763, %v4591
        %v4661 = vmul.f32 %v768, %v4591
        %v4662 = vmul.f32 %v773, %v4591
        %v4663 = vmul.f32 %v778, %v4591
        %v4664 = vmul.f32 %v783, %v4591
        %v4665 = vmul.f32 %v788, %v4591
        %v4666 = vmul.f32 %v793, %v4591
        %v4667 = vmul.f32 %v798, %v4591
        %v4668 = vmul.f32 %v803, %v4591
        %v4669 = vmul.f32 %v808, %v4591
        %v4670 = vmul.f32 %v813, %v4591
        %v4671 = vmul.f32 %v818, %v4591
        %v4672 = vmul.f32 %v823, %v4591
        %v4673 = vmul.f32 %v828, %v4591
        %v4674 = vmul.f32 %v833, %v4591
        %v4675 = vmul.f32 %v838, %v4591
        %v4676 = vmul.f32 %v843, %v4591
        %v4677 = vmul.f32 %v848, %v4591
        %v4678 = vmul.f32 %v853, %v4591
        %v4679 = vmul.f32 %v858, %v4591
        %v4680 = vmul.f32 %v863, %v4591
        %v4681 = vmul.f32 %v868, %v4591
        %v4682 = vmul.f32 %v873, %v4591
        %v4683 = vmul.f32 %v878, %v4591
        %v4684 = vmul.f32 %v883, %v4591
        %v4685 = vmul.f32 %v888, %v4591
        %v4686 = vmul.f32 %v893, %v4591
        %v4687 = vmul.f32 %v898, %v4591
        %v4688 = vmul.f32 %v2321, %v4591
        %v4689 = vmul.f32 %v2326, %v4591
        %v4690 = vmul.f32 %v2331, %v4591
        %v4691 = vmul.f32 %v2336, %v4591
        %v4692 = vmul.f32 %v3757, %v4591
        %v4693 = vmul.f32 %v3762, %v4591
        %v4694 = vmul.f32 %v3767, %v4591
        %v4695 = vmul.f32 %v3772, %v4591
        %v4800 = vrot.slane %v4592, 2
        %v4801 = vrot.slane %v4593, 2
        %v4802 = vsel %vm1927, %v4800, %v4801
        %v4803 = vrot.slane %v4594, 2
        %v4804 = vsel %vm1927, %v4801, %v4803
        %v4805 = vrot.slane %v4595, 2
        %v4806 = vsel %vm1927, %v4803, %v4805
        %v4807 = vrot.slane %v4596, 2
        %v4808 = vrot.slane %v4597, 2
        %v4809 = vsel %vm1927, %v4807, %v4808
        %v4810 = vrot.slane %v4598, 2
        %v4811 = vsel %vm1927, %v4808, %v4810
        %v4812 = vrot.slane %v4599, 2
        %v4813 = vsel %vm1927, %v4810, %v4812
        %v4814 = vrot.slane %v4600, 2
        %v4815 = vrot.slane %v4601, 2
        %v4816 = vsel %vm1927, %v4814, %v4815
        %v4817 = vrot.slane %v4602, 2
        %v4818 = vsel %vm1927, %v4815, %v4817
        %v4819 = vrot.slane %v4603, 2
        %v4820 = vsel %vm1927, %v4817, %v4819
        %v4821 = vrot.slane %v4604, 2
        %v4822 = vrot.slane %v4605, 2
        %v4823 = vsel %vm1927, %v4821, %v4822
        %v4824 = vrot.slane %v4606, 2
        %v4825 = vsel %vm1927, %v4822, %v4824
        %v4826 = vrot.slane %v4607, 2
        %v4827 = vsel %vm1927, %v4824, %v4826
        %v4828 = vrot.slane %v4608, 2
        %v4829 = vrot.slane %v4609, 2
        %v4830 = vsel %vm1927, %v4828, %v4829
        %v4831 = vrot.slane %v4610, 2
        %v4832 = vsel %vm1927, %v4829, %v4831
        %v4833 = vrot.slane %v4611, 2
        %v4834 = vsel %vm1927, %v4831, %v4833
        %v4835 = vrot.slane %v4612, 2
        %v4836 = vrot.slane %v4613, 2
        %v4837 = vsel %vm1927, %v4835, %v4836
        %v4838 = vrot.slane %v4614, 2
        %v4839 = vsel %vm1927, %v4836, %v4838
        %v4840 = vrot.slane %v4615, 2
        %v4841 = vsel %vm1927, %v4838, %v4840
        %v4842 = vrot.slane %v4616, 2
        %v4843 = vrot.slane %v4617, 2
        %v4844 = vsel %vm1927, %v4842, %v4843
        %v4845 = vrot.slane %v4618, 2
        %v4846 = vsel %vm1927, %v4843, %v4845
        %v4847 = vrot.slane %v4619, 2
        %v4848 = vsel %vm1927, %v4845, %v4847
        %v4849 = vrot.slane %v4620, 2
        %v4850 = vrot.slane %v4621, 2
        %v4851 = vsel %vm1927, %v4849, %v4850
        %v4852 = vrot.slane %v4622, 2
        %v4853 = vsel %vm1927, %v4850, %v4852
        %v4854 = vrot.slane %v4623, 2
        %v4855 = vsel %vm1927, %v4852, %v4854
        %v4856 = vrot.slane %v4624, 2
        %v4857 = vrot.slane %v4625, 2
        %v4858 = vsel %vm1927, %v4856, %v4857
        %v4859 = vrot.slane %v4626, 2
        %v4860 = vsel %vm1927, %v4857, %v4859
        %v4861 = vrot.slane %v4627, 2
        %v4862 = vsel %vm1927, %v4859, %v4861
        %v4863 = vrot.slane %v4628, 2
        %v4864 = vrot.slane %v4629, 2
        %v4865 = vsel %vm1927, %v4863, %v4864
        %v4866 = vrot.slane %v4630, 2
        %v4867 = vsel %vm1927, %v4864, %v4866
        %v4868 = vrot.slane %v4631, 2
        %v4869 = vsel %vm1927, %v4866, %v4868
        %v4870 = vrot.slane %v4632, 2
        %v4871 = vrot.slane %v4633, 2
        %v4872 = vsel %vm1927, %v4870, %v4871
        %v4873 = vrot.slane %v4634, 2
        %v4874 = vsel %vm1927, %v4871, %v4873
        %v4875 = vrot.slane %v4635, 2
        %v4876 = vsel %vm1927, %v4873, %v4875
        %v4877 = vrot.slane %v4636, 2
        %v4878 = vrot.slane %v4637, 2
        %v4879 = vsel %vm1927, %v4877, %v4878
        %v4880 = vrot.slane %v4638, 2
        %v4881 = vsel %vm1927, %v4878, %v4880
        %v4882 = vrot.slane %v4639, 2
        %v4883 = vsel %vm1927, %v4880, %v4882
        %v4884 = vrot.slane %v4640, 2
        %v4885 = vrot.slane %v4641, 2
        %v4886 = vsel %vm1927, %v4884, %v4885
        %v4887 = vrot.slane %v4642, 2
        %v4888 = vsel %vm1927, %v4885, %v4887
        %v4889 = vrot.slane %v4643, 2
        %v4890 = vsel %vm1927, %v4887, %v4889
        %v4891 = vrot.slane %v4644, 2
        %v4892 = vrot.slane %v4645, 2
        %v4893 = vsel %vm1927, %v4891, %v4892
        %v4894 = vrot.slane %v4646, 2
        %v4895 = vsel %vm1927, %v4892, %v4894
        %v4896 = vrot.slane %v4647, 2
        %v4897 = vsel %vm1927, %v4894, %v4896
        %v4898 = vrot.slane %v4648, 2
        %v4899 = vrot.slane %v4649, 2
        %v4900 = vsel %vm1927, %v4898, %v4899
        %v4901 = vrot.slane %v4650, 2
        %v4902 = vsel %vm1927, %v4899, %v4901
        %v4903 = vrot.slane %v4651, 2
        %v4904 = vsel %vm1927, %v4901, %v4903
        %v4905 = vrot.slane %v4652, 2
        %v4906 = vrot.slane %v4653, 2
        %v4907 = vsel %vm1927, %v4905, %v4906
        %v4908 = vrot.slane %v4654, 2
        %v4909 = vsel %vm1927, %v4906, %v4908
        %v4910 = vrot.slane %v4655, 2
        %v4911 = vsel %vm1927, %v4908, %v4910
        %v4912 = vrot.slane %v4656, 2
        %v4913 = vrot.slane %v4657, 2
        %v4914 = vsel %vm1927, %v4912, %v4913
        %v4915 = vrot.slane %v4658, 2
        %v4916 = vsel %vm1927, %v4913, %v4915
        %v4917 = vrot.slane %v4659, 2
        %v4918 = vsel %vm1927, %v4915, %v4917
        %v4919 = vrot.slane %v4660, 2
        %v4920 = vrot.slane %v4661, 2
        %v4921 = vsel %vm1927, %v4919, %v4920
        %v4922 = vrot.slane %v4662, 2
        %v4923 = vsel %vm1927, %v4920, %v4922
        %v4924 = vrot.slane %v4663, 2
        %v4925 = vsel %vm1927, %v4922, %v4924
        %v4926 = vrot.slane %v4664, 2
        %v4927 = vrot.slane %v4665, 2
        %v4928 = vsel %vm1927, %v4926, %v4927
        %v4929 = vrot.slane %v4666, 2
        %v4930 = vsel %vm1927, %v4927, %v4929
        %v4931 = vrot.slane %v4667, 2
        %v4932 = vsel %vm1927, %v4929, %v4931
        %v4933 = vrot.slane %v4668, 2
        %v4934 = vrot.slane %v4669, 2
        %v4935 = vsel %vm1927, %v4933, %v4934
        %v4936 = vrot.slane %v4670, 2
        %v4937 = vsel %vm1927, %v4934, %v4936
        %v4938 = vrot.slane %v4671, 2
        %v4939 = vsel %vm1927, %v4936, %v4938
        %v4940 = vrot.slane %v4672, 2
        %v4941 = vrot.slane %v4673, 2
        %v4942 = vsel %vm1927, %v4940, %v4941
        %v4943 = vrot.slane %v4674, 2
        %v4944 = vsel %vm1927, %v4941, %v4943
        %v4945 = vrot.slane %v4675, 2
        %v4946 = vsel %vm1927, %v4943, %v4945
        %v4947 = vrot.slane %v4676, 2
        %v4948 = vrot.slane %v4677, 2
        %v4949 = vsel %vm1927, %v4947, %v4948
        %v4950 = vrot.slane %v4678, 2
        %v4951 = vsel %vm1927, %v4948, %v4950
        %v4952 = vrot.slane %v4679, 2
        %v4953 = vsel %vm1927, %v4950, %v4952
        %v4954 = vrot.slane %v4680, 2
        %v4955 = vrot.slane %v4681, 2
        %v4956 = vsel %vm1927, %v4954, %v4955
        %v4957 = vrot.slane %v4682, 2
        %v4958 = vsel %vm1927, %v4955, %v4957
        %v4959 = vrot.slane %v4683, 2
        %v4960 = vsel %vm1927, %v4957, %v4959
        %v4961 = vrot.slane %v4684, 2
        %v4962 = vrot.slane %v4685, 2
        %v4963 = vsel %vm1927, %v4961, %v4962
        %v4964 = vrot.slane %v4686, 2
        %v4965 = vsel %vm1927, %v4962, %v4964
        %v4966 = vrot.slane %v4687, 2
        %v4967 = vsel %vm1927, %v4964, %v4966
        %v4968 = vrot.slane %v4688, 2
        %v4969 = vrot.slane %v4689, 2
        %v4970 = vsel %vm1927, %v4968, %v4969
        %v4971 = vrot.slane %v4690, 2
        %v4972 = vsel %vm1927, %v4969, %v4971
        %v4973 = vrot.slane %v4691, 2
        %v4974 = vsel %vm1927, %v4971, %v4973
        %v4975 = vrot.slane %v4692, 2
        %v4976 = vrot.slane %v4693, 2
        %v4977 = vsel %vm1927, %v4975, %v4976
        %v4978 = vrot.slane %v4694, 2
        %v4979 = vsel %vm1927, %v4976, %v4978
        %v4980 = vrot.slane %v4695, 2
        %v4981 = vsel %vm1927, %v4978, %v4980
        %v5086 = vadd.f32 %v4484, %v4802
        %v5087 = vadd.f32 %v4485, %v4804
        %v5088 = vadd.f32 %v4486, %v4806
        %v5089 = vadd.f32 %v4487, %v4805
        %v5090 = vadd.f32 %v4488, %v4809
        %v5091 = vadd.f32 %v4489, %v4811
        %v5092 = vadd.f32 %v4490, %v4813
        %v5093 = vadd.f32 %v4491, %v4812
        %v5094 = vadd.f32 %v4492, %v4816
        %v5095 = vadd.f32 %v4493, %v4818
        %v5096 = vadd.f32 %v4494, %v4820
        %v5097 = vadd.f32 %v4495, %v4819
        %v5098 = vadd.f32 %v4496, %v4823
        %v5099 = vadd.f32 %v4497, %v4825
        %v5100 = vadd.f32 %v4498, %v4827
        %v5101 = vadd.f32 %v4499, %v4826
        %v5102 = vadd.f32 %v4500, %v4830
        %v5103 = vadd.f32 %v4501, %v4832
        %v5104 = vadd.f32 %v4502, %v4834
        %v5105 = vadd.f32 %v4503, %v4833
        %v5106 = vadd.f32 %v4504, %v4837
        %v5107 = vadd.f32 %v4505, %v4839
        %v5108 = vadd.f32 %v4506, %v4841
        %v5109 = vadd.f32 %v4507, %v4840
        %v5110 = vadd.f32 %v4508, %v4844
        %v5111 = vadd.f32 %v4509, %v4846
        %v5112 = vadd.f32 %v4510, %v4848
        %v5113 = vadd.f32 %v4511, %v4847
        %v5114 = vadd.f32 %v4512, %v4851
        %v5115 = vadd.f32 %v4513, %v4853
        %v5116 = vadd.f32 %v4514, %v4855
        %v5117 = vadd.f32 %v4515, %v4854
        %v5118 = vadd.f32 %v4516, %v4858
        %v5119 = vadd.f32 %v4517, %v4860
        %v5120 = vadd.f32 %v4518, %v4862
        %v5121 = vadd.f32 %v4519, %v4861
        %v5122 = vadd.f32 %v4520, %v4865
        %v5123 = vadd.f32 %v4521, %v4867
        %v5124 = vadd.f32 %v4522, %v4869
        %v5125 = vadd.f32 %v4523, %v4868
        %v5126 = vadd.f32 %v4524, %v4872
        %v5127 = vadd.f32 %v4525, %v4874
        %v5128 = vadd.f32 %v4526, %v4876
        %v5129 = vadd.f32 %v4527, %v4875
        %v5130 = vadd.f32 %v4528, %v4879
        %v5131 = vadd.f32 %v4529, %v4881
        %v5132 = vadd.f32 %v4530, %v4883
        %v5133 = vadd.f32 %v4531, %v4882
        %v5134 = vadd.f32 %v4532, %v4886
        %v5135 = vadd.f32 %v4533, %v4888
        %v5136 = vadd.f32 %v4534, %v4890
        %v5137 = vadd.f32 %v4535, %v4889
        %v5138 = vadd.f32 %v4536, %v4893
        %v5139 = vadd.f32 %v4537, %v4895
        %v5140 = vadd.f32 %v4538, %v4897
        %v5141 = vadd.f32 %v4539, %v4896
        %v5142 = vadd.f32 %v4540, %v4900
        %v5143 = vadd.f32 %v4541, %v4902
        %v5144 = vadd.f32 %v4542, %v4904
        %v5145 = vadd.f32 %v4543, %v4903
        %v5146 = vadd.f32 %v4544, %v4907
        %v5147 = vadd.f32 %v4545, %v4909
        %v5148 = vadd.f32 %v4546, %v4911
        %v5149 = vadd.f32 %v4547, %v4910
        %v5150 = vadd.f32 %v4548, %v4914
        %v5151 = vadd.f32 %v4549, %v4916
        %v5152 = vadd.f32 %v4550, %v4918
        %v5153 = vadd.f32 %v4551, %v4917
        %v5154 = vadd.f32 %v4552, %v4921
        %v5155 = vadd.f32 %v4553, %v4923
        %v5156 = vadd.f32 %v4554, %v4925
        %v5157 = vadd.f32 %v4555, %v4924
        %v5158 = vadd.f32 %v4556, %v4928
        %v5159 = vadd.f32 %v4557, %v4930
        %v5160 = vadd.f32 %v4558, %v4932
        %v5161 = vadd.f32 %v4559, %v4931
        %v5162 = vadd.f32 %v4560, %v4935
        %v5163 = vadd.f32 %v4561, %v4937
        %v5164 = vadd.f32 %v4562, %v4939
        %v5165 = vadd.f32 %v4563, %v4938
        %v5166 = vadd.f32 %v4564, %v4942
        %v5167 = vadd.f32 %v4565, %v4944
        %v5168 = vadd.f32 %v4566, %v4946
        %v5169 = vadd.f32 %v4567, %v4945
        %v5170 = vadd.f32 %v4568, %v4949
        %v5171 = vadd.f32 %v4569, %v4951
        %v5172 = vadd.f32 %v4570, %v4953
        %v5173 = vadd.f32 %v4571, %v4952
        %v5174 = vadd.f32 %v4572, %v4956
        %v5175 = vadd.f32 %v4573, %v4958
        %v5176 = vadd.f32 %v4574, %v4960
        %v5177 = vadd.f32 %v4575, %v4959
        %v5178 = vadd.f32 %v4576, %v4963
        %v5179 = vadd.f32 %v4577, %v4965
        %v5180 = vadd.f32 %v4578, %v4967
        %v5181 = vadd.f32 %v4579, %v4966
        %v5182 = vadd.f32 %v4580, %v4970
        %v5183 = vadd.f32 %v4581, %v4972
        %v5184 = vadd.f32 %v4582, %v4974
        %v5185 = vadd.f32 %v4583, %v4973
        %v5186 = vadd.f32 %v4584, %v4977
        %v5187 = vadd.f32 %v4585, %v4979
        %v5188 = vadd.f32 %v4586, %v4981
        %v5189 = vadd.f32 %v4587, %v4980
        %v5190 = vld [vmem:[#allocation4] sm:$0x1]
        %v5192 = vlaneseq
        %v5193 = vshrl.u32 %v5192, 7
        %v5194 = vsub.s32 0, %v5193
        %v5195 = vrot.slane %v5190, %v5194
        %v5197 = vadd.f32 %v5086, %v5195
        %v5198 = vadd.f32 %v5087, %v5195
        %v5199 = vadd.f32 %v5088, %v5195
        %v5200 = vadd.f32 %v5089, %v5195
        %v5201 = vadd.f32 %v5090, %v5195
        %v5202 = vadd.f32 %v5091, %v5195
        %v5203 = vadd.f32 %v5092, %v5195
        %v5204 = vadd.f32 %v5093, %v5195
        %v5205 = vadd.f32 %v5094, %v5195
        %v5206 = vadd.f32 %v5095, %v5195
        %v5207 = vadd.f32 %v5096, %v5195
        %v5208 = vadd.f32 %v5097, %v5195
        %v5209 = vadd.f32 %v5098, %v5195
        %v5210 = vadd.f32 %v5099, %v5195
        %v5211 = vadd.f32 %v5100, %v5195
        %v5212 = vadd.f32 %v5101, %v5195
        %v5213 = vadd.f32 %v5102, %v5195
        %v5214 = vadd.f32 %v5103, %v5195
        %v5215 = vadd.f32 %v5104, %v5195
        %v5216 = vadd.f32 %v5105, %v5195
        %v5217 = vadd.f32 %v5106, %v5195
        %v5218 = vadd.f32 %v5107, %v5195
        %v5219 = vadd.f32 %v5108, %v5195
        %v5220 = vadd.f32 %v5109, %v5195
        %v5221 = vadd.f32 %v5110, %v5195
        %v5222 = vadd.f32 %v5111, %v5195
        %v5223 = vadd.f32 %v5112, %v5195
        %v5224 = vadd.f32 %v5113, %v5195
        %v5225 = vadd.f32 %v5114, %v5195
        %v5226 = vadd.f32 %v5115, %v5195
        %v5227 = vadd.f32 %v5116, %v5195
        %v5228 = vadd.f32 %v5117, %v5195
        %v5229 = vadd.f32 %v5118, %v5195
        %v5230 = vadd.f32 %v5119, %v5195
        %v5231 = vadd.f32 %v5120, %v5195
        %v5232 = vadd.f32 %v5121, %v5195
        %v5233 = vadd.f32 %v5122, %v5195
        %v5234 = vadd.f32 %v5123, %v5195
        %v5235 = vadd.f32 %v5124, %v5195
        %v5236 = vadd.f32 %v5125, %v5195
        %v5237 = vadd.f32 %v5126, %v5195
        %v5238 = vadd.f32 %v5127, %v5195
        %v5239 = vadd.f32 %v5128, %v5195
        %v5240 = vadd.f32 %v5129, %v5195
        %v5241 = vadd.f32 %v5130, %v5195
        %v5242 = vadd.f32 %v5131, %v5195
        %v5243 = vadd.f32 %v5132, %v5195
        %v5244 = vadd.f32 %v5133, %v5195
        %v5245 = vadd.f32 %v5134, %v5195
        %v5246 = vadd.f32 %v5135, %v5195
        %v5247 = vadd.f32 %v5136, %v5195
        %v5248 = vadd.f32 %v5137, %v5195
        %v5249 = vadd.f32 %v5138, %v5195
        %v5250 = vadd.f32 %v5139, %v5195
        %v5251 = vadd.f32 %v5140, %v5195
        %v5252 = vadd.f32 %v5141, %v5195
        %v5253 = vadd.f32 %v5142, %v5195
        %v5254 = vadd.f32 %v5143, %v5195
        %v5255 = vadd.f32 %v5144, %v5195
        %v5256 = vadd.f32 %v5145, %v5195
        %v5257 = vadd.f32 %v5146, %v5195
        %v5258 = vadd.f32 %v5147, %v5195
        %v5259 = vadd.f32 %v5148, %v5195
        %v5260 = vadd.f32 %v5149, %v5195
        %v5261 = vadd.f32 %v5150, %v5195
        %v5262 = vadd.f32 %v5151, %v5195
        %v5263 = vadd.f32 %v5152, %v5195
        %v5264 = vadd.f32 %v5153, %v5195
        %v5265 = vadd.f32 %v5154, %v5195
        %v5266 = vadd.f32 %v5155, %v5195
        %v5267 = vadd.f32 %v5156, %v5195
        %v5268 = vadd.f32 %v5157, %v5195
        %v5269 = vadd.f32 %v5158, %v5195
        %v5270 = vadd.f32 %v5159, %v5195
        %v5271 = vadd.f32 %v5160, %v5195
        %v5272 = vadd.f32 %v5161, %v5195
        %v5273 = vadd.f32 %v5162, %v5195
        %v5274 = vadd.f32 %v5163, %v5195
        %v5275 = vadd.f32 %v5164, %v5195
        %v5276 = vadd.f32 %v5165, %v5195
        %v5277 = vadd.f32 %v5166, %v5195
        %v5278 = vadd.f32 %v5167, %v5195
        %v5279 = vadd.f32 %v5168, %v5195
        %v5280 = vadd.f32 %v5169, %v5195
        %v5281 = vadd.f32 %v5170, %v5195
        %v5282 = vadd.f32 %v5171, %v5195
        %v5283 = vadd.f32 %v5172, %v5195
        %v5284 = vadd.f32 %v5173, %v5195
        %v5285 = vadd.f32 %v5174, %v5195
        %v5286 = vadd.f32 %v5175, %v5195
        %v5287 = vadd.f32 %v5176, %v5195
        %v5288 = vadd.f32 %v5177, %v5195
        %v5289 = vadd.f32 %v5178, %v5195
        %v5290 = vadd.f32 %v5179, %v5195
        %v5291 = vadd.f32 %v5180, %v5195
        %v5292 = vadd.f32 %v5181, %v5195
        %v5293 = vadd.f32 %v5182, %v5195
        %v5294 = vadd.f32 %v5183, %v5195
        %v5295 = vadd.f32 %v5184, %v5195
        %v5296 = vadd.f32 %v5185, %v5195
        %v5297 = vadd.f32 %v5186, %v5195
        %v5298 = vadd.f32 %v5187, %v5195
        %v5299 = vadd.f32 %v5188, %v5195
        %v5300 = vadd.f32 %v5189, %v5195
        %v5301 = vmax.f32 %v5197, 0.0
        %v5302 = vmax.f32 %v5198, 0.0
        %v5303 = vmax.f32 %v5199, 0.0
        %v5304 = vmax.f32 %v5200, 0.0
        %v5305 = vmax.f32 %v5201, 0.0
        %v5306 = vmax.f32 %v5202, 0.0
        %v5307 = vmax.f32 %v5203, 0.0
        %v5308 = vmax.f32 %v5204, 0.0
        %v5309 = vmax.f32 %v5205, 0.0
        %v5310 = vmax.f32 %v5206, 0.0
        %v5311 = vmax.f32 %v5207, 0.0
        %v5312 = vmax.f32 %v5208, 0.0
        %v5313 = vmax.f32 %v5209, 0.0
        %v5314 = vmax.f32 %v5210, 0.0
        %v5315 = vmax.f32 %v5211, 0.0
        %v5316 = vmax.f32 %v5212, 0.0
        %v5317 = vmax.f32 %v5213, 0.0
        %v5318 = vmax.f32 %v5214, 0.0
        %v5319 = vmax.f32 %v5215, 0.0
        %v5320 = vmax.f32 %v5216, 0.0
        %v5321 = vmax.f32 %v5217, 0.0
        %v5322 = vmax.f32 %v5218, 0.0
        %v5323 = vmax.f32 %v5219, 0.0
        %v5324 = vmax.f32 %v5220, 0.0
        %v5325 = vmax.f32 %v5221, 0.0
        %v5326 = vmax.f32 %v5222, 0.0
        %v5327 = vmax.f32 %v5223, 0.0
        %v5328 = vmax.f32 %v5224, 0.0
        %v5329 = vmax.f32 %v5225, 0.0
        %v5330 = vmax.f32 %v5226, 0.0
        %v5331 = vmax.f32 %v5227, 0.0
        %v5332 = vmax.f32 %v5228, 0.0
        %v5333 = vmax.f32 %v5229, 0.0
        %v5334 = vmax.f32 %v5230, 0.0
        %v5335 = vmax.f32 %v5231, 0.0
        %v5336 = vmax.f32 %v5232, 0.0
        %v5337 = vmax.f32 %v5233, 0.0
        %v5338 = vmax.f32 %v5234, 0.0
        %v5339 = vmax.f32 %v5235, 0.0
        %v5340 = vmax.f32 %v5236, 0.0
        %v5341 = vmax.f32 %v5237, 0.0
        %v5342 = vmax.f32 %v5238, 0.0
        %v5343 = vmax.f32 %v5239, 0.0
        %v5344 = vmax.f32 %v5240, 0.0
        %v5345 = vmax.f32 %v5241, 0.0
        %v5346 = vmax.f32 %v5242, 0.0
        %v5347 = vmax.f32 %v5243, 0.0
        %v5348 = vmax.f32 %v5244, 0.0
        %v5349 = vmax.f32 %v5245, 0.0
        %v5350 = vmax.f32 %v5246, 0.0
        %v5351 = vmax.f32 %v5247, 0.0
        %v5352 = vmax.f32 %v5248, 0.0
        %v5353 = vmax.f32 %v5249, 0.0
        %v5354 = vmax.f32 %v5250, 0.0
        %v5355 = vmax.f32 %v5251, 0.0
        %v5356 = vmax.f32 %v5252, 0.0
        %v5357 = vmax.f32 %v5253, 0.0
        %v5358 = vmax.f32 %v5254, 0.0
        %v5359 = vmax.f32 %v5255, 0.0
        %v5360 = vmax.f32 %v5256, 0.0
        %v5361 = vmax.f32 %v5257, 0.0
        %v5362 = vmax.f32 %v5258, 0.0
        %v5363 = vmax.f32 %v5259, 0.0
        %v5364 = vmax.f32 %v5260, 0.0
        %v5365 = vmax.f32 %v5261, 0.0
        %v5366 = vmax.f32 %v5262, 0.0
        %v5367 = vmax.f32 %v5263, 0.0
        %v5368 = vmax.f32 %v5264, 0.0
        %v5369 = vmax.f32 %v5265, 0.0
        %v5370 = vmax.f32 %v5266, 0.0
        %v5371 = vmax.f32 %v5267, 0.0
        %v5372 = vmax.f32 %v5268, 0.0
        %v5373 = vmax.f32 %v5269, 0.0
        %v5374 = vmax.f32 %v5270, 0.0
        %v5375 = vmax.f32 %v5271, 0.0
        %v5376 = vmax.f32 %v5272, 0.0
        %v5377 = vmax.f32 %v5273, 0.0
        %v5378 = vmax.f32 %v5274, 0.0
        %v5379 = vmax.f32 %v5275, 0.0
        %v5380 = vmax.f32 %v5276, 0.0
        %v5381 = vmax.f32 %v5277, 0.0
        %v5382 = vmax.f32 %v5278, 0.0
        %v5383 = vmax.f32 %v5279, 0.0
        %v5384 = vmax.f32 %v5280, 0.0
        %v5385 = vmax.f32 %v5281, 0.0
        %v5386 = vmax.f32 %v5282, 0.0
        %v5387 = vmax.f32 %v5283, 0.0
        %v5388 = vmax.f32 %v5284, 0.0
        %v5389 = vmax.f32 %v5285, 0.0
        %v5390 = vmax.f32 %v5286, 0.0
        %v5391 = vmax.f32 %v5287, 0.0
        %v5392 = vmax.f32 %v5288, 0.0
        %v5393 = vmax.f32 %v5289, 0.0
        %v5394 = vmax.f32 %v5290, 0.0
        %v5395 = vmax.f32 %v5291, 0.0
        %v5396 = vmax.f32 %v5292, 0.0
        %v5397 = vmax.f32 %v5293, 0.0
        %v5398 = vmax.f32 %v5294, 0.0
        %v5399 = vmax.f32 %v5295, 0.0
        %v5400 = vmax.f32 %v5296, 0.0
        %v5401 = vmax.f32 %v5297, 0.0
        %v5402 = vmax.f32 %v5298, 0.0
        %v5403 = vmax.f32 %v5299, 0.0
        %v5404 = vmax.f32 %v5300, 0.0
        %v5509 = vrot.slane %v5301, 1
        %v5510 = vrot.slane %v5302, 1
        %v5511 = vsel %vm1324, %v5509, %v5510
        %v5512 = vrot.slane %v5303, 1
        %v5513 = vsel %vm1324, %v5510, %v5512
        %v5514 = vrot.slane %v5304, 1
        %v5515 = vsel %vm1324, %v5512, %v5514
        %v5516 = vrot.slane %v5305, 1
        %v5517 = vrot.slane %v5306, 1
        %v5518 = vsel %vm1324, %v5516, %v5517
        %v5519 = vrot.slane %v5307, 1
        %v5520 = vsel %vm1324, %v5517, %v5519
        %v5521 = vrot.slane %v5308, 1
        %v5522 = vsel %vm1324, %v5519, %v5521
        %v5523 = vrot.slane %v5309, 1
        %v5524 = vrot.slane %v5310, 1
        %v5525 = vsel %vm1324, %v5523, %v5524
        %v5526 = vrot.slane %v5311, 1
        %v5527 = vsel %vm1324, %v5524, %v5526
        %v5528 = vrot.slane %v5312, 1
        %v5529 = vsel %vm1324, %v5526, %v5528
        %v5530 = vrot.slane %v5313, 1
        %v5531 = vrot.slane %v5314, 1
        %v5532 = vsel %vm1324, %v5530, %v5531
        %v5533 = vrot.slane %v5315, 1
        %v5534 = vsel %vm1324, %v5531, %v5533
        %v5535 = vrot.slane %v5316, 1
        %v5536 = vsel %vm1324, %v5533, %v5535
        %v5537 = vrot.slane %v5317, 1
        %v5538 = vrot.slane %v5318, 1
        %v5539 = vsel %vm1324, %v5537, %v5538
        %v5540 = vrot.slane %v5319, 1
        %v5541 = vsel %vm1324, %v5538, %v5540
        %v5542 = vrot.slane %v5320, 1
        %v5543 = vsel %vm1324, %v5540, %v5542
        %v5544 = vrot.slane %v5321, 1
        %v5545 = vrot.slane %v5322, 1
        %v5546 = vsel %vm1324, %v5544, %v5545
        %v5547 = vrot.slane %v5323, 1
        %v5548 = vsel %vm1324, %v5545, %v5547
        %v5549 = vrot.slane %v5324, 1
        %v5550 = vsel %vm1324, %v5547, %v5549
        %v5551 = vrot.slane %v5325, 1
        %v5552 = vrot.slane %v5326, 1
        %v5553 = vsel %vm1324, %v5551, %v5552
        %v5554 = vrot.slane %v5327, 1
        %v5555 = vsel %vm1324, %v5552, %v5554
        %v5556 = vrot.slane %v5328, 1
        %v5557 = vsel %vm1324, %v5554, %v5556
        %v5558 = vrot.slane %v5329, 1
        %v5559 = vrot.slane %v5330, 1
        %v5560 = vsel %vm1324, %v5558, %v5559
        %v5561 = vrot.slane %v5331, 1
        %v5562 = vsel %vm1324, %v5559, %v5561
        %v5563 = vrot.slane %v5332, 1
        %v5564 = vsel %vm1324, %v5561, %v5563
        %v5565 = vrot.slane %v5333, 1
        %v5566 = vrot.slane %v5334, 1
        %v5567 = vsel %vm1324, %v5565, %v5566
        %v5568 = vrot.slane %v5335, 1
        %v5569 = vsel %vm1324, %v5566, %v5568
        %v5570 = vrot.slane %v5336, 1
        %v5571 = vsel %vm1324, %v5568, %v5570
        %v5572 = vrot.slane %v5337, 1
        %v5573 = vrot.slane %v5338, 1
        %v5574 = vsel %vm1324, %v5572, %v5573
        %v5575 = vrot.slane %v5339, 1
        %v5576 = vsel %vm1324, %v5573, %v5575
        %v5577 = vrot.slane %v5340, 1
        %v5578 = vsel %vm1324, %v5575, %v5577
        %v5579 = vrot.slane %v5341, 1
        %v5580 = vrot.slane %v5342, 1
        %v5581 = vsel %vm1324, %v5579, %v5580
        %v5582 = vrot.slane %v5343, 1
        %v5583 = vsel %vm1324, %v5580, %v5582
        %v5584 = vrot.slane %v5344, 1
        %v5585 = vsel %vm1324, %v5582, %v5584
        %v5586 = vrot.slane %v5345, 1
        %v5587 = vrot.slane %v5346, 1
        %v5588 = vsel %vm1324, %v5586, %v5587
        %v5589 = vrot.slane %v5347, 1
        %v5590 = vsel %vm1324, %v5587, %v5589
        %v5591 = vrot.slane %v5348, 1
        %v5592 = vsel %vm1324, %v5589, %v5591
        %v5593 = vrot.slane %v5349, 1
        %v5594 = vrot.slane %v5350, 1
        %v5595 = vsel %vm1324, %v5593, %v5594
        %v5596 = vrot.slane %v5351, 1
        %v5597 = vsel %vm1324, %v5594, %v5596
        %v5598 = vrot.slane %v5352, 1
        %v5599 = vsel %vm1324, %v5596, %v5598
        %v5600 = vrot.slane %v5353, 1
        %v5601 = vrot.slane %v5354, 1
        %v5602 = vsel %vm1324, %v5600, %v5601
        %v5603 = vrot.slane %v5355, 1
        %v5604 = vsel %vm1324, %v5601, %v5603
        %v5605 = vrot.slane %v5356, 1
        %v5606 = vsel %vm1324, %v5603, %v5605
        %v5607 = vrot.slane %v5357, 1
        %v5608 = vrot.slane %v5358, 1
        %v5609 = vsel %vm1324, %v5607, %v5608
        %v5610 = vrot.slane %v5359, 1
        %v5611 = vsel %vm1324, %v5608, %v5610
        %v5612 = vrot.slane %v5360, 1
        %v5613 = vsel %vm1324, %v5610, %v5612
        %v5614 = vrot.slane %v5361, 1
        %v5615 = vrot.slane %v5362, 1
        %v5616 = vsel %vm1324, %v5614, %v5615
        %v5617 = vrot.slane %v5363, 1
        %v5618 = vsel %vm1324, %v5615, %v5617
        %v5619 = vrot.slane %v5364, 1
        %v5620 = vsel %vm1324, %v5617, %v5619
        %v5621 = vrot.slane %v5365, 1
        %v5622 = vrot.slane %v5366, 1
        %v5623 = vsel %vm1324, %v5621, %v5622
        %v5624 = vrot.slane %v5367, 1
        %v5625 = vsel %vm1324, %v5622, %v5624
        %v5626 = vrot.slane %v5368, 1
        %v5627 = vsel %vm1324, %v5624, %v5626
        %v5628 = vrot.slane %v5369, 1
        %v5629 = vrot.slane %v5370, 1
        %v5630 = vsel %vm1324, %v5628, %v5629
        %v5631 = vrot.slane %v5371, 1
        %v5632 = vsel %vm1324, %v5629, %v5631
        %v5633 = vrot.slane %v5372, 1
        %v5634 = vsel %vm1324, %v5631, %v5633
        %v5635 = vrot.slane %v5373, 1
        %v5636 = vrot.slane %v5374, 1
        %v5637 = vsel %vm1324, %v5635, %v5636
        %v5638 = vrot.slane %v5375, 1
        %v5639 = vsel %vm1324, %v5636, %v5638
        %v5640 = vrot.slane %v5376, 1
        %v5641 = vsel %vm1324, %v5638, %v5640
        %v5642 = vrot.slane %v5377, 1
        %v5643 = vrot.slane %v5378, 1
        %v5644 = vsel %vm1324, %v5642, %v5643
        %v5645 = vrot.slane %v5379, 1
        %v5646 = vsel %vm1324, %v5643, %v5645
        %v5647 = vrot.slane %v5380, 1
        %v5648 = vsel %vm1324, %v5645, %v5647
        %v5649 = vrot.slane %v5381, 1
        %v5650 = vrot.slane %v5382, 1
        %v5651 = vsel %vm1324, %v5649, %v5650
        %v5652 = vrot.slane %v5383, 1
        %v5653 = vsel %vm1324, %v5650, %v5652
        %v5654 = vrot.slane %v5384, 1
        %v5655 = vsel %vm1324, %v5652, %v5654
        %v5656 = vrot.slane %v5385, 1
        %v5657 = vrot.slane %v5386, 1
        %v5658 = vsel %vm1324, %v5656, %v5657
        %v5659 = vrot.slane %v5387, 1
        %v5660 = vsel %vm1324, %v5657, %v5659
        %v5661 = vrot.slane %v5388, 1
        %v5662 = vsel %vm1324, %v5659, %v5661
        %v5663 = vrot.slane %v5389, 1
        %v5664 = vrot.slane %v5390, 1
        %v5665 = vsel %vm1324, %v5663, %v5664
        %v5666 = vrot.slane %v5391, 1
        %v5667 = vsel %vm1324, %v5664, %v5666
        %v5668 = vrot.slane %v5392, 1
        %v5669 = vsel %vm1324, %v5666, %v5668
        %v5670 = vrot.slane %v5393, 1
        %v5671 = vrot.slane %v5394, 1
        %v5672 = vsel %vm1324, %v5670, %v5671
        %v5673 = vrot.slane %v5395, 1
        %v5674 = vsel %vm1324, %v5671, %v5673
        %v5675 = vrot.slane %v5396, 1
        %v5676 = vsel %vm1324, %v5673, %v5675
        %v5677 = vrot.slane %v5397, 1
        %v5678 = vrot.slane %v5398, 1
        %v5679 = vsel %vm1324, %v5677, %v5678
        %v5680 = vrot.slane %v5399, 1
        %v5681 = vsel %vm1324, %v5678, %v5680
        %v5682 = vrot.slane %v5400, 1
        %v5683 = vsel %vm1324, %v5680, %v5682
        %v5684 = vrot.slane %v5401, 1
        %v5685 = vrot.slane %v5402, 1
        %v5686 = vsel %vm1324, %v5684, %v5685
        %v5687 = vrot.slane %v5403, 1
        %v5688 = vsel %vm1324, %v5685, %v5687
        %v5689 = vrot.slane %v5404, 1
        %v5690 = vsel %vm1324, %v5687, %v5689
        %v5769 = vrot.slane %v5301, 2
        %v5770 = vrot.slane %v5302, 2
        %v5771 = vsel %vm1927, %v5769, %v5770
        %v5772 = vrot.slane %v5303, 2
        %v5773 = vsel %vm1927, %v5770, %v5772
        %v5774 = vrot.slane %v5304, 2
        %v5775 = vsel %vm1927, %v5772, %v5774
        %v5776 = vrot.slane %v5305, 2
        %v5777 = vrot.slane %v5306, 2
        %v5778 = vsel %vm1927, %v5776, %v5777
        %v5779 = vrot.slane %v5307, 2
        %v5780 = vsel %vm1927, %v5777, %v5779
        %v5781 = vrot.slane %v5308, 2
        %v5782 = vsel %vm1927, %v5779, %v5781
        %v5783 = vrot.slane %v5309, 2
        %v5784 = vrot.slane %v5310, 2
        %v5785 = vsel %vm1927, %v5783, %v5784
        %v5786 = vrot.slane %v5311, 2
        %v5787 = vsel %vm1927, %v5784, %v5786
        %v5788 = vrot.slane %v5312, 2
        %v5789 = vsel %vm1927, %v5786, %v5788
        %v5790 = vrot.slane %v5313, 2
        %v5791 = vrot.slane %v5314, 2
        %v5792 = vsel %vm1927, %v5790, %v5791
        %v5793 = vrot.slane %v5315, 2
        %v5794 = vsel %vm1927, %v5791, %v5793
        %v5795 = vrot.slane %v5316, 2
        %v5796 = vsel %vm1927, %v5793, %v5795
        %v5797 = vrot.slane %v5317, 2
        %v5798 = vrot.slane %v5318, 2
        %v5799 = vsel %vm1927, %v5797, %v5798
        %v5800 = vrot.slane %v5319, 2
        %v5801 = vsel %vm1927, %v5798, %v5800
        %v5802 = vrot.slane %v5320, 2
        %v5803 = vsel %vm1927, %v5800, %v5802
        %v5804 = vrot.slane %v5321, 2
        %v5805 = vrot.slane %v5322, 2
        %v5806 = vsel %vm1927, %v5804, %v5805
        %v5807 = vrot.slane %v5323, 2
        %v5808 = vsel %vm1927, %v5805, %v5807
        %v5809 = vrot.slane %v5324, 2
        %v5810 = vsel %vm1927, %v5807, %v5809
        %v5811 = vrot.slane %v5325, 2
        %v5812 = vrot.slane %v5326, 2
        %v5813 = vsel %vm1927, %v5811, %v5812
        %v5814 = vrot.slane %v5327, 2
        %v5815 = vsel %vm1927, %v5812, %v5814
        %v5816 = vrot.slane %v5328, 2
        %v5817 = vsel %vm1927, %v5814, %v5816
        %v5818 = vrot.slane %v5329, 2
        %v5819 = vrot.slane %v5330, 2
        %v5820 = vsel %vm1927, %v5818, %v5819
        %v5821 = vrot.slane %v5331, 2
        %v5822 = vsel %vm1927, %v5819, %v5821
        %v5823 = vrot.slane %v5332, 2
        %v5824 = vsel %vm1927, %v5821, %v5823
        %v5825 = vrot.slane %v5333, 2
        %v5826 = vrot.slane %v5334, 2
        %v5827 = vsel %vm1927, %v5825, %v5826
        %v5828 = vrot.slane %v5335, 2
        %v5829 = vsel %vm1927, %v5826, %v5828
        %v5830 = vrot.slane %v5336, 2
        %v5831 = vsel %vm1927, %v5828, %v5830
        %v5832 = vrot.slane %v5337, 2
        %v5833 = vrot.slane %v5338, 2
        %v5834 = vsel %vm1927, %v5832, %v5833
        %v5835 = vrot.slane %v5339, 2
        %v5836 = vsel %vm1927, %v5833, %v5835
        %v5837 = vrot.slane %v5340, 2
        %v5838 = vsel %vm1927, %v5835, %v5837
        %v5839 = vrot.slane %v5341, 2
        %v5840 = vrot.slane %v5342, 2
        %v5841 = vsel %vm1927, %v5839, %v5840
        %v5842 = vrot.slane %v5343, 2
        %v5843 = vsel %vm1927, %v5840, %v5842
        %v5844 = vrot.slane %v5344, 2
        %v5845 = vsel %vm1927, %v5842, %v5844
        %v5846 = vrot.slane %v5345, 2
        %v5847 = vrot.slane %v5346, 2
        %v5848 = vsel %vm1927, %v5846, %v5847
        %v5849 = vrot.slane %v5347, 2
        %v5850 = vsel %vm1927, %v5847, %v5849
        %v5851 = vrot.slane %v5348, 2
        %v5852 = vsel %vm1927, %v5849, %v5851
        %v5853 = vrot.slane %v5349, 2
        %v5854 = vrot.slane %v5350, 2
        %v5855 = vsel %vm1927, %v5853, %v5854
        %v5856 = vrot.slane %v5351, 2
        %v5857 = vsel %vm1927, %v5854, %v5856
        %v5858 = vrot.slane %v5352, 2
        %v5859 = vsel %vm1927, %v5856, %v5858
        %v5860 = vrot.slane %v5353, 2
        %v5861 = vrot.slane %v5354, 2
        %v5862 = vsel %vm1927, %v5860, %v5861
        %v5863 = vrot.slane %v5355, 2
        %v5864 = vsel %vm1927, %v5861, %v5863
        %v5865 = vrot.slane %v5356, 2
        %v5866 = vsel %vm1927, %v5863, %v5865
        %v5867 = vrot.slane %v5357, 2
        %v5868 = vrot.slane %v5358, 2
        %v5869 = vsel %vm1927, %v5867, %v5868
        %v5870 = vrot.slane %v5359, 2
        %v5871 = vsel %vm1927, %v5868, %v5870
        %v5872 = vrot.slane %v5360, 2
        %v5873 = vsel %vm1927, %v5870, %v5872
        %v5874 = vrot.slane %v5361, 2
        %v5875 = vrot.slane %v5362, 2
        %v5876 = vsel %vm1927, %v5874, %v5875
        %v5877 = vrot.slane %v5363, 2
        %v5878 = vsel %vm1927, %v5875, %v5877
        %v5879 = vrot.slane %v5364, 2
        %v5880 = vsel %vm1927, %v5877, %v5879
        %v5881 = vrot.slane %v5365, 2
        %v5882 = vrot.slane %v5366, 2
        %v5883 = vsel %vm1927, %v5881, %v5882
        %v5884 = vrot.slane %v5367, 2
        %v5885 = vsel %vm1927, %v5882, %v5884
        %v5886 = vrot.slane %v5368, 2
        %v5887 = vsel %vm1927, %v5884, %v5886
        %v5888 = vrot.slane %v5369, 2
        %v5889 = vrot.slane %v5370, 2
        %v5890 = vsel %vm1927, %v5888, %v5889
        %v5891 = vrot.slane %v5371, 2
        %v5892 = vsel %vm1927, %v5889, %v5891
        %v5893 = vrot.slane %v5372, 2
        %v5894 = vsel %vm1927, %v5891, %v5893
        %v5895 = vrot.slane %v5373, 2
        %v5896 = vrot.slane %v5374, 2
        %v5897 = vsel %vm1927, %v5895, %v5896
        %v5898 = vrot.slane %v5375, 2
        %v5899 = vsel %vm1927, %v5896, %v5898
        %v5900 = vrot.slane %v5376, 2
        %v5901 = vsel %vm1927, %v5898, %v5900
        %v5902 = vrot.slane %v5377, 2
        %v5903 = vrot.slane %v5378, 2
        %v5904 = vsel %vm1927, %v5902, %v5903
        %v5905 = vrot.slane %v5379, 2
        %v5906 = vsel %vm1927, %v5903, %v5905
        %v5907 = vrot.slane %v5380, 2
        %v5908 = vsel %vm1927, %v5905, %v5907
        %v5909 = vrot.slane %v5381, 2
        %v5910 = vrot.slane %v5382, 2
        %v5911 = vsel %vm1927, %v5909, %v5910
        %v5912 = vrot.slane %v5383, 2
        %v5913 = vsel %vm1927, %v5910, %v5912
        %v5914 = vrot.slane %v5384, 2
        %v5915 = vsel %vm1927, %v5912, %v5914
        %v5916 = vrot.slane %v5385, 2
        %v5917 = vrot.slane %v5386, 2
        %v5918 = vsel %vm1927, %v5916, %v5917
        %v5919 = vrot.slane %v5387, 2
        %v5920 = vsel %vm1927, %v5917, %v5919
        %v5921 = vrot.slane %v5388, 2
        %v5922 = vsel %vm1927, %v5919, %v5921
        %v5923 = vrot.slane %v5389, 2
        %v5924 = vrot.slane %v5390, 2
        %v5925 = vsel %vm1927, %v5923, %v5924
        %v5926 = vrot.slane %v5391, 2
        %v5927 = vsel %vm1927, %v5924, %v5926
        %v5928 = vrot.slane %v5392, 2
        %v5929 = vsel %vm1927, %v5926, %v5928
        %v5930 = vrot.slane %v5393, 2
        %v5931 = vrot.slane %v5394, 2
        %v5932 = vsel %vm1927, %v5930, %v5931
        %v5933 = vrot.slane %v5395, 2
        %v5934 = vsel %vm1927, %v5931, %v5933
        %v5935 = vrot.slane %v5396, 2
        %v5936 = vsel %vm1927, %v5933, %v5935
        %v5937 = vrot.slane %v5397, 2
        %v5938 = vrot.slane %v5398, 2
        %v5939 = vsel %vm1927, %v5937, %v5938
        %v5940 = vrot.slane %v5399, 2
        %v5941 = vsel %vm1927, %v5938, %v5940
        %v5942 = vrot.slane %v5400, 2
        %v5943 = vsel %vm1927, %v5940, %v5942
        %v5944 = vrot.slane %v5401, 2
        %v5945 = vrot.slane %v5402, 2
        %v5946 = vsel %vm1927, %v5944, %v5945
        %v5947 = vrot.slane %v5403, 2
        %v5948 = vsel %vm1927, %v5945, %v5947
        %v5949 = vrot.slane %v5404, 2
        %v5950 = vsel %vm1927, %v5947, %v5949
        %v6029 = vld [vmem:[%s3] sm:$0xf]
        %v6030 = vld [vmem:[%s3 + $0x4] sm:$0xf]
        %v6031 = vld [vmem:[%s3 + $0x8] sm:$0xf]
        %v6032 = vld [vmem:[%s3 + $0xc] sm:$0xf]
        %v6033 = vld [vmem:[%s3 + $0x10] sm:$0xf]
        %v6034 = vld [vmem:[%s3 + $0x14] sm:$0xf]
        %v6035 = vld [vmem:[%s3 + $0x18] sm:$0xf]
        %v6036 = vld [vmem:[%s3 + $0x1c] sm:$0xf]
        %v6037 = vld [vmem:[%s3 + $0x20] sm:$0xf]
        %v6038 = vld [vmem:[%s3 + $0x24] sm:$0xf]
        %v6039 = vld [vmem:[%s3 + $0x28] sm:$0xf]
        %v6040 = vld [vmem:[%s3 + $0x2c] sm:$0xf]
        %v6041 = vld [vmem:[%s3 + $0x30] sm:$0xf]
        %v6042 = vld [vmem:[%s3 + $0x34] sm:$0xf]
        %v6043 = vld [vmem:[%s3 + $0x38] sm:$0xf]
        %v6044 = vld [vmem:[%s3 + $0x3c] sm:$0xf]
        %v6045 = vld [vmem:[%s3 + $0x40] sm:$0xf]
        %v6046 = vld [vmem:[%s3 + $0x44] sm:$0xf]
        %v6047 = vld [vmem:[%s3 + $0x48] sm:$0xf]
        %v6048 = vld [vmem:[%s3 + $0x4c] sm:$0xf]
        %v6049 = vld [vmem:[%s3 + $0x50] sm:$0xf]
        %v6050 = vld [vmem:[%s3 + $0x54] sm:$0xf]
        %v6051 = vld [vmem:[%s3 + $0x58] sm:$0xf]
        %v6052 = vld [vmem:[%s3 + $0x5c] sm:$0xf]
        %v6053 = vld [vmem:[%s3 + $0x60] sm:$0xf]
        %v6054 = vld [vmem:[%s3 + $0x64] sm:$0xf]
        %v6055 = vld [vmem:[%s3 + $0x68] sm:$0xf]
        %v6056 = vld [vmem:[%s3 + $0x6c] sm:$0xf]
        %v6057 = vld [vmem:[%s3 + $0x70] sm:$0xf]
        %v6058 = vld [vmem:[%s3 + $0x74] sm:$0xf]
        %v6059 = vld [vmem:[%s3 + $0x78] sm:$0xf]
        %v6060 = vld [vmem:[%s3 + $0x7c] sm:$0xf]
        %v6061 = vld [vmem:[%s3 + $0x80] sm:$0xf]
        %v6062 = vld [vmem:[%s3 + $0x84] sm:$0xf]
        %v6063 = vld [vmem:[%s3 + $0x88] sm:$0xf]
        %v6064 = vld [vmem:[%s3 + $0x8c] sm:$0xf]
        %v6065 = vpack.c.bf16 %v5302, %v5301
        %v6066 = vpack.c.bf16 %v5305, %v5303
        %v6067 = vpack.c.bf16 %v5307, %v5306
        %v6068 = vpack.c.bf16 %v5310, %v5309
        %v6069 = vpack.c.bf16 %v5313, %v5311
        %v6070 = vpack.c.bf16 %v5315, %v5314
        %v6071 = vpack.c.bf16 %v5318, %v5317
        %v6072 = vpack.c.bf16 %v5321, %v5319
        %v6073 = vpack.c.bf16 %v5323, %v5322
        %v6074 = vpack.c.bf16 %v5326, %v5325
        %v6075 = vpack.c.bf16 %v5329, %v5327
        %v6076 = vpack.c.bf16 %v5331, %v5330
        %v6077 = vpack.c.bf16 %v5334, %v5333
        %v6078 = vpack.c.bf16 %v5337, %v5335
        %v6079 = vpack.c.bf16 %v5339, %v5338
        %v6080 = vpack.c.bf16 %v5342, %v5341
        %v6081 = vpack.c.bf16 %v5345, %v5343
        %v6082 = vpack.c.bf16 %v5347, %v5346
        %v6083 = vpack.c.bf16 %v5350, %v5349
        %v6084 = vpack.c.bf16 %v5353, %v5351
        %v6085 = vpack.c.bf16 %v5355, %v5354
        %v6086 = vpack.c.bf16 %v5358, %v5357
        %v6087 = vpack.c.bf16 %v5361, %v5359
        %v6088 = vpack.c.bf16 %v5363, %v5362
        %v6089 = vpack.c.bf16 %v5366, %v5365
        %v6090 = vpack.c.bf16 %v5369, %v5367
        %v6091 = vpack.c.bf16 %v5371, %v5370
        %v6092 = vpack.c.bf16 %v5374, %v5373
        %v6093 = vpack.c.bf16 %v5377, %v5375
        %v6094 = vpack.c.bf16 %v5379, %v5378
        %v6095 = vpack.c.bf16 %v5382, %v5381
        %v6096 = vpack.c.bf16 %v5385, %v5383
        %v6097 = vpack.c.bf16 %v5387, %v5386
        %v6098 = vpack.c.bf16 %v5390, %v5389
        %v6099 = vpack.c.bf16 %v5393, %v5391
        %v6100 = vpack.c.bf16 %v5395, %v5394
        %v6101 = vpack.c.bf16 %v5513, %v5511
        %v6102 = vpack.c.bf16 %v5518, %v5515
        %v6103 = vpack.c.bf16 %v5522, %v5520
        %v6104 = vpack.c.bf16 %v5527, %v5525
        %v6105 = vpack.c.bf16 %v5532, %v5529
        %v6106 = vpack.c.bf16 %v5536, %v5534
        %v6107 = vpack.c.bf16 %v5541, %v5539
        %v6108 = vpack.c.bf16 %v5546, %v5543
        %v6109 = vpack.c.bf16 %v5550, %v5548
        %v6110 = vpack.c.bf16 %v5555, %v5553
        %v6111 = vpack.c.bf16 %v5560, %v5557
        %v6112 = vpack.c.bf16 %v5564, %v5562
        %v6113 = vpack.c.bf16 %v5569, %v5567
        %v6114 = vpack.c.bf16 %v5574, %v5571
        %v6115 = vpack.c.bf16 %v5578, %v5576
        %v6116 = vpack.c.bf16 %v5583, %v5581
        %v6117 = vpack.c.bf16 %v5588, %v5585
        %v6118 = vpack.c.bf16 %v5592, %v5590
        %v6119 = vpack.c.bf16 %v5597, %v5595
        %v6120 = vpack.c.bf16 %v5602, %v5599
        %v6121 = vpack.c.bf16 %v5606, %v5604
        %v6122 = vpack.c.bf16 %v5611, %v5609
        %v6123 = vpack.c.bf16 %v5616, %v5613
        %v6124 = vpack.c.bf16 %v5620, %v5618
        %v6125 = vpack.c.bf16 %v5625, %v5623
        %v6126 = vpack.c.bf16 %v5630, %v5627
        %v6127 = vpack.c.bf16 %v5634, %v5632
        %v6128 = vpack.c.bf16 %v5639, %v5637
        %v6129 = vpack.c.bf16 %v5644, %v5641
        %v6130 = vpack.c.bf16 %v5648, %v5646
        %v6131 = vpack.c.bf16 %v5653, %v5651
        %v6132 = vpack.c.bf16 %v5658, %v5655
        %v6133 = vpack.c.bf16 %v5662, %v5660
        %v6134 = vpack.c.bf16 %v5667, %v5665
        %v6135 = vpack.c.bf16 %v5672, %v5669
        %v6136 = vpack.c.bf16 %v5676, %v5674
        %v6141 = vunpack.c.l.b16 %v6033
        %v6142 = vunpack.c.l.b16 %v6034
        %v6143 = vunpack.c.l.b16 %v6035
        %v6144 = vunpack.c.l.b16 %v6036
        %v6145 = vpack.c.b16 %v6142, %v6141
        %v6146 = vpack.c.b16 %v6144, %v6143
        %vm6149 = vcmask 261120
        %v6151 = vsel %vm6149, %v6101, 0
        %v6154 = vsel %vm6149, %v6102, 0
        %v6157 = vsel %vm6149, %v6103, 0
        %v6160 = vsel %vm6149, %v6104, 0
        %v6163 = vsel %vm6149, %v6105, 0
        %v6166 = vsel %vm6149, %v6106, 0
        %v6169 = vsel %vm6149, %v6107, 0
        %v6172 = vsel %vm6149, %v6108, 0
        %v6175 = vsel %vm6149, %v6109, 0
        %v6178 = vsel %vm6149, %v6110, 0
        %v6181 = vsel %vm6149, %v6111, 0
        %v6184 = vsel %vm6149, %v6112, 0
        %v6187 = vsel %vm6149, %v6113, 0
        %v6190 = vsel %vm6149, %v6114, 0
        %v6193 = vsel %vm6149, %v6115, 0
        %v6196 = vsel %vm6149, %v6116, 0
        %v6199 = vsel %vm6149, %v6117, 0
        %v6202 = vsel %vm6149, %v6118, 0
        %v6205 = vsel %vm6149, %v6119, 0
        %v6208 = vsel %vm6149, %v6120, 0
        %v6211 = vsel %vm6149, %v6121, 0
        %v6214 = vsel %vm6149, %v6122, 0
        %v6217 = vsel %vm6149, %v6123, 0
        %v6220 = vsel %vm6149, %v6124, 0
        %v6223 = vsel %vm6149, %v6125, 0
        %v6226 = vsel %vm6149, %v6126, 0
        %v6229 = vsel %vm6149, %v6127, 0
        %v6232 = vsel %vm6149, %v6128, 0
        %v6235 = vsel %vm6149, %v6129, 0
        %v6238 = vsel %vm6149, %v6130, 0
        %v6241 = vsel %vm6149, %v6131, 0
        %v6244 = vsel %vm6149, %v6132, 0
        %v6247 = vsel %vm6149, %v6133, 0
        %v6250 = vsel %vm6149, %v6134, 0
        %v6253 = vsel %vm6149, %v6135, 0
        %v6256 = vsel %vm6149, %v6136, 0
        %6258 = vmatprep.subr.bf16.mxu0 0
        %6259 = vmatpush1.bf16.msra.mxu0 %v6145
        %6260 = vmatprep.subr.bf16.mxu0 0
        %6261 = vmatpush1.bf16.msra.mxu0 %v6146
        %6262 = vmatprep.subr.bf16.mxu0 0
        %6263 = vmatpush1.bf16.msra.mxu0 0
        %6264 = vmatprep.subr.bf16.mxu0 0
        %6265 = vmatpush1.bf16.msra.mxu0 0
        %6266 = vmatprep.subr.bf16.mxu0 0
        %6267 = vmatpush1.bf16.msra.mxu0 0
        %6268 = vmatprep.subr.bf16.mxu0 0
        %6269 = vmatpush1.bf16.msra.mxu0 0
        %6270 = vmatprep.subr.bf16.mxu0 0
        %6271 = vmatpush1.bf16.msra.mxu0 0
        %6272 = vmatprep.subr.bf16.mxu0 0
        %6273 = vmatpush1.bf16.msra.mxu0 0
        %6274 = vmatprep.subr.bf16.mxu0 0
        %6275 = vmatpush1.bf16.msra.mxu0 0
        %6276 = vmatprep.subr.bf16.mxu0 0
        %6277 = vmatpush1.bf16.msra.mxu0 0
        %6278 = vmatprep.subr.bf16.mxu0 0
        %6279 = vmatpush1.bf16.msra.mxu0 0
        %6280 = vmatprep.subr.bf16.mxu0 0
        %6281 = vmatpush1.bf16.msra.mxu0 0
        %6282 = vmatprep.subr.bf16.mxu0 0
        %6283 = vmatpush1.bf16.msra.mxu0 0
        %6284 = vmatprep.subr.bf16.mxu0 0
        %6285 = vmatpush1.bf16.msra.mxu0 0
        %6286 = vmatprep.subr.bf16.mxu0 0
        %6287 = vmatpush1.bf16.msra.mxu0 0
        %6288 = vmatprep.subr.bf16.mxu0 0
        %6289 = vmatpush1.bf16.msra.mxu0 0
        %6290 = vmatprep.mubr.bf16.mxu0 0
        %6291 = vmatmul.mubr.bf16.gmra.mrb[0].mxu0 %v6151
        %v6292 = vpop.f32.mrb[0].mxu0
        %v6293 = vadd.f32 0.0, %v6292
        %v6294 = vpop.f32.mrb[0].mxu0
        %v6295 = vpop.f32.mrb[0].mxu0
        %v6296 = vadd.f32 0.0, %v6295
        %v6297 = vpop.f32.mrb[0].mxu0
        %6298 = vmatprep.mubr.bf16.mxu0 0
        %6299 = vmatmul.mubr.bf16.gmra.mrb[0].mxu0 %v6154
        %v6300 = vpop.f32.mrb[0].mxu0
        %v6301 = vadd.f32 0.0, %v6300
        %v6302 = vpop.f32.mrb[0].mxu0
        %v6303 = vpop.f32.mrb[0].mxu0
        %v6304 = vadd.f32 0.0, %v6303
        %v6305 = vpop.f32.mrb[0].mxu0
        %6306 = vmatprep.mubr.bf16.mxu0 0
        %6307 = vmatmul.mubr.bf16.gmra.mrb[0].mxu0 %v6157
        %v6308 = vpop.f32.mrb[0].mxu0
        %v6309 = vadd.f32 0.0, %v6308
        %v6310 = vpop.f32.mrb[0].mxu0
        %v6311 = vpop.f32.mrb[0].mxu0
        %v6312 = vadd.f32 0.0, %v6311
        %v6313 = vpop.f32.mrb[0].mxu0
        %6314 = vmatprep.mubr.bf16.mxu0 0
        %6315 = vmatmul.mubr.bf16.gmra.mrb[0].mxu0 %v6160
        %v6316 = vpop.f32.mrb[0].mxu0
        %v6317 = vadd.f32 0.0, %v6316
        %v6318 = vpop.f32.mrb[0].mxu0
        %v6319 = vpop.f32.mrb[0].mxu0
        %v6320 = vadd.f32 0.0, %v6319
        %v6321 = vpop.f32.mrb[0].mxu0
        %6322 = vmatprep.mubr.bf16.mxu0 0
        %6323 = vmatmul.mubr.bf16.gmra.mrb[0].mxu0 %v6163
        %v6324 = vpop.f32.mrb[0].mxu0
        %v6325 = vadd.f32 0.0, %v6324
        %v6326 = vpop.f32.mrb[0].mxu0
        %v6327 = vpop.f32.mrb[0].mxu0
        %v6328 = vadd.f32 0.0, %v6327
        %v6329 = vpop.f32.mrb[0].mxu0
        %6330 = vmatprep.mubr.bf16.mxu0 0
        %6331 = vmatmul.mubr.bf16.gmra.mrb[0].mxu0 %v6166
        %v6332 = vpop.f32.mrb[0].mxu0
        %v6333 = vadd.f32 0.0, %v6332
        %v6334 = vpop.f32.mrb[0].mxu0
        %v6335 = vpop.f32.mrb[0].mxu0
        %v6336 = vadd.f32 0.0, %v6335
        %v6337 = vpop.f32.mrb[0].mxu0
        %6338 = vmatprep.mubr.bf16.mxu0 0
        %6339 = vmatmul.mubr.bf16.gmra.mrb[0].mxu0 %v6169
        %v6340 = vpop.f32.mrb[0].mxu0
        %v6341 = vadd.f32 0.0, %v6340
        %v6342 = vpop.f32.mrb[0].mxu0
        %v6343 = vpop.f32.mrb[0].mxu0
        %v6344 = vadd.f32 0.0, %v6343
        %v6345 = vpop.f32.mrb[0].mxu0
        %6346 = vmatprep.mubr.bf16.mxu0 0
        %6347 = vmatmul.mubr.bf16.gmra.mrb[0].mxu0 %v6172
        %v6348 = vpop.f32.mrb[0].mxu0
        %v6349 = vadd.f32 0.0, %v6348
        %v6350 = vpop.f32.mrb[0].mxu0
        %v6351 = vpop.f32.mrb[0].mxu0
        %v6352 = vadd.f32 0.0, %v6351
        %v6353 = vpop.f32.mrb[0].mxu0
        %6354 = vmatprep.mubr.bf16.mxu0 0
        %6355 = vmatmul.mubr.bf16.gmra.mrb[0].mxu0 %v6175
        %v6356 = vpop.f32.mrb[0].mxu0
        %v6357 = vadd.f32 0.0, %v6356
        %v6358 = vpop.f32.mrb[0].mxu0
        %v6359 = vpop.f32.mrb[0].mxu0
        %v6360 = vadd.f32 0.0, %v6359
        %v6361 = vpop.f32.mrb[0].mxu0
        %6362 = vmatprep.mubr.bf16.mxu0 0
        %6363 = vmatmul.mubr.bf16.gmra.mrb[0].mxu0 %v6178
        %v6364 = vpop.f32.mrb[0].mxu0
        %v6365 = vadd.f32 0.0, %v6364
        %v6366 = vpop.f32.mrb[0].mxu0
        %v6367 = vpop.f32.mrb[0].mxu0
        %v6368 = vadd.f32 0.0, %v6367
        %v6369 = vpop.f32.mrb[0].mxu0
        %6370 = vmatprep.mubr.bf16.mxu0 0
        %6371 = vmatmul.mubr.bf16.gmra.mrb[0].mxu0 %v6181
        %v6372 = vpop.f32.mrb[0].mxu0
        %v6373 = vadd.f32 0.0, %v6372
        %v6374 = vpop.f32.mrb[0].mxu0
        %v6375 = vpop.f32.mrb[0].mxu0
        %v6376 = vadd.f32 0.0, %v6375
        %v6377 = vpop.f32.mrb[0].mxu0
        %6378 = vmatprep.mubr.bf16.mxu0 0
        %6379 = vmatmul.mubr.bf16.gmra.mrb[0].mxu0 %v6184
        %v6380 = vpop.f32.mrb[0].mxu0
        %v6381 = vadd.f32 0.0, %v6380
        %v6382 = vpop.f32.mrb[0].mxu0
        %v6383 = vpop.f32.mrb[0].mxu0
        %v6384 = vadd.f32 0.0, %v6383
        %v6385 = vpop.f32.mrb[0].mxu0
        %6386 = vmatprep.mubr.bf16.mxu0 0
        %6387 = vmatmul.mubr.bf16.gmra.mrb[0].mxu0 %v6187
        %v6388 = vpop.f32.mrb[0].mxu0
        %v6389 = vadd.f32 0.0, %v6388
        %v6390 = vpop.f32.mrb[0].mxu0
        %v6391 = vpop.f32.mrb[0].mxu0
        %v6392 = vadd.f32 0.0, %v6391
        %v6393 = vpop.f32.mrb[0].mxu0
        %6394 = vmatprep.mubr.bf16.mxu0 0
        %6395 = vmatmul.mubr.bf16.gmra.mrb[0].mxu0 %v6190
        %v6396 = vpop.f32.mrb[0].mxu0
        %v6397 = vadd.f32 0.0, %v6396
        %v6398 = vpop.f32.mrb[0].mxu0
        %v6399 = vpop.f32.mrb[0].mxu0
        %v6400 = vadd.f32 0.0, %v6399
        %v6401 = vpop.f32.mrb[0].mxu0
        %6402 = vmatprep.mubr.bf16.mxu0 0
        %6403 = vmatmul.mubr.bf16.gmra.mrb[0].mxu0 %v6193
        %v6404 = vpop.f32.mrb[0].mxu0
        %v6405 = vadd.f32 0.0, %v6404
        %v6406 = vpop.f32.mrb[0].mxu0
        %v6407 = vpop.f32.mrb[0].mxu0
        %v6408 = vadd.f32 0.0, %v6407
        %v6409 = vpop.f32.mrb[0].mxu0
        %6410 = vmatprep.mubr.bf16.mxu0 0
        %6411 = vmatmul.mubr.bf16.gmra.mrb[0].mxu0 %v6196
        %v6412 = vpop.f32.mrb[0].mxu0
        %v6413 = vadd.f32 0.0, %v6412
        %v6414 = vpop.f32.mrb[0].mxu0
        %v6415 = vpop.f32.mrb[0].mxu0
        %v6416 = vadd.f32 0.0, %v6415
        %v6417 = vpop.f32.mrb[0].mxu0
        %6418 = vmatprep.mubr.bf16.mxu0 0
        %6419 = vmatmul.mubr.bf16.gmra.mrb[0].mxu0 %v6199
        %v6420 = vpop.f32.mrb[0].mxu0
        %v6421 = vadd.f32 0.0, %v6420
        %v6422 = vpop.f32.mrb[0].mxu0
        %v6423 = vpop.f32.mrb[0].mxu0
        %v6424 = vadd.f32 0.0, %v6423
        %v6425 = vpop.f32.mrb[0].mxu0
        %6426 = vmatprep.mubr.bf16.mxu0 0
        %6427 = vmatmul.mubr.bf16.gmra.mrb[0].mxu0 %v6202
        %v6428 = vpop.f32.mrb[0].mxu0
        %v6429 = vadd.f32 0.0, %v6428
        %v6430 = vpop.f32.mrb[0].mxu0
        %v6431 = vpop.f32.mrb[0].mxu0
        %v6432 = vadd.f32 0.0, %v6431
        %v6433 = vpop.f32.mrb[0].mxu0
        %6434 = vmatprep.mubr.bf16.mxu0 0
        %6435 = vmatmul.mubr.bf16.gmra.mrb[0].mxu0 %v6205
        %v6436 = vpop.f32.mrb[0].mxu0
        %v6437 = vadd.f32 0.0, %v6436
        %v6438 = vpop.f32.mrb[0].mxu0
        %v6439 = vpop.f32.mrb[0].mxu0
        %v6440 = vadd.f32 0.0, %v6439
        %v6441 = vpop.f32.mrb[0].mxu0
        %6442 = vmatprep.mubr.bf16.mxu0 0
        %6443 = vmatmul.mubr.bf16.gmra.mrb[0].mxu0 %v6208
        %v6444 = vpop.f32.mrb[0].mxu0
        %v6445 = vadd.f32 0.0, %v6444
        %v6446 = vpop.f32.mrb[0].mxu0
        %v6447 = vpop.f32.mrb[0].mxu0
        %v6448 = vadd.f32 0.0, %v6447
        %v6449 = vpop.f32.mrb[0].mxu0
        %6450 = vmatprep.mubr.bf16.mxu0 0
        %6451 = vmatmul.mubr.bf16.gmra.mrb[0].mxu0 %v6211
        %v6452 = vpop.f32.mrb[0].mxu0
        %v6453 = vadd.f32 0.0, %v6452
        %v6454 = vpop.f32.mrb[0].mxu0
        %v6455 = vpop.f32.mrb[0].mxu0
        %v6456 = vadd.f32 0.0, %v6455
        %v6457 = vpop.f32.mrb[0].mxu0
        %6458 = vmatprep.mubr.bf16.mxu0 0
        %6459 = vmatmul.mubr.bf16.gmra.mrb[0].mxu0 %v6214
        %v6460 = vpop.f32.mrb[0].mxu0
        %v6461 = vadd.f32 0.0, %v6460
        %v6462 = vpop.f32.mrb[0].mxu0
        %v6463 = vpop.f32.mrb[0].mxu0
        %v6464 = vadd.f32 0.0, %v6463
        %v6465 = vpop.f32.mrb[0].mxu0
        %6466 = vmatprep.mubr.bf16.mxu0 0
        %6467 = vmatmul.mubr.bf16.gmra.mrb[0].mxu0 %v6217
        %v6468 = vpop.f32.mrb[0].mxu0
        %v6469 = vadd.f32 0.0, %v6468
        %v6470 = vpop.f32.mrb[0].mxu0
        %v6471 = vpop.f32.mrb[0].mxu0
        %v6472 = vadd.f32 0.0, %v6471
        %v6473 = vpop.f32.mrb[0].mxu0
        %6474 = vmatprep.mubr.bf16.mxu0 0
        %6475 = vmatmul.mubr.bf16.gmra.mrb[0].mxu0 %v6220
        %v6476 = vpop.f32.mrb[0].mxu0
        %v6477 = vadd.f32 0.0, %v6476
        %v6478 = vpop.f32.mrb[0].mxu0
        %v6479 = vpop.f32.mrb[0].mxu0
        %v6480 = vadd.f32 0.0, %v6479
        %v6481 = vpop.f32.mrb[0].mxu0
        %6482 = vmatprep.mubr.bf16.mxu0 0
        %6483 = vmatmul.mubr.bf16.gmra.mrb[0].mxu0 %v6223
        %v6484 = vpop.f32.mrb[0].mxu0
        %v6485 = vadd.f32 0.0, %v6484
        %v6486 = vpop.f32.mrb[0].mxu0
        %v6487 = vpop.f32.mrb[0].mxu0
        %v6488 = vadd.f32 0.0, %v6487
        %v6489 = vpop.f32.mrb[0].mxu0
        %6490 = vmatprep.mubr.bf16.mxu0 0
        %6491 = vmatmul.mubr.bf16.gmra.mrb[0].mxu0 %v6226
        %v6492 = vpop.f32.mrb[0].mxu0
        %v6493 = vadd.f32 0.0, %v6492
        %v6494 = vpop.f32.mrb[0].mxu0
        %v6495 = vpop.f32.mrb[0].mxu0
        %v6496 = vadd.f32 0.0, %v6495
        %v6497 = vpop.f32.mrb[0].mxu0
        %6498 = vmatprep.mubr.bf16.mxu0 0
        %6499 = vmatmul.mubr.bf16.gmra.mrb[0].mxu0 %v6229
        %v6500 = vpop.f32.mrb[0].mxu0
        %v6501 = vadd.f32 0.0, %v6500
        %v6502 = vpop.f32.mrb[0].mxu0
        %v6503 = vpop.f32.mrb[0].mxu0
        %v6504 = vadd.f32 0.0, %v6503
        %v6505 = vpop.f32.mrb[0].mxu0
        %6506 = vmatprep.mubr.bf16.mxu0 0
        %6507 = vmatmul.mubr.bf16.gmra.mrb[0].mxu0 %v6232
        %v6508 = vpop.f32.mrb[0].mxu0
        %v6509 = vadd.f32 0.0, %v6508
        %v6510 = vpop.f32.mrb[0].mxu0
        %v6511 = vpop.f32.mrb[0].mxu0
        %v6512 = vadd.f32 0.0, %v6511
        %v6513 = vpop.f32.mrb[0].mxu0
        %6514 = vmatprep.mubr.bf16.mxu0 0
        %6515 = vmatmul.mubr.bf16.gmra.mrb[0].mxu0 %v6235
        %v6516 = vpop.f32.mrb[0].mxu0
        %v6517 = vadd.f32 0.0, %v6516
        %v6518 = vpop.f32.mrb[0].mxu0
        %v6519 = vpop.f32.mrb[0].mxu0
        %v6520 = vadd.f32 0.0, %v6519
        %v6521 = vpop.f32.mrb[0].mxu0
        %6522 = vmatprep.mubr.bf16.mxu0 0
        %6523 = vmatmul.mubr.bf16.gmra.mrb[0].mxu0 %v6238
        %v6524 = vpop.f32.mrb[0].mxu0
        %v6525 = vadd.f32 0.0, %v6524
        %v6526 = vpop.f32.mrb[0].mxu0
        %v6527 = vpop.f32.mrb[0].mxu0
        %v6528 = vadd.f32 0.0, %v6527
        %v6529 = vpop.f32.mrb[0].mxu0
        %6530 = vmatprep.mubr.bf16.mxu0 0
        %6531 = vmatmul.mubr.bf16.gmra.mrb[0].mxu0 %v6241
        %v6532 = vpop.f32.mrb[0].mxu0
        %v6533 = vadd.f32 0.0, %v6532
        %v6534 = vpop.f32.mrb[0].mxu0
        %v6535 = vpop.f32.mrb[0].mxu0
        %v6536 = vadd.f32 0.0, %v6535
        %v6537 = vpop.f32.mrb[0].mxu0
        %6538 = vmatprep.mubr.bf16.mxu0 0
        %6539 = vmatmul.mubr.bf16.gmra.mrb[0].mxu0 %v6244
        %v6540 = vpop.f32.mrb[0].mxu0
        %v6541 = vadd.f32 0.0, %v6540
        %v6542 = vpop.f32.mrb[0].mxu0
        %v6543 = vpop.f32.mrb[0].mxu0
        %v6544 = vadd.f32 0.0, %v6543
        %v6545 = vpop.f32.mrb[0].mxu0
        %6546 = vmatprep.mubr.bf16.mxu0 0
        %6547 = vmatmul.mubr.bf16.gmra.mrb[0].mxu0 %v6247
        %v6548 = vpop.f32.mrb[0].mxu0
        %v6549 = vadd.f32 0.0, %v6548
        %v6550 = vpop.f32.mrb[0].mxu0
        %v6551 = vpop.f32.mrb[0].mxu0
        %v6552 = vadd.f32 0.0, %v6551
        %v6553 = vpop.f32.mrb[0].mxu0
        %6554 = vmatprep.mubr.bf16.mxu0 0
        %6555 = vmatmul.mubr.bf16.gmra.mrb[0].mxu0 %v6250
        %v6556 = vpop.f32.mrb[0].mxu0
        %v6557 = vadd.f32 0.0, %v6556
        %v6558 = vpop.f32.mrb[0].mxu0
        %v6559 = vpop.f32.mrb[0].mxu0
        %v6560 = vadd.f32 0.0, %v6559
        %v6561 = vpop.f32.mrb[0].mxu0
        %6562 = vmatprep.mubr.bf16.mxu0 0
        %6563 = vmatmul.mubr.bf16.gmra.mrb[0].mxu0 %v6253
        %v6564 = vpop.f32.mrb[0].mxu0
        %v6565 = vadd.f32 0.0, %v6564
        %v6566 = vpop.f32.mrb[0].mxu0
        %v6567 = vpop.f32.mrb[0].mxu0
        %v6568 = vadd.f32 0.0, %v6567
        %v6569 = vpop.f32.mrb[0].mxu0
        %6570 = vmatprep.mubr.bf16.mxu0 0
        %6571 = vmatmul.mubr.bf16.gmra.mrb[0].mxu0 %v6256
        %v6572 = vpop.f32.mrb[0].mxu0
        %v6573 = vadd.f32 0.0, %v6572
        %v6574 = vpop.f32.mrb[0].mxu0
        %v6575 = vpop.f32.mrb[0].mxu0
        %v6576 = vadd.f32 0.0, %v6575
        %v6577 = vpop.f32.mrb[0].mxu0
        %6578 = vdwg.mxu0
        %v6583 = vunpack.c.l.b16 %v6029
        %v6584 = vunpack.c.l.b16 %v6030
        %v6585 = vunpack.c.l.b16 %v6031
        %v6586 = vunpack.c.l.b16 %v6032
        %v6587 = vpack.c.b16 %v6584, %v6583
        %v6588 = vpack.c.b16 %v6586, %v6585
        %v6592 = vsel %vm6149, %v6065, 0
        %v6595 = vsel %vm6149, %v6066, 0
        %v6598 = vsel %vm6149, %v6067, 0
        %v6601 = vsel %vm6149, %v6068, 0
        %v6604 = vsel %vm6149, %v6069, 0
        %v6607 = vsel %vm6149, %v6070, 0
        %v6610 = vsel %vm6149, %v6071, 0
        %v6613 = vsel %vm6149, %v6072, 0
        %v6616 = vsel %vm6149, %v6073, 0
        %v6619 = vsel %vm6149, %v6074, 0
        %v6622 = vsel %vm6149, %v6075, 0
        %v6625 = vsel %vm6149, %v6076, 0
        %v6628 = vsel %vm6149, %v6077, 0
        %v6631 = vsel %vm6149, %v6078, 0
        %v6634 = vsel %vm6149, %v6079, 0
        %v6637 = vsel %vm6149, %v6080, 0
        %v6640 = vsel %vm6149, %v6081, 0
        %v6643 = vsel %vm6149, %v6082, 0
        %v6646 = vsel %vm6149, %v6083, 0
        %v6649 = vsel %vm6149, %v6084, 0
        %v6652 = vsel %vm6149, %v6085, 0
        %v6655 = vsel %vm6149, %v6086, 0
        %v6658 = vsel %vm6149, %v6087, 0
        %v6661 = vsel %vm6149, %v6088, 0
        %v6664 = vsel %vm6149, %v6089, 0
        %v6667 = vsel %vm6149, %v6090, 0
        %v6670 = vsel %vm6149, %v6091, 0
        %v6673 = vsel %vm6149, %v6092, 0
        %v6676 = vsel %vm6149, %v6093, 0
        %v6679 = vsel %vm6149, %v6094, 0
        %v6682 = vsel %vm6149, %v6095, 0
        %v6685 = vsel %vm6149, %v6096, 0
        %v6688 = vsel %vm6149, %v6097, 0
        %v6691 = vsel %vm6149, %v6098, 0
        %v6694 = vsel %vm6149, %v6099, 0
        %v6697 = vsel %vm6149, %v6100, 0
        %6699 = vmatprep.subr.bf16.mxu0 0
        %6700 = vmatpush1.bf16.msra.mxu0 %v6587
        %6701 = vmatprep.subr.bf16.mxu0 0
        %6702 = vmatpush1.bf16.msra.mxu0 %v6588
        %6703 = vmatprep.subr.bf16.mxu0 0
        %6704 = vmatpush1.bf16.msra.mxu0 0
        %6705 = vmatprep.subr.bf16.mxu0 0
        %6706 = vmatpush1.bf16.msra.mxu0 0
        %6707 = vmatprep.subr.bf16.mxu0 0
        %6708 = vmatpush1.bf16.msra.mxu0 0
        %6709 = vmatprep.subr.bf16.mxu0 0
        %6710 = vmatpush1.bf16.msra.mxu0 0
        %6711 = vmatprep.subr.bf16.mxu0 0
        %6712 = vmatpush1.bf16.msra.mxu0 0
        %6713 = vmatprep.subr.bf16.mxu0 0
        %6714 = vmatpush1.bf16.msra.mxu0 0
        %6715 = vmatprep.subr.bf16.mxu0 0
        %6716 = vmatpush1.bf16.msra.mxu0 0
        %6717 = vmatprep.subr.bf16.mxu0 0
        %6718 = vmatpush1.bf16.msra.mxu0 0
        %6719 = vmatprep.subr.bf16.mxu0 0
        %6720 = vmatpush1.bf16.msra.mxu0 0
        %6721 = vmatprep.subr.bf16.mxu0 0
        %6722 = vmatpush1.bf16.msra.mxu0 0
        %6723 = vmatprep.subr.bf16.mxu0 0
        %6724 = vmatpush1.bf16.msra.mxu0 0
        %6725 = vmatprep.subr.bf16.mxu0 0
        %6726 = vmatpush1.bf16.msra.mxu0 0
        %6727 = vmatprep.subr.bf16.mxu0 0
        %6728 = vmatpush1.bf16.msra.mxu0 0
        %6729 = vmatprep.subr.bf16.mxu0 0
        %6730 = vmatpush1.bf16.msra.mxu0 0
        %6731 = vmatprep.mubr.bf16.mxu0 0
        %6732 = vmatmul.mubr.bf16.gmra.mrb[0].mxu0 %v6592
        %v6733 = vpop.f32.mrb[0].mxu0
        %v6734 = vadd.f32 %v6293, %v6733
        %v6735 = vpop.f32.mrb[0].mxu0
        %v6736 = vpop.f32.mrb[0].mxu0
        %v6737 = vadd.f32 %v6296, %v6736
        %v6738 = vpop.f32.mrb[0].mxu0
        %6739 = vmatprep.mubr.bf16.mxu0 0
        %6740 = vmatmul.mubr.bf16.gmra.mrb[0].mxu0 %v6595
        %v6741 = vpop.f32.mrb[0].mxu0
        %v6742 = vadd.f32 %v6301, %v6741
        %v6743 = vpop.f32.mrb[0].mxu0
        %v6744 = vpop.f32.mrb[0].mxu0
        %v6745 = vadd.f32 %v6304, %v6744
        %v6746 = vpop.f32.mrb[0].mxu0
        %6747 = vmatprep.mubr.bf16.mxu0 0
        %6748 = vmatmul.mubr.bf16.gmra.mrb[0].mxu0 %v6598
        %v6749 = vpop.f32.mrb[0].mxu0
        %v6750 = vadd.f32 %v6309, %v6749
        %v6751 = vpop.f32.mrb[0].mxu0
        %v6752 = vpop.f32.mrb[0].mxu0
        %v6753 = vadd.f32 %v6312, %v6752
        %v6754 = vpop.f32.mrb[0].mxu0
        %6755 = vmatprep.mubr.bf16.mxu0 0
        %6756 = vmatmul.mubr.bf16.gmra.mrb[0].mxu0 %v6601
        %v6757 = vpop.f32.mrb[0].mxu0
        %v6758 = vadd.f32 %v6317, %v6757
        %v6759 = vpop.f32.mrb[0].mxu0
        %v6760 = vpop.f32.mrb[0].mxu0
        %v6761 = vadd.f32 %v6320, %v6760
        %v6762 = vpop.f32.mrb[0].mxu0
        %6763 = vmatprep.mubr.bf16.mxu0 0
        %6764 = vmatmul.mubr.bf16.gmra.mrb[0].mxu0 %v6604
        %v6765 = vpop.f32.mrb[0].mxu0
        %v6766 = vadd.f32 %v6325, %v6765
        %v6767 = vpop.f32.mrb[0].mxu0
        %v6768 = vpop.f32.mrb[0].mxu0
        %v6769 = vadd.f32 %v6328, %v6768
        %v6770 = vpop.f32.mrb[0].mxu0
        %6771 = vmatprep.mubr.bf16.mxu0 0
        %6772 = vmatmul.mubr.bf16.gmra.mrb[0].mxu0 %v6607
        %v6773 = vpop.f32.mrb[0].mxu0
        %v6774 = vadd.f32 %v6333, %v6773
        %v6775 = vpop.f32.mrb[0].mxu0
        %v6776 = vpop.f32.mrb[0].mxu0
        %v6777 = vadd.f32 %v6336, %v6776
        %v6778 = vpop.f32.mrb[0].mxu0
        %6779 = vmatprep.mubr.bf16.mxu0 0
        %6780 = vmatmul.mubr.bf16.gmra.mrb[0].mxu0 %v6610
        %v6781 = vpop.f32.mrb[0].mxu0
        %v6782 = vadd.f32 %v6341, %v6781
        %v6783 = vpop.f32.mrb[0].mxu0
        %v6784 = vpop.f32.mrb[0].mxu0
        %v6785 = vadd.f32 %v6344, %v6784
        %v6786 = vpop.f32.mrb[0].mxu0
        %6787 = vmatprep.mubr.bf16.mxu0 0
        %6788 = vmatmul.mubr.bf16.gmra.mrb[0].mxu0 %v6613
        %v6789 = vpop.f32.mrb[0].mxu0
        %v6790 = vadd.f32 %v6349, %v6789
        %v6791 = vpop.f32.mrb[0].mxu0
        %v6792 = vpop.f32.mrb[0].mxu0
        %v6793 = vadd.f32 %v6352, %v6792
        %v6794 = vpop.f32.mrb[0].mxu0
        %6795 = vmatprep.mubr.bf16.mxu0 0
        %6796 = vmatmul.mubr.bf16.gmra.mrb[0].mxu0 %v6616
        %v6797 = vpop.f32.mrb[0].mxu0
        %v6798 = vadd.f32 %v6357, %v6797
        %v6799 = vpop.f32.mrb[0].mxu0
        %v6800 = vpop.f32.mrb[0].mxu0
        %v6801 = vadd.f32 %v6360, %v6800
        %v6802 = vpop.f32.mrb[0].mxu0
        %6803 = vmatprep.mubr.bf16.mxu0 0
        %6804 = vmatmul.mubr.bf16.gmra.mrb[0].mxu0 %v6619
        %v6805 = vpop.f32.mrb[0].mxu0
        %v6806 = vadd.f32 %v6365, %v6805
        %v6807 = vpop.f32.mrb[0].mxu0
        %v6808 = vpop.f32.mrb[0].mxu0
        %v6809 = vadd.f32 %v6368, %v6808
        %v6810 = vpop.f32.mrb[0].mxu0
        %6811 = vmatprep.mubr.bf16.mxu0 0
        %6812 = vmatmul.mubr.bf16.gmra.mrb[0].mxu0 %v6622
        %v6813 = vpop.f32.mrb[0].mxu0
        %v6814 = vadd.f32 %v6373, %v6813
        %v6815 = vpop.f32.mrb[0].mxu0
        %v6816 = vpop.f32.mrb[0].mxu0
        %v6817 = vadd.f32 %v6376, %v6816
        %v6818 = vpop.f32.mrb[0].mxu0
        %6819 = vmatprep.mubr.bf16.mxu0 0
        %6820 = vmatmul.mubr.bf16.gmra.mrb[0].mxu0 %v6625
        %v6821 = vpop.f32.mrb[0].mxu0
        %v6822 = vadd.f32 %v6381, %v6821
        %v6823 = vpop.f32.mrb[0].mxu0
        %v6824 = vpop.f32.mrb[0].mxu0
        %v6825 = vadd.f32 %v6384, %v6824
        %v6826 = vpop.f32.mrb[0].mxu0
        %6827 = vmatprep.mubr.bf16.mxu0 0
        %6828 = vmatmul.mubr.bf16.gmra.mrb[0].mxu0 %v6628
        %v6829 = vpop.f32.mrb[0].mxu0
        %v6830 = vadd.f32 %v6389, %v6829
        %v6831 = vpop.f32.mrb[0].mxu0
        %v6832 = vpop.f32.mrb[0].mxu0
        %v6833 = vadd.f32 %v6392, %v6832
        %v6834 = vpop.f32.mrb[0].mxu0
        %6835 = vmatprep.mubr.bf16.mxu0 0
        %6836 = vmatmul.mubr.bf16.gmra.mrb[0].mxu0 %v6631
        %v6837 = vpop.f32.mrb[0].mxu0
        %v6838 = vadd.f32 %v6397, %v6837
        %v6839 = vpop.f32.mrb[0].mxu0
        %v6840 = vpop.f32.mrb[0].mxu0
        %v6841 = vadd.f32 %v6400, %v6840
        %v6842 = vpop.f32.mrb[0].mxu0
        %6843 = vmatprep.mubr.bf16.mxu0 0
        %6844 = vmatmul.mubr.bf16.gmra.mrb[0].mxu0 %v6634
        %v6845 = vpop.f32.mrb[0].mxu0
        %v6846 = vadd.f32 %v6405, %v6845
        %v6847 = vpop.f32.mrb[0].mxu0
        %v6848 = vpop.f32.mrb[0].mxu0
        %v6849 = vadd.f32 %v6408, %v6848
        %v6850 = vpop.f32.mrb[0].mxu0
        %6851 = vmatprep.mubr.bf16.mxu0 0
        %6852 = vmatmul.mubr.bf16.gmra.mrb[0].mxu0 %v6637
        %v6853 = vpop.f32.mrb[0].mxu0
        %v6854 = vadd.f32 %v6413, %v6853
        %v6855 = vpop.f32.mrb[0].mxu0
        %v6856 = vpop.f32.mrb[0].mxu0
        %v6857 = vadd.f32 %v6416, %v6856
        %v6858 = vpop.f32.mrb[0].mxu0
        %6859 = vmatprep.mubr.bf16.mxu0 0
        %6860 = vmatmul.mubr.bf16.gmra.mrb[0].mxu0 %v6640
        %v6861 = vpop.f32.mrb[0].mxu0
        %v6862 = vadd.f32 %v6421, %v6861
        %v6863 = vpop.f32.mrb[0].mxu0
        %v6864 = vpop.f32.mrb[0].mxu0
        %v6865 = vadd.f32 %v6424, %v6864
        %v6866 = vpop.f32.mrb[0].mxu0
        %6867 = vmatprep.mubr.bf16.mxu0 0
        %6868 = vmatmul.mubr.bf16.gmra.mrb[0].mxu0 %v6643
        %v6869 = vpop.f32.mrb[0].mxu0
        %v6870 = vadd.f32 %v6429, %v6869
        %v6871 = vpop.f32.mrb[0].mxu0
        %v6872 = vpop.f32.mrb[0].mxu0
        %v6873 = vadd.f32 %v6432, %v6872
        %v6874 = vpop.f32.mrb[0].mxu0
        %6875 = vmatprep.mubr.bf16.mxu0 0
        %6876 = vmatmul.mubr.bf16.gmra.mrb[0].mxu0 %v6646
        %v6877 = vpop.f32.mrb[0].mxu0
        %v6878 = vadd.f32 %v6437, %v6877
        %v6879 = vpop.f32.mrb[0].mxu0
        %v6880 = vpop.f32.mrb[0].mxu0
        %v6881 = vadd.f32 %v6440, %v6880
        %v6882 = vpop.f32.mrb[0].mxu0
        %6883 = vmatprep.mubr.bf16.mxu0 0
        %6884 = vmatmul.mubr.bf16.gmra.mrb[0].mxu0 %v6649
        %v6885 = vpop.f32.mrb[0].mxu0
        %v6886 = vadd.f32 %v6445, %v6885
        %v6887 = vpop.f32.mrb[0].mxu0
        %v6888 = vpop.f32.mrb[0].mxu0
        %v6889 = vadd.f32 %v6448, %v6888
        %v6890 = vpop.f32.mrb[0].mxu0
        %6891 = vmatprep.mubr.bf16.mxu0 0
        %6892 = vmatmul.mubr.bf16.gmra.mrb[0].mxu0 %v6652
        %v6893 = vpop.f32.mrb[0].mxu0
        %v6894 = vadd.f32 %v6453, %v6893
        %v6895 = vpop.f32.mrb[0].mxu0
        %v6896 = vpop.f32.mrb[0].mxu0
        %v6897 = vadd.f32 %v6456, %v6896
        %v6898 = vpop.f32.mrb[0].mxu0
        %6899 = vmatprep.mubr.bf16.mxu0 0
        %6900 = vmatmul.mubr.bf16.gmra.mrb[0].mxu0 %v6655
        %v6901 = vpop.f32.mrb[0].mxu0
        %v6902 = vadd.f32 %v6461, %v6901
        %v6903 = vpop.f32.mrb[0].mxu0
        %v6904 = vpop.f32.mrb[0].mxu0
        %v6905 = vadd.f32 %v6464, %v6904
        %v6906 = vpop.f32.mrb[0].mxu0
        %6907 = vmatprep.mubr.bf16.mxu0 0
        %6908 = vmatmul.mubr.bf16.gmra.mrb[0].mxu0 %v6658
        %v6909 = vpop.f32.mrb[0].mxu0
        %v6910 = vadd.f32 %v6469, %v6909
        %v6911 = vpop.f32.mrb[0].mxu0
        %v6912 = vpop.f32.mrb[0].mxu0
        %v6913 = vadd.f32 %v6472, %v6912
        %v6914 = vpop.f32.mrb[0].mxu0
        %6915 = vmatprep.mubr.bf16.mxu0 0
        %6916 = vmatmul.mubr.bf16.gmra.mrb[0].mxu0 %v6661
        %v6917 = vpop.f32.mrb[0].mxu0
        %v6918 = vadd.f32 %v6477, %v6917
        %v6919 = vpop.f32.mrb[0].mxu0
        %v6920 = vpop.f32.mrb[0].mxu0
        %v6921 = vadd.f32 %v6480, %v6920
        %v6922 = vpop.f32.mrb[0].mxu0
        %6923 = vmatprep.mubr.bf16.mxu0 0
        %6924 = vmatmul.mubr.bf16.gmra.mrb[0].mxu0 %v6664
        %v6925 = vpop.f32.mrb[0].mxu0
        %v6926 = vadd.f32 %v6485, %v6925
        %v6927 = vpop.f32.mrb[0].mxu0
        %v6928 = vpop.f32.mrb[0].mxu0
        %v6929 = vadd.f32 %v6488, %v6928
        %v6930 = vpop.f32.mrb[0].mxu0
        %6931 = vmatprep.mubr.bf16.mxu0 0
        %6932 = vmatmul.mubr.bf16.gmra.mrb[0].mxu0 %v6667
        %v6933 = vpop.f32.mrb[0].mxu0
        %v6934 = vadd.f32 %v6493, %v6933
        %v6935 = vpop.f32.mrb[0].mxu0
        %v6936 = vpop.f32.mrb[0].mxu0
        %v6937 = vadd.f32 %v6496, %v6936
        %v6938 = vpop.f32.mrb[0].mxu0
        %6939 = vmatprep.mubr.bf16.mxu0 0
        %6940 = vmatmul.mubr.bf16.gmra.mrb[0].mxu0 %v6670
        %v6941 = vpop.f32.mrb[0].mxu0
        %v6942 = vadd.f32 %v6501, %v6941
        %v6943 = vpop.f32.mrb[0].mxu0
        %v6944 = vpop.f32.mrb[0].mxu0
        %v6945 = vadd.f32 %v6504, %v6944
        %v6946 = vpop.f32.mrb[0].mxu0
        %6947 = vmatprep.mubr.bf16.mxu0 0
        %6948 = vmatmul.mubr.bf16.gmra.mrb[0].mxu0 %v6673
        %v6949 = vpop.f32.mrb[0].mxu0
        %v6950 = vadd.f32 %v6509, %v6949
        %v6951 = vpop.f32.mrb[0].mxu0
        %v6952 = vpop.f32.mrb[0].mxu0
        %v6953 = vadd.f32 %v6512, %v6952
        %v6954 = vpop.f32.mrb[0].mxu0
        %6955 = vmatprep.mubr.bf16.mxu0 0
        %6956 = vmatmul.mubr.bf16.gmra.mrb[0].mxu0 %v6676
        %v6957 = vpop.f32.mrb[0].mxu0
        %v6958 = vadd.f32 %v6517, %v6957
        %v6959 = vpop.f32.mrb[0].mxu0
        %v6960 = vpop.f32.mrb[0].mxu0
        %v6961 = vadd.f32 %v6520, %v6960
        %v6962 = vpop.f32.mrb[0].mxu0
        %6963 = vmatprep.mubr.bf16.mxu0 0
        %6964 = vmatmul.mubr.bf16.gmra.mrb[0].mxu0 %v6679
        %v6965 = vpop.f32.mrb[0].mxu0
        %v6966 = vadd.f32 %v6525, %v6965
        %v6967 = vpop.f32.mrb[0].mxu0
        %v6968 = vpop.f32.mrb[0].mxu0
        %v6969 = vadd.f32 %v6528, %v6968
        %v6970 = vpop.f32.mrb[0].mxu0
        %6971 = vmatprep.mubr.bf16.mxu0 0
        %6972 = vmatmul.mubr.bf16.gmra.mrb[0].mxu0 %v6682
        %v6973 = vpop.f32.mrb[0].mxu0
        %v6974 = vadd.f32 %v6533, %v6973
        %v6975 = vpop.f32.mrb[0].mxu0
        %v6976 = vpop.f32.mrb[0].mxu0
        %v6977 = vadd.f32 %v6536, %v6976
        %v6978 = vpop.f32.mrb[0].mxu0
        %6979 = vmatprep.mubr.bf16.mxu0 0
        %6980 = vmatmul.mubr.bf16.gmra.mrb[0].mxu0 %v6685
        %v6981 = vpop.f32.mrb[0].mxu0
        %v6982 = vadd.f32 %v6541, %v6981
        %v6983 = vpop.f32.mrb[0].mxu0
        %v6984 = vpop.f32.mrb[0].mxu0
        %v6985 = vadd.f32 %v6544, %v6984
        %v6986 = vpop.f32.mrb[0].mxu0
        %6987 = vmatprep.mubr.bf16.mxu0 0
        %6988 = vmatmul.mubr.bf16.gmra.mrb[0].mxu0 %v6688
        %v6989 = vpop.f32.mrb[0].mxu0
        %v6990 = vadd.f32 %v6549, %v6989
        %v6991 = vpop.f32.mrb[0].mxu0
        %v6992 = vpop.f32.mrb[0].mxu0
        %v6993 = vadd.f32 %v6552, %v6992
        %v6994 = vpop.f32.mrb[0].mxu0
        %6995 = vmatprep.mubr.bf16.mxu0 0
        %6996 = vmatmul.mubr.bf16.gmra.mrb[0].mxu0 %v6691
        %v6997 = vpop.f32.mrb[0].mxu0
        %v6998 = vadd.f32 %v6557, %v6997
        %v6999 = vpop.f32.mrb[0].mxu0
        %v7000 = vpop.f32.mrb[0].mxu0
        %v7001 = vadd.f32 %v6560, %v7000
        %v7002 = vpop.f32.mrb[0].mxu0
        %7003 = vmatprep.mubr.bf16.mxu0 0
        %7004 = vmatmul.mubr.bf16.gmra.mrb[0].mxu0 %v6694
        %v7005 = vpop.f32.mrb[0].mxu0
        %v7006 = vadd.f32 %v6565, %v7005
        %v7007 = vpop.f32.mrb[0].mxu0
        %v7008 = vpop.f32.mrb[0].mxu0
        %v7009 = vadd.f32 %v6568, %v7008
        %v7010 = vpop.f32.mrb[0].mxu0
        %7011 = vmatprep.mubr.bf16.mxu0 0
        %7012 = vmatmul.mubr.bf16.gmra.mrb[0].mxu0 %v6697
        %v7013 = vpop.f32.mrb[0].mxu0
        %v7014 = vadd.f32 %v6573, %v7013
        %v7015 = vpop.f32.mrb[0].mxu0
        %v7016 = vpop.f32.mrb[0].mxu0
        %v7017 = vadd.f32 %v6576, %v7016
        %v7018 = vpop.f32.mrb[0].mxu0
        %7019 = vdwg.mxu0
        %v7020 = vpack.c.bf16 %v5773, %v5771
        %v7021 = vpack.c.bf16 %v5778, %v5775
        %v7022 = vpack.c.bf16 %v5782, %v5780
        %v7023 = vpack.c.bf16 %v5787, %v5785
        %v7024 = vpack.c.bf16 %v5792, %v5789
        %v7025 = vpack.c.bf16 %v5796, %v5794
        %v7026 = vpack.c.bf16 %v5801, %v5799
        %v7027 = vpack.c.bf16 %v5806, %v5803
        %v7028 = vpack.c.bf16 %v5810, %v5808
        %v7029 = vpack.c.bf16 %v5815, %v5813
        %v7030 = vpack.c.bf16 %v5820, %v5817
        %v7031 = vpack.c.bf16 %v5824, %v5822
        %v7032 = vpack.c.bf16 %v5829, %v5827
        %v7033 = vpack.c.bf16 %v5834, %v5831
        %v7034 = vpack.c.bf16 %v5838, %v5836
        %v7035 = vpack.c.bf16 %v5843, %v5841
        %v7036 = vpack.c.bf16 %v5848, %v5845
        %v7037 = vpack.c.bf16 %v5852, %v5850
        %v7038 = vpack.c.bf16 %v5857, %v5855
        %v7039 = vpack.c.bf16 %v5862, %v5859
        %v7040 = vpack.c.bf16 %v5866, %v5864
        %v7041 = vpack.c.bf16 %v5871, %v5869
        %v7042 = vpack.c.bf16 %v5876, %v5873
        %v7043 = vpack.c.bf16 %v5880, %v5878
        %v7044 = vpack.c.bf16 %v5885, %v5883
        %v7045 = vpack.c.bf16 %v5890, %v5887
        %v7046 = vpack.c.bf16 %v5894, %v5892
        %v7047 = vpack.c.bf16 %v5899, %v5897
        %v7048 = vpack.c.bf16 %v5904, %v5901
        %v7049 = vpack.c.bf16 %v5908, %v5906
        %v7050 = vpack.c.bf16 %v5913, %v5911
        %v7051 = vpack.c.bf16 %v5918, %v5915
        %v7052 = vpack.c.bf16 %v5922, %v5920
        %v7053 = vpack.c.bf16 %v5927, %v5925
        %v7054 = vpack.c.bf16 %v5932, %v5929
        %v7055 = vpack.c.bf16 %v5936, %v5934
        %v7060 = vunpack.c.l.b16 %v6037
        %v7061 = vunpack.c.l.b16 %v6038
        %v7062 = vunpack.c.l.b16 %v6039
        %v7063 = vunpack.c.l.b16 %v6040
        %v7064 = vpack.c.b16 %v7061, %v7060
        %v7065 = vpack.c.b16 %v7063, %v7062
        %v7069 = vsel %vm6149, %v7020, 0
        %v7072 = vsel %vm6149, %v7021, 0
        %v7075 = vsel %vm6149, %v7022, 0
        %v7078 = vsel %vm6149, %v7023, 0
        %v7081 = vsel %vm6149, %v7024, 0
        %v7084 = vsel %vm6149, %v7025, 0
        %v7087 = vsel %vm6149, %v7026, 0
        %v7090 = vsel %vm6149, %v7027, 0
        %v7093 = vsel %vm6149, %v7028, 0
        %v7096 = vsel %vm6149, %v7029, 0
        %v7099 = vsel %vm6149, %v7030, 0
        %v7102 = vsel %vm6149, %v7031, 0
        %v7105 = vsel %vm6149, %v7032, 0
        %v7108 = vsel %vm6149, %v7033, 0
        %v7111 = vsel %vm6149, %v7034, 0
        %v7114 = vsel %vm6149, %v7035, 0
        %v7117 = vsel %vm6149, %v7036, 0
        %v7120 = vsel %vm6149, %v7037, 0
        %v7123 = vsel %vm6149, %v7038, 0
        %v7126 = vsel %vm6149, %v7039, 0
        %v7129 = vsel %vm6149, %v7040, 0
        %v7132 = vsel %vm6149, %v7041, 0
        %v7135 = vsel %vm6149, %v7042, 0
        %v7138 = vsel %vm6149, %v7043, 0
        %v7141 = vsel %vm6149, %v7044, 0
        %v7144 = vsel %vm6149, %v7045, 0
        %v7147 = vsel %vm6149, %v7046, 0
        %v7150 = vsel %vm6149, %v7047, 0
        %v7153 = vsel %vm6149, %v7048, 0
        %v7156 = vsel %vm6149, %v7049, 0
        %v7159 = vsel %vm6149, %v7050, 0
        %v7162 = vsel %vm6149, %v7051, 0
        %v7165 = vsel %vm6149, %v7052, 0
        %v7168 = vsel %vm6149, %v7053, 0
        %v7171 = vsel %vm6149, %v7054, 0
        %v7174 = vsel %vm6149, %v7055, 0
        %7176 = vmatprep.subr.bf16.mxu0 0
        %7177 = vmatpush1.bf16.msra.mxu0 %v7064
        %7178 = vmatprep.subr.bf16.mxu0 0
        %7179 = vmatpush1.bf16.msra.mxu0 %v7065
        %7180 = vmatprep.subr.bf16.mxu0 0
        %7181 = vmatpush1.bf16.msra.mxu0 0
        %7182 = vmatprep.subr.bf16.mxu0 0
        %7183 = vmatpush1.bf16.msra.mxu0 0
        %7184 = vmatprep.subr.bf16.mxu0 0
        %7185 = vmatpush1.bf16.msra.mxu0 0
        %7186 = vmatprep.subr.bf16.mxu0 0
        %7187 = vmatpush1.bf16.msra.mxu0 0
        %7188 = vmatprep.subr.bf16.mxu0 0
        %7189 = vmatpush1.bf16.msra.mxu0 0
        %7190 = vmatprep.subr.bf16.mxu0 0
        %7191 = vmatpush1.bf16.msra.mxu0 0
        %7192 = vmatprep.subr.bf16.mxu0 0
        %7193 = vmatpush1.bf16.msra.mxu0 0
        %7194 = vmatprep.subr.bf16.mxu0 0
        %7195 = vmatpush1.bf16.msra.mxu0 0
        %7196 = vmatprep.subr.bf16.mxu0 0
        %7197 = vmatpush1.bf16.msra.mxu0 0
        %7198 = vmatprep.subr.bf16.mxu0 0
        %7199 = vmatpush1.bf16.msra.mxu0 0
        %7200 = vmatprep.subr.bf16.mxu0 0
        %7201 = vmatpush1.bf16.msra.mxu0 0
        %7202 = vmatprep.subr.bf16.mxu0 0
        %7203 = vmatpush1.bf16.msra.mxu0 0
        %7204 = vmatprep.subr.bf16.mxu0 0
        %7205 = vmatpush1.bf16.msra.mxu0 0
        %7206 = vmatprep.subr.bf16.mxu0 0
        %7207 = vmatpush1.bf16.msra.mxu0 0
        %7208 = vmatprep.mubr.bf16.mxu0 0
        %7209 = vmatmul.mubr.bf16.gmra.mrb[0].mxu0 %v7069
        %v7210 = vpop.f32.mrb[0].mxu0
        %v7211 = vadd.f32 0.0, %v7210
        %v7212 = vpop.f32.mrb[0].mxu0
        %v7213 = vpop.f32.mrb[0].mxu0
        %v7214 = vadd.f32 0.0, %v7213
        %v7215 = vpop.f32.mrb[0].mxu0
        %7216 = vmatprep.mubr.bf16.mxu0 0
        %7217 = vmatmul.mubr.bf16.gmra.mrb[0].mxu0 %v7072
        %v7218 = vpop.f32.mrb[0].mxu0
        %v7219 = vadd.f32 0.0, %v7218
        %v7220 = vpop.f32.mrb[0].mxu0
        %v7221 = vpop.f32.mrb[0].mxu0
        %v7222 = vadd.f32 0.0, %v7221
        %v7223 = vpop.f32.mrb[0].mxu0
        %7224 = vmatprep.mubr.bf16.mxu0 0
        %7225 = vmatmul.mubr.bf16.gmra.mrb[0].mxu0 %v7075
        %v7226 = vpop.f32.mrb[0].mxu0
        %v7227 = vadd.f32 0.0, %v7226
        %v7228 = vpop.f32.mrb[0].mxu0
        %v7229 = vpop.f32.mrb[0].mxu0
        %v7230 = vadd.f32 0.0, %v7229
        %v7231 = vpop.f32.mrb[0].mxu0
        %7232 = vmatprep.mubr.bf16.mxu0 0
        %7233 = vmatmul.mubr.bf16.gmra.mrb[0].mxu0 %v7078
        %v7234 = vpop.f32.mrb[0].mxu0
        %v7235 = vadd.f32 0.0, %v7234
        %v7236 = vpop.f32.mrb[0].mxu0
        %v7237 = vpop.f32.mrb[0].mxu0
        %v7238 = vadd.f32 0.0, %v7237
        %v7239 = vpop.f32.mrb[0].mxu0
        %7240 = vmatprep.mubr.bf16.mxu0 0
        %7241 = vmatmul.mubr.bf16.gmra.mrb[0].mxu0 %v7081
        %v7242 = vpop.f32.mrb[0].mxu0
        %v7243 = vadd.f32 0.0, %v7242
        %v7244 = vpop.f32.mrb[0].mxu0
        %v7245 = vpop.f32.mrb[0].mxu0
        %v7246 = vadd.f32 0.0, %v7245
        %v7247 = vpop.f32.mrb[0].mxu0
        %7248 = vmatprep.mubr.bf16.mxu0 0
        %7249 = vmatmul.mubr.bf16.gmra.mrb[0].mxu0 %v7084
        %v7250 = vpop.f32.mrb[0].mxu0
        %v7251 = vadd.f32 0.0, %v7250
        %v7252 = vpop.f32.mrb[0].mxu0
        %v7253 = vpop.f32.mrb[0].mxu0
        %v7254 = vadd.f32 0.0, %v7253
        %v7255 = vpop.f32.mrb[0].mxu0
        %7256 = vmatprep.mubr.bf16.mxu0 0
        %7257 = vmatmul.mubr.bf16.gmra.mrb[0].mxu0 %v7087
        %v7258 = vpop.f32.mrb[0].mxu0
        %v7259 = vadd.f32 0.0, %v7258
        %v7260 = vpop.f32.mrb[0].mxu0
        %v7261 = vpop.f32.mrb[0].mxu0
        %v7262 = vadd.f32 0.0, %v7261
        %v7263 = vpop.f32.mrb[0].mxu0
        %7264 = vmatprep.mubr.bf16.mxu0 0
        %7265 = vmatmul.mubr.bf16.gmra.mrb[0].mxu0 %v7090
        %v7266 = vpop.f32.mrb[0].mxu0
        %v7267 = vadd.f32 0.0, %v7266
        %v7268 = vpop.f32.mrb[0].mxu0
        %v7269 = vpop.f32.mrb[0].mxu0
        %v7270 = vadd.f32 0.0, %v7269
        %v7271 = vpop.f32.mrb[0].mxu0
        %7272 = vmatprep.mubr.bf16.mxu0 0
        %7273 = vmatmul.mubr.bf16.gmra.mrb[0].mxu0 %v7093
        %v7274 = vpop.f32.mrb[0].mxu0
        %v7275 = vadd.f32 0.0, %v7274
        %v7276 = vpop.f32.mrb[0].mxu0
        %v7277 = vpop.f32.mrb[0].mxu0
        %v7278 = vadd.f32 0.0, %v7277
        %v7279 = vpop.f32.mrb[0].mxu0
        %7280 = vmatprep.mubr.bf16.mxu0 0
        %7281 = vmatmul.mubr.bf16.gmra.mrb[0].mxu0 %v7096
        %v7282 = vpop.f32.mrb[0].mxu0
        %v7283 = vadd.f32 0.0, %v7282
        %v7284 = vpop.f32.mrb[0].mxu0
        %v7285 = vpop.f32.mrb[0].mxu0
        %v7286 = vadd.f32 0.0, %v7285
        %v7287 = vpop.f32.mrb[0].mxu0
        %7288 = vmatprep.mubr.bf16.mxu0 0
        %7289 = vmatmul.mubr.bf16.gmra.mrb[0].mxu0 %v7099
        %v7290 = vpop.f32.mrb[0].mxu0
        %v7291 = vadd.f32 0.0, %v7290
        %v7292 = vpop.f32.mrb[0].mxu0
        %v7293 = vpop.f32.mrb[0].mxu0
        %v7294 = vadd.f32 0.0, %v7293
        %v7295 = vpop.f32.mrb[0].mxu0
        %7296 = vmatprep.mubr.bf16.mxu0 0
        %7297 = vmatmul.mubr.bf16.gmra.mrb[0].mxu0 %v7102
        %v7298 = vpop.f32.mrb[0].mxu0
        %v7299 = vadd.f32 0.0, %v7298
        %v7300 = vpop.f32.mrb[0].mxu0
        %v7301 = vpop.f32.mrb[0].mxu0
        %v7302 = vadd.f32 0.0, %v7301
        %v7303 = vpop.f32.mrb[0].mxu0
        %7304 = vmatprep.mubr.bf16.mxu0 0
        %7305 = vmatmul.mubr.bf16.gmra.mrb[0].mxu0 %v7105
        %v7306 = vpop.f32.mrb[0].mxu0
        %v7307 = vadd.f32 0.0, %v7306
        %v7308 = vpop.f32.mrb[0].mxu0
        %v7309 = vpop.f32.mrb[0].mxu0
        %v7310 = vadd.f32 0.0, %v7309
        %v7311 = vpop.f32.mrb[0].mxu0
        %7312 = vmatprep.mubr.bf16.mxu0 0
        %7313 = vmatmul.mubr.bf16.gmra.mrb[0].mxu0 %v7108
        %v7314 = vpop.f32.mrb[0].mxu0
        %v7315 = vadd.f32 0.0, %v7314
        %v7316 = vpop.f32.mrb[0].mxu0
        %v7317 = vpop.f32.mrb[0].mxu0
        %v7318 = vadd.f32 0.0, %v7317
        %v7319 = vpop.f32.mrb[0].mxu0
        %7320 = vmatprep.mubr.bf16.mxu0 0
        %7321 = vmatmul.mubr.bf16.gmra.mrb[0].mxu0 %v7111
        %v7322 = vpop.f32.mrb[0].mxu0
        %v7323 = vadd.f32 0.0, %v7322
        %v7324 = vpop.f32.mrb[0].mxu0
        %v7325 = vpop.f32.mrb[0].mxu0
        %v7326 = vadd.f32 0.0, %v7325
        %v7327 = vpop.f32.mrb[0].mxu0
        %7328 = vmatprep.mubr.bf16.mxu0 0
        %7329 = vmatmul.mubr.bf16.gmra.mrb[0].mxu0 %v7114
        %v7330 = vpop.f32.mrb[0].mxu0
        %v7331 = vadd.f32 0.0, %v7330
        %v7332 = vpop.f32.mrb[0].mxu0
        %v7333 = vpop.f32.mrb[0].mxu0
        %v7334 = vadd.f32 0.0, %v7333
        %v7335 = vpop.f32.mrb[0].mxu0
        %7336 = vmatprep.mubr.bf16.mxu0 0
        %7337 = vmatmul.mubr.bf16.gmra.mrb[0].mxu0 %v7117
        %v7338 = vpop.f32.mrb[0].mxu0
        %v7339 = vadd.f32 0.0, %v7338
        %v7340 = vpop.f32.mrb[0].mxu0
        %v7341 = vpop.f32.mrb[0].mxu0
        %v7342 = vadd.f32 0.0, %v7341
        %v7343 = vpop.f32.mrb[0].mxu0
        %7344 = vmatprep.mubr.bf16.mxu0 0
        %7345 = vmatmul.mubr.bf16.gmra.mrb[0].mxu0 %v7120
        %v7346 = vpop.f32.mrb[0].mxu0
        %v7347 = vadd.f32 0.0, %v7346
        %v7348 = vpop.f32.mrb[0].mxu0
        %v7349 = vpop.f32.mrb[0].mxu0
        %v7350 = vadd.f32 0.0, %v7349
        %v7351 = vpop.f32.mrb[0].mxu0
        %7352 = vmatprep.mubr.bf16.mxu0 0
        %7353 = vmatmul.mubr.bf16.gmra.mrb[0].mxu0 %v7123
        %v7354 = vpop.f32.mrb[0].mxu0
        %v7355 = vadd.f32 0.0, %v7354
        %v7356 = vpop.f32.mrb[0].mxu0
        %v7357 = vpop.f32.mrb[0].mxu0
        %v7358 = vadd.f32 0.0, %v7357
        %v7359 = vpop.f32.mrb[0].mxu0
        %7360 = vmatprep.mubr.bf16.mxu0 0
        %7361 = vmatmul.mubr.bf16.gmra.mrb[0].mxu0 %v7126
        %v7362 = vpop.f32.mrb[0].mxu0
        %v7363 = vadd.f32 0.0, %v7362
        %v7364 = vpop.f32.mrb[0].mxu0
        %v7365 = vpop.f32.mrb[0].mxu0
        %v7366 = vadd.f32 0.0, %v7365
        %v7367 = vpop.f32.mrb[0].mxu0
        %7368 = vmatprep.mubr.bf16.mxu0 0
        %7369 = vmatmul.mubr.bf16.gmra.mrb[0].mxu0 %v7129
        %v7370 = vpop.f32.mrb[0].mxu0
        %v7371 = vadd.f32 0.0, %v7370
        %v7372 = vpop.f32.mrb[0].mxu0
        %v7373 = vpop.f32.mrb[0].mxu0
        %v7374 = vadd.f32 0.0, %v7373
        %v7375 = vpop.f32.mrb[0].mxu0
        %7376 = vmatprep.mubr.bf16.mxu0 0
        %7377 = vmatmul.mubr.bf16.gmra.mrb[0].mxu0 %v7132
        %v7378 = vpop.f32.mrb[0].mxu0
        %v7379 = vadd.f32 0.0, %v7378
        %v7380 = vpop.f32.mrb[0].mxu0
        %v7381 = vpop.f32.mrb[0].mxu0
        %v7382 = vadd.f32 0.0, %v7381
        %v7383 = vpop.f32.mrb[0].mxu0
        %7384 = vmatprep.mubr.bf16.mxu0 0
        %7385 = vmatmul.mubr.bf16.gmra.mrb[0].mxu0 %v7135
        %v7386 = vpop.f32.mrb[0].mxu0
        %v7387 = vadd.f32 0.0, %v7386
        %v7388 = vpop.f32.mrb[0].mxu0
        %v7389 = vpop.f32.mrb[0].mxu0
        %v7390 = vadd.f32 0.0, %v7389
        %v7391 = vpop.f32.mrb[0].mxu0
        %7392 = vmatprep.mubr.bf16.mxu0 0
        %7393 = vmatmul.mubr.bf16.gmra.mrb[0].mxu0 %v7138
        %v7394 = vpop.f32.mrb[0].mxu0
        %v7395 = vadd.f32 0.0, %v7394
        %v7396 = vpop.f32.mrb[0].mxu0
        %v7397 = vpop.f32.mrb[0].mxu0
        %v7398 = vadd.f32 0.0, %v7397
        %v7399 = vpop.f32.mrb[0].mxu0
        %7400 = vmatprep.mubr.bf16.mxu0 0
        %7401 = vmatmul.mubr.bf16.gmra.mrb[0].mxu0 %v7141
        %v7402 = vpop.f32.mrb[0].mxu0
        %v7403 = vadd.f32 0.0, %v7402
        %v7404 = vpop.f32.mrb[0].mxu0
        %v7405 = vpop.f32.mrb[0].mxu0
        %v7406 = vadd.f32 0.0, %v7405
        %v7407 = vpop.f32.mrb[0].mxu0
        %7408 = vmatprep.mubr.bf16.mxu0 0
        %7409 = vmatmul.mubr.bf16.gmra.mrb[0].mxu0 %v7144
        %v7410 = vpop.f32.mrb[0].mxu0
        %v7411 = vadd.f32 0.0, %v7410
        %v7412 = vpop.f32.mrb[0].mxu0
        %v7413 = vpop.f32.mrb[0].mxu0
        %v7414 = vadd.f32 0.0, %v7413
        %v7415 = vpop.f32.mrb[0].mxu0
        %7416 = vmatprep.mubr.bf16.mxu0 0
        %7417 = vmatmul.mubr.bf16.gmra.mrb[0].mxu0 %v7147
        %v7418 = vpop.f32.mrb[0].mxu0
        %v7419 = vadd.f32 0.0, %v7418
        %v7420 = vpop.f32.mrb[0].mxu0
        %v7421 = vpop.f32.mrb[0].mxu0
        %v7422 = vadd.f32 0.0, %v7421
        %v7423 = vpop.f32.mrb[0].mxu0
        %7424 = vmatprep.mubr.bf16.mxu0 0
        %7425 = vmatmul.mubr.bf16.gmra.mrb[0].mxu0 %v7150
        %v7426 = vpop.f32.mrb[0].mxu0
        %v7427 = vadd.f32 0.0, %v7426
        %v7428 = vpop.f32.mrb[0].mxu0
        %v7429 = vpop.f32.mrb[0].mxu0
        %v7430 = vadd.f32 0.0, %v7429
        %v7431 = vpop.f32.mrb[0].mxu0
        %7432 = vmatprep.mubr.bf16.mxu0 0
        %7433 = vmatmul.mubr.bf16.gmra.mrb[0].mxu0 %v7153
        %v7434 = vpop.f32.mrb[0].mxu0
        %v7435 = vadd.f32 0.0, %v7434
        %v7436 = vpop.f32.mrb[0].mxu0
        %v7437 = vpop.f32.mrb[0].mxu0
        %v7438 = vadd.f32 0.0, %v7437
        %v7439 = vpop.f32.mrb[0].mxu0
        %7440 = vmatprep.mubr.bf16.mxu0 0
        %7441 = vmatmul.mubr.bf16.gmra.mrb[0].mxu0 %v7156
        %v7442 = vpop.f32.mrb[0].mxu0
        %v7443 = vadd.f32 0.0, %v7442
        %v7444 = vpop.f32.mrb[0].mxu0
        %v7445 = vpop.f32.mrb[0].mxu0
        %v7446 = vadd.f32 0.0, %v7445
        %v7447 = vpop.f32.mrb[0].mxu0
        %7448 = vmatprep.mubr.bf16.mxu0 0
        %7449 = vmatmul.mubr.bf16.gmra.mrb[0].mxu0 %v7159
        %v7450 = vpop.f32.mrb[0].mxu0
        %v7451 = vadd.f32 0.0, %v7450
        %v7452 = vpop.f32.mrb[0].mxu0
        %v7453 = vpop.f32.mrb[0].mxu0
        %v7454 = vadd.f32 0.0, %v7453
        %v7455 = vpop.f32.mrb[0].mxu0
        %7456 = vmatprep.mubr.bf16.mxu0 0
        %7457 = vmatmul.mubr.bf16.gmra.mrb[0].mxu0 %v7162
        %v7458 = vpop.f32.mrb[0].mxu0
        %v7459 = vadd.f32 0.0, %v7458
        %v7460 = vpop.f32.mrb[0].mxu0
        %v7461 = vpop.f32.mrb[0].mxu0
        %v7462 = vadd.f32 0.0, %v7461
        %v7463 = vpop.f32.mrb[0].mxu0
        %7464 = vmatprep.mubr.bf16.mxu0 0
        %7465 = vmatmul.mubr.bf16.gmra.mrb[0].mxu0 %v7165
        %v7466 = vpop.f32.mrb[0].mxu0
        %v7467 = vadd.f32 0.0, %v7466
        %v7468 = vpop.f32.mrb[0].mxu0
        %v7469 = vpop.f32.mrb[0].mxu0
        %v7470 = vadd.f32 0.0, %v7469
        %v7471 = vpop.f32.mrb[0].mxu0
        %7472 = vmatprep.mubr.bf16.mxu0 0
        %7473 = vmatmul.mubr.bf16.gmra.mrb[0].mxu0 %v7168
        %v7474 = vpop.f32.mrb[0].mxu0
        %v7475 = vadd.f32 0.0, %v7474
        %v7476 = vpop.f32.mrb[0].mxu0
        %v7477 = vpop.f32.mrb[0].mxu0
        %v7478 = vadd.f32 0.0, %v7477
        %v7479 = vpop.f32.mrb[0].mxu0
        %7480 = vmatprep.mubr.bf16.mxu0 0
        %7481 = vmatmul.mubr.bf16.gmra.mrb[0].mxu0 %v7171
        %v7482 = vpop.f32.mrb[0].mxu0
        %v7483 = vadd.f32 0.0, %v7482
        %v7484 = vpop.f32.mrb[0].mxu0
        %v7485 = vpop.f32.mrb[0].mxu0
        %v7486 = vadd.f32 0.0, %v7485
        %v7487 = vpop.f32.mrb[0].mxu0
        %7488 = vmatprep.mubr.bf16.mxu0 0
        %7489 = vmatmul.mubr.bf16.gmra.mrb[0].mxu0 %v7174
        %v7490 = vpop.f32.mrb[0].mxu0
        %v7491 = vadd.f32 0.0, %v7490
        %v7492 = vpop.f32.mrb[0].mxu0
        %v7493 = vpop.f32.mrb[0].mxu0
        %v7494 = vadd.f32 0.0, %v7493
        %v7495 = vpop.f32.mrb[0].mxu0
        %7496 = vdwg.mxu0
        %v7497 = vadd.f32 %v6734, %v7211
        %v7498 = vadd.f32 %v6737, %v7214
        %v7499 = vadd.f32 %v6742, %v7219
        %v7500 = vadd.f32 %v6745, %v7222
        %v7501 = vadd.f32 %v6750, %v7227
        %v7502 = vadd.f32 %v6753, %v7230
        %v7503 = vadd.f32 %v6758, %v7235
        %v7504 = vadd.f32 %v6761, %v7238
        %v7505 = vadd.f32 %v6766, %v7243
        %v7506 = vadd.f32 %v6769, %v7246
        %v7507 = vadd.f32 %v6774, %v7251
        %v7508 = vadd.f32 %v6777, %v7254
        %v7509 = vadd.f32 %v6782, %v7259
        %v7510 = vadd.f32 %v6785, %v7262
        %v7511 = vadd.f32 %v6790, %v7267
        %v7512 = vadd.f32 %v6793, %v7270
        %v7513 = vadd.f32 %v6798, %v7275
        %v7514 = vadd.f32 %v6801, %v7278
        %v7515 = vadd.f32 %v6806, %v7283
        %v7516 = vadd.f32 %v6809, %v7286
        %v7517 = vadd.f32 %v6814, %v7291
        %v7518 = vadd.f32 %v6817, %v7294
        %v7519 = vadd.f32 %v6822, %v7299
        %v7520 = vadd.f32 %v6825, %v7302
        %v7521 = vadd.f32 %v6830, %v7307
        %v7522 = vadd.f32 %v6833, %v7310
        %v7523 = vadd.f32 %v6838, %v7315
        %v7524 = vadd.f32 %v6841, %v7318
        %v7525 = vadd.f32 %v6846, %v7323
        %v7526 = vadd.f32 %v6849, %v7326
        %v7527 = vadd.f32 %v6854, %v7331
        %v7528 = vadd.f32 %v6857, %v7334
        %v7529 = vadd.f32 %v6862, %v7339
        %v7530 = vadd.f32 %v6865, %v7342
        %v7531 = vadd.f32 %v6870, %v7347
        %v7532 = vadd.f32 %v6873, %v7350
        %v7533 = vadd.f32 %v6878, %v7355
        %v7534 = vadd.f32 %v6881, %v7358
        %v7535 = vadd.f32 %v6886, %v7363
        %v7536 = vadd.f32 %v6889, %v7366
        %v7537 = vadd.f32 %v6894, %v7371
        %v7538 = vadd.f32 %v6897, %v7374
        %v7539 = vadd.f32 %v6902, %v7379
        %v7540 = vadd.f32 %v6905, %v7382
        %v7541 = vadd.f32 %v6910, %v7387
        %v7542 = vadd.f32 %v6913, %v7390
        %v7543 = vadd.f32 %v6918, %v7395
        %v7544 = vadd.f32 %v6921, %v7398
        %v7545 = vadd.f32 %v6926, %v7403
        %v7546 = vadd.f32 %v6929, %v7406
        %v7547 = vadd.f32 %v6934, %v7411
        %v7548 = vadd.f32 %v6937, %v7414
        %v7549 = vadd.f32 %v6942, %v7419
        %v7550 = vadd.f32 %v6945, %v7422
        %v7551 = vadd.f32 %v6950, %v7427
        %v7552 = vadd.f32 %v6953, %v7430
        %v7553 = vadd.f32 %v6958, %v7435
        %v7554 = vadd.f32 %v6961, %v7438
        %v7555 = vadd.f32 %v6966, %v7443
        %v7556 = vadd.f32 %v6969, %v7446
        %v7557 = vadd.f32 %v6974, %v7451
        %v7558 = vadd.f32 %v6977, %v7454
        %v7559 = vadd.f32 %v6982, %v7459
        %v7560 = vadd.f32 %v6985, %v7462
        %v7561 = vadd.f32 %v6990, %v7467
        %v7562 = vadd.f32 %v6993, %v7470
        %v7563 = vadd.f32 %v6998, %v7475
        %v7564 = vadd.f32 %v7001, %v7478
        %v7565 = vadd.f32 %v7006, %v7483
        %v7566 = vadd.f32 %v7009, %v7486
        %v7567 = vadd.f32 %v7014, %v7491
        %v7568 = vadd.f32 %v7017, %v7494
        %v7569 = vpack.c.bf16 %v5306, %v5305
        %v7570 = vpack.c.bf16 %v5309, %v5307
        %v7571 = vpack.c.bf16 %v5311, %v5310
        %v7572 = vpack.c.bf16 %v5314, %v5313
        %v7573 = vpack.c.bf16 %v5317, %v5315
        %v7574 = vpack.c.bf16 %v5319, %v5318
        %v7575 = vpack.c.bf16 %v5322, %v5321
        %v7576 = vpack.c.bf16 %v5325, %v5323
        %v7577 = vpack.c.bf16 %v5327, %v5326
        %v7578 = vpack.c.bf16 %v5330, %v5329
        %v7579 = vpack.c.bf16 %v5333, %v5331
        %v7580 = vpack.c.bf16 %v5335, %v5334
        %v7581 = vpack.c.bf16 %v5338, %v5337
        %v7582 = vpack.c.bf16 %v5341, %v5339
        %v7583 = vpack.c.bf16 %v5343, %v5342
        %v7584 = vpack.c.bf16 %v5346, %v5345
        %v7585 = vpack.c.bf16 %v5349, %v5347
        %v7586 = vpack.c.bf16 %v5351, %v5350
        %v7587 = vpack.c.bf16 %v5354, %v5353
        %v7588 = vpack.c.bf16 %v5357, %v5355
        %v7589 = vpack.c.bf16 %v5359, %v5358
        %v7590 = vpack.c.bf16 %v5362, %v5361
        %v7591 = vpack.c.bf16 %v5365, %v5363
        %v7592 = vpack.c.bf16 %v5367, %v5366
        %v7593 = vpack.c.bf16 %v5370, %v5369
        %v7594 = vpack.c.bf16 %v5373, %v5371
        %v7595 = vpack.c.bf16 %v5375, %v5374
        %v7596 = vpack.c.bf16 %v5378, %v5377
        %v7597 = vpack.c.bf16 %v5381, %v5379
        %v7598 = vpack.c.bf16 %v5383, %v5382
        %v7599 = vpack.c.bf16 %v5386, %v5385
        %v7600 = vpack.c.bf16 %v5389, %v5387
        %v7601 = vpack.c.bf16 %v5391, %v5390
        %v7602 = vpack.c.bf16 %v5394, %v5393
        %v7603 = vpack.c.bf16 %v5397, %v5395
        %v7604 = vpack.c.bf16 %v5399, %v5398
        %v7609 = vunpack.c.l.b16 %v6041
        %v7610 = vunpack.c.l.b16 %v6042
        %v7611 = vunpack.c.l.b16 %v6043
        %v7612 = vunpack.c.l.b16 %v6044
        %v7613 = vpack.c.b16 %v7610, %v7609
        %v7614 = vpack.c.b16 %v7612, %v7611
        %v7618 = vsel %vm6149, %v7569, 0
        %v7621 = vsel %vm6149, %v7570, 0
        %v7624 = vsel %vm6149, %v7571, 0
        %v7627 = vsel %vm6149, %v7572, 0
        %v7630 = vsel %vm6149, %v7573, 0
        %v7633 = vsel %vm6149, %v7574, 0
        %v7636 = vsel %vm6149, %v7575, 0
        %v7639 = vsel %vm6149, %v7576, 0
        %v7642 = vsel %vm6149, %v7577, 0
        %v7645 = vsel %vm6149, %v7578, 0
        %v7648 = vsel %vm6149, %v7579, 0
        %v7651 = vsel %vm6149, %v7580, 0
        %v7654 = vsel %vm6149, %v7581, 0
        %v7657 = vsel %vm6149, %v7582, 0
        %v7660 = vsel %vm6149, %v7583, 0
        %v7663 = vsel %vm6149, %v7584, 0
        %v7666 = vsel %vm6149, %v7585, 0
        %v7669 = vsel %vm6149, %v7586, 0
        %v7672 = vsel %vm6149, %v7587, 0
        %v7675 = vsel %vm6149, %v7588, 0
        %v7678 = vsel %vm6149, %v7589, 0
        %v7681 = vsel %vm6149, %v7590, 0
        %v7684 = vsel %vm6149, %v7591, 0
        %v7687 = vsel %vm6149, %v7592, 0
        %v7690 = vsel %vm6149, %v7593, 0
        %v7693 = vsel %vm6149, %v7594, 0
        %v7696 = vsel %vm6149, %v7595, 0
        %v7699 = vsel %vm6149, %v7596, 0
        %v7702 = vsel %vm6149, %v7597, 0
        %v7705 = vsel %vm6149, %v7598, 0
        %v7708 = vsel %vm6149, %v7599, 0
        %v7711 = vsel %vm6149, %v7600, 0
        %v7714 = vsel %vm6149, %v7601, 0
        %v7717 = vsel %vm6149, %v7602, 0
        %v7720 = vsel %vm6149, %v7603, 0
        %v7723 = vsel %vm6149, %v7604, 0
        %7725 = vmatprep.subr.bf16.mxu0 0
        %7726 = vmatpush1.bf16.msra.mxu0 %v7613
        %7727 = vmatprep.subr.bf16.mxu0 0
        %7728 = vmatpush1.bf16.msra.mxu0 %v7614
        %7729 = vmatprep.subr.bf16.mxu0 0
        %7730 = vmatpush1.bf16.msra.mxu0 0
        %7731 = vmatprep.subr.bf16.mxu0 0
        %7732 = vmatpush1.bf16.msra.mxu0 0
        %7733 = vmatprep.subr.bf16.mxu0 0
        %7734 = vmatpush1.bf16.msra.mxu0 0
        %7735 = vmatprep.subr.bf16.mxu0 0
        %7736 = vmatpush1.bf16.msra.mxu0 0
        %7737 = vmatprep.subr.bf16.mxu0 0
        %7738 = vmatpush1.bf16.msra.mxu0 0
        %7739 = vmatprep.subr.bf16.mxu0 0
        %7740 = vmatpush1.bf16.msra.mxu0 0
        %7741 = vmatprep.subr.bf16.mxu0 0
        %7742 = vmatpush1.bf16.msra.mxu0 0
        %7743 = vmatprep.subr.bf16.mxu0 0
        %7744 = vmatpush1.bf16.msra.mxu0 0
        %7745 = vmatprep.subr.bf16.mxu0 0
        %7746 = vmatpush1.bf16.msra.mxu0 0
        %7747 = vmatprep.subr.bf16.mxu0 0
        %7748 = vmatpush1.bf16.msra.mxu0 0
        %7749 = vmatprep.subr.bf16.mxu0 0
        %7750 = vmatpush1.bf16.msra.mxu0 0
        %7751 = vmatprep.subr.bf16.mxu0 0
        %7752 = vmatpush1.bf16.msra.mxu0 0
        %7753 = vmatprep.subr.bf16.mxu0 0
        %7754 = vmatpush1.bf16.msra.mxu0 0
        %7755 = vmatprep.subr.bf16.mxu0 0
        %7756 = vmatpush1.bf16.msra.mxu0 0
        %7757 = vmatprep.mubr.bf16.mxu0 0
        %7758 = vmatmul.mubr.bf16.gmra.mrb[0].mxu0 %v7618
        %v7759 = vpop.f32.mrb[0].mxu0
        %v7760 = vadd.f32 0.0, %v7759
        %v7761 = vpop.f32.mrb[0].mxu0
        %v7762 = vpop.f32.mrb[0].mxu0
        %v7763 = vadd.f32 0.0, %v7762
        %v7764 = vpop.f32.mrb[0].mxu0
        %7765 = vmatprep.mubr.bf16.mxu0 0
        %7766 = vmatmul.mubr.bf16.gmra.mrb[0].mxu0 %v7621
        %v7767 = vpop.f32.mrb[0].mxu0
        %v7768 = vadd.f32 0.0, %v7767
        %v7769 = vpop.f32.mrb[0].mxu0
        %v7770 = vpop.f32.mrb[0].mxu0
        %v7771 = vadd.f32 0.0, %v7770
        %v7772 = vpop.f32.mrb[0].mxu0
        %7773 = vmatprep.mubr.bf16.mxu0 0
        %7774 = vmatmul.mubr.bf16.gmra.mrb[0].mxu0 %v7624
        %v7775 = vpop.f32.mrb[0].mxu0
        %v7776 = vadd.f32 0.0, %v7775
        %v7777 = vpop.f32.mrb[0].mxu0
        %v7778 = vpop.f32.mrb[0].mxu0
        %v7779 = vadd.f32 0.0, %v7778
        %v7780 = vpop.f32.mrb[0].mxu0
        %7781 = vmatprep.mubr.bf16.mxu0 0
        %7782 = vmatmul.mubr.bf16.gmra.mrb[0].mxu0 %v7627
        %v7783 = vpop.f32.mrb[0].mxu0
        %v7784 = vadd.f32 0.0, %v7783
        %v7785 = vpop.f32.mrb[0].mxu0
        %v7786 = vpop.f32.mrb[0].mxu0
        %v7787 = vadd.f32 0.0, %v7786
        %v7788 = vpop.f32.mrb[0].mxu0
        %7789 = vmatprep.mubr.bf16.mxu0 0
        %7790 = vmatmul.mubr.bf16.gmra.mrb[0].mxu0 %v7630
        %v7791 = vpop.f32.mrb[0].mxu0
        %v7792 = vadd.f32 0.0, %v7791
        %v7793 = vpop.f32.mrb[0].mxu0
        %v7794 = vpop.f32.mrb[0].mxu0
        %v7795 = vadd.f32 0.0, %v7794
        %v7796 = vpop.f32.mrb[0].mxu0
        %7797 = vmatprep.mubr.bf16.mxu0 0
        %7798 = vmatmul.mubr.bf16.gmra.mrb[0].mxu0 %v7633
        %v7799 = vpop.f32.mrb[0].mxu0
        %v7800 = vadd.f32 0.0, %v7799
        %v7801 = vpop.f32.mrb[0].mxu0
        %v7802 = vpop.f32.mrb[0].mxu0
        %v7803 = vadd.f32 0.0, %v7802
        %v7804 = vpop.f32.mrb[0].mxu0
        %7805 = vmatprep.mubr.bf16.mxu0 0
        %7806 = vmatmul.mubr.bf16.gmra.mrb[0].mxu0 %v7636
        %v7807 = vpop.f32.mrb[0].mxu0
        %v7808 = vadd.f32 0.0, %v7807
        %v7809 = vpop.f32.mrb[0].mxu0
        %v7810 = vpop.f32.mrb[0].mxu0
        %v7811 = vadd.f32 0.0, %v7810
        %v7812 = vpop.f32.mrb[0].mxu0
        %7813 = vmatprep.mubr.bf16.mxu0 0
        %7814 = vmatmul.mubr.bf16.gmra.mrb[0].mxu0 %v7639
        %v7815 = vpop.f32.mrb[0].mxu0
        %v7816 = vadd.f32 0.0, %v7815
        %v7817 = vpop.f32.mrb[0].mxu0
        %v7818 = vpop.f32.mrb[0].mxu0
        %v7819 = vadd.f32 0.0, %v7818
        %v7820 = vpop.f32.mrb[0].mxu0
        %7821 = vmatprep.mubr.bf16.mxu0 0
        %7822 = vmatmul.mubr.bf16.gmra.mrb[0].mxu0 %v7642
        %v7823 = vpop.f32.mrb[0].mxu0
        %v7824 = vadd.f32 0.0, %v7823
        %v7825 = vpop.f32.mrb[0].mxu0
        %v7826 = vpop.f32.mrb[0].mxu0
        %v7827 = vadd.f32 0.0, %v7826
        %v7828 = vpop.f32.mrb[0].mxu0
        %7829 = vmatprep.mubr.bf16.mxu0 0
        %7830 = vmatmul.mubr.bf16.gmra.mrb[0].mxu0 %v7645
        %v7831 = vpop.f32.mrb[0].mxu0
        %v7832 = vadd.f32 0.0, %v7831
        %v7833 = vpop.f32.mrb[0].mxu0
        %v7834 = vpop.f32.mrb[0].mxu0
        %v7835 = vadd.f32 0.0, %v7834
        %v7836 = vpop.f32.mrb[0].mxu0
        %7837 = vmatprep.mubr.bf16.mxu0 0
        %7838 = vmatmul.mubr.bf16.gmra.mrb[0].mxu0 %v7648
        %v7839 = vpop.f32.mrb[0].mxu0
        %v7840 = vadd.f32 0.0, %v7839
        %v7841 = vpop.f32.mrb[0].mxu0
        %v7842 = vpop.f32.mrb[0].mxu0
        %v7843 = vadd.f32 0.0, %v7842
        %v7844 = vpop.f32.mrb[0].mxu0
        %7845 = vmatprep.mubr.bf16.mxu0 0
        %7846 = vmatmul.mubr.bf16.gmra.mrb[0].mxu0 %v7651
        %v7847 = vpop.f32.mrb[0].mxu0
        %v7848 = vadd.f32 0.0, %v7847
        %v7849 = vpop.f32.mrb[0].mxu0
        %v7850 = vpop.f32.mrb[0].mxu0
        %v7851 = vadd.f32 0.0, %v7850
        %v7852 = vpop.f32.mrb[0].mxu0
        %7853 = vmatprep.mubr.bf16.mxu0 0
        %7854 = vmatmul.mubr.bf16.gmra.mrb[0].mxu0 %v7654
        %v7855 = vpop.f32.mrb[0].mxu0
        %v7856 = vadd.f32 0.0, %v7855
        %v7857 = vpop.f32.mrb[0].mxu0
        %v7858 = vpop.f32.mrb[0].mxu0
        %v7859 = vadd.f32 0.0, %v7858
        %v7860 = vpop.f32.mrb[0].mxu0
        %7861 = vmatprep.mubr.bf16.mxu0 0
        %7862 = vmatmul.mubr.bf16.gmra.mrb[0].mxu0 %v7657
        %v7863 = vpop.f32.mrb[0].mxu0
        %v7864 = vadd.f32 0.0, %v7863
        %v7865 = vpop.f32.mrb[0].mxu0
        %v7866 = vpop.f32.mrb[0].mxu0
        %v7867 = vadd.f32 0.0, %v7866
        %v7868 = vpop.f32.mrb[0].mxu0
        %7869 = vmatprep.mubr.bf16.mxu0 0
        %7870 = vmatmul.mubr.bf16.gmra.mrb[0].mxu0 %v7660
        %v7871 = vpop.f32.mrb[0].mxu0
        %v7872 = vadd.f32 0.0, %v7871
        %v7873 = vpop.f32.mrb[0].mxu0
        %v7874 = vpop.f32.mrb[0].mxu0
        %v7875 = vadd.f32 0.0, %v7874
        %v7876 = vpop.f32.mrb[0].mxu0
        %7877 = vmatprep.mubr.bf16.mxu0 0
        %7878 = vmatmul.mubr.bf16.gmra.mrb[0].mxu0 %v7663
        %v7879 = vpop.f32.mrb[0].mxu0
        %v7880 = vadd.f32 0.0, %v7879
        %v7881 = vpop.f32.mrb[0].mxu0
        %v7882 = vpop.f32.mrb[0].mxu0
        %v7883 = vadd.f32 0.0, %v7882
        %v7884 = vpop.f32.mrb[0].mxu0
        %7885 = vmatprep.mubr.bf16.mxu0 0
        %7886 = vmatmul.mubr.bf16.gmra.mrb[0].mxu0 %v7666
        %v7887 = vpop.f32.mrb[0].mxu0
        %v7888 = vadd.f32 0.0, %v7887
        %v7889 = vpop.f32.mrb[0].mxu0
        %v7890 = vpop.f32.mrb[0].mxu0
        %v7891 = vadd.f32 0.0, %v7890
        %v7892 = vpop.f32.mrb[0].mxu0
        %7893 = vmatprep.mubr.bf16.mxu0 0
        %7894 = vmatmul.mubr.bf16.gmra.mrb[0].mxu0 %v7669
        %v7895 = vpop.f32.mrb[0].mxu0
        %v7896 = vadd.f32 0.0, %v7895
        %v7897 = vpop.f32.mrb[0].mxu0
        %v7898 = vpop.f32.mrb[0].mxu0
        %v7899 = vadd.f32 0.0, %v7898
        %v7900 = vpop.f32.mrb[0].mxu0
        %7901 = vmatprep.mubr.bf16.mxu0 0
        %7902 = vmatmul.mubr.bf16.gmra.mrb[0].mxu0 %v7672
        %v7903 = vpop.f32.mrb[0].mxu0
        %v7904 = vadd.f32 0.0, %v7903
        %v7905 = vpop.f32.mrb[0].mxu0
        %v7906 = vpop.f32.mrb[0].mxu0
        %v7907 = vadd.f32 0.0, %v7906
        %v7908 = vpop.f32.mrb[0].mxu0
        %7909 = vmatprep.mubr.bf16.mxu0 0
        %7910 = vmatmul.mubr.bf16.gmra.mrb[0].mxu0 %v7675
        %v7911 = vpop.f32.mrb[0].mxu0
        %v7912 = vadd.f32 0.0, %v7911
        %v7913 = vpop.f32.mrb[0].mxu0
        %v7914 = vpop.f32.mrb[0].mxu0
        %v7915 = vadd.f32 0.0, %v7914
        %v7916 = vpop.f32.mrb[0].mxu0
        %7917 = vmatprep.mubr.bf16.mxu0 0
        %7918 = vmatmul.mubr.bf16.gmra.mrb[0].mxu0 %v7678
        %v7919 = vpop.f32.mrb[0].mxu0
        %v7920 = vadd.f32 0.0, %v7919
        %v7921 = vpop.f32.mrb[0].mxu0
        %v7922 = vpop.f32.mrb[0].mxu0
        %v7923 = vadd.f32 0.0, %v7922
        %v7924 = vpop.f32.mrb[0].mxu0
        %7925 = vmatprep.mubr.bf16.mxu0 0
        %7926 = vmatmul.mubr.bf16.gmra.mrb[0].mxu0 %v7681
        %v7927 = vpop.f32.mrb[0].mxu0
        %v7928 = vadd.f32 0.0, %v7927
        %v7929 = vpop.f32.mrb[0].mxu0
        %v7930 = vpop.f32.mrb[0].mxu0
        %v7931 = vadd.f32 0.0, %v7930
        %v7932 = vpop.f32.mrb[0].mxu0
        %7933 = vmatprep.mubr.bf16.mxu0 0
        %7934 = vmatmul.mubr.bf16.gmra.mrb[0].mxu0 %v7684
        %v7935 = vpop.f32.mrb[0].mxu0
        %v7936 = vadd.f32 0.0, %v7935
        %v7937 = vpop.f32.mrb[0].mxu0
        %v7938 = vpop.f32.mrb[0].mxu0
        %v7939 = vadd.f32 0.0, %v7938
        %v7940 = vpop.f32.mrb[0].mxu0
        %7941 = vmatprep.mubr.bf16.mxu0 0
        %7942 = vmatmul.mubr.bf16.gmra.mrb[0].mxu0 %v7687
        %v7943 = vpop.f32.mrb[0].mxu0
        %v7944 = vadd.f32 0.0, %v7943
        %v7945 = vpop.f32.mrb[0].mxu0
        %v7946 = vpop.f32.mrb[0].mxu0
        %v7947 = vadd.f32 0.0, %v7946
        %v7948 = vpop.f32.mrb[0].mxu0
        %7949 = vmatprep.mubr.bf16.mxu0 0
        %7950 = vmatmul.mubr.bf16.gmra.mrb[0].mxu0 %v7690
        %v7951 = vpop.f32.mrb[0].mxu0
        %v7952 = vadd.f32 0.0, %v7951
        %v7953 = vpop.f32.mrb[0].mxu0
        %v7954 = vpop.f32.mrb[0].mxu0
        %v7955 = vadd.f32 0.0, %v7954
        %v7956 = vpop.f32.mrb[0].mxu0
        %7957 = vmatprep.mubr.bf16.mxu0 0
        %7958 = vmatmul.mubr.bf16.gmra.mrb[0].mxu0 %v7693
        %v7959 = vpop.f32.mrb[0].mxu0
        %v7960 = vadd.f32 0.0, %v7959
        %v7961 = vpop.f32.mrb[0].mxu0
        %v7962 = vpop.f32.mrb[0].mxu0
        %v7963 = vadd.f32 0.0, %v7962
        %v7964 = vpop.f32.mrb[0].mxu0
        %7965 = vmatprep.mubr.bf16.mxu0 0
        %7966 = vmatmul.mubr.bf16.gmra.mrb[0].mxu0 %v7696
        %v7967 = vpop.f32.mrb[0].mxu0
        %v7968 = vadd.f32 0.0, %v7967
        %v7969 = vpop.f32.mrb[0].mxu0
        %v7970 = vpop.f32.mrb[0].mxu0
        %v7971 = vadd.f32 0.0, %v7970
        %v7972 = vpop.f32.mrb[0].mxu0
        %7973 = vmatprep.mubr.bf16.mxu0 0
        %7974 = vmatmul.mubr.bf16.gmra.mrb[0].mxu0 %v7699
        %v7975 = vpop.f32.mrb[0].mxu0
        %v7976 = vadd.f32 0.0, %v7975
        %v7977 = vpop.f32.mrb[0].mxu0
        %v7978 = vpop.f32.mrb[0].mxu0
        %v7979 = vadd.f32 0.0, %v7978
        %v7980 = vpop.f32.mrb[0].mxu0
        %7981 = vmatprep.mubr.bf16.mxu0 0
        %7982 = vmatmul.mubr.bf16.gmra.mrb[0].mxu0 %v7702
        %v7983 = vpop.f32.mrb[0].mxu0
        %v7984 = vadd.f32 0.0, %v7983
        %v7985 = vpop.f32.mrb[0].mxu0
        %v7986 = vpop.f32.mrb[0].mxu0
        %v7987 = vadd.f32 0.0, %v7986
        %v7988 = vpop.f32.mrb[0].mxu0
        %7989 = vmatprep.mubr.bf16.mxu0 0
        %7990 = vmatmul.mubr.bf16.gmra.mrb[0].mxu0 %v7705
        %v7991 = vpop.f32.mrb[0].mxu0
        %v7992 = vadd.f32 0.0, %v7991
        %v7993 = vpop.f32.mrb[0].mxu0
        %v7994 = vpop.f32.mrb[0].mxu0
        %v7995 = vadd.f32 0.0, %v7994
        %v7996 = vpop.f32.mrb[0].mxu0
        %7997 = vmatprep.mubr.bf16.mxu0 0
        %7998 = vmatmul.mubr.bf16.gmra.mrb[0].mxu0 %v7708
        %v7999 = vpop.f32.mrb[0].mxu0
        %v8000 = vadd.f32 0.0, %v7999
        %v8001 = vpop.f32.mrb[0].mxu0
        %v8002 = vpop.f32.mrb[0].mxu0
        %v8003 = vadd.f32 0.0, %v8002
        %v8004 = vpop.f32.mrb[0].mxu0
        %8005 = vmatprep.mubr.bf16.mxu0 0
        %8006 = vmatmul.mubr.bf16.gmra.mrb[0].mxu0 %v7711
        %v8007 = vpop.f32.mrb[0].mxu0
        %v8008 = vadd.f32 0.0, %v8007
        %v8009 = vpop.f32.mrb[0].mxu0
        %v8010 = vpop.f32.mrb[0].mxu0
        %v8011 = vadd.f32 0.0, %v8010
        %v8012 = vpop.f32.mrb[0].mxu0
        %8013 = vmatprep.mubr.bf16.mxu0 0
        %8014 = vmatmul.mubr.bf16.gmra.mrb[0].mxu0 %v7714
        %v8015 = vpop.f32.mrb[0].mxu0
        %v8016 = vadd.f32 0.0, %v8015
        %v8017 = vpop.f32.mrb[0].mxu0
        %v8018 = vpop.f32.mrb[0].mxu0
        %v8019 = vadd.f32 0.0, %v8018
        %v8020 = vpop.f32.mrb[0].mxu0
        %8021 = vmatprep.mubr.bf16.mxu0 0
        %8022 = vmatmul.mubr.bf16.gmra.mrb[0].mxu0 %v7717
        %v8023 = vpop.f32.mrb[0].mxu0
        %v8024 = vadd.f32 0.0, %v8023
        %v8025 = vpop.f32.mrb[0].mxu0
        %v8026 = vpop.f32.mrb[0].mxu0
        %v8027 = vadd.f32 0.0, %v8026
        %v8028 = vpop.f32.mrb[0].mxu0
        %8029 = vmatprep.mubr.bf16.mxu0 0
        %8030 = vmatmul.mubr.bf16.gmra.mrb[0].mxu0 %v7720
        %v8031 = vpop.f32.mrb[0].mxu0
        %v8032 = vadd.f32 0.0, %v8031
        %v8033 = vpop.f32.mrb[0].mxu0
        %v8034 = vpop.f32.mrb[0].mxu0
        %v8035 = vadd.f32 0.0, %v8034
        %v8036 = vpop.f32.mrb[0].mxu0
        %8037 = vmatprep.mubr.bf16.mxu0 0
        %8038 = vmatmul.mubr.bf16.gmra.mrb[0].mxu0 %v7723
        %v8039 = vpop.f32.mrb[0].mxu0
        %v8040 = vadd.f32 0.0, %v8039
        %v8041 = vpop.f32.mrb[0].mxu0
        %v8042 = vpop.f32.mrb[0].mxu0
        %v8043 = vadd.f32 0.0, %v8042
        %v8044 = vpop.f32.mrb[0].mxu0
        %8045 = vdwg.mxu0
        %v8046 = vadd.f32 %v7497, %v7760
        %v8047 = vadd.f32 %v7498, %v7763
        %v8048 = vadd.f32 %v7499, %v7768
        %v8049 = vadd.f32 %v7500, %v7771
        %v8050 = vadd.f32 %v7501, %v7776
        %v8051 = vadd.f32 %v7502, %v7779
        %v8052 = vadd.f32 %v7503, %v7784
        %v8053 = vadd.f32 %v7504, %v7787
        %v8054 = vadd.f32 %v7505, %v7792
        %v8055 = vadd.f32 %v7506, %v7795
        %v8056 = vadd.f32 %v7507, %v7800
        %v8057 = vadd.f32 %v7508, %v7803
        %v8058 = vadd.f32 %v7509, %v7808
        %v8059 = vadd.f32 %v7510, %v7811
        %v8060 = vadd.f32 %v7511, %v7816
        %v8061 = vadd.f32 %v7512, %v7819
        %v8062 = vadd.f32 %v7513, %v7824
        %v8063 = vadd.f32 %v7514, %v7827
        %v8064 = vadd.f32 %v7515, %v7832
        %v8065 = vadd.f32 %v7516, %v7835
        %v8066 = vadd.f32 %v7517, %v7840
        %v8067 = vadd.f32 %v7518, %v7843
        %v8068 = vadd.f32 %v7519, %v7848
        %v8069 = vadd.f32 %v7520, %v7851
        %v8070 = vadd.f32 %v7521, %v7856
        %v8071 = vadd.f32 %v7522, %v7859
        %v8072 = vadd.f32 %v7523, %v7864
        %v8073 = vadd.f32 %v7524, %v7867
        %v8074 = vadd.f32 %v7525, %v7872
        %v8075 = vadd.f32 %v7526, %v7875
        %v8076 = vadd.f32 %v7527, %v7880
        %v8077 = vadd.f32 %v7528, %v7883
        %v8078 = vadd.f32 %v7529, %v7888
        %v8079 = vadd.f32 %v7530, %v7891
        %v8080 = vadd.f32 %v7531, %v7896
        %v8081 = vadd.f32 %v7532, %v7899
        %v8082 = vadd.f32 %v7533, %v7904
        %v8083 = vadd.f32 %v7534, %v7907
        %v8084 = vadd.f32 %v7535, %v7912
        %v8085 = vadd.f32 %v7536, %v7915
        %v8086 = vadd.f32 %v7537, %v7920
        %v8087 = vadd.f32 %v7538, %v7923
        %v8088 = vadd.f32 %v7539, %v7928
        %v8089 = vadd.f32 %v7540, %v7931
        %v8090 = vadd.f32 %v7541, %v7936
        %v8091 = vadd.f32 %v7542, %v7939
        %v8092 = vadd.f32 %v7543, %v7944
        %v8093 = vadd.f32 %v7544, %v7947
        %v8094 = vadd.f32 %v7545, %v7952
        %v8095 = vadd.f32 %v7546, %v7955
        %v8096 = vadd.f32 %v7547, %v7960
        %v8097 = vadd.f32 %v7548, %v7963
        %v8098 = vadd.f32 %v7549, %v7968
        %v8099 = vadd.f32 %v7550, %v7971
        %v8100 = vadd.f32 %v7551, %v7976
        %v8101 = vadd.f32 %v7552, %v7979
        %v8102 = vadd.f32 %v7553, %v7984
        %v8103 = vadd.f32 %v7554, %v7987
        %v8104 = vadd.f32 %v7555, %v7992
        %v8105 = vadd.f32 %v7556, %v7995
        %v8106 = vadd.f32 %v7557, %v8000
        %v8107 = vadd.f32 %v7558, %v8003
        %v8108 = vadd.f32 %v7559, %v8008
        %v8109 = vadd.f32 %v7560, %v8011
        %v8110 = vadd.f32 %v7561, %v8016
        %v8111 = vadd.f32 %v7562, %v8019
        %v8112 = vadd.f32 %v7563, %v8024
        %v8113 = vadd.f32 %v7564, %v8027
        %v8114 = vadd.f32 %v7565, %v8032
        %v8115 = vadd.f32 %v7566, %v8035
        %v8116 = vadd.f32 %v7567, %v8040
        %v8117 = vadd.f32 %v7568, %v8043
        %v8118 = vpack.c.bf16 %v5520, %v5518
        %v8119 = vpack.c.bf16 %v5525, %v5522
        %v8120 = vpack.c.bf16 %v5529, %v5527
        %v8121 = vpack.c.bf16 %v5534, %v5532
        %v8122 = vpack.c.bf16 %v5539, %v5536
        %v8123 = vpack.c.bf16 %v5543, %v5541
        %v8124 = vpack.c.bf16 %v5548, %v5546
        %v8125 = vpack.c.bf16 %v5553, %v5550
        %v8126 = vpack.c.bf16 %v5557, %v5555
        %v8127 = vpack.c.bf16 %v5562, %v5560
        %v8128 = vpack.c.bf16 %v5567, %v5564
        %v8129 = vpack.c.bf16 %v5571, %v5569
        %v8130 = vpack.c.bf16 %v5576, %v5574
        %v8131 = vpack.c.bf16 %v5581, %v5578
        %v8132 = vpack.c.bf16 %v5585, %v5583
        %v8133 = vpack.c.bf16 %v5590, %v5588
        %v8134 = vpack.c.bf16 %v5595, %v5592
        %v8135 = vpack.c.bf16 %v5599, %v5597
        %v8136 = vpack.c.bf16 %v5604, %v5602
        %v8137 = vpack.c.bf16 %v5609, %v5606
        %v8138 = vpack.c.bf16 %v5613, %v5611
        %v8139 = vpack.c.bf16 %v5618, %v5616
        %v8140 = vpack.c.bf16 %v5623, %v5620
        %v8141 = vpack.c.bf16 %v5627, %v5625
        %v8142 = vpack.c.bf16 %v5632, %v5630
        %v8143 = vpack.c.bf16 %v5637, %v5634
        %v8144 = vpack.c.bf16 %v5641, %v5639
        %v8145 = vpack.c.bf16 %v5646, %v5644
        %v8146 = vpack.c.bf16 %v5651, %v5648
        %v8147 = vpack.c.bf16 %v5655, %v5653
        %v8148 = vpack.c.bf16 %v5660, %v5658
        %v8149 = vpack.c.bf16 %v5665, %v5662
        %v8150 = vpack.c.bf16 %v5669, %v5667
        %v8151 = vpack.c.bf16 %v5674, %v5672
        %v8152 = vpack.c.bf16 %v5679, %v5676
        %v8153 = vpack.c.bf16 %v5683, %v5681
        %v8158 = vunpack.c.l.b16 %v6045
        %v8159 = vunpack.c.l.b16 %v6046
        %v8160 = vunpack.c.l.b16 %v6047
        %v8161 = vunpack.c.l.b16 %v6048
        %v8162 = vpack.c.b16 %v8159, %v8158
        %v8163 = vpack.c.b16 %v8161, %v8160
        %v8167 = vsel %vm6149, %v8118, 0
        %v8170 = vsel %vm6149, %v8119, 0
        %v8173 = vsel %vm6149, %v8120, 0
        %v8176 = vsel %vm6149, %v8121, 0
        %v8179 = vsel %vm6149, %v8122, 0
        %v8182 = vsel %vm6149, %v8123, 0
        %v8185 = vsel %vm6149, %v8124, 0
        %v8188 = vsel %vm6149, %v8125, 0
        %v8191 = vsel %vm6149, %v8126, 0
        %v8194 = vsel %vm6149, %v8127, 0
        %v8197 = vsel %vm6149, %v8128, 0
        %v8200 = vsel %vm6149, %v8129, 0
        %v8203 = vsel %vm6149, %v8130, 0
        %v8206 = vsel %vm6149, %v8131, 0
        %v8209 = vsel %vm6149, %v8132, 0
        %v8212 = vsel %vm6149, %v8133, 0
        %v8215 = vsel %vm6149, %v8134, 0
        %v8218 = vsel %vm6149, %v8135, 0
        %v8221 = vsel %vm6149, %v8136, 0
        %v8224 = vsel %vm6149, %v8137, 0
        %v8227 = vsel %vm6149, %v8138, 0
        %v8230 = vsel %vm6149, %v8139, 0
        %v8233 = vsel %vm6149, %v8140, 0
        %v8236 = vsel %vm6149, %v8141, 0
        %v8239 = vsel %vm6149, %v8142, 0
        %v8242 = vsel %vm6149, %v8143, 0
        %v8245 = vsel %vm6149, %v8144, 0
        %v8248 = vsel %vm6149, %v8145, 0
        %v8251 = vsel %vm6149, %v8146, 0
        %v8254 = vsel %vm6149, %v8147, 0
        %v8257 = vsel %vm6149, %v8148, 0
        %v8260 = vsel %vm6149, %v8149, 0
        %v8263 = vsel %vm6149, %v8150, 0
        %v8266 = vsel %vm6149, %v8151, 0
        %v8269 = vsel %vm6149, %v8152, 0
        %v8272 = vsel %vm6149, %v8153, 0
        %8274 = vmatprep.subr.bf16.mxu0 0
        %8275 = vmatpush1.bf16.msra.mxu0 %v8162
        %8276 = vmatprep.subr.bf16.mxu0 0
        %8277 = vmatpush1.bf16.msra.mxu0 %v8163
        %8278 = vmatprep.subr.bf16.mxu0 0
        %8279 = vmatpush1.bf16.msra.mxu0 0
        %8280 = vmatprep.subr.bf16.mxu0 0
        %8281 = vmatpush1.bf16.msra.mxu0 0
        %8282 = vmatprep.subr.bf16.mxu0 0
        %8283 = vmatpush1.bf16.msra.mxu0 0
        %8284 = vmatprep.subr.bf16.mxu0 0
        %8285 = vmatpush1.bf16.msra.mxu0 0
        %8286 = vmatprep.subr.bf16.mxu0 0
        %8287 = vmatpush1.bf16.msra.mxu0 0
        %8288 = vmatprep.subr.bf16.mxu0 0
        %8289 = vmatpush1.bf16.msra.mxu0 0
        %8290 = vmatprep.subr.bf16.mxu0 0
        %8291 = vmatpush1.bf16.msra.mxu0 0
        %8292 = vmatprep.subr.bf16.mxu0 0
        %8293 = vmatpush1.bf16.msra.mxu0 0
        %8294 = vmatprep.subr.bf16.mxu0 0
        %8295 = vmatpush1.bf16.msra.mxu0 0
        %8296 = vmatprep.subr.bf16.mxu0 0
        %8297 = vmatpush1.bf16.msra.mxu0 0
        %8298 = vmatprep.subr.bf16.mxu0 0
        %8299 = vmatpush1.bf16.msra.mxu0 0
        %8300 = vmatprep.subr.bf16.mxu0 0
        %8301 = vmatpush1.bf16.msra.mxu0 0
        %8302 = vmatprep.subr.bf16.mxu0 0
        %8303 = vmatpush1.bf16.msra.mxu0 0
        %8304 = vmatprep.subr.bf16.mxu0 0
        %8305 = vmatpush1.bf16.msra.mxu0 0
        %8306 = vmatprep.mubr.bf16.mxu0 0
        %8307 = vmatmul.mubr.bf16.gmra.mrb[0].mxu0 %v8167
        %v8308 = vpop.f32.mrb[0].mxu0
        %v8309 = vadd.f32 0.0, %v8308
        %v8310 = vpop.f32.mrb[0].mxu0
        %v8311 = vpop.f32.mrb[0].mxu0
        %v8312 = vadd.f32 0.0, %v8311
        %v8313 = vpop.f32.mrb[0].mxu0
        %8314 = vmatprep.mubr.bf16.mxu0 0
        %8315 = vmatmul.mubr.bf16.gmra.mrb[0].mxu0 %v8170
        %v8316 = vpop.f32.mrb[0].mxu0
        %v8317 = vadd.f32 0.0, %v8316
        %v8318 = vpop.f32.mrb[0].mxu0
        %v8319 = vpop.f32.mrb[0].mxu0
        %v8320 = vadd.f32 0.0, %v8319
        %v8321 = vpop.f32.mrb[0].mxu0
        %8322 = vmatprep.mubr.bf16.mxu0 0
        %8323 = vmatmul.mubr.bf16.gmra.mrb[0].mxu0 %v8173
        %v8324 = vpop.f32.mrb[0].mxu0
        %v8325 = vadd.f32 0.0, %v8324
        %v8326 = vpop.f32.mrb[0].mxu0
        %v8327 = vpop.f32.mrb[0].mxu0
        %v8328 = vadd.f32 0.0, %v8327
        %v8329 = vpop.f32.mrb[0].mxu0
        %8330 = vmatprep.mubr.bf16.mxu0 0
        %8331 = vmatmul.mubr.bf16.gmra.mrb[0].mxu0 %v8176
        %v8332 = vpop.f32.mrb[0].mxu0
        %v8333 = vadd.f32 0.0, %v8332
        %v8334 = vpop.f32.mrb[0].mxu0
        %v8335 = vpop.f32.mrb[0].mxu0
        %v8336 = vadd.f32 0.0, %v8335
        %v8337 = vpop.f32.mrb[0].mxu0
        %8338 = vmatprep.mubr.bf16.mxu0 0
        %8339 = vmatmul.mubr.bf16.gmra.mrb[0].mxu0 %v8179
        %v8340 = vpop.f32.mrb[0].mxu0
        %v8341 = vadd.f32 0.0, %v8340
        %v8342 = vpop.f32.mrb[0].mxu0
        %v8343 = vpop.f32.mrb[0].mxu0
        %v8344 = vadd.f32 0.0, %v8343
        %v8345 = vpop.f32.mrb[0].mxu0
        %8346 = vmatprep.mubr.bf16.mxu0 0
        %8347 = vmatmul.mubr.bf16.gmra.mrb[0].mxu0 %v8182
        %v8348 = vpop.f32.mrb[0].mxu0
        %v8349 = vadd.f32 0.0, %v8348
        %v8350 = vpop.f32.mrb[0].mxu0
        %v8351 = vpop.f32.mrb[0].mxu0
        %v8352 = vadd.f32 0.0, %v8351
        %v8353 = vpop.f32.mrb[0].mxu0
        %8354 = vmatprep.mubr.bf16.mxu0 0
        %8355 = vmatmul.mubr.bf16.gmra.mrb[0].mxu0 %v8185
        %v8356 = vpop.f32.mrb[0].mxu0
        %v8357 = vadd.f32 0.0, %v8356
        %v8358 = vpop.f32.mrb[0].mxu0
        %v8359 = vpop.f32.mrb[0].mxu0
        %v8360 = vadd.f32 0.0, %v8359
        %v8361 = vpop.f32.mrb[0].mxu0
        %8362 = vmatprep.mubr.bf16.mxu0 0
        %8363 = vmatmul.mubr.bf16.gmra.mrb[0].mxu0 %v8188
        %v8364 = vpop.f32.mrb[0].mxu0
        %v8365 = vadd.f32 0.0, %v8364
        %v8366 = vpop.f32.mrb[0].mxu0
        %v8367 = vpop.f32.mrb[0].mxu0
        %v8368 = vadd.f32 0.0, %v8367
        %v8369 = vpop.f32.mrb[0].mxu0
        %8370 = vmatprep.mubr.bf16.mxu0 0
        %8371 = vmatmul.mubr.bf16.gmra.mrb[0].mxu0 %v8191
        %v8372 = vpop.f32.mrb[0].mxu0
        %v8373 = vadd.f32 0.0, %v8372
        %v8374 = vpop.f32.mrb[0].mxu0
        %v8375 = vpop.f32.mrb[0].mxu0
        %v8376 = vadd.f32 0.0, %v8375
        %v8377 = vpop.f32.mrb[0].mxu0
        %8378 = vmatprep.mubr.bf16.mxu0 0
        %8379 = vmatmul.mubr.bf16.gmra.mrb[0].mxu0 %v8194
        %v8380 = vpop.f32.mrb[0].mxu0
        %v8381 = vadd.f32 0.0, %v8380
        %v8382 = vpop.f32.mrb[0].mxu0
        %v8383 = vpop.f32.mrb[0].mxu0
        %v8384 = vadd.f32 0.0, %v8383
        %v8385 = vpop.f32.mrb[0].mxu0
        %8386 = vmatprep.mubr.bf16.mxu0 0
        %8387 = vmatmul.mubr.bf16.gmra.mrb[0].mxu0 %v8197
        %v8388 = vpop.f32.mrb[0].mxu0
        %v8389 = vadd.f32 0.0, %v8388
        %v8390 = vpop.f32.mrb[0].mxu0
        %v8391 = vpop.f32.mrb[0].mxu0
        %v8392 = vadd.f32 0.0, %v8391
        %v8393 = vpop.f32.mrb[0].mxu0
        %8394 = vmatprep.mubr.bf16.mxu0 0
        %8395 = vmatmul.mubr.bf16.gmra.mrb[0].mxu0 %v8200
        %v8396 = vpop.f32.mrb[0].mxu0
        %v8397 = vadd.f32 0.0, %v8396
        %v8398 = vpop.f32.mrb[0].mxu0
        %v8399 = vpop.f32.mrb[0].mxu0
        %v8400 = vadd.f32 0.0, %v8399
        %v8401 = vpop.f32.mrb[0].mxu0
        %8402 = vmatprep.mubr.bf16.mxu0 0
        %8403 = vmatmul.mubr.bf16.gmra.mrb[0].mxu0 %v8203
        %v8404 = vpop.f32.mrb[0].mxu0
        %v8405 = vadd.f32 0.0, %v8404
        %v8406 = vpop.f32.mrb[0].mxu0
        %v8407 = vpop.f32.mrb[0].mxu0
        %v8408 = vadd.f32 0.0, %v8407
        %v8409 = vpop.f32.mrb[0].mxu0
        %8410 = vmatprep.mubr.bf16.mxu0 0
        %8411 = vmatmul.mubr.bf16.gmra.mrb[0].mxu0 %v8206
        %v8412 = vpop.f32.mrb[0].mxu0
        %v8413 = vadd.f32 0.0, %v8412
        %v8414 = vpop.f32.mrb[0].mxu0
        %v8415 = vpop.f32.mrb[0].mxu0
        %v8416 = vadd.f32 0.0, %v8415
        %v8417 = vpop.f32.mrb[0].mxu0
        %8418 = vmatprep.mubr.bf16.mxu0 0
        %8419 = vmatmul.mubr.bf16.gmra.mrb[0].mxu0 %v8209
        %v8420 = vpop.f32.mrb[0].mxu0
        %v8421 = vadd.f32 0.0, %v8420
        %v8422 = vpop.f32.mrb[0].mxu0
        %v8423 = vpop.f32.mrb[0].mxu0
        %v8424 = vadd.f32 0.0, %v8423
        %v8425 = vpop.f32.mrb[0].mxu0
        %8426 = vmatprep.mubr.bf16.mxu0 0
        %8427 = vmatmul.mubr.bf16.gmra.mrb[0].mxu0 %v8212
        %v8428 = vpop.f32.mrb[0].mxu0
        %v8429 = vadd.f32 0.0, %v8428
        %v8430 = vpop.f32.mrb[0].mxu0
        %v8431 = vpop.f32.mrb[0].mxu0
        %v8432 = vadd.f32 0.0, %v8431
        %v8433 = vpop.f32.mrb[0].mxu0
        %8434 = vmatprep.mubr.bf16.mxu0 0
        %8435 = vmatmul.mubr.bf16.gmra.mrb[0].mxu0 %v8215
        %v8436 = vpop.f32.mrb[0].mxu0
        %v8437 = vadd.f32 0.0, %v8436
        %v8438 = vpop.f32.mrb[0].mxu0
        %v8439 = vpop.f32.mrb[0].mxu0
        %v8440 = vadd.f32 0.0, %v8439
        %v8441 = vpop.f32.mrb[0].mxu0
        %8442 = vmatprep.mubr.bf16.mxu0 0
        %8443 = vmatmul.mubr.bf16.gmra.mrb[0].mxu0 %v8218
        %v8444 = vpop.f32.mrb[0].mxu0
        %v8445 = vadd.f32 0.0, %v8444
        %v8446 = vpop.f32.mrb[0].mxu0
        %v8447 = vpop.f32.mrb[0].mxu0
        %v8448 = vadd.f32 0.0, %v8447
        %v8449 = vpop.f32.mrb[0].mxu0
        %8450 = vmatprep.mubr.bf16.mxu0 0
        %8451 = vmatmul.mubr.bf16.gmra.mrb[0].mxu0 %v8221
        %v8452 = vpop.f32.mrb[0].mxu0
        %v8453 = vadd.f32 0.0, %v8452
        %v8454 = vpop.f32.mrb[0].mxu0
        %v8455 = vpop.f32.mrb[0].mxu0
        %v8456 = vadd.f32 0.0, %v8455
        %v8457 = vpop.f32.mrb[0].mxu0
        %8458 = vmatprep.mubr.bf16.mxu0 0
        %8459 = vmatmul.mubr.bf16.gmra.mrb[0].mxu0 %v8224
        %v8460 = vpop.f32.mrb[0].mxu0
        %v8461 = vadd.f32 0.0, %v8460
        %v8462 = vpop.f32.mrb[0].mxu0
        %v8463 = vpop.f32.mrb[0].mxu0
        %v8464 = vadd.f32 0.0, %v8463
        %v8465 = vpop.f32.mrb[0].mxu0
        %8466 = vmatprep.mubr.bf16.mxu0 0
        %8467 = vmatmul.mubr.bf16.gmra.mrb[0].mxu0 %v8227
        %v8468 = vpop.f32.mrb[0].mxu0
        %v8469 = vadd.f32 0.0, %v8468
        %v8470 = vpop.f32.mrb[0].mxu0
        %v8471 = vpop.f32.mrb[0].mxu0
        %v8472 = vadd.f32 0.0, %v8471
        %v8473 = vpop.f32.mrb[0].mxu0
        %8474 = vmatprep.mubr.bf16.mxu0 0
        %8475 = vmatmul.mubr.bf16.gmra.mrb[0].mxu0 %v8230
        %v8476 = vpop.f32.mrb[0].mxu0
        %v8477 = vadd.f32 0.0, %v8476
        %v8478 = vpop.f32.mrb[0].mxu0
        %v8479 = vpop.f32.mrb[0].mxu0
        %v8480 = vadd.f32 0.0, %v8479
        %v8481 = vpop.f32.mrb[0].mxu0
        %8482 = vmatprep.mubr.bf16.mxu0 0
        %8483 = vmatmul.mubr.bf16.gmra.mrb[0].mxu0 %v8233
        %v8484 = vpop.f32.mrb[0].mxu0
        %v8485 = vadd.f32 0.0, %v8484
        %v8486 = vpop.f32.mrb[0].mxu0
        %v8487 = vpop.f32.mrb[0].mxu0
        %v8488 = vadd.f32 0.0, %v8487
        %v8489 = vpop.f32.mrb[0].mxu0
        %8490 = vmatprep.mubr.bf16.mxu0 0
        %8491 = vmatmul.mubr.bf16.gmra.mrb[0].mxu0 %v8236
        %v8492 = vpop.f32.mrb[0].mxu0
        %v8493 = vadd.f32 0.0, %v8492
        %v8494 = vpop.f32.mrb[0].mxu0
        %v8495 = vpop.f32.mrb[0].mxu0
        %v8496 = vadd.f32 0.0, %v8495
        %v8497 = vpop.f32.mrb[0].mxu0
        %8498 = vmatprep.mubr.bf16.mxu0 0
        %8499 = vmatmul.mubr.bf16.gmra.mrb[0].mxu0 %v8239
        %v8500 = vpop.f32.mrb[0].mxu0
        %v8501 = vadd.f32 0.0, %v8500
        %v8502 = vpop.f32.mrb[0].mxu0
        %v8503 = vpop.f32.mrb[0].mxu0
        %v8504 = vadd.f32 0.0, %v8503
        %v8505 = vpop.f32.mrb[0].mxu0
        %8506 = vmatprep.mubr.bf16.mxu0 0
        %8507 = vmatmul.mubr.bf16.gmra.mrb[0].mxu0 %v8242
        %v8508 = vpop.f32.mrb[0].mxu0
        %v8509 = vadd.f32 0.0, %v8508
        %v8510 = vpop.f32.mrb[0].mxu0
        %v8511 = vpop.f32.mrb[0].mxu0
        %v8512 = vadd.f32 0.0, %v8511
        %v8513 = vpop.f32.mrb[0].mxu0
        %8514 = vmatprep.mubr.bf16.mxu0 0
        %8515 = vmatmul.mubr.bf16.gmra.mrb[0].mxu0 %v8245
        %v8516 = vpop.f32.mrb[0].mxu0
        %v8517 = vadd.f32 0.0, %v8516
        %v8518 = vpop.f32.mrb[0].mxu0
        %v8519 = vpop.f32.mrb[0].mxu0
        %v8520 = vadd.f32 0.0, %v8519
        %v8521 = vpop.f32.mrb[0].mxu0
        %8522 = vmatprep.mubr.bf16.mxu0 0
        %8523 = vmatmul.mubr.bf16.gmra.mrb[0].mxu0 %v8248
        %v8524 = vpop.f32.mrb[0].mxu0
        %v8525 = vadd.f32 0.0, %v8524
        %v8526 = vpop.f32.mrb[0].mxu0
        %v8527 = vpop.f32.mrb[0].mxu0
        %v8528 = vadd.f32 0.0, %v8527
        %v8529 = vpop.f32.mrb[0].mxu0
        %8530 = vmatprep.mubr.bf16.mxu0 0
        %8531 = vmatmul.mubr.bf16.gmra.mrb[0].mxu0 %v8251
        %v8532 = vpop.f32.mrb[0].mxu0
        %v8533 = vadd.f32 0.0, %v8532
        %v8534 = vpop.f32.mrb[0].mxu0
        %v8535 = vpop.f32.mrb[0].mxu0
        %v8536 = vadd.f32 0.0, %v8535
        %v8537 = vpop.f32.mrb[0].mxu0
        %8538 = vmatprep.mubr.bf16.mxu0 0
        %8539 = vmatmul.mubr.bf16.gmra.mrb[0].mxu0 %v8254
        %v8540 = vpop.f32.mrb[0].mxu0
        %v8541 = vadd.f32 0.0, %v8540
        %v8542 = vpop.f32.mrb[0].mxu0
        %v8543 = vpop.f32.mrb[0].mxu0
        %v8544 = vadd.f32 0.0, %v8543
        %v8545 = vpop.f32.mrb[0].mxu0
        %8546 = vmatprep.mubr.bf16.mxu0 0
        %8547 = vmatmul.mubr.bf16.gmra.mrb[0].mxu0 %v8257
        %v8548 = vpop.f32.mrb[0].mxu0
        %v8549 = vadd.f32 0.0, %v8548
        %v8550 = vpop.f32.mrb[0].mxu0
        %v8551 = vpop.f32.mrb[0].mxu0
        %v8552 = vadd.f32 0.0, %v8551
        %v8553 = vpop.f32.mrb[0].mxu0
        %8554 = vmatprep.mubr.bf16.mxu0 0
        %8555 = vmatmul.mubr.bf16.gmra.mrb[0].mxu0 %v8260
        %v8556 = vpop.f32.mrb[0].mxu0
        %v8557 = vadd.f32 0.0, %v8556
        %v8558 = vpop.f32.mrb[0].mxu0
        %v8559 = vpop.f32.mrb[0].mxu0
        %v8560 = vadd.f32 0.0, %v8559
        %v8561 = vpop.f32.mrb[0].mxu0
        %8562 = vmatprep.mubr.bf16.mxu0 0
        %8563 = vmatmul.mubr.bf16.gmra.mrb[0].mxu0 %v8263
        %v8564 = vpop.f32.mrb[0].mxu0
        %v8565 = vadd.f32 0.0, %v8564
        %v8566 = vpop.f32.mrb[0].mxu0
        %v8567 = vpop.f32.mrb[0].mxu0
        %v8568 = vadd.f32 0.0, %v8567
        %v8569 = vpop.f32.mrb[0].mxu0
        %8570 = vmatprep.mubr.bf16.mxu0 0
        %8571 = vmatmul.mubr.bf16.gmra.mrb[0].mxu0 %v8266
        %v8572 = vpop.f32.mrb[0].mxu0
        %v8573 = vadd.f32 0.0, %v8572
        %v8574 = vpop.f32.mrb[0].mxu0
        %v8575 = vpop.f32.mrb[0].mxu0
        %v8576 = vadd.f32 0.0, %v8575
        %v8577 = vpop.f32.mrb[0].mxu0
        %8578 = vmatprep.mubr.bf16.mxu0 0
        %8579 = vmatmul.mubr.bf16.gmra.mrb[0].mxu0 %v8269
        %v8580 = vpop.f32.mrb[0].mxu0
        %v8581 = vadd.f32 0.0, %v8580
        %v8582 = vpop.f32.mrb[0].mxu0
        %v8583 = vpop.f32.mrb[0].mxu0
        %v8584 = vadd.f32 0.0, %v8583
        %v8585 = vpop.f32.mrb[0].mxu0
        %8586 = vmatprep.mubr.bf16.mxu0 0
        %8587 = vmatmul.mubr.bf16.gmra.mrb[0].mxu0 %v8272
        %v8588 = vpop.f32.mrb[0].mxu0
        %v8589 = vadd.f32 0.0, %v8588
        %v8590 = vpop.f32.mrb[0].mxu0
        %v8591 = vpop.f32.mrb[0].mxu0
        %v8592 = vadd.f32 0.0, %v8591
        %v8593 = vpop.f32.mrb[0].mxu0
        %8594 = vdwg.mxu0
        %v8595 = vadd.f32 %v8046, %v8309
        %v8596 = vadd.f32 %v8047, %v8312
        %v8597 = vadd.f32 %v8048, %v8317
        %v8598 = vadd.f32 %v8049, %v8320
        %v8599 = vadd.f32 %v8050, %v8325
        %v8600 = vadd.f32 %v8051, %v8328
        %v8601 = vadd.f32 %v8052, %v8333
        %v8602 = vadd.f32 %v8053, %v8336
        %v8603 = vadd.f32 %v8054, %v8341
        %v8604 = vadd.f32 %v8055, %v8344
        %v8605 = vadd.f32 %v8056, %v8349
        %v8606 = vadd.f32 %v8057, %v8352
        %v8607 = vadd.f32 %v8058, %v8357
        %v8608 = vadd.f32 %v8059, %v8360
        %v8609 = vadd.f32 %v8060, %v8365
        %v8610 = vadd.f32 %v8061, %v8368
        %v8611 = vadd.f32 %v8062, %v8373
        %v8612 = vadd.f32 %v8063, %v8376
        %v8613 = vadd.f32 %v8064, %v8381
        %v8614 = vadd.f32 %v8065, %v8384
        %v8615 = vadd.f32 %v8066, %v8389
        %v8616 = vadd.f32 %v8067, %v8392
        %v8617 = vadd.f32 %v8068, %v8397
        %v8618 = vadd.f32 %v8069, %v8400
        %v8619 = vadd.f32 %v8070, %v8405
        %v8620 = vadd.f32 %v8071, %v8408
        %v8621 = vadd.f32 %v8072, %v8413
        %v8622 = vadd.f32 %v8073, %v8416
        %v8623 = vadd.f32 %v8074, %v8421
        %v8624 = vadd.f32 %v8075, %v8424
        %v8625 = vadd.f32 %v8076, %v8429
        %v8626 = vadd.f32 %v8077, %v8432
        %v8627 = vadd.f32 %v8078, %v8437
        %v8628 = vadd.f32 %v8079, %v8440
        %v8629 = vadd.f32 %v8080, %v8445
        %v8630 = vadd.f32 %v8081, %v8448
        %v8631 = vadd.f32 %v8082, %v8453
        %v8632 = vadd.f32 %v8083, %v8456
        %v8633 = vadd.f32 %v8084, %v8461
        %v8634 = vadd.f32 %v8085, %v8464
        %v8635 = vadd.f32 %v8086, %v8469
        %v8636 = vadd.f32 %v8087, %v8472
        %v8637 = vadd.f32 %v8088, %v8477
        %v8638 = vadd.f32 %v8089, %v8480
        %v8639 = vadd.f32 %v8090, %v8485
        %v8640 = vadd.f32 %v8091, %v8488
        %v8641 = vadd.f32 %v8092, %v8493
        %v8642 = vadd.f32 %v8093, %v8496
        %v8643 = vadd.f32 %v8094, %v8501
        %v8644 = vadd.f32 %v8095, %v8504
        %v8645 = vadd.f32 %v8096, %v8509
        %v8646 = vadd.f32 %v8097, %v8512
        %v8647 = vadd.f32 %v8098, %v8517
        %v8648 = vadd.f32 %v8099, %v8520
        %v8649 = vadd.f32 %v8100, %v8525
        %v8650 = vadd.f32 %v8101, %v8528
        %v8651 = vadd.f32 %v8102, %v8533
        %v8652 = vadd.f32 %v8103, %v8536
        %v8653 = vadd.f32 %v8104, %v8541
        %v8654 = vadd.f32 %v8105, %v8544
        %v8655 = vadd.f32 %v8106, %v8549
        %v8656 = vadd.f32 %v8107, %v8552
        %v8657 = vadd.f32 %v8108, %v8557
        %v8658 = vadd.f32 %v8109, %v8560
        %v8659 = vadd.f32 %v8110, %v8565
        %v8660 = vadd.f32 %v8111, %v8568
        %v8661 = vadd.f32 %v8112, %v8573
        %v8662 = vadd.f32 %v8113, %v8576
        %v8663 = vadd.f32 %v8114, %v8581
        %v8664 = vadd.f32 %v8115, %v8584
        %v8665 = vadd.f32 %v8116, %v8589
        %v8666 = vadd.f32 %v8117, %v8592
        %v8667 = vpack.c.bf16 %v5780, %v5778
        %v8668 = vpack.c.bf16 %v5785, %v5782
        %v8669 = vpack.c.bf16 %v5789, %v5787
        %v8670 = vpack.c.bf16 %v5794, %v5792
        %v8671 = vpack.c.bf16 %v5799, %v5796
        %v8672 = vpack.c.bf16 %v5803, %v5801
        %v8673 = vpack.c.bf16 %v5808, %v5806
        %v8674 = vpack.c.bf16 %v5813, %v5810
        %v8675 = vpack.c.bf16 %v5817, %v5815
        %v8676 = vpack.c.bf16 %v5822, %v5820
        %v8677 = vpack.c.bf16 %v5827, %v5824
        %v8678 = vpack.c.bf16 %v5831, %v5829
        %v8679 = vpack.c.bf16 %v5836, %v5834
        %v8680 = vpack.c.bf16 %v5841, %v5838
        %v8681 = vpack.c.bf16 %v5845, %v5843
        %v8682 = vpack.c.bf16 %v5850, %v5848
        %v8683 = vpack.c.bf16 %v5855, %v5852
        %v8684 = vpack.c.bf16 %v5859, %v5857
        %v8685 = vpack.c.bf16 %v5864, %v5862
        %v8686 = vpack.c.bf16 %v5869, %v5866
        %v8687 = vpack.c.bf16 %v5873, %v5871
        %v8688 = vpack.c.bf16 %v5878, %v5876
        %v8689 = vpack.c.bf16 %v5883, %v5880
        %v8690 = vpack.c.bf16 %v5887, %v5885
        %v8691 = vpack.c.bf16 %v5892, %v5890
        %v8692 = vpack.c.bf16 %v5897, %v5894
        %v8693 = vpack.c.bf16 %v5901, %v5899
        %v8694 = vpack.c.bf16 %v5906, %v5904
        %v8695 = vpack.c.bf16 %v5911, %v5908
        %v8696 = vpack.c.bf16 %v5915, %v5913
        %v8697 = vpack.c.bf16 %v5920, %v5918
        %v8698 = vpack.c.bf16 %v5925, %v5922
        %v8699 = vpack.c.bf16 %v5929, %v5927
        %v8700 = vpack.c.bf16 %v5934, %v5932
        %v8701 = vpack.c.bf16 %v5939, %v5936
        %v8702 = vpack.c.bf16 %v5943, %v5941
        %v8707 = vunpack.c.l.b16 %v6049
        %v8708 = vunpack.c.l.b16 %v6050
        %v8709 = vunpack.c.l.b16 %v6051
        %v8710 = vunpack.c.l.b16 %v6052
        %v8711 = vpack.c.b16 %v8708, %v8707
        %v8712 = vpack.c.b16 %v8710, %v8709
        %v8716 = vsel %vm6149, %v8667, 0
        %v8719 = vsel %vm6149, %v8668, 0
        %v8722 = vsel %vm6149, %v8669, 0
        %v8725 = vsel %vm6149, %v8670, 0
        %v8728 = vsel %vm6149, %v8671, 0
        %v8731 = vsel %vm6149, %v8672, 0
        %v8734 = vsel %vm6149, %v8673, 0
        %v8737 = vsel %vm6149, %v8674, 0
        %v8740 = vsel %vm6149, %v8675, 0
        %v8743 = vsel %vm6149, %v8676, 0
        %v8746 = vsel %vm6149, %v8677, 0
        %v8749 = vsel %vm6149, %v8678, 0
        %v8752 = vsel %vm6149, %v8679, 0
        %v8755 = vsel %vm6149, %v8680, 0
        %v8758 = vsel %vm6149, %v8681, 0
        %v8761 = vsel %vm6149, %v8682, 0
        %v8764 = vsel %vm6149, %v8683, 0
        %v8767 = vsel %vm6149, %v8684, 0
        %v8770 = vsel %vm6149, %v8685, 0
        %v8773 = vsel %vm6149, %v8686, 0
        %v8776 = vsel %vm6149, %v8687, 0
        %v8779 = vsel %vm6149, %v8688, 0
        %v8782 = vsel %vm6149, %v8689, 0
        %v8785 = vsel %vm6149, %v8690, 0
        %v8788 = vsel %vm6149, %v8691, 0
        %v8791 = vsel %vm6149, %v8692, 0
        %v8794 = vsel %vm6149, %v8693, 0
        %v8797 = vsel %vm6149, %v8694, 0
        %v8800 = vsel %vm6149, %v8695, 0
        %v8803 = vsel %vm6149, %v8696, 0
        %v8806 = vsel %vm6149, %v8697, 0
        %v8809 = vsel %vm6149, %v8698, 0
        %v8812 = vsel %vm6149, %v8699, 0
        %v8815 = vsel %vm6149, %v8700, 0
        %v8818 = vsel %vm6149, %v8701, 0
        %v8821 = vsel %vm6149, %v8702, 0
        %8823 = vmatprep.subr.bf16.mxu0 0
        %8824 = vmatpush1.bf16.msra.mxu0 %v8711
        %8825 = vmatprep.subr.bf16.mxu0 0
        %8826 = vmatpush1.bf16.msra.mxu0 %v8712
        %8827 = vmatprep.subr.bf16.mxu0 0
        %8828 = vmatpush1.bf16.msra.mxu0 0
        %8829 = vmatprep.subr.bf16.mxu0 0
        %8830 = vmatpush1.bf16.msra.mxu0 0
        %8831 = vmatprep.subr.bf16.mxu0 0
        %8832 = vmatpush1.bf16.msra.mxu0 0
        %8833 = vmatprep.subr.bf16.mxu0 0
        %8834 = vmatpush1.bf16.msra.mxu0 0
        %8835 = vmatprep.subr.bf16.mxu0 0
        %8836 = vmatpush1.bf16.msra.mxu0 0
        %8837 = vmatprep.subr.bf16.mxu0 0
        %8838 = vmatpush1.bf16.msra.mxu0 0
        %8839 = vmatprep.subr.bf16.mxu0 0
        %8840 = vmatpush1.bf16.msra.mxu0 0
        %8841 = vmatprep.subr.bf16.mxu0 0
        %8842 = vmatpush1.bf16.msra.mxu0 0
        %8843 = vmatprep.subr.bf16.mxu0 0
        %8844 = vmatpush1.bf16.msra.mxu0 0
        %8845 = vmatprep.subr.bf16.mxu0 0
        %8846 = vmatpush1.bf16.msra.mxu0 0
        %8847 = vmatprep.subr.bf16.mxu0 0
        %8848 = vmatpush1.bf16.msra.mxu0 0
        %8849 = vmatprep.subr.bf16.mxu0 0
        %8850 = vmatpush1.bf16.msra.mxu0 0
        %8851 = vmatprep.subr.bf16.mxu0 0
        %8852 = vmatpush1.bf16.msra.mxu0 0
        %8853 = vmatprep.subr.bf16.mxu0 0
        %8854 = vmatpush1.bf16.msra.mxu0 0
        %8855 = vmatprep.mubr.bf16.mxu0 0
        %8856 = vmatmul.mubr.bf16.gmra.mrb[0].mxu0 %v8716
        %v8857 = vpop.f32.mrb[0].mxu0
        %v8858 = vadd.f32 0.0, %v8857
        %v8859 = vpop.f32.mrb[0].mxu0
        %v8860 = vpop.f32.mrb[0].mxu0
        %v8861 = vadd.f32 0.0, %v8860
        %v8862 = vpop.f32.mrb[0].mxu0
        %8863 = vmatprep.mubr.bf16.mxu0 0
        %8864 = vmatmul.mubr.bf16.gmra.mrb[0].mxu0 %v8719
        %v8865 = vpop.f32.mrb[0].mxu0
        %v8866 = vadd.f32 0.0, %v8865
        %v8867 = vpop.f32.mrb[0].mxu0
        %v8868 = vpop.f32.mrb[0].mxu0
        %v8869 = vadd.f32 0.0, %v8868
        %v8870 = vpop.f32.mrb[0].mxu0
        %8871 = vmatprep.mubr.bf16.mxu0 0
        %8872 = vmatmul.mubr.bf16.gmra.mrb[0].mxu0 %v8722
        %v8873 = vpop.f32.mrb[0].mxu0
        %v8874 = vadd.f32 0.0, %v8873
        %v8875 = vpop.f32.mrb[0].mxu0
        %v8876 = vpop.f32.mrb[0].mxu0
        %v8877 = vadd.f32 0.0, %v8876
        %v8878 = vpop.f32.mrb[0].mxu0
        %8879 = vmatprep.mubr.bf16.mxu0 0
        %8880 = vmatmul.mubr.bf16.gmra.mrb[0].mxu0 %v8725
        %v8881 = vpop.f32.mrb[0].mxu0
        %v8882 = vadd.f32 0.0, %v8881
        %v8883 = vpop.f32.mrb[0].mxu0
        %v8884 = vpop.f32.mrb[0].mxu0
        %v8885 = vadd.f32 0.0, %v8884
        %v8886 = vpop.f32.mrb[0].mxu0
        %8887 = vmatprep.mubr.bf16.mxu0 0
        %8888 = vmatmul.mubr.bf16.gmra.mrb[0].mxu0 %v8728
        %v8889 = vpop.f32.mrb[0].mxu0
        %v8890 = vadd.f32 0.0, %v8889
        %v8891 = vpop.f32.mrb[0].mxu0
        %v8892 = vpop.f32.mrb[0].mxu0
        %v8893 = vadd.f32 0.0, %v8892
        %v8894 = vpop.f32.mrb[0].mxu0
        %8895 = vmatprep.mubr.bf16.mxu0 0
        %8896 = vmatmul.mubr.bf16.gmra.mrb[0].mxu0 %v8731
        %v8897 = vpop.f32.mrb[0].mxu0
        %v8898 = vadd.f32 0.0, %v8897
        %v8899 = vpop.f32.mrb[0].mxu0
        %v8900 = vpop.f32.mrb[0].mxu0
        %v8901 = vadd.f32 0.0, %v8900
        %v8902 = vpop.f32.mrb[0].mxu0
        %8903 = vmatprep.mubr.bf16.mxu0 0
        %8904 = vmatmul.mubr.bf16.gmra.mrb[0].mxu0 %v8734
        %v8905 = vpop.f32.mrb[0].mxu0
        %v8906 = vadd.f32 0.0, %v8905
        %v8907 = vpop.f32.mrb[0].mxu0
        %v8908 = vpop.f32.mrb[0].mxu0
        %v8909 = vadd.f32 0.0, %v8908
        %v8910 = vpop.f32.mrb[0].mxu0
        %8911 = vmatprep.mubr.bf16.mxu0 0
        %8912 = vmatmul.mubr.bf16.gmra.mrb[0].mxu0 %v8737
        %v8913 = vpop.f32.mrb[0].mxu0
        %v8914 = vadd.f32 0.0, %v8913
        %v8915 = vpop.f32.mrb[0].mxu0
        %v8916 = vpop.f32.mrb[0].mxu0
        %v8917 = vadd.f32 0.0, %v8916
        %v8918 = vpop.f32.mrb[0].mxu0
        %8919 = vmatprep.mubr.bf16.mxu0 0
        %8920 = vmatmul.mubr.bf16.gmra.mrb[0].mxu0 %v8740
        %v8921 = vpop.f32.mrb[0].mxu0
        %v8922 = vadd.f32 0.0, %v8921
        %v8923 = vpop.f32.mrb[0].mxu0
        %v8924 = vpop.f32.mrb[0].mxu0
        %v8925 = vadd.f32 0.0, %v8924
        %v8926 = vpop.f32.mrb[0].mxu0
        %8927 = vmatprep.mubr.bf16.mxu0 0
        %8928 = vmatmul.mubr.bf16.gmra.mrb[0].mxu0 %v8743
        %v8929 = vpop.f32.mrb[0].mxu0
        %v8930 = vadd.f32 0.0, %v8929
        %v8931 = vpop.f32.mrb[0].mxu0
        %v8932 = vpop.f32.mrb[0].mxu0
        %v8933 = vadd.f32 0.0, %v8932
        %v8934 = vpop.f32.mrb[0].mxu0
        %8935 = vmatprep.mubr.bf16.mxu0 0
        %8936 = vmatmul.mubr.bf16.gmra.mrb[0].mxu0 %v8746
        %v8937 = vpop.f32.mrb[0].mxu0
        %v8938 = vadd.f32 0.0, %v8937
        %v8939 = vpop.f32.mrb[0].mxu0
        %v8940 = vpop.f32.mrb[0].mxu0
        %v8941 = vadd.f32 0.0, %v8940
        %v8942 = vpop.f32.mrb[0].mxu0
        %8943 = vmatprep.mubr.bf16.mxu0 0
        %8944 = vmatmul.mubr.bf16.gmra.mrb[0].mxu0 %v8749
        %v8945 = vpop.f32.mrb[0].mxu0
        %v8946 = vadd.f32 0.0, %v8945
        %v8947 = vpop.f32.mrb[0].mxu0
        %v8948 = vpop.f32.mrb[0].mxu0
        %v8949 = vadd.f32 0.0, %v8948
        %v8950 = vpop.f32.mrb[0].mxu0
        %8951 = vmatprep.mubr.bf16.mxu0 0
        %8952 = vmatmul.mubr.bf16.gmra.mrb[0].mxu0 %v8752
        %v8953 = vpop.f32.mrb[0].mxu0
        %v8954 = vadd.f32 0.0, %v8953
        %v8955 = vpop.f32.mrb[0].mxu0
        %v8956 = vpop.f32.mrb[0].mxu0
        %v8957 = vadd.f32 0.0, %v8956
        %v8958 = vpop.f32.mrb[0].mxu0
        %8959 = vmatprep.mubr.bf16.mxu0 0
        %8960 = vmatmul.mubr.bf16.gmra.mrb[0].mxu0 %v8755
        %v8961 = vpop.f32.mrb[0].mxu0
        %v8962 = vadd.f32 0.0, %v8961
        %v8963 = vpop.f32.mrb[0].mxu0
        %v8964 = vpop.f32.mrb[0].mxu0
        %v8965 = vadd.f32 0.0, %v8964
        %v8966 = vpop.f32.mrb[0].mxu0
        %8967 = vmatprep.mubr.bf16.mxu0 0
        %8968 = vmatmul.mubr.bf16.gmra.mrb[0].mxu0 %v8758
        %v8969 = vpop.f32.mrb[0].mxu0
        %v8970 = vadd.f32 0.0, %v8969
        %v8971 = vpop.f32.mrb[0].mxu0
        %v8972 = vpop.f32.mrb[0].mxu0
        %v8973 = vadd.f32 0.0, %v8972
        %v8974 = vpop.f32.mrb[0].mxu0
        %8975 = vmatprep.mubr.bf16.mxu0 0
        %8976 = vmatmul.mubr.bf16.gmra.mrb[0].mxu0 %v8761
        %v8977 = vpop.f32.mrb[0].mxu0
        %v8978 = vadd.f32 0.0, %v8977
        %v8979 = vpop.f32.mrb[0].mxu0
        %v8980 = vpop.f32.mrb[0].mxu0
        %v8981 = vadd.f32 0.0, %v8980
        %v8982 = vpop.f32.mrb[0].mxu0
        %8983 = vmatprep.mubr.bf16.mxu0 0
        %8984 = vmatmul.mubr.bf16.gmra.mrb[0].mxu0 %v8764
        %v8985 = vpop.f32.mrb[0].mxu0
        %v8986 = vadd.f32 0.0, %v8985
        %v8987 = vpop.f32.mrb[0].mxu0
        %v8988 = vpop.f32.mrb[0].mxu0
        %v8989 = vadd.f32 0.0, %v8988
        %v8990 = vpop.f32.mrb[0].mxu0
        %8991 = vmatprep.mubr.bf16.mxu0 0
        %8992 = vmatmul.mubr.bf16.gmra.mrb[0].mxu0 %v8767
        %v8993 = vpop.f32.mrb[0].mxu0
        %v8994 = vadd.f32 0.0, %v8993
        %v8995 = vpop.f32.mrb[0].mxu0
        %v8996 = vpop.f32.mrb[0].mxu0
        %v8997 = vadd.f32 0.0, %v8996
        %v8998 = vpop.f32.mrb[0].mxu0
        %8999 = vmatprep.mubr.bf16.mxu0 0
        %9000 = vmatmul.mubr.bf16.gmra.mrb[0].mxu0 %v8770
        %v9001 = vpop.f32.mrb[0].mxu0
        %v9002 = vadd.f32 0.0, %v9001
        %v9003 = vpop.f32.mrb[0].mxu0
        %v9004 = vpop.f32.mrb[0].mxu0
        %v9005 = vadd.f32 0.0, %v9004
        %v9006 = vpop.f32.mrb[0].mxu0
        %9007 = vmatprep.mubr.bf16.mxu0 0
        %9008 = vmatmul.mubr.bf16.gmra.mrb[0].mxu0 %v8773
        %v9009 = vpop.f32.mrb[0].mxu0
        %v9010 = vadd.f32 0.0, %v9009
        %v9011 = vpop.f32.mrb[0].mxu0
        %v9012 = vpop.f32.mrb[0].mxu0
        %v9013 = vadd.f32 0.0, %v9012
        %v9014 = vpop.f32.mrb[0].mxu0
        %9015 = vmatprep.mubr.bf16.mxu0 0
        %9016 = vmatmul.mubr.bf16.gmra.mrb[0].mxu0 %v8776
        %v9017 = vpop.f32.mrb[0].mxu0
        %v9018 = vadd.f32 0.0, %v9017
        %v9019 = vpop.f32.mrb[0].mxu0
        %v9020 = vpop.f32.mrb[0].mxu0
        %v9021 = vadd.f32 0.0, %v9020
        %v9022 = vpop.f32.mrb[0].mxu0
        %9023 = vmatprep.mubr.bf16.mxu0 0
        %9024 = vmatmul.mubr.bf16.gmra.mrb[0].mxu0 %v8779
        %v9025 = vpop.f32.mrb[0].mxu0
        %v9026 = vadd.f32 0.0, %v9025
        %v9027 = vpop.f32.mrb[0].mxu0
        %v9028 = vpop.f32.mrb[0].mxu0
        %v9029 = vadd.f32 0.0, %v9028
        %v9030 = vpop.f32.mrb[0].mxu0
        %9031 = vmatprep.mubr.bf16.mxu0 0
        %9032 = vmatmul.mubr.bf16.gmra.mrb[0].mxu0 %v8782
        %v9033 = vpop.f32.mrb[0].mxu0
        %v9034 = vadd.f32 0.0, %v9033
        %v9035 = vpop.f32.mrb[0].mxu0
        %v9036 = vpop.f32.mrb[0].mxu0
        %v9037 = vadd.f32 0.0, %v9036
        %v9038 = vpop.f32.mrb[0].mxu0
        %9039 = vmatprep.mubr.bf16.mxu0 0
        %9040 = vmatmul.mubr.bf16.gmra.mrb[0].mxu0 %v8785
        %v9041 = vpop.f32.mrb[0].mxu0
        %v9042 = vadd.f32 0.0, %v9041
        %v9043 = vpop.f32.mrb[0].mxu0
        %v9044 = vpop.f32.mrb[0].mxu0
        %v9045 = vadd.f32 0.0, %v9044
        %v9046 = vpop.f32.mrb[0].mxu0
        %9047 = vmatprep.mubr.bf16.mxu0 0
        %9048 = vmatmul.mubr.bf16.gmra.mrb[0].mxu0 %v8788
        %v9049 = vpop.f32.mrb[0].mxu0
        %v9050 = vadd.f32 0.0, %v9049
        %v9051 = vpop.f32.mrb[0].mxu0
        %v9052 = vpop.f32.mrb[0].mxu0
        %v9053 = vadd.f32 0.0, %v9052
        %v9054 = vpop.f32.mrb[0].mxu0
        %9055 = vmatprep.mubr.bf16.mxu0 0
        %9056 = vmatmul.mubr.bf16.gmra.mrb[0].mxu0 %v8791
        %v9057 = vpop.f32.mrb[0].mxu0
        %v9058 = vadd.f32 0.0, %v9057
        %v9059 = vpop.f32.mrb[0].mxu0
        %v9060 = vpop.f32.mrb[0].mxu0
        %v9061 = vadd.f32 0.0, %v9060
        %v9062 = vpop.f32.mrb[0].mxu0
        %9063 = vmatprep.mubr.bf16.mxu0 0
        %9064 = vmatmul.mubr.bf16.gmra.mrb[0].mxu0 %v8794
        %v9065 = vpop.f32.mrb[0].mxu0
        %v9066 = vadd.f32 0.0, %v9065
        %v9067 = vpop.f32.mrb[0].mxu0
        %v9068 = vpop.f32.mrb[0].mxu0
        %v9069 = vadd.f32 0.0, %v9068
        %v9070 = vpop.f32.mrb[0].mxu0
        %9071 = vmatprep.mubr.bf16.mxu0 0
        %9072 = vmatmul.mubr.bf16.gmra.mrb[0].mxu0 %v8797
        %v9073 = vpop.f32.mrb[0].mxu0
        %v9074 = vadd.f32 0.0, %v9073
        %v9075 = vpop.f32.mrb[0].mxu0
        %v9076 = vpop.f32.mrb[0].mxu0
        %v9077 = vadd.f32 0.0, %v9076
        %v9078 = vpop.f32.mrb[0].mxu0
        %9079 = vmatprep.mubr.bf16.mxu0 0
        %9080 = vmatmul.mubr.bf16.gmra.mrb[0].mxu0 %v8800
        %v9081 = vpop.f32.mrb[0].mxu0
        %v9082 = vadd.f32 0.0, %v9081
        %v9083 = vpop.f32.mrb[0].mxu0
        %v9084 = vpop.f32.mrb[0].mxu0
        %v9085 = vadd.f32 0.0, %v9084
        %v9086 = vpop.f32.mrb[0].mxu0
        %9087 = vmatprep.mubr.bf16.mxu0 0
        %9088 = vmatmul.mubr.bf16.gmra.mrb[0].mxu0 %v8803
        %v9089 = vpop.f32.mrb[0].mxu0
        %v9090 = vadd.f32 0.0, %v9089
        %v9091 = vpop.f32.mrb[0].mxu0
        %v9092 = vpop.f32.mrb[0].mxu0
        %v9093 = vadd.f32 0.0, %v9092
        %v9094 = vpop.f32.mrb[0].mxu0
        %9095 = vmatprep.mubr.bf16.mxu0 0
        %9096 = vmatmul.mubr.bf16.gmra.mrb[0].mxu0 %v8806
        %v9097 = vpop.f32.mrb[0].mxu0
        %v9098 = vadd.f32 0.0, %v9097
        %v9099 = vpop.f32.mrb[0].mxu0
        %v9100 = vpop.f32.mrb[0].mxu0
        %v9101 = vadd.f32 0.0, %v9100
        %v9102 = vpop.f32.mrb[0].mxu0
        %9103 = vmatprep.mubr.bf16.mxu0 0
        %9104 = vmatmul.mubr.bf16.gmra.mrb[0].mxu0 %v8809
        %v9105 = vpop.f32.mrb[0].mxu0
        %v9106 = vadd.f32 0.0, %v9105
        %v9107 = vpop.f32.mrb[0].mxu0
        %v9108 = vpop.f32.mrb[0].mxu0
        %v9109 = vadd.f32 0.0, %v9108
        %v9110 = vpop.f32.mrb[0].mxu0
        %9111 = vmatprep.mubr.bf16.mxu0 0
        %9112 = vmatmul.mubr.bf16.gmra.mrb[0].mxu0 %v8812
        %v9113 = vpop.f32.mrb[0].mxu0
        %v9114 = vadd.f32 0.0, %v9113
        %v9115 = vpop.f32.mrb[0].mxu0
        %v9116 = vpop.f32.mrb[0].mxu0
        %v9117 = vadd.f32 0.0, %v9116
        %v9118 = vpop.f32.mrb[0].mxu0
        %9119 = vmatprep.mubr.bf16.mxu0 0
        %9120 = vmatmul.mubr.bf16.gmra.mrb[0].mxu0 %v8815
        %v9121 = vpop.f32.mrb[0].mxu0
        %v9122 = vadd.f32 0.0, %v9121
        %v9123 = vpop.f32.mrb[0].mxu0
        %v9124 = vpop.f32.mrb[0].mxu0
        %v9125 = vadd.f32 0.0, %v9124
        %v9126 = vpop.f32.mrb[0].mxu0
        %9127 = vmatprep.mubr.bf16.mxu0 0
        %9128 = vmatmul.mubr.bf16.gmra.mrb[0].mxu0 %v8818
        %v9129 = vpop.f32.mrb[0].mxu0
        %v9130 = vadd.f32 0.0, %v9129
        %v9131 = vpop.f32.mrb[0].mxu0
        %v9132 = vpop.f32.mrb[0].mxu0
        %v9133 = vadd.f32 0.0, %v9132
        %v9134 = vpop.f32.mrb[0].mxu0
        %9135 = vmatprep.mubr.bf16.mxu0 0
        %9136 = vmatmul.mubr.bf16.gmra.mrb[0].mxu0 %v8821
        %v9137 = vpop.f32.mrb[0].mxu0
        %v9138 = vadd.f32 0.0, %v9137
        %v9139 = vpop.f32.mrb[0].mxu0
        %v9140 = vpop.f32.mrb[0].mxu0
        %v9141 = vadd.f32 0.0, %v9140
        %v9142 = vpop.f32.mrb[0].mxu0
        %9143 = vdwg.mxu0
        %v9144 = vadd.f32 %v8595, %v8858
        %v9145 = vadd.f32 %v8596, %v8861
        %v9146 = vadd.f32 %v8597, %v8866
        %v9147 = vadd.f32 %v8598, %v8869
        %v9148 = vadd.f32 %v8599, %v8874
        %v9149 = vadd.f32 %v8600, %v8877
        %v9150 = vadd.f32 %v8601, %v8882
        %v9151 = vadd.f32 %v8602, %v8885
        %v9152 = vadd.f32 %v8603, %v8890
        %v9153 = vadd.f32 %v8604, %v8893
        %v9154 = vadd.f32 %v8605, %v8898
        %v9155 = vadd.f32 %v8606, %v8901
        %v9156 = vadd.f32 %v8607, %v8906
        %v9157 = vadd.f32 %v8608, %v8909
        %v9158 = vadd.f32 %v8609, %v8914
        %v9159 = vadd.f32 %v8610, %v8917
        %v9160 = vadd.f32 %v8611, %v8922
        %v9161 = vadd.f32 %v8612, %v8925
        %v9162 = vadd.f32 %v8613, %v8930
        %v9163 = vadd.f32 %v8614, %v8933
        %v9164 = vadd.f32 %v8615, %v8938
        %v9165 = vadd.f32 %v8616, %v8941
        %v9166 = vadd.f32 %v8617, %v8946
        %v9167 = vadd.f32 %v8618, %v8949
        %v9168 = vadd.f32 %v8619, %v8954
        %v9169 = vadd.f32 %v8620, %v8957
        %v9170 = vadd.f32 %v8621, %v8962
        %v9171 = vadd.f32 %v8622, %v8965
        %v9172 = vadd.f32 %v8623, %v8970
        %v9173 = vadd.f32 %v8624, %v8973
        %v9174 = vadd.f32 %v8625, %v8978
        %v9175 = vadd.f32 %v8626, %v8981
        %v9176 = vadd.f32 %v8627, %v8986
        %v9177 = vadd.f32 %v8628, %v8989
        %v9178 = vadd.f32 %v8629, %v8994
        %v9179 = vadd.f32 %v8630, %v8997
        %v9180 = vadd.f32 %v8631, %v9002
        %v9181 = vadd.f32 %v8632, %v9005
        %v9182 = vadd.f32 %v8633, %v9010
        %v9183 = vadd.f32 %v8634, %v9013
        %v9184 = vadd.f32 %v8635, %v9018
        %v9185 = vadd.f32 %v8636, %v9021
        %v9186 = vadd.f32 %v8637, %v9026
        %v9187 = vadd.f32 %v8638, %v9029
        %v9188 = vadd.f32 %v8639, %v9034
        %v9189 = vadd.f32 %v8640, %v9037
        %v9190 = vadd.f32 %v8641, %v9042
        %v9191 = vadd.f32 %v8642, %v9045
        %v9192 = vadd.f32 %v8643, %v9050
        %v9193 = vadd.f32 %v8644, %v9053
        %v9194 = vadd.f32 %v8645, %v9058
        %v9195 = vadd.f32 %v8646, %v9061
        %v9196 = vadd.f32 %v8647, %v9066
        %v9197 = vadd.f32 %v8648, %v9069
        %v9198 = vadd.f32 %v8649, %v9074
        %v9199 = vadd.f32 %v8650, %v9077
        %v9200 = vadd.f32 %v8651, %v9082
        %v9201 = vadd.f32 %v8652, %v9085
        %v9202 = vadd.f32 %v8653, %v9090
        %v9203 = vadd.f32 %v8654, %v9093
        %v9204 = vadd.f32 %v8655, %v9098
        %v9205 = vadd.f32 %v8656, %v9101
        %v9206 = vadd.f32 %v8657, %v9106
        %v9207 = vadd.f32 %v8658, %v9109
        %v9208 = vadd.f32 %v8659, %v9114
        %v9209 = vadd.f32 %v8660, %v9117
        %v9210 = vadd.f32 %v8661, %v9122
        %v9211 = vadd.f32 %v8662, %v9125
        %v9212 = vadd.f32 %v8663, %v9130
        %v9213 = vadd.f32 %v8664, %v9133
        %v9214 = vadd.f32 %v8665, %v9138
        %v9215 = vadd.f32 %v8666, %v9141
        %v9216 = vpack.c.bf16 %v5398, %v5397
        %v9217 = vpack.c.bf16 %v5401, %v5399
        %v9218 = vpack.c.bf16 %v5403, %v5402
        %v9223 = vunpack.c.l.b16 %v6053
        %v9224 = vunpack.c.l.b16 %v6054
        %v9225 = vunpack.c.l.b16 %v6055
        %v9226 = vunpack.c.l.b16 %v6056
        %v9227 = vpack.c.b16 %v9224, %v9223
        %v9228 = vpack.c.b16 %v9226, %v9225
        %v9232 = vsel %vm6149, %v9216, 0
        %v9235 = vsel %vm6149, %v9217, 0
        %v9238 = vsel %vm6149, %v9218, 0
        %9240 = vmatprep.subr.bf16.mxu0 0
        %9241 = vmatpush1.bf16.msra.mxu0 %v9227
        %9242 = vmatprep.subr.bf16.mxu0 0
        %9243 = vmatpush1.bf16.msra.mxu0 %v9228
        %9244 = vmatprep.subr.bf16.mxu0 0
        %9245 = vmatpush1.bf16.msra.mxu0 0
        %9246 = vmatprep.subr.bf16.mxu0 0
        %9247 = vmatpush1.bf16.msra.mxu0 0
        %9248 = vmatprep.subr.bf16.mxu0 0
        %9249 = vmatpush1.bf16.msra.mxu0 0
        %9250 = vmatprep.subr.bf16.mxu0 0
        %9251 = vmatpush1.bf16.msra.mxu0 0
        %9252 = vmatprep.subr.bf16.mxu0 0
        %9253 = vmatpush1.bf16.msra.mxu0 0
        %9254 = vmatprep.subr.bf16.mxu0 0
        %9255 = vmatpush1.bf16.msra.mxu0 0
        %9256 = vmatprep.subr.bf16.mxu0 0
        %9257 = vmatpush1.bf16.msra.mxu0 0
        %9258 = vmatprep.subr.bf16.mxu0 0
        %9259 = vmatpush1.bf16.msra.mxu0 0
        %9260 = vmatprep.subr.bf16.mxu0 0
        %9261 = vmatpush1.bf16.msra.mxu0 0
        %9262 = vmatprep.subr.bf16.mxu0 0
        %9263 = vmatpush1.bf16.msra.mxu0 0
        %9264 = vmatprep.subr.bf16.mxu0 0
        %9265 = vmatpush1.bf16.msra.mxu0 0
        %9266 = vmatprep.subr.bf16.mxu0 0
        %9267 = vmatpush1.bf16.msra.mxu0 0
        %9268 = vmatprep.subr.bf16.mxu0 0
        %9269 = vmatpush1.bf16.msra.mxu0 0
        %9270 = vmatprep.subr.bf16.mxu0 0
        %9271 = vmatpush1.bf16.msra.mxu0 0
        %9272 = vmatprep.mubr.bf16.mxu0 0
        %9273 = vmatmul.mubr.bf16.gmra.mrb[0].mxu0 %v6601
        %v9274 = vpop.f32.mrb[0].mxu0
        %v9275 = vadd.f32 0.0, %v9274
        %v9276 = vpop.f32.mrb[0].mxu0
        %v9277 = vpop.f32.mrb[0].mxu0
        %v9278 = vadd.f32 0.0, %v9277
        %v9279 = vpop.f32.mrb[0].mxu0
        %9280 = vmatprep.mubr.bf16.mxu0 0
        %9281 = vmatmul.mubr.bf16.gmra.mrb[0].mxu0 %v6604
        %v9282 = vpop.f32.mrb[0].mxu0
        %v9283 = vadd.f32 0.0, %v9282
        %v9284 = vpop.f32.mrb[0].mxu0
        %v9285 = vpop.f32.mrb[0].mxu0
        %v9286 = vadd.f32 0.0, %v9285
        %v9287 = vpop.f32.mrb[0].mxu0
        %9288 = vmatprep.mubr.bf16.mxu0 0
        %9289 = vmatmul.mubr.bf16.gmra.mrb[0].mxu0 %v6607
        %v9290 = vpop.f32.mrb[0].mxu0
        %v9291 = vadd.f32 0.0, %v9290
        %v9292 = vpop.f32.mrb[0].mxu0
        %v9293 = vpop.f32.mrb[0].mxu0
        %v9294 = vadd.f32 0.0, %v9293
        %v9295 = vpop.f32.mrb[0].mxu0
        %9296 = vmatprep.mubr.bf16.mxu0 0
        %9297 = vmatmul.mubr.bf16.gmra.mrb[0].mxu0 %v6610
        %v9298 = vpop.f32.mrb[0].mxu0
        %v9299 = vadd.f32 0.0, %v9298
        %v9300 = vpop.f32.mrb[0].mxu0
        %v9301 = vpop.f32.mrb[0].mxu0
        %v9302 = vadd.f32 0.0, %v9301
        %v9303 = vpop.f32.mrb[0].mxu0
        %9304 = vmatprep.mubr.bf16.mxu0 0
        %9305 = vmatmul.mubr.bf16.gmra.mrb[0].mxu0 %v6613
        %v9306 = vpop.f32.mrb[0].mxu0
        %v9307 = vadd.f32 0.0, %v9306
        %v9308 = vpop.f32.mrb[0].mxu0
        %v9309 = vpop.f32.mrb[0].mxu0
        %v9310 = vadd.f32 0.0, %v9309
        %v9311 = vpop.f32.mrb[0].mxu0
        %9312 = vmatprep.mubr.bf16.mxu0 0
        %9313 = vmatmul.mubr.bf16.gmra.mrb[0].mxu0 %v6616
        %v9314 = vpop.f32.mrb[0].mxu0
        %v9315 = vadd.f32 0.0, %v9314
        %v9316 = vpop.f32.mrb[0].mxu0
        %v9317 = vpop.f32.mrb[0].mxu0
        %v9318 = vadd.f32 0.0, %v9317
        %v9319 = vpop.f32.mrb[0].mxu0
        %9320 = vmatprep.mubr.bf16.mxu0 0
        %9321 = vmatmul.mubr.bf16.gmra.mrb[0].mxu0 %v6619
        %v9322 = vpop.f32.mrb[0].mxu0
        %v9323 = vadd.f32 0.0, %v9322
        %v9324 = vpop.f32.mrb[0].mxu0
        %v9325 = vpop.f32.mrb[0].mxu0
        %v9326 = vadd.f32 0.0, %v9325
        %v9327 = vpop.f32.mrb[0].mxu0
        %9328 = vmatprep.mubr.bf16.mxu0 0
        %9329 = vmatmul.mubr.bf16.gmra.mrb[0].mxu0 %v6622
        %v9330 = vpop.f32.mrb[0].mxu0
        %v9331 = vadd.f32 0.0, %v9330
        %v9332 = vpop.f32.mrb[0].mxu0
        %v9333 = vpop.f32.mrb[0].mxu0
        %v9334 = vadd.f32 0.0, %v9333
        %v9335 = vpop.f32.mrb[0].mxu0
        %9336 = vmatprep.mubr.bf16.mxu0 0
        %9337 = vmatmul.mubr.bf16.gmra.mrb[0].mxu0 %v6625
        %v9338 = vpop.f32.mrb[0].mxu0
        %v9339 = vadd.f32 0.0, %v9338
        %v9340 = vpop.f32.mrb[0].mxu0
        %v9341 = vpop.f32.mrb[0].mxu0
        %v9342 = vadd.f32 0.0, %v9341
        %v9343 = vpop.f32.mrb[0].mxu0
        %9344 = vmatprep.mubr.bf16.mxu0 0
        %9345 = vmatmul.mubr.bf16.gmra.mrb[0].mxu0 %v6628
        %v9346 = vpop.f32.mrb[0].mxu0
        %v9347 = vadd.f32 0.0, %v9346
        %v9348 = vpop.f32.mrb[0].mxu0
        %v9349 = vpop.f32.mrb[0].mxu0
        %v9350 = vadd.f32 0.0, %v9349
        %v9351 = vpop.f32.mrb[0].mxu0
        %9352 = vmatprep.mubr.bf16.mxu0 0
        %9353 = vmatmul.mubr.bf16.gmra.mrb[0].mxu0 %v6631
        %v9354 = vpop.f32.mrb[0].mxu0
        %v9355 = vadd.f32 0.0, %v9354
        %v9356 = vpop.f32.mrb[0].mxu0
        %v9357 = vpop.f32.mrb[0].mxu0
        %v9358 = vadd.f32 0.0, %v9357
        %v9359 = vpop.f32.mrb[0].mxu0
        %9360 = vmatprep.mubr.bf16.mxu0 0
        %9361 = vmatmul.mubr.bf16.gmra.mrb[0].mxu0 %v6634
        %v9362 = vpop.f32.mrb[0].mxu0
        %v9363 = vadd.f32 0.0, %v9362
        %v9364 = vpop.f32.mrb[0].mxu0
        %v9365 = vpop.f32.mrb[0].mxu0
        %v9366 = vadd.f32 0.0, %v9365
        %v9367 = vpop.f32.mrb[0].mxu0
        %9368 = vmatprep.mubr.bf16.mxu0 0
        %9369 = vmatmul.mubr.bf16.gmra.mrb[0].mxu0 %v6637
        %v9370 = vpop.f32.mrb[0].mxu0
        %v9371 = vadd.f32 0.0, %v9370
        %v9372 = vpop.f32.mrb[0].mxu0
        %v9373 = vpop.f32.mrb[0].mxu0
        %v9374 = vadd.f32 0.0, %v9373
        %v9375 = vpop.f32.mrb[0].mxu0
        %9376 = vmatprep.mubr.bf16.mxu0 0
        %9377 = vmatmul.mubr.bf16.gmra.mrb[0].mxu0 %v6640
        %v9378 = vpop.f32.mrb[0].mxu0
        %v9379 = vadd.f32 0.0, %v9378
        %v9380 = vpop.f32.mrb[0].mxu0
        %v9381 = vpop.f32.mrb[0].mxu0
        %v9382 = vadd.f32 0.0, %v9381
        %v9383 = vpop.f32.mrb[0].mxu0
        %9384 = vmatprep.mubr.bf16.mxu0 0
        %9385 = vmatmul.mubr.bf16.gmra.mrb[0].mxu0 %v6643
        %v9386 = vpop.f32.mrb[0].mxu0
        %v9387 = vadd.f32 0.0, %v9386
        %v9388 = vpop.f32.mrb[0].mxu0
        %v9389 = vpop.f32.mrb[0].mxu0
        %v9390 = vadd.f32 0.0, %v9389
        %v9391 = vpop.f32.mrb[0].mxu0
        %9392 = vmatprep.mubr.bf16.mxu0 0
        %9393 = vmatmul.mubr.bf16.gmra.mrb[0].mxu0 %v6646
        %v9394 = vpop.f32.mrb[0].mxu0
        %v9395 = vadd.f32 0.0, %v9394
        %v9396 = vpop.f32.mrb[0].mxu0
        %v9397 = vpop.f32.mrb[0].mxu0
        %v9398 = vadd.f32 0.0, %v9397
        %v9399 = vpop.f32.mrb[0].mxu0
        %9400 = vmatprep.mubr.bf16.mxu0 0
        %9401 = vmatmul.mubr.bf16.gmra.mrb[0].mxu0 %v6649
        %v9402 = vpop.f32.mrb[0].mxu0
        %v9403 = vadd.f32 0.0, %v9402
        %v9404 = vpop.f32.mrb[0].mxu0
        %v9405 = vpop.f32.mrb[0].mxu0
        %v9406 = vadd.f32 0.0, %v9405
        %v9407 = vpop.f32.mrb[0].mxu0
        %9408 = vmatprep.mubr.bf16.mxu0 0
        %9409 = vmatmul.mubr.bf16.gmra.mrb[0].mxu0 %v6652
        %v9410 = vpop.f32.mrb[0].mxu0
        %v9411 = vadd.f32 0.0, %v9410
        %v9412 = vpop.f32.mrb[0].mxu0
        %v9413 = vpop.f32.mrb[0].mxu0
        %v9414 = vadd.f32 0.0, %v9413
        %v9415 = vpop.f32.mrb[0].mxu0
        %9416 = vmatprep.mubr.bf16.mxu0 0
        %9417 = vmatmul.mubr.bf16.gmra.mrb[0].mxu0 %v6655
        %v9418 = vpop.f32.mrb[0].mxu0
        %v9419 = vadd.f32 0.0, %v9418
        %v9420 = vpop.f32.mrb[0].mxu0
        %v9421 = vpop.f32.mrb[0].mxu0
        %v9422 = vadd.f32 0.0, %v9421
        %v9423 = vpop.f32.mrb[0].mxu0
        %9424 = vmatprep.mubr.bf16.mxu0 0
        %9425 = vmatmul.mubr.bf16.gmra.mrb[0].mxu0 %v6658
        %v9426 = vpop.f32.mrb[0].mxu0
        %v9427 = vadd.f32 0.0, %v9426
        %v9428 = vpop.f32.mrb[0].mxu0
        %v9429 = vpop.f32.mrb[0].mxu0
        %v9430 = vadd.f32 0.0, %v9429
        %v9431 = vpop.f32.mrb[0].mxu0
        %9432 = vmatprep.mubr.bf16.mxu0 0
        %9433 = vmatmul.mubr.bf16.gmra.mrb[0].mxu0 %v6661
        %v9434 = vpop.f32.mrb[0].mxu0
        %v9435 = vadd.f32 0.0, %v9434
        %v9436 = vpop.f32.mrb[0].mxu0
        %v9437 = vpop.f32.mrb[0].mxu0
        %v9438 = vadd.f32 0.0, %v9437
        %v9439 = vpop.f32.mrb[0].mxu0
        %9440 = vmatprep.mubr.bf16.mxu0 0
        %9441 = vmatmul.mubr.bf16.gmra.mrb[0].mxu0 %v6664
        %v9442 = vpop.f32.mrb[0].mxu0
        %v9443 = vadd.f32 0.0, %v9442
        %v9444 = vpop.f32.mrb[0].mxu0
        %v9445 = vpop.f32.mrb[0].mxu0
        %v9446 = vadd.f32 0.0, %v9445
        %v9447 = vpop.f32.mrb[0].mxu0
        %9448 = vmatprep.mubr.bf16.mxu0 0
        %9449 = vmatmul.mubr.bf16.gmra.mrb[0].mxu0 %v6667
        %v9450 = vpop.f32.mrb[0].mxu0
        %v9451 = vadd.f32 0.0, %v9450
        %v9452 = vpop.f32.mrb[0].mxu0
        %v9453 = vpop.f32.mrb[0].mxu0
        %v9454 = vadd.f32 0.0, %v9453
        %v9455 = vpop.f32.mrb[0].mxu0
        %9456 = vmatprep.mubr.bf16.mxu0 0
        %9457 = vmatmul.mubr.bf16.gmra.mrb[0].mxu0 %v6670
        %v9458 = vpop.f32.mrb[0].mxu0
        %v9459 = vadd.f32 0.0, %v9458
        %v9460 = vpop.f32.mrb[0].mxu0
        %v9461 = vpop.f32.mrb[0].mxu0
        %v9462 = vadd.f32 0.0, %v9461
        %v9463 = vpop.f32.mrb[0].mxu0
        %9464 = vmatprep.mubr.bf16.mxu0 0
        %9465 = vmatmul.mubr.bf16.gmra.mrb[0].mxu0 %v6673
        %v9466 = vpop.f32.mrb[0].mxu0
        %v9467 = vadd.f32 0.0, %v9466
        %v9468 = vpop.f32.mrb[0].mxu0
        %v9469 = vpop.f32.mrb[0].mxu0
        %v9470 = vadd.f32 0.0, %v9469
        %v9471 = vpop.f32.mrb[0].mxu0
        %9472 = vmatprep.mubr.bf16.mxu0 0
        %9473 = vmatmul.mubr.bf16.gmra.mrb[0].mxu0 %v6676
        %v9474 = vpop.f32.mrb[0].mxu0
        %v9475 = vadd.f32 0.0, %v9474
        %v9476 = vpop.f32.mrb[0].mxu0
        %v9477 = vpop.f32.mrb[0].mxu0
        %v9478 = vadd.f32 0.0, %v9477
        %v9479 = vpop.f32.mrb[0].mxu0
        %9480 = vmatprep.mubr.bf16.mxu0 0
        %9481 = vmatmul.mubr.bf16.gmra.mrb[0].mxu0 %v6679
        %v9482 = vpop.f32.mrb[0].mxu0
        %v9483 = vadd.f32 0.0, %v9482
        %v9484 = vpop.f32.mrb[0].mxu0
        %v9485 = vpop.f32.mrb[0].mxu0
        %v9486 = vadd.f32 0.0, %v9485
        %v9487 = vpop.f32.mrb[0].mxu0
        %9488 = vmatprep.mubr.bf16.mxu0 0
        %9489 = vmatmul.mubr.bf16.gmra.mrb[0].mxu0 %v6682
        %v9490 = vpop.f32.mrb[0].mxu0
        %v9491 = vadd.f32 0.0, %v9490
        %v9492 = vpop.f32.mrb[0].mxu0
        %v9493 = vpop.f32.mrb[0].mxu0
        %v9494 = vadd.f32 0.0, %v9493
        %v9495 = vpop.f32.mrb[0].mxu0
        %9496 = vmatprep.mubr.bf16.mxu0 0
        %9497 = vmatmul.mubr.bf16.gmra.mrb[0].mxu0 %v6685
        %v9498 = vpop.f32.mrb[0].mxu0
        %v9499 = vadd.f32 0.0, %v9498
        %v9500 = vpop.f32.mrb[0].mxu0
        %v9501 = vpop.f32.mrb[0].mxu0
        %v9502 = vadd.f32 0.0, %v9501
        %v9503 = vpop.f32.mrb[0].mxu0
        %9504 = vmatprep.mubr.bf16.mxu0 0
        %9505 = vmatmul.mubr.bf16.gmra.mrb[0].mxu0 %v6688
        %v9506 = vpop.f32.mrb[0].mxu0
        %v9507 = vadd.f32 0.0, %v9506
        %v9508 = vpop.f32.mrb[0].mxu0
        %v9509 = vpop.f32.mrb[0].mxu0
        %v9510 = vadd.f32 0.0, %v9509
        %v9511 = vpop.f32.mrb[0].mxu0
        %9512 = vmatprep.mubr.bf16.mxu0 0
        %9513 = vmatmul.mubr.bf16.gmra.mrb[0].mxu0 %v6691
        %v9514 = vpop.f32.mrb[0].mxu0
        %v9515 = vadd.f32 0.0, %v9514
        %v9516 = vpop.f32.mrb[0].mxu0
        %v9517 = vpop.f32.mrb[0].mxu0
        %v9518 = vadd.f32 0.0, %v9517
        %v9519 = vpop.f32.mrb[0].mxu0
        %9520 = vmatprep.mubr.bf16.mxu0 0
        %9521 = vmatmul.mubr.bf16.gmra.mrb[0].mxu0 %v6694
        %v9522 = vpop.f32.mrb[0].mxu0
        %v9523 = vadd.f32 0.0, %v9522
        %v9524 = vpop.f32.mrb[0].mxu0
        %v9525 = vpop.f32.mrb[0].mxu0
        %v9526 = vadd.f32 0.0, %v9525
        %v9527 = vpop.f32.mrb[0].mxu0
        %9528 = vmatprep.mubr.bf16.mxu0 0
        %9529 = vmatmul.mubr.bf16.gmra.mrb[0].mxu0 %v6697
        %v9530 = vpop.f32.mrb[0].mxu0
        %v9531 = vadd.f32 0.0, %v9530
        %v9532 = vpop.f32.mrb[0].mxu0
        %v9533 = vpop.f32.mrb[0].mxu0
        %v9534 = vadd.f32 0.0, %v9533
        %v9535 = vpop.f32.mrb[0].mxu0
        %9536 = vmatprep.mubr.bf16.mxu0 0
        %9537 = vmatmul.mubr.bf16.gmra.mrb[0].mxu0 %v9232
        %v9538 = vpop.f32.mrb[0].mxu0
        %v9539 = vadd.f32 0.0, %v9538
        %v9540 = vpop.f32.mrb[0].mxu0
        %v9541 = vpop.f32.mrb[0].mxu0
        %v9542 = vadd.f32 0.0, %v9541
        %v9543 = vpop.f32.mrb[0].mxu0
        %9544 = vmatprep.mubr.bf16.mxu0 0
        %9545 = vmatmul.mubr.bf16.gmra.mrb[0].mxu0 %v9235
        %v9546 = vpop.f32.mrb[0].mxu0
        %v9547 = vadd.f32 0.0, %v9546
        %v9548 = vpop.f32.mrb[0].mxu0
        %v9549 = vpop.f32.mrb[0].mxu0
        %v9550 = vadd.f32 0.0, %v9549
        %v9551 = vpop.f32.mrb[0].mxu0
        %9552 = vmatprep.mubr.bf16.mxu0 0
        %9553 = vmatmul.mubr.bf16.gmra.mrb[0].mxu0 %v9238
        %v9554 = vpop.f32.mrb[0].mxu0
        %v9555 = vadd.f32 0.0, %v9554
        %v9556 = vpop.f32.mrb[0].mxu0
        %v9557 = vpop.f32.mrb[0].mxu0
        %v9558 = vadd.f32 0.0, %v9557
        %v9559 = vpop.f32.mrb[0].mxu0
        %9560 = vdwg.mxu0
        %v9561 = vadd.f32 %v9144, %v9275
        %v9562 = vadd.f32 %v9145, %v9278
        %v9563 = vadd.f32 %v9146, %v9283
        %v9564 = vadd.f32 %v9147, %v9286
        %v9565 = vadd.f32 %v9148, %v9291
        %v9566 = vadd.f32 %v9149, %v9294
        %v9567 = vadd.f32 %v9150, %v9299
        %v9568 = vadd.f32 %v9151, %v9302
        %v9569 = vadd.f32 %v9152, %v9307
        %v9570 = vadd.f32 %v9153, %v9310
        %v9571 = vadd.f32 %v9154, %v9315
        %v9572 = vadd.f32 %v9155, %v9318
        %v9573 = vadd.f32 %v9156, %v9323
        %v9574 = vadd.f32 %v9157, %v9326
        %v9575 = vadd.f32 %v9158, %v9331
        %v9576 = vadd.f32 %v9159, %v9334
        %v9577 = vadd.f32 %v9160, %v9339
        %v9578 = vadd.f32 %v9161, %v9342
        %v9579 = vadd.f32 %v9162, %v9347
        %v9580 = vadd.f32 %v9163, %v9350
        %v9581 = vadd.f32 %v9164, %v9355
        %v9582 = vadd.f32 %v9165, %v9358
        %v9583 = vadd.f32 %v9166, %v9363
        %v9584 = vadd.f32 %v9167, %v9366
        %v9585 = vadd.f32 %v9168, %v9371
        %v9586 = vadd.f32 %v9169, %v9374
        %v9587 = vadd.f32 %v9170, %v9379
        %v9588 = vadd.f32 %v9171, %v9382
        %v9589 = vadd.f32 %v9172, %v9387
        %v9590 = vadd.f32 %v9173, %v9390
        %v9591 = vadd.f32 %v9174, %v9395
        %v9592 = vadd.f32 %v9175, %v9398
        %v9593 = vadd.f32 %v9176, %v9403
        %v9594 = vadd.f32 %v9177, %v9406
        %v9595 = vadd.f32 %v9178, %v9411
        %v9596 = vadd.f32 %v9179, %v9414
        %v9597 = vadd.f32 %v9180, %v9419
        %v9598 = vadd.f32 %v9181, %v9422
        %v9599 = vadd.f32 %v9182, %v9427
        %v9600 = vadd.f32 %v9183, %v9430
        %v9601 = vadd.f32 %v9184, %v9435
        %v9602 = vadd.f32 %v9185, %v9438
        %v9603 = vadd.f32 %v9186, %v9443
        %v9604 = vadd.f32 %v9187, %v9446
        %v9605 = vadd.f32 %v9188, %v9451
        %v9606 = vadd.f32 %v9189, %v9454
        %v9607 = vadd.f32 %v9190, %v9459
        %v9608 = vadd.f32 %v9191, %v9462
        %v9609 = vadd.f32 %v9192, %v9467
        %v9610 = vadd.f32 %v9193, %v9470
        %v9611 = vadd.f32 %v9194, %v9475
        %v9612 = vadd.f32 %v9195, %v9478
        %v9613 = vadd.f32 %v9196, %v9483
        %v9614 = vadd.f32 %v9197, %v9486
        %v9615 = vadd.f32 %v9198, %v9491
        %v9616 = vadd.f32 %v9199, %v9494
        %v9617 = vadd.f32 %v9200, %v9499
        %v9618 = vadd.f32 %v9201, %v9502
        %v9619 = vadd.f32 %v9202, %v9507
        %v9620 = vadd.f32 %v9203, %v9510
        %v9621 = vadd.f32 %v9204, %v9515
        %v9622 = vadd.f32 %v9205, %v9518
        %v9623 = vadd.f32 %v9206, %v9523
        %v9624 = vadd.f32 %v9207, %v9526
        %v9625 = vadd.f32 %v9208, %v9531
        %v9626 = vadd.f32 %v9209, %v9534
        %v9627 = vadd.f32 %v9210, %v9539
        %v9628 = vadd.f32 %v9211, %v9542
        %v9629 = vadd.f32 %v9212, %v9547
        %v9630 = vadd.f32 %v9213, %v9550
        %v9631 = vadd.f32 %v9214, %v9555
        %v9632 = vadd.f32 %v9215, %v9558
        %v9633 = vpack.c.bf16 %v5681, %v5679
        %v9634 = vpack.c.bf16 %v5686, %v5683
        %v9635 = vpack.c.bf16 %v5690, %v5688
        %v9640 = vunpack.c.l.b16 %v6057
        %v9641 = vunpack.c.l.b16 %v6058
        %v9642 = vunpack.c.l.b16 %v6059
        %v9643 = vunpack.c.l.b16 %v6060
        %v9644 = vpack.c.b16 %v9641, %v9640
        %v9645 = vpack.c.b16 %v9643, %v9642
        %v9649 = vsel %vm6149, %v9633, 0
        %v9652 = vsel %vm6149, %v9634, 0
        %v9655 = vsel %vm6149, %v9635, 0
        %9657 = vmatprep.subr.bf16.mxu0 0
        %9658 = vmatpush1.bf16.msra.mxu0 %v9644
        %9659 = vmatprep.subr.bf16.mxu0 0
        %9660 = vmatpush1.bf16.msra.mxu0 %v9645
        %9661 = vmatprep.subr.bf16.mxu0 0
        %9662 = vmatpush1.bf16.msra.mxu0 0
        %9663 = vmatprep.subr.bf16.mxu0 0
        %9664 = vmatpush1.bf16.msra.mxu0 0
        %9665 = vmatprep.subr.bf16.mxu0 0
        %9666 = vmatpush1.bf16.msra.mxu0 0
        %9667 = vmatprep.subr.bf16.mxu0 0
        %9668 = vmatpush1.bf16.msra.mxu0 0
        %9669 = vmatprep.subr.bf16.mxu0 0
        %9670 = vmatpush1.bf16.msra.mxu0 0
        %9671 = vmatprep.subr.bf16.mxu0 0
        %9672 = vmatpush1.bf16.msra.mxu0 0
        %9673 = vmatprep.subr.bf16.mxu0 0
        %9674 = vmatpush1.bf16.msra.mxu0 0
        %9675 = vmatprep.subr.bf16.mxu0 0
        %9676 = vmatpush1.bf16.msra.mxu0 0
        %9677 = vmatprep.subr.bf16.mxu0 0
        %9678 = vmatpush1.bf16.msra.mxu0 0
        %9679 = vmatprep.subr.bf16.mxu0 0
        %9680 = vmatpush1.bf16.msra.mxu0 0
        %9681 = vmatprep.subr.bf16.mxu0 0
        %9682 = vmatpush1.bf16.msra.mxu0 0
        %9683 = vmatprep.subr.bf16.mxu0 0
        %9684 = vmatpush1.bf16.msra.mxu0 0
        %9685 = vmatprep.subr.bf16.mxu0 0
        %9686 = vmatpush1.bf16.msra.mxu0 0
        %9687 = vmatprep.subr.bf16.mxu0 0
        %9688 = vmatpush1.bf16.msra.mxu0 0
        %9689 = vmatprep.mubr.bf16.mxu0 0
        %9690 = vmatmul.mubr.bf16.gmra.mrb[0].mxu0 %v6160
        %v9691 = vpop.f32.mrb[0].mxu0
        %v9692 = vadd.f32 0.0, %v9691
        %v9693 = vpop.f32.mrb[0].mxu0
        %v9694 = vpop.f32.mrb[0].mxu0
        %v9695 = vadd.f32 0.0, %v9694
        %v9696 = vpop.f32.mrb[0].mxu0
        %9697 = vmatprep.mubr.bf16.mxu0 0
        %9698 = vmatmul.mubr.bf16.gmra.mrb[0].mxu0 %v6163
        %v9699 = vpop.f32.mrb[0].mxu0
        %v9700 = vadd.f32 0.0, %v9699
        %v9701 = vpop.f32.mrb[0].mxu0
        %v9702 = vpop.f32.mrb[0].mxu0
        %v9703 = vadd.f32 0.0, %v9702
        %v9704 = vpop.f32.mrb[0].mxu0
        %9705 = vmatprep.mubr.bf16.mxu0 0
        %9706 = vmatmul.mubr.bf16.gmra.mrb[0].mxu0 %v6166
        %v9707 = vpop.f32.mrb[0].mxu0
        %v9708 = vadd.f32 0.0, %v9707
        %v9709 = vpop.f32.mrb[0].mxu0
        %v9710 = vpop.f32.mrb[0].mxu0
        %v9711 = vadd.f32 0.0, %v9710
        %v9712 = vpop.f32.mrb[0].mxu0
        %9713 = vmatprep.mubr.bf16.mxu0 0
        %9714 = vmatmul.mubr.bf16.gmra.mrb[0].mxu0 %v6169
        %v9715 = vpop.f32.mrb[0].mxu0
        %v9716 = vadd.f32 0.0, %v9715
        %v9717 = vpop.f32.mrb[0].mxu0
        %v9718 = vpop.f32.mrb[0].mxu0
        %v9719 = vadd.f32 0.0, %v9718
        %v9720 = vpop.f32.mrb[0].mxu0
        %9721 = vmatprep.mubr.bf16.mxu0 0
        %9722 = vmatmul.mubr.bf16.gmra.mrb[0].mxu0 %v6172
        %v9723 = vpop.f32.mrb[0].mxu0
        %v9724 = vadd.f32 0.0, %v9723
        %v9725 = vpop.f32.mrb[0].mxu0
        %v9726 = vpop.f32.mrb[0].mxu0
        %v9727 = vadd.f32 0.0, %v9726
        %v9728 = vpop.f32.mrb[0].mxu0
        %9729 = vmatprep.mubr.bf16.mxu0 0
        %9730 = vmatmul.mubr.bf16.gmra.mrb[0].mxu0 %v6175
        %v9731 = vpop.f32.mrb[0].mxu0
        %v9732 = vadd.f32 0.0, %v9731
        %v9733 = vpop.f32.mrb[0].mxu0
        %v9734 = vpop.f32.mrb[0].mxu0
        %v9735 = vadd.f32 0.0, %v9734
        %v9736 = vpop.f32.mrb[0].mxu0
        %9737 = vmatprep.mubr.bf16.mxu0 0
        %9738 = vmatmul.mubr.bf16.gmra.mrb[0].mxu0 %v6178
        %v9739 = vpop.f32.mrb[0].mxu0
        %v9740 = vadd.f32 0.0, %v9739
        %v9741 = vpop.f32.mrb[0].mxu0
        %v9742 = vpop.f32.mrb[0].mxu0
        %v9743 = vadd.f32 0.0, %v9742
        %v9744 = vpop.f32.mrb[0].mxu0
        %9745 = vmatprep.mubr.bf16.mxu0 0
        %9746 = vmatmul.mubr.bf16.gmra.mrb[0].mxu0 %v6181
        %v9747 = vpop.f32.mrb[0].mxu0
        %v9748 = vadd.f32 0.0, %v9747
        %v9749 = vpop.f32.mrb[0].mxu0
        %v9750 = vpop.f32.mrb[0].mxu0
        %v9751 = vadd.f32 0.0, %v9750
        %v9752 = vpop.f32.mrb[0].mxu0
        %9753 = vmatprep.mubr.bf16.mxu0 0
        %9754 = vmatmul.mubr.bf16.gmra.mrb[0].mxu0 %v6184
        %v9755 = vpop.f32.mrb[0].mxu0
        %v9756 = vadd.f32 0.0, %v9755
        %v9757 = vpop.f32.mrb[0].mxu0
        %v9758 = vpop.f32.mrb[0].mxu0
        %v9759 = vadd.f32 0.0, %v9758
        %v9760 = vpop.f32.mrb[0].mxu0
        %9761 = vmatprep.mubr.bf16.mxu0 0
        %9762 = vmatmul.mubr.bf16.gmra.mrb[0].mxu0 %v6187
        %v9763 = vpop.f32.mrb[0].mxu0
        %v9764 = vadd.f32 0.0, %v9763
        %v9765 = vpop.f32.mrb[0].mxu0
        %v9766 = vpop.f32.mrb[0].mxu0
        %v9767 = vadd.f32 0.0, %v9766
        %v9768 = vpop.f32.mrb[0].mxu0
        %9769 = vmatprep.mubr.bf16.mxu0 0
        %9770 = vmatmul.mubr.bf16.gmra.mrb[0].mxu0 %v6190
        %v9771 = vpop.f32.mrb[0].mxu0
        %v9772 = vadd.f32 0.0, %v9771
        %v9773 = vpop.f32.mrb[0].mxu0
        %v9774 = vpop.f32.mrb[0].mxu0
        %v9775 = vadd.f32 0.0, %v9774
        %v9776 = vpop.f32.mrb[0].mxu0
        %9777 = vmatprep.mubr.bf16.mxu0 0
        %9778 = vmatmul.mubr.bf16.gmra.mrb[0].mxu0 %v6193
        %v9779 = vpop.f32.mrb[0].mxu0
        %v9780 = vadd.f32 0.0, %v9779
        %v9781 = vpop.f32.mrb[0].mxu0
        %v9782 = vpop.f32.mrb[0].mxu0
        %v9783 = vadd.f32 0.0, %v9782
        %v9784 = vpop.f32.mrb[0].mxu0
        %9785 = vmatprep.mubr.bf16.mxu0 0
        %9786 = vmatmul.mubr.bf16.gmra.mrb[0].mxu0 %v6196
        %v9787 = vpop.f32.mrb[0].mxu0
        %v9788 = vadd.f32 0.0, %v9787
        %v9789 = vpop.f32.mrb[0].mxu0
        %v9790 = vpop.f32.mrb[0].mxu0
        %v9791 = vadd.f32 0.0, %v9790
        %v9792 = vpop.f32.mrb[0].mxu0
        %9793 = vmatprep.mubr.bf16.mxu0 0
        %9794 = vmatmul.mubr.bf16.gmra.mrb[0].mxu0 %v6199
        %v9795 = vpop.f32.mrb[0].mxu0
        %v9796 = vadd.f32 0.0, %v9795
        %v9797 = vpop.f32.mrb[0].mxu0
        %v9798 = vpop.f32.mrb[0].mxu0
        %v9799 = vadd.f32 0.0, %v9798
        %v9800 = vpop.f32.mrb[0].mxu0
        %9801 = vmatprep.mubr.bf16.mxu0 0
        %9802 = vmatmul.mubr.bf16.gmra.mrb[0].mxu0 %v6202
        %v9803 = vpop.f32.mrb[0].mxu0
        %v9804 = vadd.f32 0.0, %v9803
        %v9805 = vpop.f32.mrb[0].mxu0
        %v9806 = vpop.f32.mrb[0].mxu0
        %v9807 = vadd.f32 0.0, %v9806
        %v9808 = vpop.f32.mrb[0].mxu0
        %9809 = vmatprep.mubr.bf16.mxu0 0
        %9810 = vmatmul.mubr.bf16.gmra.mrb[0].mxu0 %v6205
        %v9811 = vpop.f32.mrb[0].mxu0
        %v9812 = vadd.f32 0.0, %v9811
        %v9813 = vpop.f32.mrb[0].mxu0
        %v9814 = vpop.f32.mrb[0].mxu0
        %v9815 = vadd.f32 0.0, %v9814
        %v9816 = vpop.f32.mrb[0].mxu0
        %9817 = vmatprep.mubr.bf16.mxu0 0
        %9818 = vmatmul.mubr.bf16.gmra.mrb[0].mxu0 %v6208
        %v9819 = vpop.f32.mrb[0].mxu0
        %v9820 = vadd.f32 0.0, %v9819
        %v9821 = vpop.f32.mrb[0].mxu0
        %v9822 = vpop.f32.mrb[0].mxu0
        %v9823 = vadd.f32 0.0, %v9822
        %v9824 = vpop.f32.mrb[0].mxu0
        %9825 = vmatprep.mubr.bf16.mxu0 0
        %9826 = vmatmul.mubr.bf16.gmra.mrb[0].mxu0 %v6211
        %v9827 = vpop.f32.mrb[0].mxu0
        %v9828 = vadd.f32 0.0, %v9827
        %v9829 = vpop.f32.mrb[0].mxu0
        %v9830 = vpop.f32.mrb[0].mxu0
        %v9831 = vadd.f32 0.0, %v9830
        %v9832 = vpop.f32.mrb[0].mxu0
        %9833 = vmatprep.mubr.bf16.mxu0 0
        %9834 = vmatmul.mubr.bf16.gmra.mrb[0].mxu0 %v6214
        %v9835 = vpop.f32.mrb[0].mxu0
        %v9836 = vadd.f32 0.0, %v9835
        %v9837 = vpop.f32.mrb[0].mxu0
        %v9838 = vpop.f32.mrb[0].mxu0
        %v9839 = vadd.f32 0.0, %v9838
        %v9840 = vpop.f32.mrb[0].mxu0
        %9841 = vmatprep.mubr.bf16.mxu0 0
        %9842 = vmatmul.mubr.bf16.gmra.mrb[0].mxu0 %v6217
        %v9843 = vpop.f32.mrb[0].mxu0
        %v9844 = vadd.f32 0.0, %v9843
        %v9845 = vpop.f32.mrb[0].mxu0
        %v9846 = vpop.f32.mrb[0].mxu0
        %v9847 = vadd.f32 0.0, %v9846
        %v9848 = vpop.f32.mrb[0].mxu0
        %9849 = vmatprep.mubr.bf16.mxu0 0
        %9850 = vmatmul.mubr.bf16.gmra.mrb[0].mxu0 %v6220
        %v9851 = vpop.f32.mrb[0].mxu0
        %v9852 = vadd.f32 0.0, %v9851
        %v9853 = vpop.f32.mrb[0].mxu0
        %v9854 = vpop.f32.mrb[0].mxu0
        %v9855 = vadd.f32 0.0, %v9854
        %v9856 = vpop.f32.mrb[0].mxu0
        %9857 = vmatprep.mubr.bf16.mxu0 0
        %9858 = vmatmul.mubr.bf16.gmra.mrb[0].mxu0 %v6223
        %v9859 = vpop.f32.mrb[0].mxu0
        %v9860 = vadd.f32 0.0, %v9859
        %v9861 = vpop.f32.mrb[0].mxu0
        %v9862 = vpop.f32.mrb[0].mxu0
        %v9863 = vadd.f32 0.0, %v9862
        %v9864 = vpop.f32.mrb[0].mxu0
        %9865 = vmatprep.mubr.bf16.mxu0 0
        %9866 = vmatmul.mubr.bf16.gmra.mrb[0].mxu0 %v6226
        %v9867 = vpop.f32.mrb[0].mxu0
        %v9868 = vadd.f32 0.0, %v9867
        %v9869 = vpop.f32.mrb[0].mxu0
        %v9870 = vpop.f32.mrb[0].mxu0
        %v9871 = vadd.f32 0.0, %v9870
        %v9872 = vpop.f32.mrb[0].mxu0
        %9873 = vmatprep.mubr.bf16.mxu0 0
        %9874 = vmatmul.mubr.bf16.gmra.mrb[0].mxu0 %v6229
        %v9875 = vpop.f32.mrb[0].mxu0
        %v9876 = vadd.f32 0.0, %v9875
        %v9877 = vpop.f32.mrb[0].mxu0
        %v9878 = vpop.f32.mrb[0].mxu0
        %v9879 = vadd.f32 0.0, %v9878
        %v9880 = vpop.f32.mrb[0].mxu0
        %9881 = vmatprep.mubr.bf16.mxu0 0
        %9882 = vmatmul.mubr.bf16.gmra.mrb[0].mxu0 %v6232
        %v9883 = vpop.f32.mrb[0].mxu0
        %v9884 = vadd.f32 0.0, %v9883
        %v9885 = vpop.f32.mrb[0].mxu0
        %v9886 = vpop.f32.mrb[0].mxu0
        %v9887 = vadd.f32 0.0, %v9886
        %v9888 = vpop.f32.mrb[0].mxu0
        %9889 = vmatprep.mubr.bf16.mxu0 0
        %9890 = vmatmul.mubr.bf16.gmra.mrb[0].mxu0 %v6235
        %v9891 = vpop.f32.mrb[0].mxu0
        %v9892 = vadd.f32 0.0, %v9891
        %v9893 = vpop.f32.mrb[0].mxu0
        %v9894 = vpop.f32.mrb[0].mxu0
        %v9895 = vadd.f32 0.0, %v9894
        %v9896 = vpop.f32.mrb[0].mxu0
        %9897 = vmatprep.mubr.bf16.mxu0 0
        %9898 = vmatmul.mubr.bf16.gmra.mrb[0].mxu0 %v6238
        %v9899 = vpop.f32.mrb[0].mxu0
        %v9900 = vadd.f32 0.0, %v9899
        %v9901 = vpop.f32.mrb[0].mxu0
        %v9902 = vpop.f32.mrb[0].mxu0
        %v9903 = vadd.f32 0.0, %v9902
        %v9904 = vpop.f32.mrb[0].mxu0
        %9905 = vmatprep.mubr.bf16.mxu0 0
        %9906 = vmatmul.mubr.bf16.gmra.mrb[0].mxu0 %v6241
        %v9907 = vpop.f32.mrb[0].mxu0
        %v9908 = vadd.f32 0.0, %v9907
        %v9909 = vpop.f32.mrb[0].mxu0
        %v9910 = vpop.f32.mrb[0].mxu0
        %v9911 = vadd.f32 0.0, %v9910
        %v9912 = vpop.f32.mrb[0].mxu0
        %9913 = vmatprep.mubr.bf16.mxu0 0
        %9914 = vmatmul.mubr.bf16.gmra.mrb[0].mxu0 %v6244
        %v9915 = vpop.f32.mrb[0].mxu0
        %v9916 = vadd.f32 0.0, %v9915
        %v9917 = vpop.f32.mrb[0].mxu0
        %v9918 = vpop.f32.mrb[0].mxu0
        %v9919 = vadd.f32 0.0, %v9918
        %v9920 = vpop.f32.mrb[0].mxu0
        %9921 = vmatprep.mubr.bf16.mxu0 0
        %9922 = vmatmul.mubr.bf16.gmra.mrb[0].mxu0 %v6247
        %v9923 = vpop.f32.mrb[0].mxu0
        %v9924 = vadd.f32 0.0, %v9923
        %v9925 = vpop.f32.mrb[0].mxu0
        %v9926 = vpop.f32.mrb[0].mxu0
        %v9927 = vadd.f32 0.0, %v9926
        %v9928 = vpop.f32.mrb[0].mxu0
        %9929 = vmatprep.mubr.bf16.mxu0 0
        %9930 = vmatmul.mubr.bf16.gmra.mrb[0].mxu0 %v6250
        %v9931 = vpop.f32.mrb[0].mxu0
        %v9932 = vadd.f32 0.0, %v9931
        %v9933 = vpop.f32.mrb[0].mxu0
        %v9934 = vpop.f32.mrb[0].mxu0
        %v9935 = vadd.f32 0.0, %v9934
        %v9936 = vpop.f32.mrb[0].mxu0
        %9937 = vmatprep.mubr.bf16.mxu0 0
        %9938 = vmatmul.mubr.bf16.gmra.mrb[0].mxu0 %v6253
        %v9939 = vpop.f32.mrb[0].mxu0
        %v9940 = vadd.f32 0.0, %v9939
        %v9941 = vpop.f32.mrb[0].mxu0
        %v9942 = vpop.f32.mrb[0].mxu0
        %v9943 = vadd.f32 0.0, %v9942
        %v9944 = vpop.f32.mrb[0].mxu0
        %9945 = vmatprep.mubr.bf16.mxu0 0
        %9946 = vmatmul.mubr.bf16.gmra.mrb[0].mxu0 %v6256
        %v9947 = vpop.f32.mrb[0].mxu0
        %v9948 = vadd.f32 0.0, %v9947
        %v9949 = vpop.f32.mrb[0].mxu0
        %v9950 = vpop.f32.mrb[0].mxu0
        %v9951 = vadd.f32 0.0, %v9950
        %v9952 = vpop.f32.mrb[0].mxu0
        %9953 = vmatprep.mubr.bf16.mxu0 0
        %9954 = vmatmul.mubr.bf16.gmra.mrb[0].mxu0 %v9649
        %v9955 = vpop.f32.mrb[0].mxu0
        %v9956 = vadd.f32 0.0, %v9955
        %v9957 = vpop.f32.mrb[0].mxu0
        %v9958 = vpop.f32.mrb[0].mxu0
        %v9959 = vadd.f32 0.0, %v9958
        %v9960 = vpop.f32.mrb[0].mxu0
        %9961 = vmatprep.mubr.bf16.mxu0 0
        %9962 = vmatmul.mubr.bf16.gmra.mrb[0].mxu0 %v9652
        %v9963 = vpop.f32.mrb[0].mxu0
        %v9964 = vadd.f32 0.0, %v9963
        %v9965 = vpop.f32.mrb[0].mxu0
        %v9966 = vpop.f32.mrb[0].mxu0
        %v9967 = vadd.f32 0.0, %v9966
        %v9968 = vpop.f32.mrb[0].mxu0
        %9969 = vmatprep.mubr.bf16.mxu0 0
        %9970 = vmatmul.mubr.bf16.gmra.mrb[0].mxu0 %v9655
        %v9971 = vpop.f32.mrb[0].mxu0
        %v9972 = vadd.f32 0.0, %v9971
        %v9973 = vpop.f32.mrb[0].mxu0
        %v9974 = vpop.f32.mrb[0].mxu0
        %v9975 = vadd.f32 0.0, %v9974
        %v9976 = vpop.f32.mrb[0].mxu0
        %9977 = vdwg.mxu0
        %v9978 = vadd.f32 %v9561, %v9692
        %v9979 = vadd.f32 %v9562, %v9695
        %v9980 = vadd.f32 %v9563, %v9700
        %v9981 = vadd.f32 %v9564, %v9703
        %v9982 = vadd.f32 %v9565, %v9708
        %v9983 = vadd.f32 %v9566, %v9711
        %v9984 = vadd.f32 %v9567, %v9716
        %v9985 = vadd.f32 %v9568, %v9719
        %v9986 = vadd.f32 %v9569, %v9724
        %v9987 = vadd.f32 %v9570, %v9727
        %v9988 = vadd.f32 %v9571, %v9732
        %v9989 = vadd.f32 %v9572, %v9735
        %v9990 = vadd.f32 %v9573, %v9740
        %v9991 = vadd.f32 %v9574, %v9743
        %v9992 = vadd.f32 %v9575, %v9748
        %v9993 = vadd.f32 %v9576, %v9751
        %v9994 = vadd.f32 %v9577, %v9756
        %v9995 = vadd.f32 %v9578, %v9759
        %v9996 = vadd.f32 %v9579, %v9764
        %v9997 = vadd.f32 %v9580, %v9767
        %v9998 = vadd.f32 %v9581, %v9772
        %v9999 = vadd.f32 %v9582, %v9775
        %v10000 = vadd.f32 %v9583, %v9780
        %v10001 = vadd.f32 %v9584, %v9783
        %v10002 = vadd.f32 %v9585, %v9788
        %v10003 = vadd.f32 %v9586, %v9791
        %v10004 = vadd.f32 %v9587, %v9796
        %v10005 = vadd.f32 %v9588, %v9799
        %v10006 = vadd.f32 %v9589, %v9804
        %v10007 = vadd.f32 %v9590, %v9807
        %v10008 = vadd.f32 %v9591, %v9812
        %v10009 = vadd.f32 %v9592, %v9815
        %v10010 = vadd.f32 %v9593, %v9820
        %v10011 = vadd.f32 %v9594, %v9823
        %v10012 = vadd.f32 %v9595, %v9828
        %v10013 = vadd.f32 %v9596, %v9831
        %v10014 = vadd.f32 %v9597, %v9836
        %v10015 = vadd.f32 %v9598, %v9839
        %v10016 = vadd.f32 %v9599, %v9844
        %v10017 = vadd.f32 %v9600, %v9847
        %v10018 = vadd.f32 %v9601, %v9852
        %v10019 = vadd.f32 %v9602, %v9855
        %v10020 = vadd.f32 %v9603, %v9860
        %v10021 = vadd.f32 %v9604, %v9863
        %v10022 = vadd.f32 %v9605, %v9868
        %v10023 = vadd.f32 %v9606, %v9871
        %v10024 = vadd.f32 %v9607, %v9876
        %v10025 = vadd.f32 %v9608, %v9879
        %v10026 = vadd.f32 %v9609, %v9884
        %v10027 = vadd.f32 %v9610, %v9887
        %v10028 = vadd.f32 %v9611, %v9892
        %v10029 = vadd.f32 %v9612, %v9895
        %v10030 = vadd.f32 %v9613, %v9900
        %v10031 = vadd.f32 %v9614, %v9903
        %v10032 = vadd.f32 %v9615, %v9908
        %v10033 = vadd.f32 %v9616, %v9911
        %v10034 = vadd.f32 %v9617, %v9916
        %v10035 = vadd.f32 %v9618, %v9919
        %v10036 = vadd.f32 %v9619, %v9924
        %v10037 = vadd.f32 %v9620, %v9927
        %v10038 = vadd.f32 %v9621, %v9932
        %v10039 = vadd.f32 %v9622, %v9935
        %v10040 = vadd.f32 %v9623, %v9940
        %v10041 = vadd.f32 %v9624, %v9943
        %v10042 = vadd.f32 %v9625, %v9948
        %v10043 = vadd.f32 %v9626, %v9951
        %v10044 = vadd.f32 %v9627, %v9956
        %v10045 = vadd.f32 %v9628, %v9959
        %v10046 = vadd.f32 %v9629, %v9964
        %v10047 = vadd.f32 %v9630, %v9967
        %v10048 = vadd.f32 %v9631, %v9972
        %v10049 = vadd.f32 %v9632, %v9975
        %v10050 = vpack.c.bf16 %v5941, %v5939
        %v10051 = vpack.c.bf16 %v5946, %v5943
        %v10052 = vpack.c.bf16 %v5950, %v5948
        %v10057 = vunpack.c.l.b16 %v6061
        %v10058 = vunpack.c.l.b16 %v6062
        %v10059 = vunpack.c.l.b16 %v6063
        %v10060 = vunpack.c.l.b16 %v6064
        %v10061 = vpack.c.b16 %v10058, %v10057
        %v10062 = vpack.c.b16 %v10060, %v10059
        %v10066 = vsel %vm6149, %v10050, 0
        %v10069 = vsel %vm6149, %v10051, 0
        %v10072 = vsel %vm6149, %v10052, 0
        %10074 = vmatprep.subr.bf16.mxu0 0
        %10075 = vmatpush1.bf16.msra.mxu0 %v10061
        %10076 = vmatprep.subr.bf16.mxu0 0
        %10077 = vmatpush1.bf16.msra.mxu0 %v10062
        %10078 = vmatprep.subr.bf16.mxu0 0
        %10079 = vmatpush1.bf16.msra.mxu0 0
        %10080 = vmatprep.subr.bf16.mxu0 0
        %10081 = vmatpush1.bf16.msra.mxu0 0
        %10082 = vmatprep.subr.bf16.mxu0 0
        %10083 = vmatpush1.bf16.msra.mxu0 0
        %10084 = vmatprep.subr.bf16.mxu0 0
        %10085 = vmatpush1.bf16.msra.mxu0 0
        %10086 = vmatprep.subr.bf16.mxu0 0
        %10087 = vmatpush1.bf16.msra.mxu0 0
        %10088 = vmatprep.subr.bf16.mxu0 0
        %10089 = vmatpush1.bf16.msra.mxu0 0
        %10090 = vmatprep.subr.bf16.mxu0 0
        %10091 = vmatpush1.bf16.msra.mxu0 0
        %10092 = vmatprep.subr.bf16.mxu0 0
        %10093 = vmatpush1.bf16.msra.mxu0 0
        %10094 = vmatprep.subr.bf16.mxu0 0
        %10095 = vmatpush1.bf16.msra.mxu0 0
        %10096 = vmatprep.subr.bf16.mxu0 0
        %10097 = vmatpush1.bf16.msra.mxu0 0
        %10098 = vmatprep.subr.bf16.mxu0 0
        %10099 = vmatpush1.bf16.msra.mxu0 0
        %10100 = vmatprep.subr.bf16.mxu0 0
        %10101 = vmatpush1.bf16.msra.mxu0 0
        %10102 = vmatprep.subr.bf16.mxu0 0
        %10103 = vmatpush1.bf16.msra.mxu0 0
        %10104 = vmatprep.subr.bf16.mxu0 0
        %10105 = vmatpush1.bf16.msra.mxu0 0
        %10106 = vmatprep.mubr.bf16.mxu0 0
        %10107 = vmatmul.mubr.bf16.gmra.mrb[0].mxu0 %v7078
        %v10108 = vpop.f32.mrb[0].mxu0
        %v10109 = vadd.f32 0.0, %v10108
        %v10110 = vpop.f32.mrb[0].mxu0
        %v10111 = vpop.f32.mrb[0].mxu0
        %v10112 = vadd.f32 0.0, %v10111
        %v10113 = vpop.f32.mrb[0].mxu0
        %10114 = vmatprep.mubr.bf16.mxu0 0
        %10115 = vmatmul.mubr.bf16.gmra.mrb[0].mxu0 %v7081
        %v10116 = vpop.f32.mrb[0].mxu0
        %v10117 = vadd.f32 0.0, %v10116
        %v10118 = vpop.f32.mrb[0].mxu0
        %v10119 = vpop.f32.mrb[0].mxu0
        %v10120 = vadd.f32 0.0, %v10119
        %v10121 = vpop.f32.mrb[0].mxu0
        %10122 = vmatprep.mubr.bf16.mxu0 0
        %10123 = vmatmul.mubr.bf16.gmra.mrb[0].mxu0 %v7084
        %v10124 = vpop.f32.mrb[0].mxu0
        %v10125 = vadd.f32 0.0, %v10124
        %v10126 = vpop.f32.mrb[0].mxu0
        %v10127 = vpop.f32.mrb[0].mxu0
        %v10128 = vadd.f32 0.0, %v10127
        %v10129 = vpop.f32.mrb[0].mxu0
        %10130 = vmatprep.mubr.bf16.mxu0 0
        %10131 = vmatmul.mubr.bf16.gmra.mrb[0].mxu0 %v7087
        %v10132 = vpop.f32.mrb[0].mxu0
        %v10133 = vadd.f32 0.0, %v10132
        %v10134 = vpop.f32.mrb[0].mxu0
        %v10135 = vpop.f32.mrb[0].mxu0
        %v10136 = vadd.f32 0.0, %v10135
        %v10137 = vpop.f32.mrb[0].mxu0
        %10138 = vmatprep.mubr.bf16.mxu0 0
        %10139 = vmatmul.mubr.bf16.gmra.mrb[0].mxu0 %v7090
        %v10140 = vpop.f32.mrb[0].mxu0
        %v10141 = vadd.f32 0.0, %v10140
        %v10142 = vpop.f32.mrb[0].mxu0
        %v10143 = vpop.f32.mrb[0].mxu0
        %v10144 = vadd.f32 0.0, %v10143
        %v10145 = vpop.f32.mrb[0].mxu0
        %10146 = vmatprep.mubr.bf16.mxu0 0
        %10147 = vmatmul.mubr.bf16.gmra.mrb[0].mxu0 %v7093
        %v10148 = vpop.f32.mrb[0].mxu0
        %v10149 = vadd.f32 0.0, %v10148
        %v10150 = vpop.f32.mrb[0].mxu0
        %v10151 = vpop.f32.mrb[0].mxu0
        %v10152 = vadd.f32 0.0, %v10151
        %v10153 = vpop.f32.mrb[0].mxu0
        %10154 = vmatprep.mubr.bf16.mxu0 0
        %10155 = vmatmul.mubr.bf16.gmra.mrb[0].mxu0 %v7096
        %v10156 = vpop.f32.mrb[0].mxu0
        %v10157 = vadd.f32 0.0, %v10156
        %v10158 = vpop.f32.mrb[0].mxu0
        %v10159 = vpop.f32.mrb[0].mxu0
        %v10160 = vadd.f32 0.0, %v10159
        %v10161 = vpop.f32.mrb[0].mxu0
        %10162 = vmatprep.mubr.bf16.mxu0 0
        %10163 = vmatmul.mubr.bf16.gmra.mrb[0].mxu0 %v7099
        %v10164 = vpop.f32.mrb[0].mxu0
        %v10165 = vadd.f32 0.0, %v10164
        %v10166 = vpop.f32.mrb[0].mxu0
        %v10167 = vpop.f32.mrb[0].mxu0
        %v10168 = vadd.f32 0.0, %v10167
        %v10169 = vpop.f32.mrb[0].mxu0
        %10170 = vmatprep.mubr.bf16.mxu0 0
        %10171 = vmatmul.mubr.bf16.gmra.mrb[0].mxu0 %v7102
        %v10172 = vpop.f32.mrb[0].mxu0
        %v10173 = vadd.f32 0.0, %v10172
        %v10174 = vpop.f32.mrb[0].mxu0
        %v10175 = vpop.f32.mrb[0].mxu0
        %v10176 = vadd.f32 0.0, %v10175
        %v10177 = vpop.f32.mrb[0].mxu0
        %10178 = vmatprep.mubr.bf16.mxu0 0
        %10179 = vmatmul.mubr.bf16.gmra.mrb[0].mxu0 %v7105
        %v10180 = vpop.f32.mrb[0].mxu0
        %v10181 = vadd.f32 0.0, %v10180
        %v10182 = vpop.f32.mrb[0].mxu0
        %v10183 = vpop.f32.mrb[0].mxu0
        %v10184 = vadd.f32 0.0, %v10183
        %v10185 = vpop.f32.mrb[0].mxu0
        %10186 = vmatprep.mubr.bf16.mxu0 0
        %10187 = vmatmul.mubr.bf16.gmra.mrb[0].mxu0 %v7108
        %v10188 = vpop.f32.mrb[0].mxu0
        %v10189 = vadd.f32 0.0, %v10188
        %v10190 = vpop.f32.mrb[0].mxu0
        %v10191 = vpop.f32.mrb[0].mxu0
        %v10192 = vadd.f32 0.0, %v10191
        %v10193 = vpop.f32.mrb[0].mxu0
        %10194 = vmatprep.mubr.bf16.mxu0 0
        %10195 = vmatmul.mubr.bf16.gmra.mrb[0].mxu0 %v7111
        %v10196 = vpop.f32.mrb[0].mxu0
        %v10197 = vadd.f32 0.0, %v10196
        %v10198 = vpop.f32.mrb[0].mxu0
        %v10199 = vpop.f32.mrb[0].mxu0
        %v10200 = vadd.f32 0.0, %v10199
        %v10201 = vpop.f32.mrb[0].mxu0
        %10202 = vmatprep.mubr.bf16.mxu0 0
        %10203 = vmatmul.mubr.bf16.gmra.mrb[0].mxu0 %v7114
        %v10204 = vpop.f32.mrb[0].mxu0
        %v10205 = vadd.f32 0.0, %v10204
        %v10206 = vpop.f32.mrb[0].mxu0
        %v10207 = vpop.f32.mrb[0].mxu0
        %v10208 = vadd.f32 0.0, %v10207
        %v10209 = vpop.f32.mrb[0].mxu0
        %10210 = vmatprep.mubr.bf16.mxu0 0
        %10211 = vmatmul.mubr.bf16.gmra.mrb[0].mxu0 %v7117
        %v10212 = vpop.f32.mrb[0].mxu0
        %v10213 = vadd.f32 0.0, %v10212
        %v10214 = vpop.f32.mrb[0].mxu0
        %v10215 = vpop.f32.mrb[0].mxu0
        %v10216 = vadd.f32 0.0, %v10215
        %v10217 = vpop.f32.mrb[0].mxu0
        %10218 = vmatprep.mubr.bf16.mxu0 0
        %10219 = vmatmul.mubr.bf16.gmra.mrb[0].mxu0 %v7120
        %v10220 = vpop.f32.mrb[0].mxu0
        %v10221 = vadd.f32 0.0, %v10220
        %v10222 = vpop.f32.mrb[0].mxu0
        %v10223 = vpop.f32.mrb[0].mxu0
        %v10224 = vadd.f32 0.0, %v10223
        %v10225 = vpop.f32.mrb[0].mxu0
        %10226 = vmatprep.mubr.bf16.mxu0 0
        %10227 = vmatmul.mubr.bf16.gmra.mrb[0].mxu0 %v7123
        %v10228 = vpop.f32.mrb[0].mxu0
        %v10229 = vadd.f32 0.0, %v10228
        %v10230 = vpop.f32.mrb[0].mxu0
        %v10231 = vpop.f32.mrb[0].mxu0
        %v10232 = vadd.f32 0.0, %v10231
        %v10233 = vpop.f32.mrb[0].mxu0
        %10234 = vmatprep.mubr.bf16.mxu0 0
        %10235 = vmatmul.mubr.bf16.gmra.mrb[0].mxu0 %v7126
        %v10236 = vpop.f32.mrb[0].mxu0
        %v10237 = vadd.f32 0.0, %v10236
        %v10238 = vpop.f32.mrb[0].mxu0
        %v10239 = vpop.f32.mrb[0].mxu0
        %v10240 = vadd.f32 0.0, %v10239
        %v10241 = vpop.f32.mrb[0].mxu0
        %10242 = vmatprep.mubr.bf16.mxu0 0
        %10243 = vmatmul.mubr.bf16.gmra.mrb[0].mxu0 %v7129
        %v10244 = vpop.f32.mrb[0].mxu0
        %v10245 = vadd.f32 0.0, %v10244
        %v10246 = vpop.f32.mrb[0].mxu0
        %v10247 = vpop.f32.mrb[0].mxu0
        %v10248 = vadd.f32 0.0, %v10247
        %v10249 = vpop.f32.mrb[0].mxu0
        %10250 = vmatprep.mubr.bf16.mxu0 0
        %10251 = vmatmul.mubr.bf16.gmra.mrb[0].mxu0 %v7132
        %v10252 = vpop.f32.mrb[0].mxu0
        %v10253 = vadd.f32 0.0, %v10252
        %v10254 = vpop.f32.mrb[0].mxu0
        %v10255 = vpop.f32.mrb[0].mxu0
        %v10256 = vadd.f32 0.0, %v10255
        %v10257 = vpop.f32.mrb[0].mxu0
        %10258 = vmatprep.mubr.bf16.mxu0 0
        %10259 = vmatmul.mubr.bf16.gmra.mrb[0].mxu0 %v7135
        %v10260 = vpop.f32.mrb[0].mxu0
        %v10261 = vadd.f32 0.0, %v10260
        %v10262 = vpop.f32.mrb[0].mxu0
        %v10263 = vpop.f32.mrb[0].mxu0
        %v10264 = vadd.f32 0.0, %v10263
        %v10265 = vpop.f32.mrb[0].mxu0
        %10266 = vmatprep.mubr.bf16.mxu0 0
        %10267 = vmatmul.mubr.bf16.gmra.mrb[0].mxu0 %v7138
        %v10268 = vpop.f32.mrb[0].mxu0
        %v10269 = vadd.f32 0.0, %v10268
        %v10270 = vpop.f32.mrb[0].mxu0
        %v10271 = vpop.f32.mrb[0].mxu0
        %v10272 = vadd.f32 0.0, %v10271
        %v10273 = vpop.f32.mrb[0].mxu0
        %10274 = vmatprep.mubr.bf16.mxu0 0
        %10275 = vmatmul.mubr.bf16.gmra.mrb[0].mxu0 %v7141
        %v10276 = vpop.f32.mrb[0].mxu0
        %v10277 = vadd.f32 0.0, %v10276
        %v10278 = vpop.f32.mrb[0].mxu0
        %v10279 = vpop.f32.mrb[0].mxu0
        %v10280 = vadd.f32 0.0, %v10279
        %v10281 = vpop.f32.mrb[0].mxu0
        %10282 = vmatprep.mubr.bf16.mxu0 0
        %10283 = vmatmul.mubr.bf16.gmra.mrb[0].mxu0 %v7144
        %v10284 = vpop.f32.mrb[0].mxu0
        %v10285 = vadd.f32 0.0, %v10284
        %v10286 = vpop.f32.mrb[0].mxu0
        %v10287 = vpop.f32.mrb[0].mxu0
        %v10288 = vadd.f32 0.0, %v10287
        %v10289 = vpop.f32.mrb[0].mxu0
        %10290 = vmatprep.mubr.bf16.mxu0 0
        %10291 = vmatmul.mubr.bf16.gmra.mrb[0].mxu0 %v7147
        %v10292 = vpop.f32.mrb[0].mxu0
        %v10293 = vadd.f32 0.0, %v10292
        %v10294 = vpop.f32.mrb[0].mxu0
        %v10295 = vpop.f32.mrb[0].mxu0
        %v10296 = vadd.f32 0.0, %v10295
        %v10297 = vpop.f32.mrb[0].mxu0
        %10298 = vmatprep.mubr.bf16.mxu0 0
        %10299 = vmatmul.mubr.bf16.gmra.mrb[0].mxu0 %v7150
        %v10300 = vpop.f32.mrb[0].mxu0
        %v10301 = vadd.f32 0.0, %v10300
        %v10302 = vpop.f32.mrb[0].mxu0
        %v10303 = vpop.f32.mrb[0].mxu0
        %v10304 = vadd.f32 0.0, %v10303
        %v10305 = vpop.f32.mrb[0].mxu0
        %10306 = vmatprep.mubr.bf16.mxu0 0
        %10307 = vmatmul.mubr.bf16.gmra.mrb[0].mxu0 %v7153
        %v10308 = vpop.f32.mrb[0].mxu0
        %v10309 = vadd.f32 0.0, %v10308
        %v10310 = vpop.f32.mrb[0].mxu0
        %v10311 = vpop.f32.mrb[0].mxu0
        %v10312 = vadd.f32 0.0, %v10311
        %v10313 = vpop.f32.mrb[0].mxu0
        %10314 = vmatprep.mubr.bf16.mxu0 0
        %10315 = vmatmul.mubr.bf16.gmra.mrb[0].mxu0 %v7156
        %v10316 = vpop.f32.mrb[0].mxu0
        %v10317 = vadd.f32 0.0, %v10316
        %v10318 = vpop.f32.mrb[0].mxu0
        %v10319 = vpop.f32.mrb[0].mxu0
        %v10320 = vadd.f32 0.0, %v10319
        %v10321 = vpop.f32.mrb[0].mxu0
        %10322 = vmatprep.mubr.bf16.mxu0 0
        %10323 = vmatmul.mubr.bf16.gmra.mrb[0].mxu0 %v7159
        %v10324 = vpop.f32.mrb[0].mxu0
        %v10325 = vadd.f32 0.0, %v10324
        %v10326 = vpop.f32.mrb[0].mxu0
        %v10327 = vpop.f32.mrb[0].mxu0
        %v10328 = vadd.f32 0.0, %v10327
        %v10329 = vpop.f32.mrb[0].mxu0
        %10330 = vmatprep.mubr.bf16.mxu0 0
        %10331 = vmatmul.mubr.bf16.gmra.mrb[0].mxu0 %v7162
        %v10332 = vpop.f32.mrb[0].mxu0
        %v10333 = vadd.f32 0.0, %v10332
        %v10334 = vpop.f32.mrb[0].mxu0
        %v10335 = vpop.f32.mrb[0].mxu0
        %v10336 = vadd.f32 0.0, %v10335
        %v10337 = vpop.f32.mrb[0].mxu0
        %10338 = vmatprep.mubr.bf16.mxu0 0
        %10339 = vmatmul.mubr.bf16.gmra.mrb[0].mxu0 %v7165
        %v10340 = vpop.f32.mrb[0].mxu0
        %v10341 = vadd.f32 0.0, %v10340
        %v10342 = vpop.f32.mrb[0].mxu0
        %v10343 = vpop.f32.mrb[0].mxu0
        %v10344 = vadd.f32 0.0, %v10343
        %v10345 = vpop.f32.mrb[0].mxu0
        %10346 = vmatprep.mubr.bf16.mxu0 0
        %10347 = vmatmul.mubr.bf16.gmra.mrb[0].mxu0 %v7168
        %v10348 = vpop.f32.mrb[0].mxu0
        %v10349 = vadd.f32 0.0, %v10348
        %v10350 = vpop.f32.mrb[0].mxu0
        %v10351 = vpop.f32.mrb[0].mxu0
        %v10352 = vadd.f32 0.0, %v10351
        %v10353 = vpop.f32.mrb[0].mxu0
        %10354 = vmatprep.mubr.bf16.mxu0 0
        %10355 = vmatmul.mubr.bf16.gmra.mrb[0].mxu0 %v7171
        %v10356 = vpop.f32.mrb[0].mxu0
        %v10357 = vadd.f32 0.0, %v10356
        %v10358 = vpop.f32.mrb[0].mxu0
        %v10359 = vpop.f32.mrb[0].mxu0
        %v10360 = vadd.f32 0.0, %v10359
        %v10361 = vpop.f32.mrb[0].mxu0
        %10362 = vmatprep.mubr.bf16.mxu0 0
        %10363 = vmatmul.mubr.bf16.gmra.mrb[0].mxu0 %v7174
        %v10364 = vpop.f32.mrb[0].mxu0
        %v10365 = vadd.f32 0.0, %v10364
        %v10366 = vpop.f32.mrb[0].mxu0
        %v10367 = vpop.f32.mrb[0].mxu0
        %v10368 = vadd.f32 0.0, %v10367
        %v10369 = vpop.f32.mrb[0].mxu0
        %10370 = vmatprep.mubr.bf16.mxu0 0
        %10371 = vmatmul.mubr.bf16.gmra.mrb[0].mxu0 %v10066
        %v10372 = vpop.f32.mrb[0].mxu0
        %v10373 = vadd.f32 0.0, %v10372
        %v10374 = vpop.f32.mrb[0].mxu0
        %v10375 = vpop.f32.mrb[0].mxu0
        %v10376 = vadd.f32 0.0, %v10375
        %v10377 = vpop.f32.mrb[0].mxu0
        %10378 = vmatprep.mubr.bf16.mxu0 0
        %10379 = vmatmul.mubr.bf16.gmra.mrb[0].mxu0 %v10069
        %v10380 = vpop.f32.mrb[0].mxu0
        %v10381 = vadd.f32 0.0, %v10380
        %v10382 = vpop.f32.mrb[0].mxu0
        %v10383 = vpop.f32.mrb[0].mxu0
        %v10384 = vadd.f32 0.0, %v10383
        %v10385 = vpop.f32.mrb[0].mxu0
        %10386 = vmatprep.mubr.bf16.mxu0 0
        %10387 = vmatmul.mubr.bf16.gmra.mrb[0].mxu0 %v10072
        %v10388 = vpop.f32.mrb[0].mxu0
        %v10389 = vadd.f32 0.0, %v10388
        %v10390 = vpop.f32.mrb[0].mxu0
        %v10391 = vpop.f32.mrb[0].mxu0
        %v10392 = vadd.f32 0.0, %v10391
        %v10393 = vpop.f32.mrb[0].mxu0
        %10394 = vdwg.mxu0
        %v10395 = vadd.f32 %v9978, %v10109
        %v10396 = vadd.f32 %v9979, %v10112
        %v10397 = vadd.f32 %v9980, %v10117
        %v10398 = vadd.f32 %v9981, %v10120
        %v10399 = vadd.f32 %v9982, %v10125
        %v10400 = vadd.f32 %v9983, %v10128
        %v10401 = vadd.f32 %v9984, %v10133
        %v10402 = vadd.f32 %v9985, %v10136
        %v10403 = vadd.f32 %v9986, %v10141
        %v10404 = vadd.f32 %v9987, %v10144
        %v10405 = vadd.f32 %v9988, %v10149
        %v10406 = vadd.f32 %v9989, %v10152
        %v10407 = vadd.f32 %v9990, %v10157
        %v10408 = vadd.f32 %v9991, %v10160
        %v10409 = vadd.f32 %v9992, %v10165
        %v10410 = vadd.f32 %v9993, %v10168
        %v10411 = vadd.f32 %v9994, %v10173
        %v10412 = vadd.f32 %v9995, %v10176
        %v10413 = vadd.f32 %v9996, %v10181
        %v10414 = vadd.f32 %v9997, %v10184
        %v10415 = vadd.f32 %v9998, %v10189
        %v10416 = vadd.f32 %v9999, %v10192
        %v10417 = vadd.f32 %v10000, %v10197
        %v10418 = vadd.f32 %v10001, %v10200
        %v10419 = vadd.f32 %v10002, %v10205
        %v10420 = vadd.f32 %v10003, %v10208
        %v10421 = vadd.f32 %v10004, %v10213
        %v10422 = vadd.f32 %v10005, %v10216
        %v10423 = vadd.f32 %v10006, %v10221
        %v10424 = vadd.f32 %v10007, %v10224
        %v10425 = vadd.f32 %v10008, %v10229
        %v10426 = vadd.f32 %v10009, %v10232
        %v10427 = vadd.f32 %v10010, %v10237
        %v10428 = vadd.f32 %v10011, %v10240
        %v10429 = vadd.f32 %v10012, %v10245
        %v10430 = vadd.f32 %v10013, %v10248
        %v10431 = vadd.f32 %v10014, %v10253
        %v10432 = vadd.f32 %v10015, %v10256
        %v10433 = vadd.f32 %v10016, %v10261
        %v10434 = vadd.f32 %v10017, %v10264
        %v10435 = vadd.f32 %v10018, %v10269
        %v10436 = vadd.f32 %v10019, %v10272
        %v10437 = vadd.f32 %v10020, %v10277
        %v10438 = vadd.f32 %v10021, %v10280
        %v10439 = vadd.f32 %v10022, %v10285
        %v10440 = vadd.f32 %v10023, %v10288
        %v10441 = vadd.f32 %v10024, %v10293
        %v10442 = vadd.f32 %v10025, %v10296
        %v10443 = vadd.f32 %v10026, %v10301
        %v10444 = vadd.f32 %v10027, %v10304
        %v10445 = vadd.f32 %v10028, %v10309
        %v10446 = vadd.f32 %v10029, %v10312
        %v10447 = vadd.f32 %v10030, %v10317
        %v10448 = vadd.f32 %v10031, %v10320
        %v10449 = vadd.f32 %v10032, %v10325
        %v10450 = vadd.f32 %v10033, %v10328
        %v10451 = vadd.f32 %v10034, %v10333
        %v10452 = vadd.f32 %v10035, %v10336
        %v10453 = vadd.f32 %v10036, %v10341
        %v10454 = vadd.f32 %v10037, %v10344
        %v10455 = vadd.f32 %v10038, %v10349
        %v10456 = vadd.f32 %v10039, %v10352
        %v10457 = vadd.f32 %v10040, %v10357
        %v10458 = vadd.f32 %v10041, %v10360
        %v10459 = vadd.f32 %v10042, %v10365
        %v10460 = vadd.f32 %v10043, %v10368
        %v10461 = vadd.f32 %v10044, %v10373
        %v10462 = vadd.f32 %v10045, %v10376
        %v10463 = vadd.f32 %v10046, %v10381
        %v10464 = vadd.f32 %v10047, %v10384
        %v10465 = vadd.f32 %v10048, %v10389
        %v10466 = vadd.f32 %v10049, %v10392
        %v10467 = vld [vmem:[#allocation6] sm:$0x1]
        %v10469 = vlaneseq
        %v10470 = vshrl.u32 %v10469, 7
        %v10471 = vsub.s32 0, %v10470
        %v10472 = vrot.slane %v10467, %v10471
        %v10474 = vadd.f32 %v10395, %v10472
        %v10475 = vadd.f32 %v10396, %v10472
        %v10476 = vadd.f32 %v10397, %v10472
        %v10477 = vadd.f32 %v10398, %v10472
        %v10478 = vadd.f32 %v10399, %v10472
        %v10479 = vadd.f32 %v10400, %v10472
        %v10480 = vadd.f32 %v10401, %v10472
        %v10481 = vadd.f32 %v10402, %v10472
        %v10482 = vadd.f32 %v10403, %v10472
        %v10483 = vadd.f32 %v10404, %v10472
        %v10484 = vadd.f32 %v10405, %v10472
        %v10485 = vadd.f32 %v10406, %v10472
        %v10486 = vadd.f32 %v10407, %v10472
        %v10487 = vadd.f32 %v10408, %v10472
        %v10488 = vadd.f32 %v10409, %v10472
        %v10489 = vadd.f32 %v10410, %v10472
        %v10490 = vadd.f32 %v10411, %v10472
        %v10491 = vadd.f32 %v10412, %v10472
        %v10492 = vadd.f32 %v10413, %v10472
        %v10493 = vadd.f32 %v10414, %v10472
        %v10494 = vadd.f32 %v10415, %v10472
        %v10495 = vadd.f32 %v10416, %v10472
        %v10496 = vadd.f32 %v10417, %v10472
        %v10497 = vadd.f32 %v10418, %v10472
        %v10498 = vadd.f32 %v10419, %v10472
        %v10499 = vadd.f32 %v10420, %v10472
        %v10500 = vadd.f32 %v10421, %v10472
        %v10501 = vadd.f32 %v10422, %v10472
        %v10502 = vadd.f32 %v10423, %v10472
        %v10503 = vadd.f32 %v10424, %v10472
        %v10504 = vadd.f32 %v10425, %v10472
        %v10505 = vadd.f32 %v10426, %v10472
        %v10506 = vadd.f32 %v10427, %v10472
        %v10507 = vadd.f32 %v10428, %v10472
        %v10508 = vadd.f32 %v10429, %v10472
        %v10509 = vadd.f32 %v10430, %v10472
        %v10510 = vadd.f32 %v10431, %v10472
        %v10511 = vadd.f32 %v10432, %v10472
        %v10512 = vadd.f32 %v10433, %v10472
        %v10513 = vadd.f32 %v10434, %v10472
        %v10514 = vadd.f32 %v10435, %v10472
        %v10515 = vadd.f32 %v10436, %v10472
        %v10516 = vadd.f32 %v10437, %v10472
        %v10517 = vadd.f32 %v10438, %v10472
        %v10518 = vadd.f32 %v10439, %v10472
        %v10519 = vadd.f32 %v10440, %v10472
        %v10520 = vadd.f32 %v10441, %v10472
        %v10521 = vadd.f32 %v10442, %v10472
        %v10522 = vadd.f32 %v10443, %v10472
        %v10523 = vadd.f32 %v10444, %v10472
        %v10524 = vadd.f32 %v10445, %v10472
        %v10525 = vadd.f32 %v10446, %v10472
        %v10526 = vadd.f32 %v10447, %v10472
        %v10527 = vadd.f32 %v10448, %v10472
        %v10528 = vadd.f32 %v10449, %v10472
        %v10529 = vadd.f32 %v10450, %v10472
        %v10530 = vadd.f32 %v10451, %v10472
        %v10531 = vadd.f32 %v10452, %v10472
        %v10532 = vadd.f32 %v10453, %v10472
        %v10533 = vadd.f32 %v10454, %v10472
        %v10534 = vadd.f32 %v10455, %v10472
        %v10535 = vadd.f32 %v10456, %v10472
        %v10536 = vadd.f32 %v10457, %v10472
        %v10537 = vadd.f32 %v10458, %v10472
        %v10538 = vadd.f32 %v10459, %v10472
        %v10539 = vadd.f32 %v10460, %v10472
        %v10540 = vadd.f32 %v10461, %v10472
        %v10541 = vadd.f32 %v10462, %v10472
        %v10542 = vadd.f32 %v10463, %v10472
        %v10543 = vadd.f32 %v10464, %v10472
        %v10544 = vadd.f32 %v10465, %v10472
        %v10545 = vadd.f32 %v10466, %v10472
        %v10546 = vmax.f32 %v10474, 0.0
        %v10547 = vmax.f32 %v10475, 0.0
        %v10548 = vmax.f32 %v10476, 0.0
        %v10549 = vmax.f32 %v10477, 0.0
        %v10550 = vmax.f32 %v10478, 0.0
        %v10551 = vmax.f32 %v10479, 0.0
        %v10552 = vmax.f32 %v10480, 0.0
        %v10553 = vmax.f32 %v10481, 0.0
        %v10554 = vmax.f32 %v10482, 0.0
        %v10555 = vmax.f32 %v10483, 0.0
        %v10556 = vmax.f32 %v10484, 0.0
        %v10557 = vmax.f32 %v10485, 0.0
        %v10558 = vmax.f32 %v10486, 0.0
        %v10559 = vmax.f32 %v10487, 0.0
        %v10560 = vmax.f32 %v10488, 0.0
        %v10561 = vmax.f32 %v10489, 0.0
        %v10562 = vmax.f32 %v10490, 0.0
        %v10563 = vmax.f32 %v10491, 0.0
        %v10564 = vmax.f32 %v10492, 0.0
        %v10565 = vmax.f32 %v10493, 0.0
        %v10566 = vmax.f32 %v10494, 0.0
        %v10567 = vmax.f32 %v10495, 0.0
        %v10568 = vmax.f32 %v10496, 0.0
        %v10569 = vmax.f32 %v10497, 0.0
        %v10570 = vmax.f32 %v10498, 0.0
        %v10571 = vmax.f32 %v10499, 0.0
        %v10572 = vmax.f32 %v10500, 0.0
        %v10573 = vmax.f32 %v10501, 0.0
        %v10574 = vmax.f32 %v10502, 0.0
        %v10575 = vmax.f32 %v10503, 0.0
        %v10576 = vmax.f32 %v10504, 0.0
        %v10577 = vmax.f32 %v10505, 0.0
        %v10578 = vmax.f32 %v10506, 0.0
        %v10579 = vmax.f32 %v10507, 0.0
        %v10580 = vmax.f32 %v10508, 0.0
        %v10581 = vmax.f32 %v10509, 0.0
        %v10582 = vmax.f32 %v10510, 0.0
        %v10583 = vmax.f32 %v10511, 0.0
        %v10584 = vmax.f32 %v10512, 0.0
        %v10585 = vmax.f32 %v10513, 0.0
        %v10586 = vmax.f32 %v10514, 0.0
        %v10587 = vmax.f32 %v10515, 0.0
        %v10588 = vmax.f32 %v10516, 0.0
        %v10589 = vmax.f32 %v10517, 0.0
        %v10590 = vmax.f32 %v10518, 0.0
        %v10591 = vmax.f32 %v10519, 0.0
        %v10592 = vmax.f32 %v10520, 0.0
        %v10593 = vmax.f32 %v10521, 0.0
        %v10594 = vmax.f32 %v10522, 0.0
        %v10595 = vmax.f32 %v10523, 0.0
        %v10596 = vmax.f32 %v10524, 0.0
        %v10597 = vmax.f32 %v10525, 0.0
        %v10598 = vmax.f32 %v10526, 0.0
        %v10599 = vmax.f32 %v10527, 0.0
        %v10600 = vmax.f32 %v10528, 0.0
        %v10601 = vmax.f32 %v10529, 0.0
        %v10602 = vmax.f32 %v10530, 0.0
        %v10603 = vmax.f32 %v10531, 0.0
        %v10604 = vmax.f32 %v10532, 0.0
        %v10605 = vmax.f32 %v10533, 0.0
        %v10606 = vmax.f32 %v10534, 0.0
        %v10607 = vmax.f32 %v10535, 0.0
        %v10608 = vmax.f32 %v10536, 0.0
        %v10609 = vmax.f32 %v10537, 0.0
        %v10610 = vmax.f32 %v10538, 0.0
        %v10611 = vmax.f32 %v10539, 0.0
        %v10612 = vmax.f32 %v10540, 0.0
        %v10613 = vmax.f32 %v10541, 0.0
        %v10614 = vmax.f32 %v10542, 0.0
        %v10615 = vmax.f32 %v10543, 0.0
        %v10616 = vmax.f32 %v10544, 0.0
        %v10617 = vmax.f32 %v10545, 0.0
        %v10618 = vmax.f32 %v10546, %v10549
        %v10619 = vmax.f32 %v10547, %v10550
        %v10620 = vmax.f32 %v10548, %v10551
        %v10621 = vmax.f32 %v10552, %v10555
        %v10622 = vmax.f32 %v10553, %v10556
        %v10623 = vmax.f32 %v10554, %v10557
        %v10624 = vmax.f32 %v10558, %v10561
        %v10625 = vmax.f32 %v10559, %v10562
        %v10626 = vmax.f32 %v10560, %v10563
        %v10627 = vmax.f32 %v10564, %v10567
        %v10628 = vmax.f32 %v10565, %v10568
        %v10629 = vmax.f32 %v10566, %v10569
        %v10630 = vmax.f32 %v10570, %v10573
        %v10631 = vmax.f32 %v10571, %v10574
        %v10632 = vmax.f32 %v10572, %v10575
        %v10633 = vmax.f32 %v10576, %v10579
        %v10634 = vmax.f32 %v10577, %v10580
        %v10635 = vmax.f32 %v10578, %v10581
        %v10636 = vmax.f32 %v10582, %v10585
        %v10637 = vmax.f32 %v10583, %v10586
        %v10638 = vmax.f32 %v10584, %v10587
        %v10639 = vmax.f32 %v10588, %v10591
        %v10640 = vmax.f32 %v10589, %v10592
        %v10641 = vmax.f32 %v10590, %v10593
        %v10642 = vmax.f32 %v10594, %v10597
        %v10643 = vmax.f32 %v10595, %v10598
        %v10644 = vmax.f32 %v10596, %v10599
        %v10645 = vmax.f32 %v10600, %v10603
        %v10646 = vmax.f32 %v10601, %v10604
        %v10647 = vmax.f32 %v10602, %v10605
        %v10648 = vmax.f32 %v10606, %v10609
        %v10649 = vmax.f32 %v10607, %v10610
        %v10650 = vmax.f32 %v10608, %v10611
        %v10651 = vmax.f32 %v10612, %v10615
        %v10652 = vmax.f32 %v10613, %v10616
        %v10653 = vmax.f32 %v10614, %v10617
        %vm10654 = vcmask 523264
        %10655 = vst.msk [vmem:[%s264] sm:$0xff] %vm10654, %v10618
        %10656 = vst.msk [vmem:[%s264 + $0x8] sm:$0xff] %vm10654, %v10619
        %10657 = vst.msk [vmem:[%s264 + $0x10] sm:$0xff] %vm10654, %v10620
        %10658 = vst.msk [vmem:[%s264 + $0x18] sm:$0xff] %vm10654, %v10621
        %10659 = vst.msk [vmem:[%s264 + $0x20] sm:$0xff] %vm10654, %v10622
        %10660 = vst.msk [vmem:[%s264 + $0x28] sm:$0xff] %vm10654, %v10623
        %10661 = vst.msk [vmem:[%s264 + $0x30] sm:$0xff] %vm10654, %v10624
        %10662 = vst.msk [vmem:[%s264 + $0x38] sm:$0xff] %vm10654, %v10625
        %10663 = vst.msk [vmem:[%s264 + $0x40] sm:$0xff] %vm10654, %v10626
        %10664 = vst.msk [vmem:[%s264 + $0x48] sm:$0xff] %vm10654, %v10627
        %10665 = vst.msk [vmem:[%s264 + $0x50] sm:$0xff] %vm10654, %v10628
        %10666 = vst.msk [vmem:[%s264 + $0x58] sm:$0xff] %vm10654, %v10629
        %10667 = vst.msk [vmem:[%s264 + $0x60] sm:$0xff] %vm10654, %v10630
        %10668 = vst.msk [vmem:[%s264 + $0x68] sm:$0xff] %vm10654, %v10631
        %10669 = vst.msk [vmem:[%s264 + $0x70] sm:$0xff] %vm10654, %v10632
        %10670 = vst.msk [vmem:[%s264 + $0x78] sm:$0xff] %vm10654, %v10633
        %10671 = vst.msk [vmem:[%s264 + $0x80] sm:$0xff] %vm10654, %v10634
        %10672 = vst.msk [vmem:[%s264 + $0x88] sm:$0xff] %vm10654, %v10635
        %10673 = vst.msk [vmem:[%s264 + $0x90] sm:$0xff] %vm10654, %v10636
        %10674 = vst.msk [vmem:[%s264 + $0x98] sm:$0xff] %vm10654, %v10637
        %10675 = vst.msk [vmem:[%s264 + $0xa0] sm:$0xff] %vm10654, %v10638
        %10676 = vst.msk [vmem:[%s264 + $0xa8] sm:$0xff] %vm10654, %v10639
        %10677 = vst.msk [vmem:[%s264 + $0xb0] sm:$0xff] %vm10654, %v10640
        %10678 = vst.msk [vmem:[%s264 + $0xb8] sm:$0xff] %vm10654, %v10641
        %10679 = vst.msk [vmem:[%s264 + $0xc0] sm:$0xff] %vm10654, %v10642
        %10680 = vst.msk [vmem:[%s264 + $0xc8] sm:$0xff] %vm10654, %v10643
        %10681 = vst.msk [vmem:[%s264 + $0xd0] sm:$0xff] %vm10654, %v10644
        %10682 = vst.msk [vmem:[%s264 + $0xd8] sm:$0xff] %vm10654, %v10645
        %10683 = vst.msk [vmem:[%s264 + $0xe0] sm:$0xff] %vm10654, %v10646
        %10684 = vst.msk [vmem:[%s264 + $0xe8] sm:$0xff] %vm10654, %v10647
        %10685 = vst.msk [vmem:[%s264 + $0xf0] sm:$0xff] %vm10654, %v10648
        %10686 = vst.msk [vmem:[%s264 + $0xf8] sm:$0xff] %vm10654, %v10649
        %10687 = vst.msk [vmem:[%s264 + $0x100] sm:$0xff] %vm10654, %v10650
        %10688 = vst.msk [vmem:[%s264 + $0x108] sm:$0xff] %vm10654, %v10651
        %10689 = vst.msk [vmem:[%s264 + $0x110] sm:$0xff] %vm10654, %v10652
        %10690 = vst.msk [vmem:[%s264 + $0x118] sm:$0xff] %vm10654, %v10653
        %p10691 = scmp.lt.s32.totalorder %s18, 1
        %s10692 = scalar_select %p10691, %s18, 1
        %s10693 = smul.addr %s10692, 36
        %s10694 = smul.addr %s10693, 8
        %s10695 = scalar_lea.vmem %s5, %s10694
        // Predicated region
        $region53: #{net_forward.2} parent=39 // pred_check
          %p10696 = pneg %p146
        $region54: #{net_forward.2} parent=39 // pred_check_branch
          %10698 = sbr.rel (%p10696) target = $region56
        $region55: #{net_forward.2} parent=39 // pred_region
          _
        $region56: #{net_forward.2} parent=39 // pred_fallthru
          _
      $region40: #{net_forward.2} parent=5 // pred_fallthru
        _
      %p10699 = scmp.le.s32.totalorder 2, %s13
      // Predicated region
      $region57: #{net_forward.2} parent=5 // pred_check
        %p10700 = pneg %p10699
      $region58: #{net_forward.2} parent=5 // pred_check_branch
        %10702 = sbr.rel (%p10700) target = $region60
      $region59: #{net_forward.2} parent=5 // pred_region
        %s10703 = ssub.s32 %s13, 2
        // Predicated region
        $region61: #{net_forward.2} parent=59 // pred_check
          %p10704 = pneg %p152
        $region62: #{net_forward.2} parent=59 // pred_check_branch
          %10706 = sbr.rel (%p10704) target = $region64
        $region63: #{net_forward.2} parent=59 // pred_region
          %p10707 = scmp.lt.s32.totalorder %s19, 1
          %s10708 = scalar_select %p10707, %s19, 1
          %s10709 = smul.addr %s10708, 36
          %s10710 = smul.addr %s10709, 8
          %s10711 = scalar_lea.vmem %s5, %s10710
        $region64: #{net_forward.2} parent=59 // pred_fallthru
          _
      $region60: #{net_forward.2} parent=5 // pred_fallthru
        _
    $region6: #{net_forward.2} parent=1 // loop_footer
      %s17 = sadd.s32 1, %s13
    $region7: #{net_forward.2} parent=1 // loop_footer_branch
      %12 = sbr.rel target = $region3
    $region8: #{net_forward.2} parent=1 // loop_exit
      _
    %10712 = vsyncpa [#allocation3], 1
    %s10713 = scalar_lea.sflag [#allocation3], 1
    %10714 = vsyncpa %s10713, 1
    %10715 = vsyncpa [#allocation5], 1

</llo_original>
